<compile_context>
chip_gen: v6e
topology: v6e:2x2x1
jax: 0.10.0
libtpu: 0.0.40
codegen_flags: <defaults>
</compile_context>

<pallas_src>
import jax
import jax.numpy as jnp
from jax.experimental import pallas as pl
from jax.experimental.pallas import tpu as pltpu

OPENAI_CLIP_MEAN = jnp.array([0.48145466, 0.4578275, 0.40821073], jnp.float32)
OPENAI_CLIP_STD = jnp.array([0.26862954, 0.26130258, 0.27577711], jnp.float32)

IMAGE_SIZE = 224          # fixed by transforms.Resize((224, 224))
PATCH = 32                # ViT-B/32 patch size
HIDDEN = 128              # (real: 768)
LAYERS = 2                # (real: 12)
HEADS = 4                 # (real: 12)
HEAD_DIM = HIDDEN // HEADS
MLP = 512                 # (real: 3072)
PROJ = 64                 # (real: 512)
EPS = 1e-5
GRID_SIDE = IMAGE_SIZE // PATCH
N_PATCH = GRID_SIDE * GRID_SIDE     # 49
SEQ = N_PATCH + 1                   # 50 (CLS + patches)
SEQ_PAD = 64                        # pad tokens -> (8,128)-aligned tiles
PATCH_DIM = 3 * PATCH * PATCH       # 3072 flattened pixels per patch


def _layernorm(x, g, b):
    mu = jnp.mean(x, axis=-1, keepdims=True)
    var = jnp.mean(jnp.square(x - mu), axis=-1, keepdims=True)
    return (x - mu) * jax.lax.rsqrt(var + EPS) * g + b


# ------------------------------------------------------------------ fused CLIP kernel
def _clip_kernel(pix_ref, patch_w_ref, patch_b_ref, cls_ref, pos_ref,
                 pre_g_ref, pre_b_ref,
                 ln1_g_ref, ln1_b_ref, qkv_w_ref, qkv_b_ref, o_w_ref, o_b_ref,
                 ln2_g_ref, ln2_b_ref, fc1_w_ref, fc1_b_ref, fc2_w_ref, fc2_b_ref,
                 post_g_ref, post_b_ref, proj_w_ref,
                 out_ref, h_scr):
    """One grid step = one (batch element, transformer layer).

    Residual stream `h_scr` (SEQ_PAD, HIDDEN) f32 stays resident in VMEM across the
    layer axis; per-layer weights stream in via the BlockSpec pipeline.
    """
    l = pl.program_id(1)

    # ---------- layer-0 prologue: patch embed + CLS + pos + pre-LN (all in VMEM) ----------
    @pl.when(l == 0)
    def _():
        emb = jnp.dot(pix_ref[0].astype(jnp.bfloat16), patch_w_ref[...],
                      preferred_element_type=jnp.float32) + patch_b_ref[...]
        # Row 0 of pix is the (zeroed) CLS slot -> replace with the CLS embedding.
        is_cls = jax.lax.broadcasted_iota(jnp.int32, (SEQ_PAD, 1), 0) == 0
        tok = jnp.where(is_cls, cls_ref[...], emb) + pos_ref[...]
        h_scr[...] = _layernorm(tok, pre_g_ref[...], pre_b_ref[...])

    resid = h_scr[...]

    # ---------------- self-attention block
    hn = _layernorm(resid, ln1_g_ref[0], ln1_b_ref[0])
    qkv = jnp.dot(hn.astype(jnp.bfloat16), qkv_w_ref[0],
                  preferred_element_type=jnp.float32) + qkv_b_ref[0]     # (S, 3*HIDDEN)

    scale = HEAD_DIM ** -0.5
    # mask out padded key tokens (columns >= SEQ)
    key_valid = jax.lax.broadcasted_iota(jnp.int32, (SEQ_PAD, SEQ_PAD), 1) < SEQ

    head_outs = []
    for h in range(HEADS):
        q = (qkv[:, h * HEAD_DIM:(h + 1) * HEAD_DIM] * scale).astype(jnp.bfloat16)
        k = qkv[:, HIDDEN + h * HEAD_DIM:HIDDEN + (h + 1) * HEAD_DIM].astype(jnp.bfloat16)
        v = qkv[:, 2 * HIDDEN + h * HEAD_DIM:2 * HIDDEN + (h + 1) * HEAD_DIM].astype(jnp.bfloat16)
        s = jax.lax.dot_general(q, k, (((1,), (1,)), ((), ())),
                                preferred_element_type=jnp.float32)      # (S, S)
        s = jnp.where(key_valid, s, -1e30)
        s = s - jnp.max(s, axis=-1, keepdims=True)
        p = jnp.exp(s)
        p = p * pl.reciprocal(jnp.sum(p, axis=-1, keepdims=True), approx=True)
        head_outs.append(jnp.dot(p.astype(jnp.bfloat16), v,
                                 preferred_element_type=jnp.float32))    # (S, HEAD_DIM)
    attn = jnp.concatenate(head_outs, axis=-1)                            # (S, HIDDEN)

    attn = jnp.dot(attn.astype(jnp.bfloat16), o_w_ref[0],
                   preferred_element_type=jnp.float32) + o_b_ref[0]
    h1 = resid + attn

    # ---------------- MLP block (quick_gelu: x * sigmoid(1.702 x), f32)
    hn2 = _layernorm(h1, ln2_g_ref[0], ln2_b_ref[0])
    m = jnp.dot(hn2.astype(jnp.bfloat16), fc1_w_ref[0],
                preferred_element_type=jnp.float32) + fc1_b_ref[0]
    m = m * (1.0 / (1.0 + jnp.exp(-1.702 * m)))
    m = jnp.dot(m.astype(jnp.bfloat16), fc2_w_ref[0],
                preferred_element_type=jnp.float32) + fc2_b_ref[0]
    h_new = h1 + m
    h_scr[...] = h_new

    # ---------- last-layer epilogue: post-LN on pooled CLS + visual projection ----------
    @pl.when(l == pl.num_programs(1) - 1)
    def _():
        cls_row = h_new[0:1, :]                                           # (1, HIDDEN)
        xn = _layernorm(cls_row, post_g_ref[...], post_b_ref[...])
        out_ref[0] = jnp.dot(xn.astype(jnp.bfloat16), proj_w_ref[...],
                             preferred_element_type=jnp.float32).astype(out_ref.dtype)


def clip_forward(pix, patch_w, patch_b, cls, pos, p):
    """pix: (B, SEQ_PAD, PATCH_DIM) f32 — row 0 = CLS slot, rows 1..49 = patches."""
    B = pix.shape[0]
    L = p["qkv_w"].shape[0]

    xmap = lambda b, l: (b, 0, 0)       # per-batch activations
    wmap = lambda b, l: (l, 0, 0)       # per-layer stacked weights
    cmap = lambda b, l: (0, 0)          # broadcast constants (fetched once)

    in_specs = [
        pl.BlockSpec((1, SEQ_PAD, PATCH_DIM), xmap),        # pix
        pl.BlockSpec((PATCH_DIM, HIDDEN), cmap),            # patch_w (bf16, normalize folded)
        pl.BlockSpec((1, HIDDEN), cmap),                    # patch_b
        pl.BlockSpec((1, HIDDEN), cmap),                    # cls embedding
        pl.BlockSpec((SEQ_PAD, HIDDEN), cmap),              # pos (padded)
        pl.BlockSpec((1, HIDDEN), cmap),                    # pre_ln_g
        pl.BlockSpec((1, HIDDEN), cmap),                    # pre_ln_b
        pl.BlockSpec((1, 1, HIDDEN), wmap),                 # ln1_g
        pl.BlockSpec((1, 1, HIDDEN), wmap),                 # ln1_b
        pl.BlockSpec((1, HIDDEN, 3 * HIDDEN), wmap),        # qkv_w (bf16)
        pl.BlockSpec((1, 1, 3 * HIDDEN), wmap),             # qkv_b
        pl.BlockSpec((1, HIDDEN, HIDDEN), wmap),            # o_w   (bf16)
        pl.BlockSpec((1, 1, HIDDEN), wmap),                 # o_b
        pl.BlockSpec((1, 1, HIDDEN), wmap),                 # ln2_g
        pl.BlockSpec((1, 1, HIDDEN), wmap),                 # ln2_b
        pl.BlockSpec((1, HIDDEN, MLP), wmap),               # fc1_w (bf16)
        pl.BlockSpec((1, 1, MLP), wmap),                    # fc1_b
        pl.BlockSpec((1, MLP, HIDDEN), wmap),               # fc2_w (bf16)
        pl.BlockSpec((1, 1, HIDDEN), wmap),                 # fc2_b
        pl.BlockSpec((1, HIDDEN), cmap),                    # post_ln_g
        pl.BlockSpec((1, HIDDEN), cmap),                    # post_ln_b
        pl.BlockSpec((HIDDEN, PROJ), cmap),                 # proj_w (bf16, bias-free)
    ]
    return pl.pallas_call(
        _clip_kernel,
        out_shape=jax.ShapeDtypeStruct((B, 1, PROJ), jnp.float32),
        grid=(B, L),
        in_specs=in_specs,
        out_specs=pl.BlockSpec((1, 1, PROJ), xmap),
        scratch_shapes=[pltpu.VMEM((SEQ_PAD, HIDDEN), jnp.float32)],
        compiler_params=pltpu.CompilerParams(
            dimension_semantics=("parallel", "arbitrary")),   # batch axis -> megacore
    )(pix, patch_w, patch_b, cls, pos,
      p["pre_ln_g"], p["pre_ln_b"],
      p["ln1_g"], p["ln1_b"], p["qkv_w"], p["qkv_b"], p["o_w"], p["o_b"],
      p["ln2_g"], p["ln2_b"], p["fc1_w"], p["fc1_b"], p["fc2_w"], p["fc2_b"],
      p["post_ln_g"], p["post_ln_b"], p["proj_w"])


# ------------------------------------------------------------------ parameters
def init_params(key):
    def nrm(k, shape, std=0.02):
        return std * jax.random.normal(k, shape, jnp.float32)

    keys = jax.random.split(key, 8)
    return {
        # Conv2d(3, HIDDEN, k=32, s=32, bias=False), flattened to a patch matmul.
        "patch_w": nrm(keys[0], (PATCH_DIM, HIDDEN)),
        "cls": nrm(keys[1], (1, HIDDEN)),
        "pos": nrm(keys[2], (SEQ, HIDDEN)),
        "pre_ln_g": jnp.ones((1, HIDDEN), jnp.float32),
        "pre_ln_b": jnp.zeros((1, HIDDEN), jnp.float32),
        "post_ln_g": jnp.ones((1, HIDDEN), jnp.float32),
        "post_ln_b": jnp.zeros((1, HIDDEN), jnp.float32),
        "proj_w": nrm(keys[3], (HIDDEN, PROJ)).astype(jnp.bfloat16),   # bias-free
        # stacked per-layer params (LAYERS, ...) — streamed by the fused kernel
        "ln1_g": jnp.ones((LAYERS, 1, HIDDEN), jnp.float32),
        "ln1_b": jnp.zeros((LAYERS, 1, HIDDEN), jnp.float32),
        "qkv_w": nrm(keys[4], (LAYERS, HIDDEN, 3 * HIDDEN)).astype(jnp.bfloat16),
        "qkv_b": jnp.zeros((LAYERS, 1, 3 * HIDDEN), jnp.float32),
        "o_w": nrm(keys[5], (LAYERS, HIDDEN, HIDDEN)).astype(jnp.bfloat16),
        "o_b": jnp.zeros((LAYERS, 1, HIDDEN), jnp.float32),
        "ln2_g": jnp.ones((LAYERS, 1, HIDDEN), jnp.float32),
        "ln2_b": jnp.zeros((LAYERS, 1, HIDDEN), jnp.float32),
        "fc1_w": nrm(keys[6], (LAYERS, HIDDEN, MLP)).astype(jnp.bfloat16),
        "fc1_b": jnp.zeros((LAYERS, 1, MLP), jnp.float32),
        "fc2_w": nrm(keys[7], (LAYERS, MLP, HIDDEN)).astype(jnp.bfloat16),
        "fc2_b": jnp.zeros((LAYERS, 1, HIDDEN), jnp.float32),
    }


# ------------------------------------------------------------------ forward
def clip_image_features(params, images):
    B = images.shape[0]
    x = jnp.clip(images.astype(jnp.float32), 0.0, 1.0)        # torch.clamp(x, 0, 1)

    # transforms.Resize((224, 224)) -- bilinear, plain-JAX glue.
    # TODO(synk): torchvision Resize defaults to antialiased bilinear; jax.image.resize
    # bilinear here is non-antialiased, so upsampled edges may differ slightly.
    x = jax.image.resize(x, (B, 3, IMAGE_SIZE, IMAGE_SIZE), method="bilinear")

    # transforms.Normalize(mean, std) folded into the patch-embed matmul:
    #   (x*scale + shift) @ W == x @ (scale*W) + (shift @ W)
    inv_std = 1.0 / OPENAI_CLIP_STD
    scale_flat = jnp.repeat(inv_std, PATCH * PATCH)                       # (3*P*P,)
    shift_flat = jnp.repeat(-OPENAI_CLIP_MEAN * inv_std, PATCH * PATCH)   # (3*P*P,)
    w_eff = (scale_flat[:, None] * params["patch_w"]).astype(jnp.bfloat16)
    b_eff = (shift_flat @ params["patch_w"]).reshape(1, HIDDEN)

    # Patch extraction (Conv2d k=32, s=32, bias-free == per-patch matmul), NCHW order.
    g = GRID_SIDE
    pix = (x.reshape(B, 3, g, PATCH, g, PATCH)
             .transpose(0, 2, 4, 1, 3, 5)
             .reshape(B, N_PATCH, PATCH_DIM))
    # Row 0 = CLS slot (zeros, replaced in-kernel), rows 1..49 = patches, rest = pad.
    pix = jnp.pad(pix, ((0, 0), (1, SEQ_PAD - SEQ), (0, 0)))              # (B, SEQ_PAD, 3*P*P)
    pos_pad = jnp.pad(params["pos"], ((0, SEQ_PAD - SEQ), (0, 0)))        # (SEQ_PAD, HIDDEN)

    # Entire CLIP vision tower (patch embed -> pre-LN -> transformer -> post-LN ->
    # visual projection) in ONE fused pallas_call.
    feats = clip_forward(pix, w_eff, b_eff, params["cls"], pos_pad, params)  # (B, 1, PROJ)
    return feats[:, 0, :]


if __name__ == "__main__":
    key = jax.random.PRNGKey(0)
    pkey, xkey = jax.random.split(key)
    params = init_params(pkey)
    # small input image batch; forward clamps to [0,1] and resizes to 224x224
    x = jax.random.uniform(xkey, (2, 3, 64, 64), jnp.float32, minval=-0.2, maxval=1.2)

    feats = jax.jit(clip_image_features)(params, x)
    jax.block_until_ready(feats)
    assert feats.shape == (2, PROJ), feats.shape
    assert bool(jnp.all(jnp.isfinite(feats)))
    print("KERNEL_OK")
</pallas_src>

<mosaic_0001>
module attributes {stable_mosaic.version = 11 : i64} {
  func.func @_clip_kernel(%arg0: i32, %arg1: i32, %arg2: memref<1x64x3072xf32, #tpu.memory_space<vmem>>, %arg3: memref<3072x128xbf16, #tpu.memory_space<vmem>>, %arg4: memref<1x128xf32, #tpu.memory_space<vmem>>, %arg5: memref<1x128xf32, #tpu.memory_space<vmem>>, %arg6: memref<64x128xf32, #tpu.memory_space<vmem>>, %arg7: memref<1x128xf32, #tpu.memory_space<vmem>>, %arg8: memref<1x128xf32, #tpu.memory_space<vmem>>, %arg9: memref<1x1x128xf32, #tpu.memory_space<vmem>>, %arg10: memref<1x1x128xf32, #tpu.memory_space<vmem>>, %arg11: memref<1x128x384xbf16, #tpu.memory_space<vmem>>, %arg12: memref<1x1x384xf32, #tpu.memory_space<vmem>>, %arg13: memref<1x128x128xbf16, #tpu.memory_space<vmem>>, %arg14: memref<1x1x128xf32, #tpu.memory_space<vmem>>, %arg15: memref<1x1x128xf32, #tpu.memory_space<vmem>>, %arg16: memref<1x1x128xf32, #tpu.memory_space<vmem>>, %arg17: memref<1x128x512xbf16, #tpu.memory_space<vmem>>, %arg18: memref<1x1x512xf32, #tpu.memory_space<vmem>>, %arg19: memref<1x512x128xbf16, #tpu.memory_space<vmem>>, %arg20: memref<1x1x128xf32, #tpu.memory_space<vmem>>, %arg21: memref<1x128xf32, #tpu.memory_space<vmem>>, %arg22: memref<1x128xf32, #tpu.memory_space<vmem>>, %arg23: memref<128x64xbf16, #tpu.memory_space<vmem>>, %arg24: memref<1x1x64xf32, #tpu.memory_space<vmem>>, %arg25: memref<64x128xf32, #tpu.memory_space<vmem>>) attributes {dimension_semantics = [#tpu.dimension_semantics<parallel>, #tpu.dimension_semantics<arbitrary>], iteration_bounds = array<i64: 2, 2>, scalar_prefetch = 0 : i64, scratch_operands = 1 : i64, tpu.core_type = #tpu.core_type<tc>, window_params = [{transform_indices = @transform_0, window_bounds = array<i64: 1, 64, 3072>}, {pipeline_mode = #tpu.pipeline_mode<synchronous>, transform_indices = @transform_1, window_bounds = array<i64: 3072, 128>}, {pipeline_mode = #tpu.pipeline_mode<synchronous>, transform_indices = @transform_2, window_bounds = array<i64: 1, 128>}, {pipeline_mode = #tpu.pipeline_mode<synchronous>, transform_indices = @transform_3, window_bounds = array<i64: 1, 128>}, {pipeline_mode = #tpu.pipeline_mode<synchronous>, transform_indices = @transform_4, window_bounds = array<i64: 64, 128>}, {pipeline_mode = #tpu.pipeline_mode<synchronous>, transform_indices = @transform_5, window_bounds = array<i64: 1, 128>}, {pipeline_mode = #tpu.pipeline_mode<synchronous>, transform_indices = @transform_6, window_bounds = array<i64: 1, 128>}, {transform_indices = @transform_7, window_bounds = array<i64: 1, 1, 128>}, {transform_indices = @transform_8, window_bounds = array<i64: 1, 1, 128>}, {transform_indices = @transform_9, window_bounds = array<i64: 1, 128, 384>}, {transform_indices = @transform_10, window_bounds = array<i64: 1, 1, 384>}, {transform_indices = @transform_11, window_bounds = array<i64: 1, 128, 128>}, {transform_indices = @transform_12, window_bounds = array<i64: 1, 1, 128>}, {transform_indices = @transform_13, window_bounds = array<i64: 1, 1, 128>}, {transform_indices = @transform_14, window_bounds = array<i64: 1, 1, 128>}, {transform_indices = @transform_15, window_bounds = array<i64: 1, 128, 512>}, {transform_indices = @transform_16, window_bounds = array<i64: 1, 1, 512>}, {transform_indices = @transform_17, window_bounds = array<i64: 1, 512, 128>}, {transform_indices = @transform_18, window_bounds = array<i64: 1, 1, 128>}, {pipeline_mode = #tpu.pipeline_mode<synchronous>, transform_indices = @transform_19, window_bounds = array<i64: 1, 128>}, {pipeline_mode = #tpu.pipeline_mode<synchronous>, transform_indices = @transform_20, window_bounds = array<i64: 1, 128>}, {pipeline_mode = #tpu.pipeline_mode<synchronous>, transform_indices = @transform_21, window_bounds = array<i64: 128, 64>}, {transform_indices = @transform_22, window_bounds = array<i64: 1, 1, 64>}]} {
    %c0_i32 = arith.constant 0 : i32
    %0 = arith.cmpi eq, %arg1, %c0_i32 : i32
    %1 = arith.extui %0 : i1 to i32
    %c0_i32_0 = arith.constant 0 : i32
    %2 = arith.cmpi ne, %1, %c0_i32_0 : i32
    scf.if %2 {
      %c0_81 = arith.constant 0 : index
      %c0_82 = arith.constant 0 : index
      %c0_83 = arith.constant 0 : index
      %198 = vector.load %arg2[%c0_81, %c0_82, %c0_83] : memref<1x64x3072xf32, #tpu.memory_space<vmem>>, vector<1x64x3072xf32>
      %199 = vector.shape_cast %198 : vector<1x64x3072xf32> to vector<64x3072xf32>
      %200 = arith.truncf %199 : vector<64x3072xf32> to vector<64x3072xbf16>
      %c0_84 = arith.constant 0 : index
      %c0_85 = arith.constant 0 : index
      %201 = vector.load %arg3[%c0_84, %c0_85] : memref<3072x128xbf16, #tpu.memory_space<vmem>>, vector<3072x128xbf16>
      %cst_86 = arith.constant dense<0.000000e+00> : vector<64x128xf32>
      %202 = tpu.matmul %200, %201, %cst_86 {dimension_numbers = #tpu.dot_dimension_numbers<[1], [0], [0], [1], [0, 0, 1, 1], [], []>} : vector<64x3072xbf16>, vector<3072x128xbf16>, vector<64x128xf32> -> vector<64x128xf32>
      %c0_87 = arith.constant 0 : index
      %c0_88 = arith.constant 0 : index
      %203 = vector.load %arg4[%c0_87, %c0_88] : memref<1x128xf32, #tpu.memory_space<vmem>>, vector<1x128xf32>
      %204 = vector.broadcast %203 : vector<1x128xf32> to vector<64x128xf32>
      %205 = arith.addf %202, %204 : vector<64x128xf32>
      %206 = tpu.iota {dimensions = array<i32: 0>} : vector<64x1xi32>
      %c0_i32_89 = arith.constant 0 : i32
      %207 = vector.broadcast %c0_i32_89 : i32 to vector<64x1xi32>
      %208 = arith.cmpi eq, %206, %207 : vector<64x1xi32>
      %c0_90 = arith.constant 0 : index
      %c0_91 = arith.constant 0 : index
      %209 = vector.load %arg5[%c0_90, %c0_91] : memref<1x128xf32, #tpu.memory_space<vmem>>, vector<1x128xf32>
      %210 = vector.shape_cast %208 : vector<64x1xi1> to vector<64x1xi1>
      %211 = vector.broadcast %210 : vector<64x1xi1> to vector<64x128xi1>
      %212 = vector.shape_cast %209 : vector<1x128xf32> to vector<1x128xf32>
      %213 = vector.broadcast %212 : vector<1x128xf32> to vector<64x128xf32>
      %214 = arith.select %211, %213, %205 : vector<64x128xi1>, vector<64x128xf32>
      %c0_92 = arith.constant 0 : index
      %c0_93 = arith.constant 0 : index
      %215 = vector.load %arg6[%c0_92, %c0_93] : memref<64x128xf32, #tpu.memory_space<vmem>>, vector<64x128xf32>
      %216 = arith.addf %214, %215 : vector<64x128xf32>
      %c0_94 = arith.constant 0 : index
      %c0_95 = arith.constant 0 : index
      %217 = vector.load %arg7[%c0_94, %c0_95] : memref<1x128xf32, #tpu.memory_space<vmem>>, vector<1x128xf32>
      %c0_96 = arith.constant 0 : index
      %c0_97 = arith.constant 0 : index
      %218 = vector.load %arg8[%c0_96, %c0_97] : memref<1x128xf32, #tpu.memory_space<vmem>>, vector<1x128xf32>
      %cst_98 = arith.constant dense<0.000000e+00> : vector<64xf32>
      %219 = vector.multi_reduction <add>, %216, %cst_98 [1] : vector<64x128xf32> to vector<64xf32>
      %220 = vector.shape_cast %219 : vector<64xf32> to vector<64x1xf32>
      %cst_99 = arith.constant 1.280000e+02 : f32
      %221 = vector.broadcast %cst_99 : f32 to vector<64x1xf32>
      %222 = arith.divf %220, %221 : vector<64x1xf32>
      %223 = vector.broadcast %222 : vector<64x1xf32> to vector<64x128xf32>
      %224 = arith.subf %216, %223 : vector<64x128xf32>
      %225 = arith.mulf %224, %224 : vector<64x128xf32>
      %cst_100 = arith.constant dense<0.000000e+00> : vector<64xf32>
      %226 = vector.multi_reduction <add>, %225, %cst_100 [1] : vector<64x128xf32> to vector<64xf32>
      %227 = vector.shape_cast %226 : vector<64xf32> to vector<64x1xf32>
      %cst_101 = arith.constant 1.280000e+02 : f32
      %228 = vector.broadcast %cst_101 : f32 to vector<64x1xf32>
      %229 = arith.divf %227, %228 : vector<64x1xf32>
      %230 = vector.broadcast %222 : vector<64x1xf32> to vector<64x128xf32>
      %231 = arith.subf %216, %230 : vector<64x128xf32>
      %cst_102 = arith.constant 9.99999974E-6 : f32
      %232 = vector.broadcast %cst_102 : f32 to vector<64x1xf32>
      %233 = arith.addf %229, %232 : vector<64x1xf32>
      %234 = math.rsqrt %233 : vector<64x1xf32>
      %235 = vector.broadcast %234 : vector<64x1xf32> to vector<64x128xf32>
      %236 = arith.mulf %231, %235 : vector<64x128xf32>
      %237 = vector.broadcast %217 : vector<1x128xf32> to vector<64x128xf32>
      %238 = arith.mulf %236, %237 : vector<64x128xf32>
      %239 = vector.broadcast %218 : vector<1x128xf32> to vector<64x128xf32>
      %240 = arith.addf %238, %239 : vector<64x128xf32>
      %c0_103 = arith.constant 0 : index
      %c0_104 = arith.constant 0 : index
      %241 = vector.load %arg25[%c0_103, %c0_104] : memref<64x128xf32, #tpu.memory_space<vmem>>, vector<64x128xf32>
      tpu.vector_store %arg25[%c0_103, %c0_104], %240 {strides = array<i32>} : memref<64x128xf32, #tpu.memory_space<vmem>>, vector<64x128xf32>,
    } else {
    }
    %c0 = arith.constant 0 : index
    %c0_1 = arith.constant 0 : index
    %3 = vector.load %arg25[%c0, %c0_1] : memref<64x128xf32, #tpu.memory_space<vmem>>, vector<64x128xf32>
    %c0_2 = arith.constant 0 : index
    %c0_3 = arith.constant 0 : index
    %c0_4 = arith.constant 0 : index
    %4 = vector.load %arg9[%c0_2, %c0_3, %c0_4] : memref<1x1x128xf32, #tpu.memory_space<vmem>>, vector<1x1x128xf32>
    %5 = vector.shape_cast %4 : vector<1x1x128xf32> to vector<1x128xf32>
    %c0_5 = arith.constant 0 : index
    %c0_6 = arith.constant 0 : index
    %c0_7 = arith.constant 0 : index
    %6 = vector.load %arg10[%c0_5, %c0_6, %c0_7] : memref<1x1x128xf32, #tpu.memory_space<vmem>>, vector<1x1x128xf32>
    %7 = vector.shape_cast %6 : vector<1x1x128xf32> to vector<1x128xf32>
    %cst = arith.constant dense<0.000000e+00> : vector<64xf32>
    %8 = vector.multi_reduction <add>, %3, %cst [1] : vector<64x128xf32> to vector<64xf32>
    %9 = vector.shape_cast %8 : vector<64xf32> to vector<64x1xf32>
    %cst_8 = arith.constant 1.280000e+02 : f32
    %10 = vector.broadcast %cst_8 : f32 to vector<64x1xf32>
    %11 = arith.divf %9, %10 : vector<64x1xf32>
    %12 = vector.broadcast %11 : vector<64x1xf32> to vector<64x128xf32>
    %13 = arith.subf %3, %12 : vector<64x128xf32>
    %14 = arith.mulf %13, %13 : vector<64x128xf32>
    %cst_9 = arith.constant dense<0.000000e+00> : vector<64xf32>
    %15 = vector.multi_reduction <add>, %14, %cst_9 [1] : vector<64x128xf32> to vector<64xf32>
    %16 = vector.shape_cast %15 : vector<64xf32> to vector<64x1xf32>
    %cst_10 = arith.constant 1.280000e+02 : f32
    %17 = vector.broadcast %cst_10 : f32 to vector<64x1xf32>
    %18 = arith.divf %16, %17 : vector<64x1xf32>
    %19 = vector.broadcast %11 : vector<64x1xf32> to vector<64x128xf32>
    %20 = arith.subf %3, %19 : vector<64x128xf32>
    %cst_11 = arith.constant 9.99999974E-6 : f32
    %21 = vector.broadcast %cst_11 : f32 to vector<64x1xf32>
    %22 = arith.addf %18, %21 : vector<64x1xf32>
    %23 = math.rsqrt %22 : vector<64x1xf32>
    %24 = vector.broadcast %23 : vector<64x1xf32> to vector<64x128xf32>
    %25 = arith.mulf %20, %24 : vector<64x128xf32>
    %26 = vector.broadcast %5 : vector<1x128xf32> to vector<64x128xf32>
    %27 = arith.mulf %25, %26 : vector<64x128xf32>
    %28 = vector.broadcast %7 : vector<1x128xf32> to vector<64x128xf32>
    %29 = arith.addf %27, %28 : vector<64x128xf32>
    %30 = arith.truncf %29 : vector<64x128xf32> to vector<64x128xbf16>
    %c0_12 = arith.constant 0 : index
    %c0_13 = arith.constant 0 : index
    %c0_14 = arith.constant 0 : index
    %31 = vector.load %arg11[%c0_12, %c0_13, %c0_14] : memref<1x128x384xbf16, #tpu.memory_space<vmem>>, vector<1x128x384xbf16>
    %32 = vector.shape_cast %31 : vector<1x128x384xbf16> to vector<128x384xbf16>
    %cst_15 = arith.constant dense<0.000000e+00> : vector<64x384xf32>
    %33 = tpu.matmul %30, %32, %cst_15 {dimension_numbers = #tpu.dot_dimension_numbers<[1], [0], [0], [1], [0, 0, 1, 1], [], []>} : vector<64x128xbf16>, vector<128x384xbf16>, vector<64x384xf32> -> vector<64x384xf32>
    %c0_16 = arith.constant 0 : index
    %c0_17 = arith.constant 0 : index
    %c0_18 = arith.constant 0 : index
    %34 = vector.load %arg12[%c0_16, %c0_17, %c0_18] : memref<1x1x384xf32, #tpu.memory_space<vmem>>, vector<1x1x384xf32>
    %35 = vector.shape_cast %34 : vector<1x1x384xf32> to vector<1x384xf32>
    %36 = vector.broadcast %35 : vector<1x384xf32> to vector<64x384xf32>
    %37 = arith.addf %33, %36 : vector<64x384xf32>
    %38 = tpu.iota {dimensions = array<i32: 1>} : vector<64x64xi32>
    %c50_i32 = arith.constant 50 : i32
    %39 = vector.broadcast %c50_i32 : i32 to vector<64x64xi32>
    %40 = arith.cmpi slt, %38, %39 : vector<64x64xi32>
    %41 = vector.extract_strided_slice %37 {offsets = [0, 0], sizes = [64, 32], strides = [1, 1]} : vector<64x384xf32> to vector<64x32xf32>
    %cst_19 = arith.constant 0.176776692 : f32
    %42 = vector.broadcast %cst_19 : f32 to vector<64x32xf32>
    %43 = arith.mulf %41, %42 : vector<64x32xf32>
    %44 = arith.truncf %43 : vector<64x32xf32> to vector<64x32xbf16>
    %45 = vector.extract_strided_slice %37 {offsets = [0, 128], sizes = [64, 32], strides = [1, 1]} : vector<64x384xf32> to vector<64x32xf32>
    %46 = arith.truncf %45 : vector<64x32xf32> to vector<64x32xbf16>
    %47 = vector.extract_strided_slice %37 {offsets = [0, 256], sizes = [64, 32], strides = [1, 1]} : vector<64x384xf32> to vector<64x32xf32>
    %48 = arith.truncf %47 : vector<64x32xf32> to vector<64x32xbf16>
    %cst_20 = arith.constant dense<0.000000e+00> : vector<64x64xf32>
    %49 = tpu.matmul %44, %46, %cst_20 {dimension_numbers = #tpu.dot_dimension_numbers<[1], [1], [0], [0], [0, 0, 1, 0], [], []>} : vector<64x32xbf16>, vector<64x32xbf16>, vector<64x64xf32> -> vector<64x64xf32>
    %cst_21 = arith.constant -1.000000e+30 : f32
    %50 = vector.broadcast %cst_21 : f32 to vector<64x64xf32>
    %51 = arith.select %40, %49, %50 : vector<64x64xi1>, vector<64x64xf32>
    %cst_22 = arith.constant dense<0xFF800000> : vector<64xf32>
    %52 = vector.multi_reduction <maximumf>, %51, %cst_22 [1] : vector<64x64xf32> to vector<64xf32>
    %53 = vector.shape_cast %52 : vector<64xf32> to vector<64x1xf32>
    %54 = vector.broadcast %53 : vector<64x1xf32> to vector<64x64xf32>
    %55 = arith.subf %51, %54 : vector<64x64xf32>
    %56 = math.exp %55 : vector<64x64xf32>
    %cst_23 = arith.constant dense<0.000000e+00> : vector<64xf32>
    %57 = vector.multi_reduction <add>, %56, %cst_23 [1] : vector<64x64xf32> to vector<64xf32>
    %58 = vector.shape_cast %57 : vector<64xf32> to vector<64x1xf32>
    %59 = tpu.reciprocal %58 {approx = true} : vector<64x1xf32> -> vector<64x1xf32>
    %60 = vector.broadcast %59 : vector<64x1xf32> to vector<64x64xf32>
    %61 = arith.mulf %56, %60 : vector<64x64xf32>
    %62 = arith.truncf %61 : vector<64x64xf32> to vector<64x64xbf16>
    %cst_24 = arith.constant dense<0.000000e+00> : vector<64x32xf32>
    %63 = tpu.matmul %62, %48, %cst_24 {dimension_numbers = #tpu.dot_dimension_numbers<[1], [0], [0], [1], [0, 0, 1, 1], [], []>} : vector<64x64xbf16>, vector<64x32xbf16>, vector<64x32xf32> -> vector<64x32xf32>
    %64 = vector.extract_strided_slice %37 {offsets = [0, 32], sizes = [64, 32], strides = [1, 1]} : vector<64x384xf32> to vector<64x32xf32>
    %cst_25 = arith.constant 0.176776692 : f32
    %65 = vector.broadcast %cst_25 : f32 to vector<64x32xf32>
    %66 = arith.mulf %64, %65 : vector<64x32xf32>
    %67 = arith.truncf %66 : vector<64x32xf32> to vector<64x32xbf16>
    %68 = vector.extract_strided_slice %37 {offsets = [0, 160], sizes = [64, 32], strides = [1, 1]} : vector<64x384xf32> to vector<64x32xf32>
    %69 = arith.truncf %68 : vector<64x32xf32> to vector<64x32xbf16>
    %70 = vector.extract_strided_slice %37 {offsets = [0, 288], sizes = [64, 32], strides = [1, 1]} : vector<64x384xf32> to vector<64x32xf32>
    %71 = arith.truncf %70 : vector<64x32xf32> to vector<64x32xbf16>
    %cst_26 = arith.constant dense<0.000000e+00> : vector<64x64xf32>
    %72 = tpu.matmul %67, %69, %cst_26 {dimension_numbers = #tpu.dot_dimension_numbers<[1], [1], [0], [0], [0, 0, 1, 0], [], []>} : vector<64x32xbf16>, vector<64x32xbf16>, vector<64x64xf32> -> vector<64x64xf32>
    %cst_27 = arith.constant -1.000000e+30 : f32
    %73 = vector.broadcast %cst_27 : f32 to vector<64x64xf32>
    %74 = arith.select %40, %72, %73 : vector<64x64xi1>, vector<64x64xf32>
    %cst_28 = arith.constant dense<0xFF800000> : vector<64xf32>
    %75 = vector.multi_reduction <maximumf>, %74, %cst_28 [1] : vector<64x64xf32> to vector<64xf32>
    %76 = vector.shape_cast %75 : vector<64xf32> to vector<64x1xf32>
    %77 = vector.broadcast %76 : vector<64x1xf32> to vector<64x64xf32>
    %78 = arith.subf %74, %77 : vector<64x64xf32>
    %79 = math.exp %78 : vector<64x64xf32>
    %cst_29 = arith.constant dense<0.000000e+00> : vector<64xf32>
    %80 = vector.multi_reduction <add>, %79, %cst_29 [1] : vector<64x64xf32> to vector<64xf32>
    %81 = vector.shape_cast %80 : vector<64xf32> to vector<64x1xf32>
    %82 = tpu.reciprocal %81 {approx = true} : vector<64x1xf32> -> vector<64x1xf32>
    %83 = vector.broadcast %82 : vector<64x1xf32> to vector<64x64xf32>
    %84 = arith.mulf %79, %83 : vector<64x64xf32>
    %85 = arith.truncf %84 : vector<64x64xf32> to vector<64x64xbf16>
    %cst_30 = arith.constant dense<0.000000e+00> : vector<64x32xf32>
    %86 = tpu.matmul %85, %71, %cst_30 {dimension_numbers = #tpu.dot_dimension_numbers<[1], [0], [0], [1], [0, 0, 1, 1], [], []>} : vector<64x64xbf16>, vector<64x32xbf16>, vector<64x32xf32> -> vector<64x32xf32>
    %87 = vector.extract_strided_slice %37 {offsets = [0, 64], sizes = [64, 32], strides = [1, 1]} : vector<64x384xf32> to vector<64x32xf32>
    %cst_31 = arith.constant 0.176776692 : f32
    %88 = vector.broadcast %cst_31 : f32 to vector<64x32xf32>
    %89 = arith.mulf %87, %88 : vector<64x32xf32>
    %90 = arith.truncf %89 : vector<64x32xf32> to vector<64x32xbf16>
    %91 = vector.extract_strided_slice %37 {offsets = [0, 192], sizes = [64, 32], strides = [1, 1]} : vector<64x384xf32> to vector<64x32xf32>
    %92 = arith.truncf %91 : vector<64x32xf32> to vector<64x32xbf16>
    %93 = vector.extract_strided_slice %37 {offsets = [0, 320], sizes = [64, 32], strides = [1, 1]} : vector<64x384xf32> to vector<64x32xf32>
    %94 = arith.truncf %93 : vector<64x32xf32> to vector<64x32xbf16>
    %cst_32 = arith.constant dense<0.000000e+00> : vector<64x64xf32>
    %95 = tpu.matmul %90, %92, %cst_32 {dimension_numbers = #tpu.dot_dimension_numbers<[1], [1], [0], [0], [0, 0, 1, 0], [], []>} : vector<64x32xbf16>, vector<64x32xbf16>, vector<64x64xf32> -> vector<64x64xf32>
    %cst_33 = arith.constant -1.000000e+30 : f32
    %96 = vector.broadcast %cst_33 : f32 to vector<64x64xf32>
    %97 = arith.select %40, %95, %96 : vector<64x64xi1>, vector<64x64xf32>
    %cst_34 = arith.constant dense<0xFF800000> : vector<64xf32>
    %98 = vector.multi_reduction <maximumf>, %97, %cst_34 [1] : vector<64x64xf32> to vector<64xf32>
    %99 = vector.shape_cast %98 : vector<64xf32> to vector<64x1xf32>
    %100 = vector.broadcast %99 : vector<64x1xf32> to vector<64x64xf32>
    %101 = arith.subf %97, %100 : vector<64x64xf32>
    %102 = math.exp %101 : vector<64x64xf32>
    %cst_35 = arith.constant dense<0.000000e+00> : vector<64xf32>
    %103 = vector.multi_reduction <add>, %102, %cst_35 [1] : vector<64x64xf32> to vector<64xf32>
    %104 = vector.shape_cast %103 : vector<64xf32> to vector<64x1xf32>
    %105 = tpu.reciprocal %104 {approx = true} : vector<64x1xf32> -> vector<64x1xf32>
    %106 = vector.broadcast %105 : vector<64x1xf32> to vector<64x64xf32>
    %107 = arith.mulf %102, %106 : vector<64x64xf32>
    %108 = arith.truncf %107 : vector<64x64xf32> to vector<64x64xbf16>
    %cst_36 = arith.constant dense<0.000000e+00> : vector<64x32xf32>
    %109 = tpu.matmul %108, %94, %cst_36 {dimension_numbers = #tpu.dot_dimension_numbers<[1], [0], [0], [1], [0, 0, 1, 1], [], []>} : vector<64x64xbf16>, vector<64x32xbf16>, vector<64x32xf32> -> vector<64x32xf32>
    %110 = vector.extract_strided_slice %37 {offsets = [0, 96], sizes = [64, 32], strides = [1, 1]} : vector<64x384xf32> to vector<64x32xf32>
    %cst_37 = arith.constant 0.176776692 : f32
    %111 = vector.broadcast %cst_37 : f32 to vector<64x32xf32>
    %112 = arith.mulf %110, %111 : vector<64x32xf32>
    %113 = arith.truncf %112 : vector<64x32xf32> to vector<64x32xbf16>
    %114 = vector.extract_strided_slice %37 {offsets = [0, 224], sizes = [64, 32], strides = [1, 1]} : vector<64x384xf32> to vector<64x32xf32>
    %115 = arith.truncf %114 : vector<64x32xf32> to vector<64x32xbf16>
    %116 = vector.extract_strided_slice %37 {offsets = [0, 352], sizes = [64, 32], strides = [1, 1]} : vector<64x384xf32> to vector<64x32xf32>
    %117 = arith.truncf %116 : vector<64x32xf32> to vector<64x32xbf16>
    %cst_38 = arith.constant dense<0.000000e+00> : vector<64x64xf32>
    %118 = tpu.matmul %113, %115, %cst_38 {dimension_numbers = #tpu.dot_dimension_numbers<[1], [1], [0], [0], [0, 0, 1, 0], [], []>} : vector<64x32xbf16>, vector<64x32xbf16>, vector<64x64xf32> -> vector<64x64xf32>
    %cst_39 = arith.constant -1.000000e+30 : f32
    %119 = vector.broadcast %cst_39 : f32 to vector<64x64xf32>
    %120 = arith.select %40, %118, %119 : vector<64x64xi1>, vector<64x64xf32>
    %cst_40 = arith.constant dense<0xFF800000> : vector<64xf32>
    %121 = vector.multi_reduction <maximumf>, %120, %cst_40 [1] : vector<64x64xf32> to vector<64xf32>
    %122 = vector.shape_cast %121 : vector<64xf32> to vector<64x1xf32>
    %123 = vector.broadcast %122 : vector<64x1xf32> to vector<64x64xf32>
    %124 = arith.subf %120, %123 : vector<64x64xf32>
    %125 = math.exp %124 : vector<64x64xf32>
    %cst_41 = arith.constant dense<0.000000e+00> : vector<64xf32>
    %126 = vector.multi_reduction <add>, %125, %cst_41 [1] : vector<64x64xf32> to vector<64xf32>
    %127 = vector.shape_cast %126 : vector<64xf32> to vector<64x1xf32>
    %128 = tpu.reciprocal %127 {approx = true} : vector<64x1xf32> -> vector<64x1xf32>
    %129 = vector.broadcast %128 : vector<64x1xf32> to vector<64x64xf32>
    %130 = arith.mulf %125, %129 : vector<64x64xf32>
    %131 = arith.truncf %130 : vector<64x64xf32> to vector<64x64xbf16>
    %cst_42 = arith.constant dense<0.000000e+00> : vector<64x32xf32>
    %132 = tpu.matmul %131, %117, %cst_42 {dimension_numbers = #tpu.dot_dimension_numbers<[1], [0], [0], [1], [0, 0, 1, 1], [], []>} : vector<64x64xbf16>, vector<64x32xbf16>, vector<64x32xf32> -> vector<64x32xf32>
    %133 = tpu.concatenate %63, %86, %109, %132 in 1 : vector<64x32xf32>, vector<64x32xf32>, vector<64x32xf32>, vector<64x32xf32> -> vector<64x128xf32>
    %134 = arith.truncf %133 : vector<64x128xf32> to vector<64x128xbf16>
    %c0_43 = arith.constant 0 : index
    %c0_44 = arith.constant 0 : index
    %c0_45 = arith.constant 0 : index
    %135 = vector.load %arg13[%c0_43, %c0_44, %c0_45] : memref<1x128x128xbf16, #tpu.memory_space<vmem>>, vector<1x128x128xbf16>
    %136 = vector.shape_cast %135 : vector<1x128x128xbf16> to vector<128x128xbf16>
    %cst_46 = arith.constant dense<0.000000e+00> : vector<64x128xf32>
    %137 = tpu.matmul %134, %136, %cst_46 {dimension_numbers = #tpu.dot_dimension_numbers<[1], [0], [0], [1], [0, 0, 1, 1], [], []>} : vector<64x128xbf16>, vector<128x128xbf16>, vector<64x128xf32> -> vector<64x128xf32>
    %c0_47 = arith.constant 0 : index
    %c0_48 = arith.constant 0 : index
    %c0_49 = arith.constant 0 : index
    %138 = vector.load %arg14[%c0_47, %c0_48, %c0_49] : memref<1x1x128xf32, #tpu.memory_space<vmem>>, vector<1x1x128xf32>
    %139 = vector.shape_cast %138 : vector<1x1x128xf32> to vector<1x128xf32>
    %140 = vector.broadcast %139 : vector<1x128xf32> to vector<64x128xf32>
    %141 = arith.addf %137, %140 : vector<64x128xf32>
    %142 = arith.addf %3, %141 : vector<64x128xf32>
    %c0_50 = arith.constant 0 : index
    %c0_51 = arith.constant 0 : index
    %c0_52 = arith.constant 0 : index
    %143 = vector.load %arg15[%c0_50, %c0_51, %c0_52] : memref<1x1x128xf32, #tpu.memory_space<vmem>>, vector<1x1x128xf32>
    %144 = vector.shape_cast %143 : vector<1x1x128xf32> to vector<1x128xf32>
    %c0_53 = arith.constant 0 : index
    %c0_54 = arith.constant 0 : index
    %c0_55 = arith.constant 0 : index
    %145 = vector.load %arg16[%c0_53, %c0_54, %c0_55] : memref<1x1x128xf32, #tpu.memory_space<vmem>>, vector<1x1x128xf32>
    %146 = vector.shape_cast %145 : vector<1x1x128xf32> to vector<1x128xf32>
    %cst_56 = arith.constant dense<0.000000e+00> : vector<64xf32>
    %147 = vector.multi_reduction <add>, %142, %cst_56 [1] : vector<64x128xf32> to vector<64xf32>
    %148 = vector.shape_cast %147 : vector<64xf32> to vector<64x1xf32>
    %cst_57 = arith.constant 1.280000e+02 : f32
    %149 = vector.broadcast %cst_57 : f32 to vector<64x1xf32>
    %150 = arith.divf %148, %149 : vector<64x1xf32>
    %151 = vector.broadcast %150 : vector<64x1xf32> to vector<64x128xf32>
    %152 = arith.subf %142, %151 : vector<64x128xf32>
    %153 = arith.mulf %152, %152 : vector<64x128xf32>
    %cst_58 = arith.constant dense<0.000000e+00> : vector<64xf32>
    %154 = vector.multi_reduction <add>, %153, %cst_58 [1] : vector<64x128xf32> to vector<64xf32>
    %155 = vector.shape_cast %154 : vector<64xf32> to vector<64x1xf32>
    %cst_59 = arith.constant 1.280000e+02 : f32
    %156 = vector.broadcast %cst_59 : f32 to vector<64x1xf32>
    %157 = arith.divf %155, %156 : vector<64x1xf32>
    %158 = vector.broadcast %150 : vector<64x1xf32> to vector<64x128xf32>
    %159 = arith.subf %142, %158 : vector<64x128xf32>
    %cst_60 = arith.constant 9.99999974E-6 : f32
    %160 = vector.broadcast %cst_60 : f32 to vector<64x1xf32>
    %161 = arith.addf %157, %160 : vector<64x1xf32>
    %162 = math.rsqrt %161 : vector<64x1xf32>
    %163 = vector.broadcast %162 : vector<64x1xf32> to vector<64x128xf32>
    %164 = arith.mulf %159, %163 : vector<64x128xf32>
    %165 = vector.broadcast %144 : vector<1x128xf32> to vector<64x128xf32>
    %166 = arith.mulf %164, %165 : vector<64x128xf32>
    %167 = vector.broadcast %146 : vector<1x128xf32> to vector<64x128xf32>
    %168 = arith.addf %166, %167 : vector<64x128xf32>
    %169 = arith.truncf %168 : vector<64x128xf32> to vector<64x128xbf16>
    %c0_61 = arith.constant 0 : index
    %c0_62 = arith.constant 0 : index
    %c0_63 = arith.constant 0 : index
    %170 = vector.load %arg17[%c0_61, %c0_62, %c0_63] : memref<1x128x512xbf16, #tpu.memory_space<vmem>>, vector<1x128x512xbf16>
    %171 = vector.shape_cast %170 : vector<1x128x512xbf16> to vector<128x512xbf16>
    %cst_64 = arith.constant dense<0.000000e+00> : vector<64x512xf32>
    %172 = tpu.matmul %169, %171, %cst_64 {dimension_numbers = #tpu.dot_dimension_numbers<[1], [0], [0], [1], [0, 0, 1, 1], [], []>} : vector<64x128xbf16>, vector<128x512xbf16>, vector<64x512xf32> -> vector<64x512xf32>
    %c0_65 = arith.constant 0 : index
    %c0_66 = arith.constant 0 : index
    %c0_67 = arith.constant 0 : index
    %173 = vector.load %arg18[%c0_65, %c0_66, %c0_67] : memref<1x1x512xf32, #tpu.memory_space<vmem>>, vector<1x1x512xf32>
    %174 = vector.shape_cast %173 : vector<1x1x512xf32> to vector<1x512xf32>
    %175 = vector.broadcast %174 : vector<1x512xf32> to vector<64x512xf32>
    %176 = arith.addf %172, %175 : vector<64x512xf32>
    %cst_68 = arith.constant -1.702000e+00 : f32
    %177 = vector.broadcast %cst_68 : f32 to vector<64x512xf32>
    %178 = arith.mulf %177, %176 : vector<64x512xf32>
    %179 = math.exp %178 : vector<64x512xf32>
    %cst_69 = arith.constant 1.000000e+00 : f32
    %180 = vector.broadcast %cst_69 : f32 to vector<64x512xf32>
    %181 = arith.addf %180, %179 : vector<64x512xf32>
    %cst_70 = arith.constant 1.000000e+00 : f32
    %182 = vector.broadcast %cst_70 : f32 to vector<64x512xf32>
    %183 = arith.divf %182, %181 : vector<64x512xf32>
    %184 = arith.mulf %176, %183 : vector<64x512xf32>
    %185 = arith.truncf %184 : vector<64x512xf32> to vector<64x512xbf16>
    %c0_71 = arith.constant 0 : index
    %c0_72 = arith.constant 0 : index
    %c0_73 = arith.constant 0 : index
    %186 = vector.load %arg19[%c0_71, %c0_72, %c0_73] : memref<1x512x128xbf16, #tpu.memory_space<vmem>>, vector<1x512x128xbf16>
    %187 = vector.shape_cast %186 : vector<1x512x128xbf16> to vector<512x128xbf16>
    %cst_74 = arith.constant dense<0.000000e+00> : vector<64x128xf32>
    %188 = tpu.matmul %185, %187, %cst_74 {dimension_numbers = #tpu.dot_dimension_numbers<[1], [0], [0], [1], [0, 0, 1, 1], [], []>} : vector<64x512xbf16>, vector<512x128xbf16>, vector<64x128xf32> -> vector<64x128xf32>
    %c0_75 = arith.constant 0 : index
    %c0_76 = arith.constant 0 : index
    %c0_77 = arith.constant 0 : index
    %189 = vector.load %arg20[%c0_75, %c0_76, %c0_77] : memref<1x1x128xf32, #tpu.memory_space<vmem>>, vector<1x1x128xf32>
    %190 = vector.shape_cast %189 : vector<1x1x128xf32> to vector<1x128xf32>
    %191 = vector.broadcast %190 : vector<1x128xf32> to vector<64x128xf32>
    %192 = arith.addf %188, %191 : vector<64x128xf32>
    %193 = arith.addf %142, %192 : vector<64x128xf32>
    %c0_78 = arith.constant 0 : index
    %c0_79 = arith.constant 0 : index
    %194 = vector.load %arg25[%c0_78, %c0_79] : memref<64x128xf32, #tpu.memory_space<vmem>>, vector<64x128xf32>
    tpu.vector_store %arg25[%c0_78, %c0_79], %193 {strides = array<i32>} : memref<64x128xf32, #tpu.memory_space<vmem>>, vector<64x128xf32>,
    %c1_i32 = arith.constant 1 : i32
    %195 = arith.cmpi eq, %arg1, %c1_i32 : i32
    %196 = arith.extui %195 : i1 to i32
    %c0_i32_80 = arith.constant 0 : i32
    %197 = arith.cmpi ne, %196, %c0_i32_80 : i32
    scf.if %197 {
      %198 = vector.extract_strided_slice %193 {offsets = [0, 0], sizes = [1, 128], strides = [1, 1]} : vector<64x128xf32> to vector<1x128xf32>
      %c0_81 = arith.constant 0 : index
      %c0_82 = arith.constant 0 : index
      %199 = vector.load %arg21[%c0_81, %c0_82] : memref<1x128xf32, #tpu.memory_space<vmem>>, vector<1x128xf32>
      %c0_83 = arith.constant 0 : index
      %c0_84 = arith.constant 0 : index
      %200 = vector.load %arg22[%c0_83, %c0_84] : memref<1x128xf32, #tpu.memory_space<vmem>>, vector<1x128xf32>
      %cst_85 = arith.constant dense<0.000000e+00> : vector<1xf32>
      %201 = vector.multi_reduction <add>, %198, %cst_85 [1] : vector<1x128xf32> to vector<1xf32>
      %202 = vector.shape_cast %201 : vector<1xf32> to vector<1x1xf32>
      %cst_86 = arith.constant 1.280000e+02 : f32
      %203 = vector.broadcast %cst_86 : f32 to vector<1x1xf32>
      %204 = arith.divf %202, %203 : vector<1x1xf32>
      %205 = vector.broadcast %204 : vector<1x1xf32> to vector<1x128xf32>
      %206 = arith.subf %198, %205 : vector<1x128xf32>
      %207 = arith.mulf %206, %206 : vector<1x128xf32>
      %cst_87 = arith.constant dense<0.000000e+00> : vector<1xf32>
      %208 = vector.multi_reduction <add>, %207, %cst_87 [1] : vector<1x128xf32> to vector<1xf32>
      %209 = vector.shape_cast %208 : vector<1xf32> to vector<1x1xf32>
      %cst_88 = arith.constant 1.280000e+02 : f32
      %210 = vector.broadcast %cst_88 : f32 to vector<1x1xf32>
      %211 = arith.divf %209, %210 : vector<1x1xf32>
      %212 = vector.broadcast %204 : vector<1x1xf32> to vector<1x128xf32>
      %213 = arith.subf %198, %212 : vector<1x128xf32>
      %cst_89 = arith.constant 9.99999974E-6 : f32
      %214 = vector.broadcast %cst_89 : f32 to vector<1x1xf32>
      %215 = arith.addf %211, %214 : vector<1x1xf32>
      %216 = math.rsqrt %215 : vector<1x1xf32>
      %217 = vector.broadcast %216 : vector<1x1xf32> to vector<1x128xf32>
      %218 = arith.mulf %213, %217 : vector<1x128xf32>
      %219 = arith.mulf %218, %199 : vector<1x128xf32>
      %220 = arith.addf %219, %200 : vector<1x128xf32>
      %221 = arith.truncf %220 : vector<1x128xf32> to vector<1x128xbf16>
      %c0_90 = arith.constant 0 : index
      %c0_91 = arith.constant 0 : index
      %222 = vector.load %arg23[%c0_90, %c0_91] : memref<128x64xbf16, #tpu.memory_space<vmem>>, vector<128x64xbf16>
      %cst_92 = arith.constant dense<0.000000e+00> : vector<1x64xf32>
      %223 = tpu.matmul %221, %222, %cst_92 {dimension_numbers = #tpu.dot_dimension_numbers<[1], [0], [0], [1], [0, 0, 1, 1], [], []>} : vector<1x128xbf16>, vector<128x64xbf16>, vector<1x64xf32> -> vector<1x64xf32>
      %c0_93 = arith.constant 0 : index
      %c0_94 = arith.constant 0 : index
      %c0_95 = arith.constant 0 : index
      %224 = vector.load %arg24[%c0_93, %c0_94, %c0_95] : memref<1x1x64xf32, #tpu.memory_space<vmem>>, vector<1x1x64xf32>
      %225 = vector.shape_cast %224 : vector<1x1x64xf32> to vector<1x64xf32>
      %226 = vector.shape_cast %223 : vector<1x64xf32> to vector<1x1x64xf32>
      tpu.vector_store %arg24[%c0_93, %c0_94, %c0_95], %226 {strides = array<i32>} : memref<1x1x64xf32, #tpu.memory_space<vmem>>, vector<1x1x64xf32>,
    } else {
    }
    return
  }
  func.func @transform_0(%arg0: i32, %arg1: i32) -> (i32, i32, i32) {
    %c0_i32 = arith.constant 0 : i32
    %c0_i32_0 = arith.constant 0 : i32
    %c0_i32_1 = arith.constant 0 : i32
    return %arg0, %c0_i32, %c0_i32_0 : i32, i32, i32
  }
  func.func @transform_1(%arg0: i32, %arg1: i32) -> (i32, i32) {
    %c0_i32 = arith.constant 0 : i32
    %c0_i32_0 = arith.constant 0 : i32
    %c0_i32_1 = arith.constant 0 : i32
    return %c0_i32, %c0_i32_0 : i32, i32
  }
  func.func @transform_2(%arg0: i32, %arg1: i32) -> (i32, i32) {
    %c0_i32 = arith.constant 0 : i32
    %c0_i32_0 = arith.constant 0 : i32
    %c0_i32_1 = arith.constant 0 : i32
    return %c0_i32, %c0_i32_0 : i32, i32
  }
  func.func @transform_3(%arg0: i32, %arg1: i32) -> (i32, i32) {
    %c0_i32 = arith.constant 0 : i32
    %c0_i32_0 = arith.constant 0 : i32
    %c0_i32_1 = arith.constant 0 : i32
    return %c0_i32, %c0_i32_0 : i32, i32
  }
  func.func @transform_4(%arg0: i32, %arg1: i32) -> (i32, i32) {
    %c0_i32 = arith.constant 0 : i32
    %c0_i32_0 = arith.constant 0 : i32
    %c0_i32_1 = arith.constant 0 : i32
    return %c0_i32, %c0_i32_0 : i32, i32
  }
  func.func @transform_5(%arg0: i32, %arg1: i32) -> (i32, i32) {
    %c0_i32 = arith.constant 0 : i32
    %c0_i32_0 = arith.constant 0 : i32
    %c0_i32_1 = arith.constant 0 : i32
    return %c0_i32, %c0_i32_0 : i32, i32
  }
  func.func @transform_6(%arg0: i32, %arg1: i32) -> (i32, i32) {
    %c0_i32 = arith.constant 0 : i32
    %c0_i32_0 = arith.constant 0 : i32
    %c0_i32_1 = arith.constant 0 : i32
    return %c0_i32, %c0_i32_0 : i32, i32
  }
  func.func @transform_7(%arg0: i32, %arg1: i32) -> (i32, i32, i32) {
    %c0_i32 = arith.constant 0 : i32
    %c0_i32_0 = arith.constant 0 : i32
    %c0_i32_1 = arith.constant 0 : i32
    return %arg1, %c0_i32, %c0_i32_0 : i32, i32, i32
  }
  func.func @transform_8(%arg0: i32, %arg1: i32) -> (i32, i32, i32) {
    %c0_i32 = arith.constant 0 : i32
    %c0_i32_0 = arith.constant 0 : i32
    %c0_i32_1 = arith.constant 0 : i32
    return %arg1, %c0_i32, %c0_i32_0 : i32, i32, i32
  }
  func.func @transform_9(%arg0: i32, %arg1: i32) -> (i32, i32, i32) {
    %c0_i32 = arith.constant 0 : i32
    %c0_i32_0 = arith.constant 0 : i32
    %c0_i32_1 = arith.constant 0 : i32
    return %arg1, %c0_i32, %c0_i32_0 : i32, i32, i32
  }
  func.func @transform_10(%arg0: i32, %arg1: i32) -> (i32, i32, i32) {
    %c0_i32 = arith.constant 0 : i32
    %c0_i32_0 = arith.constant 0 : i32
    %c0_i32_1 = arith.constant 0 : i32
    return %arg1, %c0_i32, %c0_i32_0 : i32, i32, i32
  }
  func.func @transform_11(%arg0: i32, %arg1: i32) -> (i32, i32, i32) {
    %c0_i32 = arith.constant 0 : i32
    %c0_i32_0 = arith.constant 0 : i32
    %c0_i32_1 = arith.constant 0 : i32
    return %arg1, %c0_i32, %c0_i32_0 : i32, i32, i32
  }
  func.func @transform_12(%arg0: i32, %arg1: i32) -> (i32, i32, i32) {
    %c0_i32 = arith.constant 0 : i32
    %c0_i32_0 = arith.constant 0 : i32
    %c0_i32_1 = arith.constant 0 : i32
    return %arg1, %c0_i32, %c0_i32_0 : i32, i32, i32
  }
  func.func @transform_13(%arg0: i32, %arg1: i32) -> (i32, i32, i32) {
    %c0_i32 = arith.constant 0 : i32
    %c0_i32_0 = arith.constant 0 : i32
    %c0_i32_1 = arith.constant 0 : i32
    return %arg1, %c0_i32, %c0_i32_0 : i32, i32, i32
  }
  func.func @transform_14(%arg0: i32, %arg1: i32) -> (i32, i32, i32) {
    %c0_i32 = arith.constant 0 : i32
    %c0_i32_0 = arith.constant 0 : i32
    %c0_i32_1 = arith.constant 0 : i32
    return %arg1, %c0_i32, %c0_i32_0 : i32, i32, i32
  }
  func.func @transform_15(%arg0: i32, %arg1: i32) -> (i32, i32, i32) {
    %c0_i32 = arith.constant 0 : i32
    %c0_i32_0 = arith.constant 0 : i32
    %c0_i32_1 = arith.constant 0 : i32
    return %arg1, %c0_i32, %c0_i32_0 : i32, i32, i32
  }
  func.func @transform_16(%arg0: i32, %arg1: i32) -> (i32, i32, i32) {
    %c0_i32 = arith.constant 0 : i32
    %c0_i32_0 = arith.constant 0 : i32
    %c0_i32_1 = arith.constant 0 : i32
    return %arg1, %c0_i32, %c0_i32_0 : i32, i32, i32
  }
  func.func @transform_17(%arg0: i32, %arg1: i32) -> (i32, i32, i32) {
    %c0_i32 = arith.constant 0 : i32
    %c0_i32_0 = arith.constant 0 : i32
    %c0_i32_1 = arith.constant 0 : i32
    return %arg1, %c0_i32, %c0_i32_0 : i32, i32, i32
  }
  func.func @transform_18(%arg0: i32, %arg1: i32) -> (i32, i32, i32) {
    %c0_i32 = arith.constant 0 : i32
    %c0_i32_0 = arith.constant 0 : i32
    %c0_i32_1 = arith.constant 0 : i32
    return %arg1, %c0_i32, %c0_i32_0 : i32, i32, i32
  }
  func.func @transform_19(%arg0: i32, %arg1: i32) -> (i32, i32) {
    %c0_i32 = arith.constant 0 : i32
    %c0_i32_0 = arith.constant 0 : i32
    %c0_i32_1 = arith.constant 0 : i32
    return %c0_i32, %c0_i32_0 : i32, i32
  }
  func.func @transform_20(%arg0: i32, %arg1: i32) -> (i32, i32) {
    %c0_i32 = arith.constant 0 : i32
    %c0_i32_0 = arith.constant 0 : i32
    %c0_i32_1 = arith.constant 0 : i32
    return %c0_i32, %c0_i32_0 : i32, i32
  }
  func.func @transform_21(%arg0: i32, %arg1: i32) -> (i32, i32) {
    %c0_i32 = arith.constant 0 : i32
    %c0_i32_0 = arith.constant 0 : i32
    %c0_i32_1 = arith.constant 0 : i32
    return %c0_i32, %c0_i32_0 : i32, i32
  }
  func.func @transform_22(%arg0: i32, %arg1: i32) -> (i32, i32, i32) {
    %c0_i32 = arith.constant 0 : i32
    %c0_i32_0 = arith.constant 0 : i32
    %c0_i32_1 = arith.constant 0 : i32
    return %arg0, %c0_i32, %c0_i32_0 : i32, i32, i32
  }
}

</mosaic_0001>

<llo_original>
// kernel: mul.9
$region0: #{mul.9}
  %s0 = inlined_call_operand.vmem [shape: f32[3,1024], index: 0, kind: input, shape index: {}]
  %s1 = inlined_call_operand.vmem [shape: f32[3072], index: 1, kind: output, shape index: {}]
  $region1: #{mul.9} parent=0
    #allocation0 [shape = 'u8[32768]{0}', space=vmem, size = 0x8000, scoped, tag = 'scoped mem for input reshape']
    %s3 = sshll.u32 1, 4
    %s4 = ssub.s32 %s3, 1
    %s5 = smul.addr 4, 7
    %s6 = scalar_lea.vmem %s0, %s5
    %v7 = vld [vmem:[%s6] sm:%s4]
    %s8 = scalar_lea.vmem [#allocation0], 56
    %9 = vst [vmem:[%s8] sm:%s4] %v7
    %s10 = smul.addr 4, 6
    %s11 = scalar_lea.vmem %s0, %s10
    %v12 = vld [vmem:[%s11] sm:%s4]
    %s13 = scalar_lea.vmem [#allocation0], 48
    %14 = vst [vmem:[%s13] sm:%s4] %v12
    %s15 = smul.addr 4, 5
    %s16 = scalar_lea.vmem %s0, %s15
    %v17 = vld [vmem:[%s16] sm:%s4]
    %s18 = scalar_lea.vmem [#allocation0], 40
    %19 = vst [vmem:[%s18] sm:%s4] %v17
    %s20 = smul.addr 4, 4
    %s21 = scalar_lea.vmem %s0, %s20
    %v22 = vld [vmem:[%s21] sm:%s4]
    %s23 = scalar_lea.vmem [#allocation0], 32
    %24 = vst [vmem:[%s23] sm:%s4] %v22
    %s25 = smul.addr 4, 3
    %s26 = scalar_lea.vmem %s0, %s25
    %v27 = vld [vmem:[%s26] sm:%s4]
    %s28 = scalar_lea.vmem [#allocation0], 24
    %29 = vst [vmem:[%s28] sm:%s4] %v27
    %s30 = smul.addr 4, 2
    %s31 = scalar_lea.vmem %s0, %s30
    %v32 = vld [vmem:[%s31] sm:%s4]
    %s33 = scalar_lea.vmem [#allocation0], 16
    %34 = vst [vmem:[%s33] sm:%s4] %v32
    %s35 = scalar_lea.vmem %s0, 4
    %v36 = vld [vmem:[%s35] sm:%s4]
    %s37 = scalar_lea.vmem [#allocation0], 8
    %38 = vst [vmem:[%s37] sm:%s4] %v36
    %v39 = vld [vmem:[%s0] sm:%s4]
    %40 = vst [vmem:[#allocation0] sm:%s4] %v39
    %v41 = vld [vmem:[#allocation0] sm:$0x7]
    %42 = vst [vmem:[%s1] ss:$8 sm:$0x7] %v41
    %s43 = scalar_lea.vmem [#allocation0], 8
    %v44 = vld [vmem:[%s43] sm:$0x7]
    %s45 = scalar_lea.vmem %s1, 1
    %46 = vst [vmem:[%s45] ss:$8 sm:$0x7] %v44
    %s47 = scalar_lea.vmem [#allocation0], 16
    %v48 = vld [vmem:[%s47] sm:$0x7]
    %s49 = scalar_lea.vmem %s1, 2
    %50 = vst [vmem:[%s49] ss:$8 sm:$0x7] %v48
    %s51 = scalar_lea.vmem [#allocation0], 24
    %v52 = vld [vmem:[%s51] sm:$0x7]
    %s53 = scalar_lea.vmem %s1, 3
    %54 = vst [vmem:[%s53] ss:$8 sm:$0x7] %v52
    %s55 = scalar_lea.vmem [#allocation0], 32
    %v56 = vld [vmem:[%s55] sm:$0x7]
    %s57 = scalar_lea.vmem %s1, 4
    %58 = vst [vmem:[%s57] ss:$8 sm:$0x7] %v56
    %s59 = scalar_lea.vmem [#allocation0], 40
    %v60 = vld [vmem:[%s59] sm:$0x7]
    %s61 = scalar_lea.vmem %s1, 5
    %62 = vst [vmem:[%s61] ss:$8 sm:$0x7] %v60
    %s63 = scalar_lea.vmem [#allocation0], 48
    %v64 = vld [vmem:[%s63] sm:$0x7]
    %s65 = scalar_lea.vmem %s1, 6
    %66 = vst [vmem:[%s65] ss:$8 sm:$0x7] %v64
    %s67 = scalar_lea.vmem [#allocation0], 56
    %v68 = vld [vmem:[%s67] sm:$0x7]
    %s69 = scalar_lea.vmem %s1, 7
    %70 = vst [vmem:[%s69] ss:$8 sm:$0x7] %v68

// kernel: clip_image_features.1
$region0: #{clip_image_features.1}
  #allocation0 [shape = 'u32[]', space=smem, size = 0x4, offset = 0x4, fixed_abs, tag = 'smem constant byte address 0x4 - core index']
  #allocation1 [shape = 'u32[144,128]{1,0:T(1,128)}', space=vmem, size = 0x12000, scoped, tag = 'internal scratch']
  #allocation2 [shape = 'f32[64,128]{1,0:T(8,128)}', space=vmem, size = 0x8000, scoped, tag = 'scratch operand']
  %s0 = inlined_call_operand.vmem [shape: f32[2,64,3072], index: 0, kind: input, shape index: {}]
  %s1 = inlined_call_operand.vmem [shape: bf16[3072,128], index: 1, kind: input, shape index: {}]
  %s2 = inlined_call_operand.vmem [shape: f32[1,128], index: 2, kind: input, shape index: {}]
  %s3 = inlined_call_operand.vmem [shape: f32[1,128], index: 3, kind: input, shape index: {}]
  %s4 = inlined_call_operand.vmem [shape: f32[64,128], index: 4, kind: input, shape index: {}]
  %s5 = inlined_call_operand.vmem [shape: f32[1,128], index: 5, kind: input, shape index: {}]
  %s6 = inlined_call_operand.vmem [shape: f32[1,128], index: 6, kind: input, shape index: {}]
  %s7 = inlined_call_operand.vmem [shape: f32[2,1,128], index: 7, kind: input, shape index: {}]
  %s8 = inlined_call_operand.vmem [shape: f32[2,1,128], index: 8, kind: input, shape index: {}]
  %s9 = inlined_call_operand.vmem [shape: bf16[2,128,384], index: 9, kind: input, shape index: {}]
  %s10 = inlined_call_operand.vmem [shape: f32[2,1,384], index: 10, kind: input, shape index: {}]
  %s11 = inlined_call_operand.vmem [shape: bf16[2,128,128], index: 11, kind: input, shape index: {}]
  %s12 = inlined_call_operand.vmem [shape: f32[2,1,128], index: 12, kind: input, shape index: {}]
  %s13 = inlined_call_operand.vmem [shape: f32[2,1,128], index: 13, kind: input, shape index: {}]
  %s14 = inlined_call_operand.vmem [shape: f32[2,1,128], index: 14, kind: input, shape index: {}]
  %s15 = inlined_call_operand.vmem [shape: bf16[2,128,512], index: 15, kind: input, shape index: {}]
  %s16 = inlined_call_operand.vmem [shape: f32[2,1,512], index: 16, kind: input, shape index: {}]
  %s17 = inlined_call_operand.vmem [shape: bf16[2,512,128], index: 17, kind: input, shape index: {}]
  %s18 = inlined_call_operand.vmem [shape: f32[2,1,128], index: 18, kind: input, shape index: {}]
  %s19 = inlined_call_operand.vmem [shape: f32[1,128], index: 19, kind: input, shape index: {}]
  %s20 = inlined_call_operand.vmem [shape: f32[1,128], index: 20, kind: input, shape index: {}]
  %s21 = inlined_call_operand.vmem [shape: bf16[128,64], index: 21, kind: input, shape index: {}]
  %s22 = inlined_call_operand.hbm [shape: f32[2,1,64], index: 22, kind: output, shape index: {}]
  %s23 = sld [smem:[#allocation0]]
  $region129: #{clip_image_features.1} parent=0
    _
  %s25 = ssub.s32 1, %s23
  %s26 = scalar_select 0, %s25, %s23
  $region1: #{clip_image_features.1} parent=0
    #allocation3 [shape = 'u8[1024]{0}', space=vmem, size = 0x400, scoped, tag = 'output window, operand 0']
    #allocation4 [shape = 's32[2]{0}', space=sflag, size = 0x8, scoped, tag = 'scoped memory for clip_image_features.1']
    %27 = vsyncpa [#allocation4], 0
    %s28 = scalar_lea.sflag [#allocation4], 1
    %29 = vsyncpa %s28, 0
    loop: start=0, step=1, limit=6
    $region2: #{clip_image_features.1} parent=1 // loop_pre_header
      _
    $region3: #{clip_image_features.1} parent=1 // loop_header
      %s31 = sphi 0, %s35
      %p32 = scmp.ge.s32.totalorder %s31, 6
      %s38 = sphi 0, %s50
      %s39 = sphi 0, %s46
      %s40 = sphi 0, %s38
      %s41 = sphi 0, %s39
      %s42 = sphi 0, %s40
      %s43 = sphi 0, %s41
      %s53 = sphi 0, %s55
      %s56 = sphi 0, %s53
      %s57 = sphi 0, %s56
      %s73 = sphi 0, %s57
      %s77 = sphi 0, %s77
      %s79 = sphi 0, %s77
      %s80 = sphi 0, %s79
      %s94 = sphi 0, %s80
      %s98 = sphi 0, %s98
      %s100 = sphi 0, %s98
      %s101 = sphi 0, %s100
      %s115 = sphi 0, %s101
      %s119 = sphi 0, %s119
      %s121 = sphi 0, %s119
      %s122 = sphi 0, %s121
      %s136 = sphi 0, %s122
      %s140 = sphi 0, %s140
      %s142 = sphi 0, %s140
      %s143 = sphi 0, %s142
      %s157 = sphi 0, %s143
      %s161 = sphi 0, %s161
      %s163 = sphi 0, %s161
      %s164 = sphi 0, %s163
      %s178 = sphi 0, %s164
      %s182 = sphi 0, %s182
      %s184 = sphi 0, %s182
      %s185 = sphi 0, %s184
      %s199 = sphi 0, %s185
      %s205 = sphi 0, %s207
      %s208 = sphi 0, %s205
      %s209 = sphi 0, %s208
      %s225 = sphi 0, %s209
      %s231 = sphi 0, %s233
      %s234 = sphi 0, %s231
      %s235 = sphi 0, %s234
      %s251 = sphi 0, %s235
      %s257 = sphi 0, %s259
      %s260 = sphi 0, %s257
      %s261 = sphi 0, %s260
      %s277 = sphi 0, %s261
      %s283 = sphi 0, %s285
      %s286 = sphi 0, %s283
      %s287 = sphi 0, %s286
      %s303 = sphi 0, %s287
      %s309 = sphi 0, %s311
      %s312 = sphi 0, %s309
      %s313 = sphi 0, %s312
      %s329 = sphi 0, %s313
      %s335 = sphi 0, %s337
      %s338 = sphi 0, %s335
      %s339 = sphi 0, %s338
      %s355 = sphi 0, %s339
      %s361 = sphi 0, %s363
      %s364 = sphi 0, %s361
      %s365 = sphi 0, %s364
      %s381 = sphi 0, %s365
      %s387 = sphi 0, %s389
      %s390 = sphi 0, %s387
      %s391 = sphi 0, %s390
      %s407 = sphi 0, %s391
      %s413 = sphi 0, %s415
      %s416 = sphi 0, %s413
      %s417 = sphi 0, %s416
      %s433 = sphi 0, %s417
      %s439 = sphi 0, %s441
      %s442 = sphi 0, %s439
      %s443 = sphi 0, %s442
      %s459 = sphi 0, %s443
      %s465 = sphi 0, %s467
      %s468 = sphi 0, %s465
      %s469 = sphi 0, %s468
      %s485 = sphi 0, %s469
      %s491 = sphi 0, %s493
      %s494 = sphi 0, %s491
      %s495 = sphi 0, %s494
      %s511 = sphi 0, %s495
      %s515 = sphi 0, %s515
      %s517 = sphi 0, %s515
      %s518 = sphi 0, %s517
      %s532 = sphi 0, %s518
      %s536 = sphi 0, %s536
      %s538 = sphi 0, %s536
      %s539 = sphi 0, %s538
      %s553 = sphi 0, %s539
      %s557 = sphi 0, %s557
      %s559 = sphi 0, %s557
      %s560 = sphi 0, %s559
      %s574 = sphi 0, %s560
      %s580 = sphi 0, %s582
      %s583 = sphi 0, %s580
      %s584 = sphi 0, %s583
      %s600 = sphi 0, %s584
    $region4: #{clip_image_features.1} parent=1 // loop_header_branch
      %34 = sbr.rel (%p32) target = $region8
    $region5: #{clip_image_features.1} parent=1 // loop_body
      %s36 = ssub.s32 %s31, 1
      %s37 = ssub.s32 %s31, 2
      %s44 = sadd.s32 1, %s39
      %p45 = scmp.ge.s32.totalorder %s44, 2
      %s46 = scalar_select %p45, 0, %s44
      %s47 = sadd.s32 1, %s38
      %s48 = scalar_select %p45, %s47, %s38
      %p49 = scmp.ge.s32.totalorder %s48, 2
      %s50 = scalar_select %p49, 0, %s48
      %s51 = ssub.s32 %s38, %s50
      %p52 = scmp.eq.s32.totalorder %s51, 0
      %s54 = sadd.s32 %s53, 1
      %s55 = scalar_select %p52, %s53, %s54
      %p58 = pneg %p52
      %p59 = scmp.eq.s32.totalorder %s31, 3
      %p60 = por %p58, %p59
      %p61 = scmp.ne.s32.totalorder %s53, %s56
      %p62 = scmp.eq.s32.totalorder %s31, 0
      %p63 = por %p61, %p62
      %p64 = scmp.ne.s32.totalorder %s53, %s56
      %p65 = scmp.eq.s32.totalorder %s36, 3
      %p66 = por %p64, %p65
      %p67 = scmp.ne.s32.totalorder %s56, %s57
      %p68 = scmp.eq.s32.totalorder %s36, 0
      %p69 = por %p67, %p68
      %p70 = scmp.ne.s32.totalorder %s56, %s57
      %p71 = scmp.eq.s32.totalorder %s37, 3
      %p72 = por %p70, %p71
      %p74 = scmp.ne.s32.totalorder %s57, %s73
      %p75 = scmp.eq.s32.totalorder %s37, 0
      %p76 = por %p74, %p75
      %s78 = sadd.s32 %s77, 1
      %p81 = scmp.eq.s32.totalorder %s31, 3
      %p82 = scmp.ne.s32.totalorder %s77, %s79
      %p83 = scmp.eq.s32.totalorder %s31, 0
      %p84 = por %p82, %p83
      %p85 = scmp.ne.s32.totalorder %s77, %s79
      %p86 = scmp.eq.s32.totalorder %s36, 3
      %p87 = por %p85, %p86
      %p88 = scmp.ne.s32.totalorder %s79, %s80
      %p89 = scmp.eq.s32.totalorder %s36, 0
      %p90 = por %p88, %p89
      %p91 = scmp.ne.s32.totalorder %s79, %s80
      %p92 = scmp.eq.s32.totalorder %s37, 3
      %p93 = por %p91, %p92
      %p95 = scmp.ne.s32.totalorder %s80, %s94
      %p96 = scmp.eq.s32.totalorder %s37, 0
      %p97 = por %p95, %p96
      %s99 = sadd.s32 %s98, 1
      %p102 = scmp.eq.s32.totalorder %s31, 3
      %p103 = scmp.ne.s32.totalorder %s98, %s100
      %p104 = scmp.eq.s32.totalorder %s31, 0
      %p105 = por %p103, %p104
      %p106 = scmp.ne.s32.totalorder %s98, %s100
      %p107 = scmp.eq.s32.totalorder %s36, 3
      %p108 = por %p106, %p107
      %p109 = scmp.ne.s32.totalorder %s100, %s101
      %p110 = scmp.eq.s32.totalorder %s36, 0
      %p111 = por %p109, %p110
      %p112 = scmp.ne.s32.totalorder %s100, %s101
      %p113 = scmp.eq.s32.totalorder %s37, 3
      %p114 = por %p112, %p113
      %p116 = scmp.ne.s32.totalorder %s101, %s115
      %p117 = scmp.eq.s32.totalorder %s37, 0
      %p118 = por %p116, %p117
      %s120 = sadd.s32 %s119, 1
      %p123 = scmp.eq.s32.totalorder %s31, 3
      %p124 = scmp.ne.s32.totalorder %s119, %s121
      %p125 = scmp.eq.s32.totalorder %s31, 0
      %p126 = por %p124, %p125
      %p127 = scmp.ne.s32.totalorder %s119, %s121
      %p128 = scmp.eq.s32.totalorder %s36, 3
      %p129 = por %p127, %p128
      %p130 = scmp.ne.s32.totalorder %s121, %s122
      %p131 = scmp.eq.s32.totalorder %s36, 0
      %p132 = por %p130, %p131
      %p133 = scmp.ne.s32.totalorder %s121, %s122
      %p134 = scmp.eq.s32.totalorder %s37, 3
      %p135 = por %p133, %p134
      %p137 = scmp.ne.s32.totalorder %s122, %s136
      %p138 = scmp.eq.s32.totalorder %s37, 0
      %p139 = por %p137, %p138
      %s141 = sadd.s32 %s140, 1
      %p144 = scmp.eq.s32.totalorder %s31, 3
      %p145 = scmp.ne.s32.totalorder %s140, %s142
      %p146 = scmp.eq.s32.totalorder %s31, 0
      %p147 = por %p145, %p146
      %p148 = scmp.ne.s32.totalorder %s140, %s142
      %p149 = scmp.eq.s32.totalorder %s36, 3
      %p150 = por %p148, %p149
      %p151 = scmp.ne.s32.totalorder %s142, %s143
      %p152 = scmp.eq.s32.totalorder %s36, 0
      %p153 = por %p151, %p152
      %p154 = scmp.ne.s32.totalorder %s142, %s143
      %p155 = scmp.eq.s32.totalorder %s37, 3
      %p156 = por %p154, %p155
      %p158 = scmp.ne.s32.totalorder %s143, %s157
      %p159 = scmp.eq.s32.totalorder %s37, 0
      %p160 = por %p158, %p159
      %s162 = sadd.s32 %s161, 1
      %p165 = scmp.eq.s32.totalorder %s31, 3
      %p166 = scmp.ne.s32.totalorder %s161, %s163
      %p167 = scmp.eq.s32.totalorder %s31, 0
      %p168 = por %p166, %p167
      %p169 = scmp.ne.s32.totalorder %s161, %s163
      %p170 = scmp.eq.s32.totalorder %s36, 3
      %p171 = por %p169, %p170
      %p172 = scmp.ne.s32.totalorder %s163, %s164
      %p173 = scmp.eq.s32.totalorder %s36, 0
      %p174 = por %p172, %p173
      %p175 = scmp.ne.s32.totalorder %s163, %s164
      %p176 = scmp.eq.s32.totalorder %s37, 3
      %p177 = por %p175, %p176
      %p179 = scmp.ne.s32.totalorder %s164, %s178
      %p180 = scmp.eq.s32.totalorder %s37, 0
      %p181 = por %p179, %p180
      %s183 = sadd.s32 %s182, 1
      %p186 = scmp.eq.s32.totalorder %s31, 3
      %p187 = scmp.ne.s32.totalorder %s182, %s184
      %p188 = scmp.eq.s32.totalorder %s31, 0
      %p189 = por %p187, %p188
      %p190 = scmp.ne.s32.totalorder %s182, %s184
      %p191 = scmp.eq.s32.totalorder %s36, 3
      %p192 = por %p190, %p191
      %p193 = scmp.ne.s32.totalorder %s184, %s185
      %p194 = scmp.eq.s32.totalorder %s36, 0
      %p195 = por %p193, %p194
      %p196 = scmp.ne.s32.totalorder %s184, %s185
      %p197 = scmp.eq.s32.totalorder %s37, 3
      %p198 = por %p196, %p197
      %p200 = scmp.ne.s32.totalorder %s185, %s199
      %p201 = scmp.eq.s32.totalorder %s37, 0
      %p202 = por %p200, %p201
      %s203 = ssub.s32 %s39, %s46
      %p204 = scmp.eq.s32.totalorder %s203, 0
      %s206 = sadd.s32 %s205, 1
      %s207 = scalar_select %p204, %s205, %s206
      %p210 = pneg %p204
      %p211 = scmp.eq.s32.totalorder %s31, 3
      %p212 = por %p210, %p211
      %p213 = scmp.ne.s32.totalorder %s205, %s208
      %p214 = scmp.eq.s32.totalorder %s31, 0
      %p215 = por %p213, %p214
      %p216 = scmp.ne.s32.totalorder %s205, %s208
      %p217 = scmp.eq.s32.totalorder %s36, 3
      %p218 = por %p216, %p217
      %p219 = scmp.ne.s32.totalorder %s208, %s209
      %p220 = scmp.eq.s32.totalorder %s36, 0
      %p221 = por %p219, %p220
      %p222 = scmp.ne.s32.totalorder %s208, %s209
      %p223 = scmp.eq.s32.totalorder %s37, 3
      %p224 = por %p222, %p223
      %p226 = scmp.ne.s32.totalorder %s209, %s225
      %p227 = scmp.eq.s32.totalorder %s37, 0
      %p228 = por %p226, %p227
      %s229 = ssub.s32 %s39, %s46
      %p230 = scmp.eq.s32.totalorder %s229, 0
      %s232 = sadd.s32 %s231, 1
      %s233 = scalar_select %p230, %s231, %s232
      %p236 = pneg %p230
      %p237 = scmp.eq.s32.totalorder %s31, 3
      %p238 = por %p236, %p237
      %p239 = scmp.ne.s32.totalorder %s231, %s234
      %p240 = scmp.eq.s32.totalorder %s31, 0
      %p241 = por %p239, %p240
      %p242 = scmp.ne.s32.totalorder %s231, %s234
      %p243 = scmp.eq.s32.totalorder %s36, 3
      %p244 = por %p242, %p243
      %p245 = scmp.ne.s32.totalorder %s234, %s235
      %p246 = scmp.eq.s32.totalorder %s36, 0
      %p247 = por %p245, %p246
      %p248 = scmp.ne.s32.totalorder %s234, %s235
      %p249 = scmp.eq.s32.totalorder %s37, 3
      %p250 = por %p248, %p249
      %p252 = scmp.ne.s32.totalorder %s235, %s251
      %p253 = scmp.eq.s32.totalorder %s37, 0
      %p254 = por %p252, %p253
      %s255 = ssub.s32 %s39, %s46
      %p256 = scmp.eq.s32.totalorder %s255, 0
      %s258 = sadd.s32 %s257, 1
      %s259 = scalar_select %p256, %s257, %s258
      %p262 = pneg %p256
      %p263 = scmp.eq.s32.totalorder %s31, 3
      %p264 = por %p262, %p263
      %p265 = scmp.ne.s32.totalorder %s257, %s260
      %p266 = scmp.eq.s32.totalorder %s31, 0
      %p267 = por %p265, %p266
      %p268 = scmp.ne.s32.totalorder %s257, %s260
      %p269 = scmp.eq.s32.totalorder %s36, 3
      %p270 = por %p268, %p269
      %p271 = scmp.ne.s32.totalorder %s260, %s261
      %p272 = scmp.eq.s32.totalorder %s36, 0
      %p273 = por %p271, %p272
      %p274 = scmp.ne.s32.totalorder %s260, %s261
      %p275 = scmp.eq.s32.totalorder %s37, 3
      %p276 = por %p274, %p275
      %p278 = scmp.ne.s32.totalorder %s261, %s277
      %p279 = scmp.eq.s32.totalorder %s37, 0
      %p280 = por %p278, %p279
      %s281 = ssub.s32 %s39, %s46
      %p282 = scmp.eq.s32.totalorder %s281, 0
      %s284 = sadd.s32 %s283, 1
      %s285 = scalar_select %p282, %s283, %s284
      %p288 = pneg %p282
      %p289 = scmp.eq.s32.totalorder %s31, 3
      %p290 = por %p288, %p289
      %p291 = scmp.ne.s32.totalorder %s283, %s286
      %p292 = scmp.eq.s32.totalorder %s31, 0
      %p293 = por %p291, %p292
      %p294 = scmp.ne.s32.totalorder %s283, %s286
      %p295 = scmp.eq.s32.totalorder %s36, 3
      %p296 = por %p294, %p295
      %p297 = scmp.ne.s32.totalorder %s286, %s287
      %p298 = scmp.eq.s32.totalorder %s36, 0
      %p299 = por %p297, %p298
      %p300 = scmp.ne.s32.totalorder %s286, %s287
      %p301 = scmp.eq.s32.totalorder %s37, 3
      %p302 = por %p300, %p301
      %p304 = scmp.ne.s32.totalorder %s287, %s303
      %p305 = scmp.eq.s32.totalorder %s37, 0
      %p306 = por %p304, %p305
      %s307 = ssub.s32 %s39, %s46
      %p308 = scmp.eq.s32.totalorder %s307, 0
      %s310 = sadd.s32 %s309, 1
      %s311 = scalar_select %p308, %s309, %s310
      %p314 = pneg %p308
      %p315 = scmp.eq.s32.totalorder %s31, 3
      %p316 = por %p314, %p315
      %p317 = scmp.ne.s32.totalorder %s309, %s312
      %p318 = scmp.eq.s32.totalorder %s31, 0
      %p319 = por %p317, %p318
      %p320 = scmp.ne.s32.totalorder %s309, %s312
      %p321 = scmp.eq.s32.totalorder %s36, 3
      %p322 = por %p320, %p321
      %p323 = scmp.ne.s32.totalorder %s312, %s313
      %p324 = scmp.eq.s32.totalorder %s36, 0
      %p325 = por %p323, %p324
      %p326 = scmp.ne.s32.totalorder %s312, %s313
      %p327 = scmp.eq.s32.totalorder %s37, 3
      %p328 = por %p326, %p327
      %p330 = scmp.ne.s32.totalorder %s313, %s329
      %p331 = scmp.eq.s32.totalorder %s37, 0
      %p332 = por %p330, %p331
      %s333 = ssub.s32 %s39, %s46
      %p334 = scmp.eq.s32.totalorder %s333, 0
      %s336 = sadd.s32 %s335, 1
      %s337 = scalar_select %p334, %s335, %s336
      %p340 = pneg %p334
      %p341 = scmp.eq.s32.totalorder %s31, 3
      %p342 = por %p340, %p341
      %p343 = scmp.ne.s32.totalorder %s335, %s338
      %p344 = scmp.eq.s32.totalorder %s31, 0
      %p345 = por %p343, %p344
      %p346 = scmp.ne.s32.totalorder %s335, %s338
      %p347 = scmp.eq.s32.totalorder %s36, 3
      %p348 = por %p346, %p347
      %p349 = scmp.ne.s32.totalorder %s338, %s339
      %p350 = scmp.eq.s32.totalorder %s36, 0
      %p351 = por %p349, %p350
      %p352 = scmp.ne.s32.totalorder %s338, %s339
      %p353 = scmp.eq.s32.totalorder %s37, 3
      %p354 = por %p352, %p353
      %p356 = scmp.ne.s32.totalorder %s339, %s355
      %p357 = scmp.eq.s32.totalorder %s37, 0
      %p358 = por %p356, %p357
      %s359 = ssub.s32 %s39, %s46
      %p360 = scmp.eq.s32.totalorder %s359, 0
      %s362 = sadd.s32 %s361, 1
      %s363 = scalar_select %p360, %s361, %s362
      %p366 = pneg %p360
      %p367 = scmp.eq.s32.totalorder %s31, 3
      %p368 = por %p366, %p367
      %p369 = scmp.ne.s32.totalorder %s361, %s364
      %p370 = scmp.eq.s32.totalorder %s31, 0
      %p371 = por %p369, %p370
      %p372 = scmp.ne.s32.totalorder %s361, %s364
      %p373 = scmp.eq.s32.totalorder %s36, 3
      %p374 = por %p372, %p373
      %p375 = scmp.ne.s32.totalorder %s364, %s365
      %p376 = scmp.eq.s32.totalorder %s36, 0
      %p377 = por %p375, %p376
      %p378 = scmp.ne.s32.totalorder %s364, %s365
      %p379 = scmp.eq.s32.totalorder %s37, 3
      %p380 = por %p378, %p379
      %p382 = scmp.ne.s32.totalorder %s365, %s381
      %p383 = scmp.eq.s32.totalorder %s37, 0
      %p384 = por %p382, %p383
      %s385 = ssub.s32 %s39, %s46
      %p386 = scmp.eq.s32.totalorder %s385, 0
      %s388 = sadd.s32 %s387, 1
      %s389 = scalar_select %p386, %s387, %s388
      %p392 = pneg %p386
      %p393 = scmp.eq.s32.totalorder %s31, 3
      %p394 = por %p392, %p393
      %p395 = scmp.ne.s32.totalorder %s387, %s390
      %p396 = scmp.eq.s32.totalorder %s31, 0
      %p397 = por %p395, %p396
      %p398 = scmp.ne.s32.totalorder %s387, %s390
      %p399 = scmp.eq.s32.totalorder %s36, 3
      %p400 = por %p398, %p399
      %p401 = scmp.ne.s32.totalorder %s390, %s391
      %p402 = scmp.eq.s32.totalorder %s36, 0
      %p403 = por %p401, %p402
      %p404 = scmp.ne.s32.totalorder %s390, %s391
      %p405 = scmp.eq.s32.totalorder %s37, 3
      %p406 = por %p404, %p405
      %p408 = scmp.ne.s32.totalorder %s391, %s407
      %p409 = scmp.eq.s32.totalorder %s37, 0
      %p410 = por %p408, %p409
      %s411 = ssub.s32 %s39, %s46
      %p412 = scmp.eq.s32.totalorder %s411, 0
      %s414 = sadd.s32 %s413, 1
      %s415 = scalar_select %p412, %s413, %s414
      %p418 = pneg %p412
      %p419 = scmp.eq.s32.totalorder %s31, 3
      %p420 = por %p418, %p419
      %p421 = scmp.ne.s32.totalorder %s413, %s416
      %p422 = scmp.eq.s32.totalorder %s31, 0
      %p423 = por %p421, %p422
      %p424 = scmp.ne.s32.totalorder %s413, %s416
      %p425 = scmp.eq.s32.totalorder %s36, 3
      %p426 = por %p424, %p425
      %p427 = scmp.ne.s32.totalorder %s416, %s417
      %p428 = scmp.eq.s32.totalorder %s36, 0
      %p429 = por %p427, %p428
      %p430 = scmp.ne.s32.totalorder %s416, %s417
      %p431 = scmp.eq.s32.totalorder %s37, 3
      %p432 = por %p430, %p431
      %p434 = scmp.ne.s32.totalorder %s417, %s433
      %p435 = scmp.eq.s32.totalorder %s37, 0
      %p436 = por %p434, %p435
      %s437 = ssub.s32 %s39, %s46
      %p438 = scmp.eq.s32.totalorder %s437, 0
      %s440 = sadd.s32 %s439, 1
      %s441 = scalar_select %p438, %s439, %s440
      %p444 = pneg %p438
      %p445 = scmp.eq.s32.totalorder %s31, 3
      %p446 = por %p444, %p445
      %p447 = scmp.ne.s32.totalorder %s439, %s442
      %p448 = scmp.eq.s32.totalorder %s31, 0
      %p449 = por %p447, %p448
      %p450 = scmp.ne.s32.totalorder %s439, %s442
      %p451 = scmp.eq.s32.totalorder %s36, 3
      %p452 = por %p450, %p451
      %p453 = scmp.ne.s32.totalorder %s442, %s443
      %p454 = scmp.eq.s32.totalorder %s36, 0
      %p455 = por %p453, %p454
      %p456 = scmp.ne.s32.totalorder %s442, %s443
      %p457 = scmp.eq.s32.totalorder %s37, 3
      %p458 = por %p456, %p457
      %p460 = scmp.ne.s32.totalorder %s443, %s459
      %p461 = scmp.eq.s32.totalorder %s37, 0
      %p462 = por %p460, %p461
      %s463 = ssub.s32 %s39, %s46
      %p464 = scmp.eq.s32.totalorder %s463, 0
      %s466 = sadd.s32 %s465, 1
      %s467 = scalar_select %p464, %s465, %s466
      %p470 = pneg %p464
      %p471 = scmp.eq.s32.totalorder %s31, 3
      %p472 = por %p470, %p471
      %p473 = scmp.ne.s32.totalorder %s465, %s468
      %p474 = scmp.eq.s32.totalorder %s31, 0
      %p475 = por %p473, %p474
      %p476 = scmp.ne.s32.totalorder %s465, %s468
      %p477 = scmp.eq.s32.totalorder %s36, 3
      %p478 = por %p476, %p477
      %p479 = scmp.ne.s32.totalorder %s468, %s469
      %p480 = scmp.eq.s32.totalorder %s36, 0
      %p481 = por %p479, %p480
      %p482 = scmp.ne.s32.totalorder %s468, %s469
      %p483 = scmp.eq.s32.totalorder %s37, 3
      %p484 = por %p482, %p483
      %p486 = scmp.ne.s32.totalorder %s469, %s485
      %p487 = scmp.eq.s32.totalorder %s37, 0
      %p488 = por %p486, %p487
      %s489 = ssub.s32 %s39, %s46
      %p490 = scmp.eq.s32.totalorder %s489, 0
      %s492 = sadd.s32 %s491, 1
      %s493 = scalar_select %p490, %s491, %s492
      %p496 = pneg %p490
      %p497 = scmp.eq.s32.totalorder %s31, 3
      %p498 = por %p496, %p497
      %p499 = scmp.ne.s32.totalorder %s491, %s494
      %p500 = scmp.eq.s32.totalorder %s31, 0
      %p501 = por %p499, %p500
      %p502 = scmp.ne.s32.totalorder %s491, %s494
      %p503 = scmp.eq.s32.totalorder %s36, 3
      %p504 = por %p502, %p503
      %p505 = scmp.ne.s32.totalorder %s494, %s495
      %p506 = scmp.eq.s32.totalorder %s36, 0
      %p507 = por %p505, %p506
      %p508 = scmp.ne.s32.totalorder %s494, %s495
      %p509 = scmp.eq.s32.totalorder %s37, 3
      %p510 = por %p508, %p509
      %p512 = scmp.ne.s32.totalorder %s495, %s511
      %p513 = scmp.eq.s32.totalorder %s37, 0
      %p514 = por %p512, %p513
      %s516 = sadd.s32 %s515, 1
      %p519 = scmp.eq.s32.totalorder %s31, 3
      %p520 = scmp.ne.s32.totalorder %s515, %s517
      %p521 = scmp.eq.s32.totalorder %s31, 0
      %p522 = por %p520, %p521
      %p523 = scmp.ne.s32.totalorder %s515, %s517
      %p524 = scmp.eq.s32.totalorder %s36, 3
      %p525 = por %p523, %p524
      %p526 = scmp.ne.s32.totalorder %s517, %s518
      %p527 = scmp.eq.s32.totalorder %s36, 0
      %p528 = por %p526, %p527
      %p529 = scmp.ne.s32.totalorder %s517, %s518
      %p530 = scmp.eq.s32.totalorder %s37, 3
      %p531 = por %p529, %p530
      %p533 = scmp.ne.s32.totalorder %s518, %s532
      %p534 = scmp.eq.s32.totalorder %s37, 0
      %p535 = por %p533, %p534
      %s537 = sadd.s32 %s536, 1
      %p540 = scmp.eq.s32.totalorder %s31, 3
      %p541 = scmp.ne.s32.totalorder %s536, %s538
      %p542 = scmp.eq.s32.totalorder %s31, 0
      %p543 = por %p541, %p542
      %p544 = scmp.ne.s32.totalorder %s536, %s538
      %p545 = scmp.eq.s32.totalorder %s36, 3
      %p546 = por %p544, %p545
      %p547 = scmp.ne.s32.totalorder %s538, %s539
      %p548 = scmp.eq.s32.totalorder %s36, 0
      %p549 = por %p547, %p548
      %p550 = scmp.ne.s32.totalorder %s538, %s539
      %p551 = scmp.eq.s32.totalorder %s37, 3
      %p552 = por %p550, %p551
      %p554 = scmp.ne.s32.totalorder %s539, %s553
      %p555 = scmp.eq.s32.totalorder %s37, 0
      %p556 = por %p554, %p555
      %s558 = sadd.s32 %s557, 1
      %p561 = scmp.eq.s32.totalorder %s31, 3
      %p562 = scmp.ne.s32.totalorder %s557, %s559
      %p563 = scmp.eq.s32.totalorder %s31, 0
      %p564 = por %p562, %p563
      %p565 = scmp.ne.s32.totalorder %s557, %s559
      %p566 = scmp.eq.s32.totalorder %s36, 3
      %p567 = por %p565, %p566
      %p568 = scmp.ne.s32.totalorder %s559, %s560
      %p569 = scmp.eq.s32.totalorder %s36, 0
      %p570 = por %p568, %p569
      %p571 = scmp.ne.s32.totalorder %s559, %s560
      %p572 = scmp.eq.s32.totalorder %s37, 3
      %p573 = por %p571, %p572
      %p575 = scmp.ne.s32.totalorder %s560, %s574
      %p576 = scmp.eq.s32.totalorder %s37, 0
      %p577 = por %p575, %p576
      %s578 = ssub.s32 %s38, %s50
      %p579 = scmp.eq.s32.totalorder %s578, 0
      %s581 = sadd.s32 %s580, 1
      %s582 = scalar_select %p579, %s580, %s581
      %p585 = pneg %p579
      %p586 = scmp.eq.s32.totalorder %s31, 3
      %p587 = por %p585, %p586
      %p588 = scmp.ne.s32.totalorder %s580, %s583
      %p589 = scmp.eq.s32.totalorder %s31, 0
      %p590 = por %p588, %p589
      %p591 = scmp.ne.s32.totalorder %s580, %s583
      %p592 = scmp.eq.s32.totalorder %s36, 3
      %p593 = por %p591, %p592
      %p594 = scmp.ne.s32.totalorder %s583, %s584
      %p595 = scmp.eq.s32.totalorder %s36, 0
      %p596 = por %p594, %p595
      %p597 = scmp.ne.s32.totalorder %s583, %s584
      %p598 = scmp.eq.s32.totalorder %s37, 3
      %p599 = por %p597, %p598
      %p601 = scmp.ne.s32.totalorder %s584, %s600
      %p602 = scmp.eq.s32.totalorder %s37, 0
      %p603 = por %p601, %p602
      %p604 = scmp.le.s32.totalorder 1, %s31
      %p605 = scmp.lt.s32.totalorder %s31, 5
      %p606 = pnand %p604, %p605
      %p607 = pneg %p606
      // Predicated region
      $region9: #{clip_image_features.1} parent=5 // pred_check
        _
      $region10: #{clip_image_features.1} parent=5 // pred_check_branch
        %609 = sbr.rel (%p606) target = $region12
      $region11: #{clip_image_features.1} parent=5 // pred_region
        %s610 = ssub.s32 %s31, 1
        // Predicated region
        $region13: #{clip_image_features.1} parent=11 // pred_check
          %p611 = pneg %p90
        $region14: #{clip_image_features.1} parent=11 // pred_check_branch
          %613 = sbr.rel (%p611) target = $region16
        $region15: #{clip_image_features.1} parent=11 // pred_region
          _
        $region16: #{clip_image_features.1} parent=11 // pred_fallthru
          _
        // Predicated region
        $region17: #{clip_image_features.1} parent=11 // pred_check
          %p614 = pneg %p111
        $region18: #{clip_image_features.1} parent=11 // pred_check_branch
          %616 = sbr.rel (%p614) target = $region20
        $region19: #{clip_image_features.1} parent=11 // pred_region
          _
        $region20: #{clip_image_features.1} parent=11 // pred_fallthru
          _
        // Predicated region
        $region21: #{clip_image_features.1} parent=11 // pred_check
          %p617 = pneg %p132
        $region22: #{clip_image_features.1} parent=11 // pred_check_branch
          %619 = sbr.rel (%p617) target = $region24
        $region23: #{clip_image_features.1} parent=11 // pred_region
          _
        $region24: #{clip_image_features.1} parent=11 // pred_fallthru
          _
        // Predicated region
        $region25: #{clip_image_features.1} parent=11 // pred_check
          %p620 = pneg %p153
        $region26: #{clip_image_features.1} parent=11 // pred_check_branch
          %622 = sbr.rel (%p620) target = $region28
        $region27: #{clip_image_features.1} parent=11 // pred_region
          _
        $region28: #{clip_image_features.1} parent=11 // pred_fallthru
          _
        // Predicated region
        $region29: #{clip_image_features.1} parent=11 // pred_check
          %p623 = pneg %p174
        $region30: #{clip_image_features.1} parent=11 // pred_check_branch
          %625 = sbr.rel (%p623) target = $region32
        $region31: #{clip_image_features.1} parent=11 // pred_region
          _
        $region32: #{clip_image_features.1} parent=11 // pred_fallthru
          _
        // Predicated region
        $region33: #{clip_image_features.1} parent=11 // pred_check
          %p626 = pneg %p195
        $region34: #{clip_image_features.1} parent=11 // pred_check_branch
          %628 = sbr.rel (%p626) target = $region36
        $region35: #{clip_image_features.1} parent=11 // pred_region
          _
        $region36: #{clip_image_features.1} parent=11 // pred_fallthru
          _
        // Predicated region
        $region37: #{clip_image_features.1} parent=11 // pred_check
          %p629 = pneg %p528
        $region38: #{clip_image_features.1} parent=11 // pred_check_branch
          %631 = sbr.rel (%p629) target = $region40
        $region39: #{clip_image_features.1} parent=11 // pred_region
          _
        $region40: #{clip_image_features.1} parent=11 // pred_fallthru
          _
        // Predicated region
        $region41: #{clip_image_features.1} parent=11 // pred_check
          %p632 = pneg %p549
        $region42: #{clip_image_features.1} parent=11 // pred_check_branch
          %634 = sbr.rel (%p632) target = $region44
        $region43: #{clip_image_features.1} parent=11 // pred_region
          _
        $region44: #{clip_image_features.1} parent=11 // pred_fallthru
          _
        // Predicated region
        $region45: #{clip_image_features.1} parent=11 // pred_check
          %p635 = pneg %p570
        $region46: #{clip_image_features.1} parent=11 // pred_check_branch
          %637 = sbr.rel (%p635) target = $region48
        $region47: #{clip_image_features.1} parent=11 // pred_region
          _
        $region48: #{clip_image_features.1} parent=11 // pred_fallthru
          _
      $region12: #{clip_image_features.1} parent=5 // pred_fallthru
        _
      %p638 = scmp.lt.s32.totalorder %s31, 4
      // Predicated region
      $region49: #{clip_image_features.1} parent=5 // pred_check
        %p639 = pneg %p638
      $region50: #{clip_image_features.1} parent=5 // pred_check_branch
        %641 = sbr.rel (%p639) target = $region52
      $region51: #{clip_image_features.1} parent=5 // pred_region
        // Predicated region
        $region53: #{clip_image_features.1} parent=51 // pred_check
          %p642 = pneg %p63
        $region54: #{clip_image_features.1} parent=51 // pred_check_branch
          %644 = sbr.rel (%p642) target = $region56
        $region55: #{clip_image_features.1} parent=51 // pred_region
          %p645 = scmp.lt.s32.totalorder %s38, 1
          %s646 = scalar_select %p645, %s38, 1
          %s647 = smul.addr %s646, 192
          %s648 = smul.addr %s647, 8
          %s649 = scalar_lea.vmem %s0, %s648
        $region56: #{clip_image_features.1} parent=51 // pred_fallthru
          _
        // Predicated region
        $region57: #{clip_image_features.1} parent=51 // pred_check
          %p650 = pneg %p215
        $region58: #{clip_image_features.1} parent=51 // pred_check_branch
          %652 = sbr.rel (%p650) target = $region60
        $region59: #{clip_image_features.1} parent=51 // pred_region
          %p653 = scmp.lt.s32.totalorder %s39, 1
          %s654 = scalar_select %p653, %s39, 1
          %s655 = scalar_lea.vmem %s7, %s654
        $region60: #{clip_image_features.1} parent=51 // pred_fallthru
          _
        // Predicated region
        $region61: #{clip_image_features.1} parent=51 // pred_check
          %p656 = pneg %p241
        $region62: #{clip_image_features.1} parent=51 // pred_check_branch
          %658 = sbr.rel (%p656) target = $region64
        $region63: #{clip_image_features.1} parent=51 // pred_region
          %p659 = scmp.lt.s32.totalorder %s39, 1
          %s660 = scalar_select %p659, %s39, 1
          %s661 = scalar_lea.vmem %s8, %s660
        $region64: #{clip_image_features.1} parent=51 // pred_fallthru
          _
        // Predicated region
        $region65: #{clip_image_features.1} parent=51 // pred_check
          %p662 = pneg %p267
        $region66: #{clip_image_features.1} parent=51 // pred_check_branch
          %664 = sbr.rel (%p662) target = $region68
        $region67: #{clip_image_features.1} parent=51 // pred_region
          %p665 = scmp.lt.s32.totalorder %s39, 1
          %s666 = scalar_select %p665, %s39, 1
          %s667 = smul.addr %s666, 48
          %s668 = smul.addr %s667, 4
          %s669 = scalar_lea.vmem %s9, %s668
        $region68: #{clip_image_features.1} parent=51 // pred_fallthru
          _
        // Predicated region
        $region69: #{clip_image_features.1} parent=51 // pred_check
          %p670 = pneg %p293
        $region70: #{clip_image_features.1} parent=51 // pred_check_branch
          %672 = sbr.rel (%p670) target = $region72
        $region71: #{clip_image_features.1} parent=51 // pred_region
          %p673 = scmp.lt.s32.totalorder %s39, 1
          %s674 = scalar_select %p673, %s39, 1
          %s675 = smul.addr %s674, 3
          %s676 = scalar_lea.vmem %s10, %s675
        $region72: #{clip_image_features.1} parent=51 // pred_fallthru
          _
        // Predicated region
        $region73: #{clip_image_features.1} parent=51 // pred_check
          %p677 = pneg %p319
        $region74: #{clip_image_features.1} parent=51 // pred_check_branch
          %679 = sbr.rel (%p677) target = $region76
        $region75: #{clip_image_features.1} parent=51 // pred_region
          %p680 = scmp.lt.s32.totalorder %s39, 1
          %s681 = scalar_select %p680, %s39, 1
          %s682 = smul.addr %s681, 16
          %s683 = smul.addr %s682, 4
          %s684 = scalar_lea.vmem %s11, %s683
        $region76: #{clip_image_features.1} parent=51 // pred_fallthru
          _
        // Predicated region
        $region77: #{clip_image_features.1} parent=51 // pred_check
          %p685 = pneg %p345
        $region78: #{clip_image_features.1} parent=51 // pred_check_branch
          %687 = sbr.rel (%p685) target = $region80
        $region79: #{clip_image_features.1} parent=51 // pred_region
          %p688 = scmp.lt.s32.totalorder %s39, 1
          %s689 = scalar_select %p688, %s39, 1
          %s690 = scalar_lea.vmem %s12, %s689
        $region80: #{clip_image_features.1} parent=51 // pred_fallthru
          _
        // Predicated region
        $region81: #{clip_image_features.1} parent=51 // pred_check
          %p691 = pneg %p371
        $region82: #{clip_image_features.1} parent=51 // pred_check_branch
          %693 = sbr.rel (%p691) target = $region84
        $region83: #{clip_image_features.1} parent=51 // pred_region
          %p694 = scmp.lt.s32.totalorder %s39, 1
          %s695 = scalar_select %p694, %s39, 1
          %s696 = scalar_lea.vmem %s13, %s695
        $region84: #{clip_image_features.1} parent=51 // pred_fallthru
          _
        // Predicated region
        $region85: #{clip_image_features.1} parent=51 // pred_check
          %p697 = pneg %p397
        $region86: #{clip_image_features.1} parent=51 // pred_check_branch
          %699 = sbr.rel (%p697) target = $region88
        $region87: #{clip_image_features.1} parent=51 // pred_region
          %p700 = scmp.lt.s32.totalorder %s39, 1
          %s701 = scalar_select %p700, %s39, 1
          %s702 = scalar_lea.vmem %s14, %s701
        $region88: #{clip_image_features.1} parent=51 // pred_fallthru
          _
        // Predicated region
        $region89: #{clip_image_features.1} parent=51 // pred_check
          %p703 = pneg %p423
        $region90: #{clip_image_features.1} parent=51 // pred_check_branch
          %705 = sbr.rel (%p703) target = $region92
        $region91: #{clip_image_features.1} parent=51 // pred_region
          %p706 = scmp.lt.s32.totalorder %s39, 1
          %s707 = scalar_select %p706, %s39, 1
          %s708 = smul.addr %s707, 64
          %s709 = smul.addr %s708, 4
          %s710 = scalar_lea.vmem %s15, %s709
        $region92: #{clip_image_features.1} parent=51 // pred_fallthru
          _
        // Predicated region
        $region93: #{clip_image_features.1} parent=51 // pred_check
          %p711 = pneg %p449
        $region94: #{clip_image_features.1} parent=51 // pred_check_branch
          %713 = sbr.rel (%p711) target = $region96
        $region95: #{clip_image_features.1} parent=51 // pred_region
          %p714 = scmp.lt.s32.totalorder %s39, 1
          %s715 = scalar_select %p714, %s39, 1
          %s716 = smul.addr %s715, 4
          %s717 = scalar_lea.vmem %s16, %s716
        $region96: #{clip_image_features.1} parent=51 // pred_fallthru
          _
        // Predicated region
        $region97: #{clip_image_features.1} parent=51 // pred_check
          %p718 = pneg %p475
        $region98: #{clip_image_features.1} parent=51 // pred_check_branch
          %720 = sbr.rel (%p718) target = $region100
        $region99: #{clip_image_features.1} parent=51 // pred_region
          %p721 = scmp.lt.s32.totalorder %s39, 1
          %s722 = scalar_select %p721, %s39, 1
          %s723 = smul.addr %s722, 64
          %s724 = smul.addr %s723, 4
          %s725 = scalar_lea.vmem %s17, %s724
        $region100: #{clip_image_features.1} parent=51 // pred_fallthru
          _
        // Predicated region
        $region101: #{clip_image_features.1} parent=51 // pred_check
          %p726 = pneg %p501
        $region102: #{clip_image_features.1} parent=51 // pred_check_branch
          %728 = sbr.rel (%p726) target = $region104
        $region103: #{clip_image_features.1} parent=51 // pred_region
          %p729 = scmp.lt.s32.totalorder %s39, 1
          %s730 = scalar_select %p729, %s39, 1
          %s731 = scalar_lea.vmem %s18, %s730
        $region104: #{clip_image_features.1} parent=51 // pred_fallthru
          _
      $region52: #{clip_image_features.1} parent=5 // pred_fallthru
        _
      %p732 = scmp.le.s32.totalorder 1, %s31
      %p733 = scmp.lt.s32.totalorder %s31, 5
      %p734 = pnand %p732, %p733
      %p735 = pneg %p734
      // Predicated region
      $region105: #{clip_image_features.1} parent=5 // pred_check
        _
      $region106: #{clip_image_features.1} parent=5 // pred_check_branch
        %737 = sbr.rel (%p734) target = $region108
      $region107: #{clip_image_features.1} parent=5 // pred_region
        %s738 = ssub.s32 %s31, 1
        %p739 = scmp.lt.s32.totalorder %s40, 1
        %s740 = scalar_select %p739, %s40, 1
        %s741 = smul.addr %s740, 192
        %s742 = smul.addr %s741, 8
        %s743 = scalar_lea.vmem %s0, %s742
        %p744 = pneg %p69
        %p745 = pneg %p66
        %p746 = pneg %p90
        %p747 = pneg %p87
        %p748 = pneg %p111
        %p749 = pneg %p108
        %p750 = pneg %p132
        %p751 = pneg %p129
        %p752 = pneg %p153
        %p753 = pneg %p150
        %p754 = pneg %p174
        %p755 = pneg %p171
        %p756 = pneg %p195
        %p757 = pneg %p192
        %p758 = scmp.lt.s32.totalorder %s41, 1
        %s759 = scalar_select %p758, %s41, 1
        %s760 = scalar_lea.vmem %s7, %s759
        %p761 = pneg %p221
        %p762 = pneg %p218
        %p763 = scmp.lt.s32.totalorder %s41, 1
        %s764 = scalar_select %p763, %s41, 1
        %s765 = scalar_lea.vmem %s8, %s764
        %p766 = pneg %p247
        %p767 = pneg %p244
        %p768 = scmp.lt.s32.totalorder %s41, 1
        %s769 = scalar_select %p768, %s41, 1
        %s770 = smul.addr %s769, 48
        %s771 = smul.addr %s770, 4
        %s772 = scalar_lea.vmem %s9, %s771
        %p773 = pneg %p273
        %p774 = pneg %p270
        %p775 = scmp.lt.s32.totalorder %s41, 1
        %s776 = scalar_select %p775, %s41, 1
        %s777 = smul.addr %s776, 3
        %s778 = scalar_lea.vmem %s10, %s777
        %p779 = pneg %p299
        %p780 = pneg %p296
        %p781 = scmp.lt.s32.totalorder %s41, 1
        %s782 = scalar_select %p781, %s41, 1
        %s783 = smul.addr %s782, 16
        %s784 = smul.addr %s783, 4
        %s785 = scalar_lea.vmem %s11, %s784
        %p786 = pneg %p325
        %p787 = pneg %p322
        %p788 = scmp.lt.s32.totalorder %s41, 1
        %s789 = scalar_select %p788, %s41, 1
        %s790 = scalar_lea.vmem %s12, %s789
        %p791 = pneg %p351
        %p792 = pneg %p348
        %p793 = scmp.lt.s32.totalorder %s41, 1
        %s794 = scalar_select %p793, %s41, 1
        %s795 = scalar_lea.vmem %s13, %s794
        %p796 = pneg %p377
        %p797 = pneg %p374
        %p798 = scmp.lt.s32.totalorder %s41, 1
        %s799 = scalar_select %p798, %s41, 1
        %s800 = scalar_lea.vmem %s14, %s799
        %p801 = pneg %p403
        %p802 = pneg %p400
        %p803 = scmp.lt.s32.totalorder %s41, 1
        %s804 = scalar_select %p803, %s41, 1
        %s805 = smul.addr %s804, 64
        %s806 = smul.addr %s805, 4
        %s807 = scalar_lea.vmem %s15, %s806
        %p808 = pneg %p429
        %p809 = pneg %p426
        %p810 = scmp.lt.s32.totalorder %s41, 1
        %s811 = scalar_select %p810, %s41, 1
        %s812 = smul.addr %s811, 4
        %s813 = scalar_lea.vmem %s16, %s812
        %p814 = pneg %p455
        %p815 = pneg %p452
        %p816 = scmp.lt.s32.totalorder %s41, 1
        %s817 = scalar_select %p816, %s41, 1
        %s818 = smul.addr %s817, 64
        %s819 = smul.addr %s818, 4
        %s820 = scalar_lea.vmem %s17, %s819
        %p821 = pneg %p481
        %p822 = pneg %p478
        %p823 = scmp.lt.s32.totalorder %s41, 1
        %s824 = scalar_select %p823, %s41, 1
        %s825 = scalar_lea.vmem %s18, %s824
        %p826 = pneg %p507
        %p827 = pneg %p504
        %p828 = pneg %p528
        %p829 = pneg %p525
        %p830 = pneg %p549
        %p831 = pneg %p546
        %p832 = pneg %p570
        %p833 = pneg %p567
        %p834 = pneg %p596
        %p835 = pneg %p593
        %s836 = sand.u32 %s583, 1
        %s837 = scalar_lea.sflag [#allocation4], %s836
        %s838 = sand.u32 %s583, 1
        %s839 = scalar_lea.vmem [#allocation3], %s838
        %p840 = scmp.lt.s32.totalorder %s40, 1
        %s841 = scalar_select %p840, %s40, 1
        %s842 = smul.addr %s841, 192
        %s843 = smul.addr %s842, 8
        %s844 = scalar_lea.vmem %s0, %s843
        %p845 = scmp.lt.s32.totalorder %s41, 1
        %s846 = scalar_select %p845, %s41, 1
        %s847 = scalar_lea.vmem %s7, %s846
        %p848 = scmp.lt.s32.totalorder %s41, 1
        %s849 = scalar_select %p848, %s41, 1
        %s850 = scalar_lea.vmem %s8, %s849
        %p851 = scmp.lt.s32.totalorder %s41, 1
        %s852 = scalar_select %p851, %s41, 1
        %s853 = smul.addr %s852, 48
        %s854 = smul.addr %s853, 4
        %s855 = scalar_lea.vmem %s9, %s854
        %p856 = scmp.lt.s32.totalorder %s41, 1
        %s857 = scalar_select %p856, %s41, 1
        %s858 = smul.addr %s857, 3
        %s859 = scalar_lea.vmem %s10, %s858
        %p860 = scmp.lt.s32.totalorder %s41, 1
        %s861 = scalar_select %p860, %s41, 1
        %s862 = smul.addr %s861, 16
        %s863 = smul.addr %s862, 4
        %s864 = scalar_lea.vmem %s11, %s863
        %p865 = scmp.lt.s32.totalorder %s41, 1
        %s866 = scalar_select %p865, %s41, 1
        %s867 = scalar_lea.vmem %s12, %s866
        %p868 = scmp.lt.s32.totalorder %s41, 1
        %s869 = scalar_select %p868, %s41, 1
        %s870 = scalar_lea.vmem %s13, %s869
        %p871 = scmp.lt.s32.totalorder %s41, 1
        %s872 = scalar_select %p871, %s41, 1
        %s873 = scalar_lea.vmem %s14, %s872
        %p874 = scmp.lt.s32.totalorder %s41, 1
        %s875 = scalar_select %p874, %s41, 1
        %s876 = smul.addr %s875, 64
        %s877 = smul.addr %s876, 4
        %s878 = scalar_lea.vmem %s15, %s877
        %p879 = scmp.lt.s32.totalorder %s41, 1
        %s880 = scalar_select %p879, %s41, 1
        %s881 = smul.addr %s880, 4
        %s882 = scalar_lea.vmem %s16, %s881
        %p883 = scmp.lt.s32.totalorder %s41, 1
        %s884 = scalar_select %p883, %s41, 1
        %s885 = smul.addr %s884, 64
        %s886 = smul.addr %s885, 4
        %s887 = scalar_lea.vmem %s17, %s886
        %p888 = scmp.lt.s32.totalorder %s41, 1
        %s889 = scalar_select %p888, %s41, 1
        %s890 = scalar_lea.vmem %s18, %s889
        %p892 = scmp.eq.s32.totalorder %s41, 0
        // Predicated region
        $region109: #{clip_image_features.1} parent=107 // pred_check
          %p893 = pneg %p892
        $region110: #{clip_image_features.1} parent=107 // pred_check_branch
          %895 = sbr.rel (%p893) target = $region112
        $region111: #{clip_image_features.1} parent=107 // pred_region
          %v896 = vld [vmem:[%s844] sm:$0xff]
          %v897 = vld [vmem:[%s844 + $0x8] sm:$0xff]
          %v898 = vld [vmem:[%s844 + $0x10] sm:$0xff]
          %v899 = vld [vmem:[%s844 + $0x18] sm:$0xff]
          %v900 = vld [vmem:[%s844 + $0x20] sm:$0xff]
          %v901 = vld [vmem:[%s844 + $0x28] sm:$0xff]
          %v902 = vld [vmem:[%s844 + $0x30] sm:$0xff]
          %v903 = vld [vmem:[%s844 + $0x38] sm:$0xff]
          %v904 = vld [vmem:[%s844 + $0x40] sm:$0xff]
          %v905 = vld [vmem:[%s844 + $0x48] sm:$0xff]
          %v906 = vld [vmem:[%s844 + $0x50] sm:$0xff]
          %v907 = vld [vmem:[%s844 + $0x58] sm:$0xff]
          %v908 = vld [vmem:[%s844 + $0x60] sm:$0xff]
          %v909 = vld [vmem:[%s844 + $0x68] sm:$0xff]
          %v910 = vld [vmem:[%s844 + $0x70] sm:$0xff]
          %v911 = vld [vmem:[%s844 + $0x78] sm:$0xff]
          %v912 = vld [vmem:[%s844 + $0x80] sm:$0xff]
          %v913 = vld [vmem:[%s844 + $0x88] sm:$0xff]
          %v914 = vld [vmem:[%s844 + $0x90] sm:$0xff]
          %v915 = vld [vmem:[%s844 + $0x98] sm:$0xff]
          %v916 = vld [vmem:[%s844 + $0xa0] sm:$0xff]
          %v917 = vld [vmem:[%s844 + $0xa8] sm:$0xff]
          %v918 = vld [vmem:[%s844 + $0xb0] sm:$0xff]
          %v919 = vld [vmem:[%s844 + $0xb8] sm:$0xff]
          %v920 = vld [vmem:[%s844 + $0xc0] sm:$0xff]
          %v921 = vld [vmem:[%s844 + $0xc8] sm:$0xff]
          %v922 = vld [vmem:[%s844 + $0xd0] sm:$0xff]
          %v923 = vld [vmem:[%s844 + $0xd8] sm:$0xff]
          %v924 = vld [vmem:[%s844 + $0xe0] sm:$0xff]
          %v925 = vld [vmem:[%s844 + $0xe8] sm:$0xff]
          %v926 = vld [vmem:[%s844 + $0xf0] sm:$0xff]
          %v927 = vld [vmem:[%s844 + $0xf8] sm:$0xff]
          %v928 = vld [vmem:[%s844 + $0x100] sm:$0xff]
          %v929 = vld [vmem:[%s844 + $0x108] sm:$0xff]
          %v930 = vld [vmem:[%s844 + $0x110] sm:$0xff]
          %v931 = vld [vmem:[%s844 + $0x118] sm:$0xff]
          %v932 = vld [vmem:[%s844 + $0x120] sm:$0xff]
          %v933 = vld [vmem:[%s844 + $0x128] sm:$0xff]
          %v934 = vld [vmem:[%s844 + $0x130] sm:$0xff]
          %v935 = vld [vmem:[%s844 + $0x138] sm:$0xff]
          %v936 = vld [vmem:[%s844 + $0x140] sm:$0xff]
          %v937 = vld [vmem:[%s844 + $0x148] sm:$0xff]
          %v938 = vld [vmem:[%s844 + $0x150] sm:$0xff]
          %v939 = vld [vmem:[%s844 + $0x158] sm:$0xff]
          %v940 = vld [vmem:[%s844 + $0x160] sm:$0xff]
          %v941 = vld [vmem:[%s844 + $0x168] sm:$0xff]
          %v942 = vld [vmem:[%s844 + $0x170] sm:$0xff]
          %v943 = vld [vmem:[%s844 + $0x178] sm:$0xff]
          %v944 = vld [vmem:[%s844 + $0x180] sm:$0xff]
          %v945 = vld [vmem:[%s844 + $0x188] sm:$0xff]
          %v946 = vld [vmem:[%s844 + $0x190] sm:$0xff]
          %v947 = vld [vmem:[%s844 + $0x198] sm:$0xff]
          %v948 = vld [vmem:[%s844 + $0x1a0] sm:$0xff]
          %v949 = vld [vmem:[%s844 + $0x1a8] sm:$0xff]
          %v950 = vld [vmem:[%s844 + $0x1b0] sm:$0xff]
          %v951 = vld [vmem:[%s844 + $0x1b8] sm:$0xff]
          %v952 = vld [vmem:[%s844 + $0x1c0] sm:$0xff]
          %v953 = vld [vmem:[%s844 + $0x1c8] sm:$0xff]
          %v954 = vld [vmem:[%s844 + $0x1d0] sm:$0xff]
          %v955 = vld [vmem:[%s844 + $0x1d8] sm:$0xff]
          %v956 = vld [vmem:[%s844 + $0x1e0] sm:$0xff]
          %v957 = vld [vmem:[%s844 + $0x1e8] sm:$0xff]
          %v958 = vld [vmem:[%s844 + $0x1f0] sm:$0xff]
          %v959 = vld [vmem:[%s844 + $0x1f8] sm:$0xff]
          %v960 = vld [vmem:[%s844 + $0x200] sm:$0xff]
          %v961 = vld [vmem:[%s844 + $0x208] sm:$0xff]
          %v962 = vld [vmem:[%s844 + $0x210] sm:$0xff]
          %v963 = vld [vmem:[%s844 + $0x218] sm:$0xff]
          %v964 = vld [vmem:[%s844 + $0x220] sm:$0xff]
          %v965 = vld [vmem:[%s844 + $0x228] sm:$0xff]
          %v966 = vld [vmem:[%s844 + $0x230] sm:$0xff]
          %v967 = vld [vmem:[%s844 + $0x238] sm:$0xff]
          %v968 = vld [vmem:[%s844 + $0x240] sm:$0xff]
          %v969 = vld [vmem:[%s844 + $0x248] sm:$0xff]
          %v970 = vld [vmem:[%s844 + $0x250] sm:$0xff]
          %v971 = vld [vmem:[%s844 + $0x258] sm:$0xff]
          %v972 = vld [vmem:[%s844 + $0x260] sm:$0xff]
          %v973 = vld [vmem:[%s844 + $0x268] sm:$0xff]
          %v974 = vld [vmem:[%s844 + $0x270] sm:$0xff]
          %v975 = vld [vmem:[%s844 + $0x278] sm:$0xff]
          %v976 = vld [vmem:[%s844 + $0x280] sm:$0xff]
          %v977 = vld [vmem:[%s844 + $0x288] sm:$0xff]
          %v978 = vld [vmem:[%s844 + $0x290] sm:$0xff]
          %v979 = vld [vmem:[%s844 + $0x298] sm:$0xff]
          %v980 = vld [vmem:[%s844 + $0x2a0] sm:$0xff]
          %v981 = vld [vmem:[%s844 + $0x2a8] sm:$0xff]
          %v982 = vld [vmem:[%s844 + $0x2b0] sm:$0xff]
          %v983 = vld [vmem:[%s844 + $0x2b8] sm:$0xff]
          %v984 = vld [vmem:[%s844 + $0x2c0] sm:$0xff]
          %v985 = vld [vmem:[%s844 + $0x2c8] sm:$0xff]
          %v986 = vld [vmem:[%s844 + $0x2d0] sm:$0xff]
          %v987 = vld [vmem:[%s844 + $0x2d8] sm:$0xff]
          %v988 = vld [vmem:[%s844 + $0x2e0] sm:$0xff]
          %v989 = vld [vmem:[%s844 + $0x2e8] sm:$0xff]
          %v990 = vld [vmem:[%s844 + $0x2f0] sm:$0xff]
          %v991 = vld [vmem:[%s844 + $0x2f8] sm:$0xff]
          %v992 = vld [vmem:[%s844 + $0x300] sm:$0xff]
          %v993 = vld [vmem:[%s844 + $0x308] sm:$0xff]
          %v994 = vld [vmem:[%s844 + $0x310] sm:$0xff]
          %v995 = vld [vmem:[%s844 + $0x318] sm:$0xff]
          %v996 = vld [vmem:[%s844 + $0x320] sm:$0xff]
          %v997 = vld [vmem:[%s844 + $0x328] sm:$0xff]
          %v998 = vld [vmem:[%s844 + $0x330] sm:$0xff]
          %v999 = vld [vmem:[%s844 + $0x338] sm:$0xff]
          %v1000 = vld [vmem:[%s844 + $0x340] sm:$0xff]
          %v1001 = vld [vmem:[%s844 + $0x348] sm:$0xff]
          %v1002 = vld [vmem:[%s844 + $0x350] sm:$0xff]
          %v1003 = vld [vmem:[%s844 + $0x358] sm:$0xff]
          %v1004 = vld [vmem:[%s844 + $0x360] sm:$0xff]
          %v1005 = vld [vmem:[%s844 + $0x368] sm:$0xff]
          %v1006 = vld [vmem:[%s844 + $0x370] sm:$0xff]
          %v1007 = vld [vmem:[%s844 + $0x378] sm:$0xff]
          %v1008 = vld [vmem:[%s844 + $0x380] sm:$0xff]
          %v1009 = vld [vmem:[%s844 + $0x388] sm:$0xff]
          %v1010 = vld [vmem:[%s844 + $0x390] sm:$0xff]
          %v1011 = vld [vmem:[%s844 + $0x398] sm:$0xff]
          %v1012 = vld [vmem:[%s844 + $0x3a0] sm:$0xff]
          %v1013 = vld [vmem:[%s844 + $0x3a8] sm:$0xff]
          %v1014 = vld [vmem:[%s844 + $0x3b0] sm:$0xff]
          %v1015 = vld [vmem:[%s844 + $0x3b8] sm:$0xff]
          %v1016 = vld [vmem:[%s844 + $0x3c0] sm:$0xff]
          %v1017 = vld [vmem:[%s844 + $0x3c8] sm:$0xff]
          %v1018 = vld [vmem:[%s844 + $0x3d0] sm:$0xff]
          %v1019 = vld [vmem:[%s844 + $0x3d8] sm:$0xff]
          %v1020 = vld [vmem:[%s844 + $0x3e0] sm:$0xff]
          %v1021 = vld [vmem:[%s844 + $0x3e8] sm:$0xff]
          %v1022 = vld [vmem:[%s844 + $0x3f0] sm:$0xff]
          %v1023 = vld [vmem:[%s844 + $0x3f8] sm:$0xff]
          %v1024 = vld [vmem:[%s844 + $0x400] sm:$0xff]
          %v1025 = vld [vmem:[%s844 + $0x408] sm:$0xff]
          %v1026 = vld [vmem:[%s844 + $0x410] sm:$0xff]
          %v1027 = vld [vmem:[%s844 + $0x418] sm:$0xff]
          %v1028 = vld [vmem:[%s844 + $0x420] sm:$0xff]
          %v1029 = vld [vmem:[%s844 + $0x428] sm:$0xff]
          %v1030 = vld [vmem:[%s844 + $0x430] sm:$0xff]
          %v1031 = vld [vmem:[%s844 + $0x438] sm:$0xff]
          %v1032 = vld [vmem:[%s844 + $0x440] sm:$0xff]
          %v1033 = vld [vmem:[%s844 + $0x448] sm:$0xff]
          %v1034 = vld [vmem:[%s844 + $0x450] sm:$0xff]
          %v1035 = vld [vmem:[%s844 + $0x458] sm:$0xff]
          %v1036 = vld [vmem:[%s844 + $0x460] sm:$0xff]
          %v1037 = vld [vmem:[%s844 + $0x468] sm:$0xff]
          %v1038 = vld [vmem:[%s844 + $0x470] sm:$0xff]
          %v1039 = vld [vmem:[%s844 + $0x478] sm:$0xff]
          %v1040 = vld [vmem:[%s844 + $0x480] sm:$0xff]
          %v1041 = vld [vmem:[%s844 + $0x488] sm:$0xff]
          %v1042 = vld [vmem:[%s844 + $0x490] sm:$0xff]
          %v1043 = vld [vmem:[%s844 + $0x498] sm:$0xff]
          %v1044 = vld [vmem:[%s844 + $0x4a0] sm:$0xff]
          %v1045 = vld [vmem:[%s844 + $0x4a8] sm:$0xff]
          %v1046 = vld [vmem:[%s844 + $0x4b0] sm:$0xff]
          %v1047 = vld [vmem:[%s844 + $0x4b8] sm:$0xff]
          %v1048 = vld [vmem:[%s844 + $0x4c0] sm:$0xff]
          %v1049 = vld [vmem:[%s844 + $0x4c8] sm:$0xff]
          %v1050 = vld [vmem:[%s844 + $0x4d0] sm:$0xff]
          %v1051 = vld [vmem:[%s844 + $0x4d8] sm:$0xff]
          %v1052 = vld [vmem:[%s844 + $0x4e0] sm:$0xff]
          %v1053 = vld [vmem:[%s844 + $0x4e8] sm:$0xff]
          %v1054 = vld [vmem:[%s844 + $0x4f0] sm:$0xff]
          %v1055 = vld [vmem:[%s844 + $0x4f8] sm:$0xff]
          %v1056 = vld [vmem:[%s844 + $0x500] sm:$0xff]
          %v1057 = vld [vmem:[%s844 + $0x508] sm:$0xff]
          %v1058 = vld [vmem:[%s844 + $0x510] sm:$0xff]
          %v1059 = vld [vmem:[%s844 + $0x518] sm:$0xff]
          %v1060 = vld [vmem:[%s844 + $0x520] sm:$0xff]
          %v1061 = vld [vmem:[%s844 + $0x528] sm:$0xff]
          %v1062 = vld [vmem:[%s844 + $0x530] sm:$0xff]
          %v1063 = vld [vmem:[%s844 + $0x538] sm:$0xff]
          %v1064 = vld [vmem:[%s844 + $0x540] sm:$0xff]
          %v1065 = vld [vmem:[%s844 + $0x548] sm:$0xff]
          %v1066 = vld [vmem:[%s844 + $0x550] sm:$0xff]
          %v1067 = vld [vmem:[%s844 + $0x558] sm:$0xff]
          %v1068 = vld [vmem:[%s844 + $0x560] sm:$0xff]
          %v1069 = vld [vmem:[%s844 + $0x568] sm:$0xff]
          %v1070 = vld [vmem:[%s844 + $0x570] sm:$0xff]
          %v1071 = vld [vmem:[%s844 + $0x578] sm:$0xff]
          %v1072 = vld [vmem:[%s844 + $0x580] sm:$0xff]
          %v1073 = vld [vmem:[%s844 + $0x588] sm:$0xff]
          %v1074 = vld [vmem:[%s844 + $0x590] sm:$0xff]
          %v1075 = vld [vmem:[%s844 + $0x598] sm:$0xff]
          %v1076 = vld [vmem:[%s844 + $0x5a0] sm:$0xff]
          %v1077 = vld [vmem:[%s844 + $0x5a8] sm:$0xff]
          %v1078 = vld [vmem:[%s844 + $0x5b0] sm:$0xff]
          %v1079 = vld [vmem:[%s844 + $0x5b8] sm:$0xff]
          %v1080 = vld [vmem:[%s844 + $0x5c0] sm:$0xff]
          %v1081 = vld [vmem:[%s844 + $0x5c8] sm:$0xff]
          %v1082 = vld [vmem:[%s844 + $0x5d0] sm:$0xff]
          %v1083 = vld [vmem:[%s844 + $0x5d8] sm:$0xff]
          %v1084 = vld [vmem:[%s844 + $0x5e0] sm:$0xff]
          %v1085 = vld [vmem:[%s844 + $0x5e8] sm:$0xff]
          %v1086 = vld [vmem:[%s844 + $0x5f0] sm:$0xff]
          %v1087 = vld [vmem:[%s844 + $0x5f8] sm:$0xff]
          %v1088 = vpack.c.bf16 %v920, %v896
          %v1089 = vpack.c.bf16 %v921, %v897
          %v1090 = vpack.c.bf16 %v922, %v898
          %v1091 = vpack.c.bf16 %v923, %v899
          %v1092 = vpack.c.bf16 %v924, %v900
          %v1093 = vpack.c.bf16 %v925, %v901
          %v1094 = vpack.c.bf16 %v926, %v902
          %v1095 = vpack.c.bf16 %v927, %v903
          %v1096 = vpack.c.bf16 %v928, %v904
          %v1097 = vpack.c.bf16 %v929, %v905
          %v1098 = vpack.c.bf16 %v930, %v906
          %v1099 = vpack.c.bf16 %v931, %v907
          %v1100 = vpack.c.bf16 %v932, %v908
          %v1101 = vpack.c.bf16 %v933, %v909
          %v1102 = vpack.c.bf16 %v934, %v910
          %v1103 = vpack.c.bf16 %v935, %v911
          %v1104 = vpack.c.bf16 %v936, %v912
          %v1105 = vpack.c.bf16 %v937, %v913
          %v1106 = vpack.c.bf16 %v938, %v914
          %v1107 = vpack.c.bf16 %v939, %v915
          %v1108 = vpack.c.bf16 %v940, %v916
          %v1109 = vpack.c.bf16 %v941, %v917
          %v1110 = vpack.c.bf16 %v942, %v918
          %v1111 = vpack.c.bf16 %v943, %v919
          %v1112 = vpack.c.bf16 %v968, %v944
          %v1113 = vpack.c.bf16 %v969, %v945
          %v1114 = vpack.c.bf16 %v970, %v946
          %v1115 = vpack.c.bf16 %v971, %v947
          %v1116 = vpack.c.bf16 %v972, %v948
          %v1117 = vpack.c.bf16 %v973, %v949
          %v1118 = vpack.c.bf16 %v974, %v950
          %v1119 = vpack.c.bf16 %v975, %v951
          %v1120 = vpack.c.bf16 %v976, %v952
          %v1121 = vpack.c.bf16 %v977, %v953
          %v1122 = vpack.c.bf16 %v978, %v954
          %v1123 = vpack.c.bf16 %v979, %v955
          %v1124 = vpack.c.bf16 %v980, %v956
          %v1125 = vpack.c.bf16 %v981, %v957
          %v1126 = vpack.c.bf16 %v982, %v958
          %v1127 = vpack.c.bf16 %v983, %v959
          %v1128 = vpack.c.bf16 %v984, %v960
          %v1129 = vpack.c.bf16 %v985, %v961
          %v1130 = vpack.c.bf16 %v986, %v962
          %v1131 = vpack.c.bf16 %v987, %v963
          %v1132 = vpack.c.bf16 %v988, %v964
          %v1133 = vpack.c.bf16 %v989, %v965
          %v1134 = vpack.c.bf16 %v990, %v966
          %v1135 = vpack.c.bf16 %v991, %v967
          %v1136 = vpack.c.bf16 %v1016, %v992
          %v1137 = vpack.c.bf16 %v1017, %v993
          %v1138 = vpack.c.bf16 %v1018, %v994
          %v1139 = vpack.c.bf16 %v1019, %v995
          %v1140 = vpack.c.bf16 %v1020, %v996
          %v1141 = vpack.c.bf16 %v1021, %v997
          %v1142 = vpack.c.bf16 %v1022, %v998
          %v1143 = vpack.c.bf16 %v1023, %v999
          %v1144 = vpack.c.bf16 %v1024, %v1000
          %v1145 = vpack.c.bf16 %v1025, %v1001
          %v1146 = vpack.c.bf16 %v1026, %v1002
          %v1147 = vpack.c.bf16 %v1027, %v1003
          %v1148 = vpack.c.bf16 %v1028, %v1004
          %v1149 = vpack.c.bf16 %v1029, %v1005
          %v1150 = vpack.c.bf16 %v1030, %v1006
          %v1151 = vpack.c.bf16 %v1031, %v1007
          %v1152 = vpack.c.bf16 %v1032, %v1008
          %v1153 = vpack.c.bf16 %v1033, %v1009
          %v1154 = vpack.c.bf16 %v1034, %v1010
          %v1155 = vpack.c.bf16 %v1035, %v1011
          %v1156 = vpack.c.bf16 %v1036, %v1012
          %v1157 = vpack.c.bf16 %v1037, %v1013
          %v1158 = vpack.c.bf16 %v1038, %v1014
          %v1159 = vpack.c.bf16 %v1039, %v1015
          %v1160 = vpack.c.bf16 %v1064, %v1040
          %v1161 = vpack.c.bf16 %v1065, %v1041
          %v1162 = vpack.c.bf16 %v1066, %v1042
          %v1163 = vpack.c.bf16 %v1067, %v1043
          %v1164 = vpack.c.bf16 %v1068, %v1044
          %v1165 = vpack.c.bf16 %v1069, %v1045
          %v1166 = vpack.c.bf16 %v1070, %v1046
          %v1167 = vpack.c.bf16 %v1071, %v1047
          %v1168 = vpack.c.bf16 %v1072, %v1048
          %v1169 = vpack.c.bf16 %v1073, %v1049
          %v1170 = vpack.c.bf16 %v1074, %v1050
          %v1171 = vpack.c.bf16 %v1075, %v1051
          %v1172 = vpack.c.bf16 %v1076, %v1052
          %v1173 = vpack.c.bf16 %v1077, %v1053
          %v1174 = vpack.c.bf16 %v1078, %v1054
          %v1175 = vpack.c.bf16 %v1079, %v1055
          %v1176 = vpack.c.bf16 %v1080, %v1056
          %v1177 = vpack.c.bf16 %v1081, %v1057
          %v1178 = vpack.c.bf16 %v1082, %v1058
          %v1179 = vpack.c.bf16 %v1083, %v1059
          %v1180 = vpack.c.bf16 %v1084, %v1060
          %v1181 = vpack.c.bf16 %v1085, %v1061
          %v1182 = vpack.c.bf16 %v1086, %v1062
          %v1183 = vpack.c.bf16 %v1087, %v1063
          %v1184 = vld [vmem:[%s1] sm:$0xf]
          %v1185 = vld [vmem:[%s1 + $0x4] sm:$0xf]
          %v1186 = vld [vmem:[%s1 + $0x8] sm:$0xf]
          %v1187 = vld [vmem:[%s1 + $0xc] sm:$0xf]
          %v1188 = vld [vmem:[%s1 + $0x10] sm:$0xf]
          %v1189 = vld [vmem:[%s1 + $0x14] sm:$0xf]
          %v1190 = vld [vmem:[%s1 + $0x18] sm:$0xf]
          %v1191 = vld [vmem:[%s1 + $0x1c] sm:$0xf]
          %v1192 = vld [vmem:[%s1 + $0x20] sm:$0xf]
          %v1193 = vld [vmem:[%s1 + $0x24] sm:$0xf]
          %v1194 = vld [vmem:[%s1 + $0x28] sm:$0xf]
          %v1195 = vld [vmem:[%s1 + $0x2c] sm:$0xf]
          %v1196 = vld [vmem:[%s1 + $0x30] sm:$0xf]
          %v1197 = vld [vmem:[%s1 + $0x34] sm:$0xf]
          %v1198 = vld [vmem:[%s1 + $0x38] sm:$0xf]
          %v1199 = vld [vmem:[%s1 + $0x3c] sm:$0xf]
          %v1200 = vld [vmem:[%s1 + $0x40] sm:$0xf]
          %v1201 = vld [vmem:[%s1 + $0x44] sm:$0xf]
          %v1202 = vld [vmem:[%s1 + $0x48] sm:$0xf]
          %v1203 = vld [vmem:[%s1 + $0x4c] sm:$0xf]
          %v1204 = vld [vmem:[%s1 + $0x50] sm:$0xf]
          %v1205 = vld [vmem:[%s1 + $0x54] sm:$0xf]
          %v1206 = vld [vmem:[%s1 + $0x58] sm:$0xf]
          %v1207 = vld [vmem:[%s1 + $0x5c] sm:$0xf]
          %v1208 = vld [vmem:[%s1 + $0x60] sm:$0xf]
          %v1209 = vld [vmem:[%s1 + $0x64] sm:$0xf]
          %v1210 = vld [vmem:[%s1 + $0x68] sm:$0xf]
          %v1211 = vld [vmem:[%s1 + $0x6c] sm:$0xf]
          %v1212 = vld [vmem:[%s1 + $0x70] sm:$0xf]
          %v1213 = vld [vmem:[%s1 + $0x74] sm:$0xf]
          %v1214 = vld [vmem:[%s1 + $0x78] sm:$0xf]
          %v1215 = vld [vmem:[%s1 + $0x7c] sm:$0xf]
          %v1216 = vld [vmem:[%s1 + $0x80] sm:$0xf]
          %v1217 = vld [vmem:[%s1 + $0x84] sm:$0xf]
          %v1218 = vld [vmem:[%s1 + $0x88] sm:$0xf]
          %v1219 = vld [vmem:[%s1 + $0x8c] sm:$0xf]
          %v1220 = vld [vmem:[%s1 + $0x90] sm:$0xf]
          %v1221 = vld [vmem:[%s1 + $0x94] sm:$0xf]
          %v1222 = vld [vmem:[%s1 + $0x98] sm:$0xf]
          %v1223 = vld [vmem:[%s1 + $0x9c] sm:$0xf]
          %v1224 = vld [vmem:[%s1 + $0xa0] sm:$0xf]
          %v1225 = vld [vmem:[%s1 + $0xa4] sm:$0xf]
          %v1226 = vld [vmem:[%s1 + $0xa8] sm:$0xf]
          %v1227 = vld [vmem:[%s1 + $0xac] sm:$0xf]
          %v1228 = vld [vmem:[%s1 + $0xb0] sm:$0xf]
          %v1229 = vld [vmem:[%s1 + $0xb4] sm:$0xf]
          %v1230 = vld [vmem:[%s1 + $0xb8] sm:$0xf]
          %v1231 = vld [vmem:[%s1 + $0xbc] sm:$0xf]
          %v1232 = vld [vmem:[%s1 + $0xc0] sm:$0xf]
          %v1233 = vld [vmem:[%s1 + $0xc4] sm:$0xf]
          %v1234 = vld [vmem:[%s1 + $0xc8] sm:$0xf]
          %v1235 = vld [vmem:[%s1 + $0xcc] sm:$0xf]
          %v1236 = vld [vmem:[%s1 + $0xd0] sm:$0xf]
          %v1237 = vld [vmem:[%s1 + $0xd4] sm:$0xf]
          %v1238 = vld [vmem:[%s1 + $0xd8] sm:$0xf]
          %v1239 = vld [vmem:[%s1 + $0xdc] sm:$0xf]
          %v1240 = vld [vmem:[%s1 + $0xe0] sm:$0xf]
          %v1241 = vld [vmem:[%s1 + $0xe4] sm:$0xf]
          %v1242 = vld [vmem:[%s1 + $0xe8] sm:$0xf]
          %v1243 = vld [vmem:[%s1 + $0xec] sm:$0xf]
          %v1244 = vld [vmem:[%s1 + $0xf0] sm:$0xf]
          %v1245 = vld [vmem:[%s1 + $0xf4] sm:$0xf]
          %v1246 = vld [vmem:[%s1 + $0xf8] sm:$0xf]
          %v1247 = vld [vmem:[%s1 + $0xfc] sm:$0xf]
          %v1248 = vld [vmem:[%s1 + $0x100] sm:$0xf]
          %v1249 = vld [vmem:[%s1 + $0x104] sm:$0xf]
          %v1250 = vld [vmem:[%s1 + $0x108] sm:$0xf]
          %v1251 = vld [vmem:[%s1 + $0x10c] sm:$0xf]
          %v1252 = vld [vmem:[%s1 + $0x110] sm:$0xf]
          %v1253 = vld [vmem:[%s1 + $0x114] sm:$0xf]
          %v1254 = vld [vmem:[%s1 + $0x118] sm:$0xf]
          %v1255 = vld [vmem:[%s1 + $0x11c] sm:$0xf]
          %v1256 = vld [vmem:[%s1 + $0x120] sm:$0xf]
          %v1257 = vld [vmem:[%s1 + $0x124] sm:$0xf]
          %v1258 = vld [vmem:[%s1 + $0x128] sm:$0xf]
          %v1259 = vld [vmem:[%s1 + $0x12c] sm:$0xf]
          %v1260 = vld [vmem:[%s1 + $0x130] sm:$0xf]
          %v1261 = vld [vmem:[%s1 + $0x134] sm:$0xf]
          %v1262 = vld [vmem:[%s1 + $0x138] sm:$0xf]
          %v1263 = vld [vmem:[%s1 + $0x13c] sm:$0xf]
          %v1264 = vld [vmem:[%s1 + $0x140] sm:$0xf]
          %v1265 = vld [vmem:[%s1 + $0x144] sm:$0xf]
          %v1266 = vld [vmem:[%s1 + $0x148] sm:$0xf]
          %v1267 = vld [vmem:[%s1 + $0x14c] sm:$0xf]
          %v1268 = vld [vmem:[%s1 + $0x150] sm:$0xf]
          %v1269 = vld [vmem:[%s1 + $0x154] sm:$0xf]
          %v1270 = vld [vmem:[%s1 + $0x158] sm:$0xf]
          %v1271 = vld [vmem:[%s1 + $0x15c] sm:$0xf]
          %v1272 = vld [vmem:[%s1 + $0x160] sm:$0xf]
          %v1273 = vld [vmem:[%s1 + $0x164] sm:$0xf]
          %v1274 = vld [vmem:[%s1 + $0x168] sm:$0xf]
          %v1275 = vld [vmem:[%s1 + $0x16c] sm:$0xf]
          %v1276 = vld [vmem:[%s1 + $0x170] sm:$0xf]
          %v1277 = vld [vmem:[%s1 + $0x174] sm:$0xf]
          %v1278 = vld [vmem:[%s1 + $0x178] sm:$0xf]
          %v1279 = vld [vmem:[%s1 + $0x17c] sm:$0xf]
          %v1280 = vld [vmem:[%s1 + $0x180] sm:$0xf]
          %v1281 = vld [vmem:[%s1 + $0x184] sm:$0xf]
          %v1282 = vld [vmem:[%s1 + $0x188] sm:$0xf]
          %v1283 = vld [vmem:[%s1 + $0x18c] sm:$0xf]
          %v1284 = vld [vmem:[%s1 + $0x190] sm:$0xf]
          %v1285 = vld [vmem:[%s1 + $0x194] sm:$0xf]
          %v1286 = vld [vmem:[%s1 + $0x198] sm:$0xf]
          %v1287 = vld [vmem:[%s1 + $0x19c] sm:$0xf]
          %v1288 = vld [vmem:[%s1 + $0x1a0] sm:$0xf]
          %v1289 = vld [vmem:[%s1 + $0x1a4] sm:$0xf]
          %v1290 = vld [vmem:[%s1 + $0x1a8] sm:$0xf]
          %v1291 = vld [vmem:[%s1 + $0x1ac] sm:$0xf]
          %v1292 = vld [vmem:[%s1 + $0x1b0] sm:$0xf]
          %v1293 = vld [vmem:[%s1 + $0x1b4] sm:$0xf]
          %v1294 = vld [vmem:[%s1 + $0x1b8] sm:$0xf]
          %v1295 = vld [vmem:[%s1 + $0x1bc] sm:$0xf]
          %v1296 = vld [vmem:[%s1 + $0x1c0] sm:$0xf]
          %v1297 = vld [vmem:[%s1 + $0x1c4] sm:$0xf]
          %v1298 = vld [vmem:[%s1 + $0x1c8] sm:$0xf]
          %v1299 = vld [vmem:[%s1 + $0x1cc] sm:$0xf]
          %v1300 = vld [vmem:[%s1 + $0x1d0] sm:$0xf]
          %v1301 = vld [vmem:[%s1 + $0x1d4] sm:$0xf]
          %v1302 = vld [vmem:[%s1 + $0x1d8] sm:$0xf]
          %v1303 = vld [vmem:[%s1 + $0x1dc] sm:$0xf]
          %v1304 = vld [vmem:[%s1 + $0x1e0] sm:$0xf]
          %v1305 = vld [vmem:[%s1 + $0x1e4] sm:$0xf]
          %v1306 = vld [vmem:[%s1 + $0x1e8] sm:$0xf]
          %v1307 = vld [vmem:[%s1 + $0x1ec] sm:$0xf]
          %v1308 = vld [vmem:[%s1 + $0x1f0] sm:$0xf]
          %v1309 = vld [vmem:[%s1 + $0x1f4] sm:$0xf]
          %v1310 = vld [vmem:[%s1 + $0x1f8] sm:$0xf]
          %v1311 = vld [vmem:[%s1 + $0x1fc] sm:$0xf]
          %v1312 = vld [vmem:[%s1 + $0x200] sm:$0xf]
          %v1313 = vld [vmem:[%s1 + $0x204] sm:$0xf]
          %v1314 = vld [vmem:[%s1 + $0x208] sm:$0xf]
          %v1315 = vld [vmem:[%s1 + $0x20c] sm:$0xf]
          %v1316 = vld [vmem:[%s1 + $0x210] sm:$0xf]
          %v1317 = vld [vmem:[%s1 + $0x214] sm:$0xf]
          %v1318 = vld [vmem:[%s1 + $0x218] sm:$0xf]
          %v1319 = vld [vmem:[%s1 + $0x21c] sm:$0xf]
          %v1320 = vld [vmem:[%s1 + $0x220] sm:$0xf]
          %v1321 = vld [vmem:[%s1 + $0x224] sm:$0xf]
          %v1322 = vld [vmem:[%s1 + $0x228] sm:$0xf]
          %v1323 = vld [vmem:[%s1 + $0x22c] sm:$0xf]
          %v1324 = vld [vmem:[%s1 + $0x230] sm:$0xf]
          %v1325 = vld [vmem:[%s1 + $0x234] sm:$0xf]
          %v1326 = vld [vmem:[%s1 + $0x238] sm:$0xf]
          %v1327 = vld [vmem:[%s1 + $0x23c] sm:$0xf]
          %v1328 = vld [vmem:[%s1 + $0x240] sm:$0xf]
          %v1329 = vld [vmem:[%s1 + $0x244] sm:$0xf]
          %v1330 = vld [vmem:[%s1 + $0x248] sm:$0xf]
          %v1331 = vld [vmem:[%s1 + $0x24c] sm:$0xf]
          %v1332 = vld [vmem:[%s1 + $0x250] sm:$0xf]
          %v1333 = vld [vmem:[%s1 + $0x254] sm:$0xf]
          %v1334 = vld [vmem:[%s1 + $0x258] sm:$0xf]
          %v1335 = vld [vmem:[%s1 + $0x25c] sm:$0xf]
          %v1336 = vld [vmem:[%s1 + $0x260] sm:$0xf]
          %v1337 = vld [vmem:[%s1 + $0x264] sm:$0xf]
          %v1338 = vld [vmem:[%s1 + $0x268] sm:$0xf]
          %v1339 = vld [vmem:[%s1 + $0x26c] sm:$0xf]
          %v1340 = vld [vmem:[%s1 + $0x270] sm:$0xf]
          %v1341 = vld [vmem:[%s1 + $0x274] sm:$0xf]
          %v1342 = vld [vmem:[%s1 + $0x278] sm:$0xf]
          %v1343 = vld [vmem:[%s1 + $0x27c] sm:$0xf]
          %v1344 = vld [vmem:[%s1 + $0x280] sm:$0xf]
          %v1345 = vld [vmem:[%s1 + $0x284] sm:$0xf]
          %v1346 = vld [vmem:[%s1 + $0x288] sm:$0xf]
          %v1347 = vld [vmem:[%s1 + $0x28c] sm:$0xf]
          %v1348 = vld [vmem:[%s1 + $0x290] sm:$0xf]
          %v1349 = vld [vmem:[%s1 + $0x294] sm:$0xf]
          %v1350 = vld [vmem:[%s1 + $0x298] sm:$0xf]
          %v1351 = vld [vmem:[%s1 + $0x29c] sm:$0xf]
          %v1352 = vld [vmem:[%s1 + $0x2a0] sm:$0xf]
          %v1353 = vld [vmem:[%s1 + $0x2a4] sm:$0xf]
          %v1354 = vld [vmem:[%s1 + $0x2a8] sm:$0xf]
          %v1355 = vld [vmem:[%s1 + $0x2ac] sm:$0xf]
          %v1356 = vld [vmem:[%s1 + $0x2b0] sm:$0xf]
          %v1357 = vld [vmem:[%s1 + $0x2b4] sm:$0xf]
          %v1358 = vld [vmem:[%s1 + $0x2b8] sm:$0xf]
          %v1359 = vld [vmem:[%s1 + $0x2bc] sm:$0xf]
          %v1360 = vld [vmem:[%s1 + $0x2c0] sm:$0xf]
          %v1361 = vld [vmem:[%s1 + $0x2c4] sm:$0xf]
          %v1362 = vld [vmem:[%s1 + $0x2c8] sm:$0xf]
          %v1363 = vld [vmem:[%s1 + $0x2cc] sm:$0xf]
          %v1364 = vld [vmem:[%s1 + $0x2d0] sm:$0xf]
          %v1365 = vld [vmem:[%s1 + $0x2d4] sm:$0xf]
          %v1366 = vld [vmem:[%s1 + $0x2d8] sm:$0xf]
          %v1367 = vld [vmem:[%s1 + $0x2dc] sm:$0xf]
          %v1368 = vld [vmem:[%s1 + $0x2e0] sm:$0xf]
          %v1369 = vld [vmem:[%s1 + $0x2e4] sm:$0xf]
          %v1370 = vld [vmem:[%s1 + $0x2e8] sm:$0xf]
          %v1371 = vld [vmem:[%s1 + $0x2ec] sm:$0xf]
          %v1372 = vld [vmem:[%s1 + $0x2f0] sm:$0xf]
          %v1373 = vld [vmem:[%s1 + $0x2f4] sm:$0xf]
          %v1374 = vld [vmem:[%s1 + $0x2f8] sm:$0xf]
          %v1375 = vld [vmem:[%s1 + $0x2fc] sm:$0xf]
          %v1376 = vld [vmem:[%s1 + $0x300] sm:$0xf]
          %v1377 = vld [vmem:[%s1 + $0x304] sm:$0xf]
          %v1378 = vld [vmem:[%s1 + $0x308] sm:$0xf]
          %v1379 = vld [vmem:[%s1 + $0x30c] sm:$0xf]
          %v1380 = vld [vmem:[%s1 + $0x310] sm:$0xf]
          %v1381 = vld [vmem:[%s1 + $0x314] sm:$0xf]
          %v1382 = vld [vmem:[%s1 + $0x318] sm:$0xf]
          %v1383 = vld [vmem:[%s1 + $0x31c] sm:$0xf]
          %v1384 = vld [vmem:[%s1 + $0x320] sm:$0xf]
          %v1385 = vld [vmem:[%s1 + $0x324] sm:$0xf]
          %v1386 = vld [vmem:[%s1 + $0x328] sm:$0xf]
          %v1387 = vld [vmem:[%s1 + $0x32c] sm:$0xf]
          %v1388 = vld [vmem:[%s1 + $0x330] sm:$0xf]
          %v1389 = vld [vmem:[%s1 + $0x334] sm:$0xf]
          %v1390 = vld [vmem:[%s1 + $0x338] sm:$0xf]
          %v1391 = vld [vmem:[%s1 + $0x33c] sm:$0xf]
          %v1392 = vld [vmem:[%s1 + $0x340] sm:$0xf]
          %v1393 = vld [vmem:[%s1 + $0x344] sm:$0xf]
          %v1394 = vld [vmem:[%s1 + $0x348] sm:$0xf]
          %v1395 = vld [vmem:[%s1 + $0x34c] sm:$0xf]
          %v1396 = vld [vmem:[%s1 + $0x350] sm:$0xf]
          %v1397 = vld [vmem:[%s1 + $0x354] sm:$0xf]
          %v1398 = vld [vmem:[%s1 + $0x358] sm:$0xf]
          %v1399 = vld [vmem:[%s1 + $0x35c] sm:$0xf]
          %v1400 = vld [vmem:[%s1 + $0x360] sm:$0xf]
          %v1401 = vld [vmem:[%s1 + $0x364] sm:$0xf]
          %v1402 = vld [vmem:[%s1 + $0x368] sm:$0xf]
          %v1403 = vld [vmem:[%s1 + $0x36c] sm:$0xf]
          %v1404 = vld [vmem:[%s1 + $0x370] sm:$0xf]
          %v1405 = vld [vmem:[%s1 + $0x374] sm:$0xf]
          %v1406 = vld [vmem:[%s1 + $0x378] sm:$0xf]
          %v1407 = vld [vmem:[%s1 + $0x37c] sm:$0xf]
          %v1408 = vld [vmem:[%s1 + $0x380] sm:$0xf]
          %v1409 = vld [vmem:[%s1 + $0x384] sm:$0xf]
          %v1410 = vld [vmem:[%s1 + $0x388] sm:$0xf]
          %v1411 = vld [vmem:[%s1 + $0x38c] sm:$0xf]
          %v1412 = vld [vmem:[%s1 + $0x390] sm:$0xf]
          %v1413 = vld [vmem:[%s1 + $0x394] sm:$0xf]
          %v1414 = vld [vmem:[%s1 + $0x398] sm:$0xf]
          %v1415 = vld [vmem:[%s1 + $0x39c] sm:$0xf]
          %v1416 = vld [vmem:[%s1 + $0x3a0] sm:$0xf]
          %v1417 = vld [vmem:[%s1 + $0x3a4] sm:$0xf]
          %v1418 = vld [vmem:[%s1 + $0x3a8] sm:$0xf]
          %v1419 = vld [vmem:[%s1 + $0x3ac] sm:$0xf]
          %v1420 = vld [vmem:[%s1 + $0x3b0] sm:$0xf]
          %v1421 = vld [vmem:[%s1 + $0x3b4] sm:$0xf]
          %v1422 = vld [vmem:[%s1 + $0x3b8] sm:$0xf]
          %v1423 = vld [vmem:[%s1 + $0x3bc] sm:$0xf]
          %v1424 = vld [vmem:[%s1 + $0x3c0] sm:$0xf]
          %v1425 = vld [vmem:[%s1 + $0x3c4] sm:$0xf]
          %v1426 = vld [vmem:[%s1 + $0x3c8] sm:$0xf]
          %v1427 = vld [vmem:[%s1 + $0x3cc] sm:$0xf]
          %v1428 = vld [vmem:[%s1 + $0x3d0] sm:$0xf]
          %v1429 = vld [vmem:[%s1 + $0x3d4] sm:$0xf]
          %v1430 = vld [vmem:[%s1 + $0x3d8] sm:$0xf]
          %v1431 = vld [vmem:[%s1 + $0x3dc] sm:$0xf]
          %v1432 = vld [vmem:[%s1 + $0x3e0] sm:$0xf]
          %v1433 = vld [vmem:[%s1 + $0x3e4] sm:$0xf]
          %v1434 = vld [vmem:[%s1 + $0x3e8] sm:$0xf]
          %v1435 = vld [vmem:[%s1 + $0x3ec] sm:$0xf]
          %v1436 = vld [vmem:[%s1 + $0x3f0] sm:$0xf]
          %v1437 = vld [vmem:[%s1 + $0x3f4] sm:$0xf]
          %v1438 = vld [vmem:[%s1 + $0x3f8] sm:$0xf]
          %v1439 = vld [vmem:[%s1 + $0x3fc] sm:$0xf]
          %v1440 = vld [vmem:[%s1 + $0x400] sm:$0xf]
          %v1441 = vld [vmem:[%s1 + $0x404] sm:$0xf]
          %v1442 = vld [vmem:[%s1 + $0x408] sm:$0xf]
          %v1443 = vld [vmem:[%s1 + $0x40c] sm:$0xf]
          %v1444 = vld [vmem:[%s1 + $0x410] sm:$0xf]
          %v1445 = vld [vmem:[%s1 + $0x414] sm:$0xf]
          %v1446 = vld [vmem:[%s1 + $0x418] sm:$0xf]
          %v1447 = vld [vmem:[%s1 + $0x41c] sm:$0xf]
          %v1448 = vld [vmem:[%s1 + $0x420] sm:$0xf]
          %v1449 = vld [vmem:[%s1 + $0x424] sm:$0xf]
          %v1450 = vld [vmem:[%s1 + $0x428] sm:$0xf]
          %v1451 = vld [vmem:[%s1 + $0x42c] sm:$0xf]
          %v1452 = vld [vmem:[%s1 + $0x430] sm:$0xf]
          %v1453 = vld [vmem:[%s1 + $0x434] sm:$0xf]
          %v1454 = vld [vmem:[%s1 + $0x438] sm:$0xf]
          %v1455 = vld [vmem:[%s1 + $0x43c] sm:$0xf]
          %v1456 = vld [vmem:[%s1 + $0x440] sm:$0xf]
          %v1457 = vld [vmem:[%s1 + $0x444] sm:$0xf]
          %v1458 = vld [vmem:[%s1 + $0x448] sm:$0xf]
          %v1459 = vld [vmem:[%s1 + $0x44c] sm:$0xf]
          %v1460 = vld [vmem:[%s1 + $0x450] sm:$0xf]
          %v1461 = vld [vmem:[%s1 + $0x454] sm:$0xf]
          %v1462 = vld [vmem:[%s1 + $0x458] sm:$0xf]
          %v1463 = vld [vmem:[%s1 + $0x45c] sm:$0xf]
          %v1464 = vld [vmem:[%s1 + $0x460] sm:$0xf]
          %v1465 = vld [vmem:[%s1 + $0x464] sm:$0xf]
          %v1466 = vld [vmem:[%s1 + $0x468] sm:$0xf]
          %v1467 = vld [vmem:[%s1 + $0x46c] sm:$0xf]
          %v1468 = vld [vmem:[%s1 + $0x470] sm:$0xf]
          %v1469 = vld [vmem:[%s1 + $0x474] sm:$0xf]
          %v1470 = vld [vmem:[%s1 + $0x478] sm:$0xf]
          %v1471 = vld [vmem:[%s1 + $0x47c] sm:$0xf]
          %v1472 = vld [vmem:[%s1 + $0x480] sm:$0xf]
          %v1473 = vld [vmem:[%s1 + $0x484] sm:$0xf]
          %v1474 = vld [vmem:[%s1 + $0x488] sm:$0xf]
          %v1475 = vld [vmem:[%s1 + $0x48c] sm:$0xf]
          %v1476 = vld [vmem:[%s1 + $0x490] sm:$0xf]
          %v1477 = vld [vmem:[%s1 + $0x494] sm:$0xf]
          %v1478 = vld [vmem:[%s1 + $0x498] sm:$0xf]
          %v1479 = vld [vmem:[%s1 + $0x49c] sm:$0xf]
          %v1480 = vld [vmem:[%s1 + $0x4a0] sm:$0xf]
          %v1481 = vld [vmem:[%s1 + $0x4a4] sm:$0xf]
          %v1482 = vld [vmem:[%s1 + $0x4a8] sm:$0xf]
          %v1483 = vld [vmem:[%s1 + $0x4ac] sm:$0xf]
          %v1484 = vld [vmem:[%s1 + $0x4b0] sm:$0xf]
          %v1485 = vld [vmem:[%s1 + $0x4b4] sm:$0xf]
          %v1486 = vld [vmem:[%s1 + $0x4b8] sm:$0xf]
          %v1487 = vld [vmem:[%s1 + $0x4bc] sm:$0xf]
          %v1488 = vld [vmem:[%s1 + $0x4c0] sm:$0xf]
          %v1489 = vld [vmem:[%s1 + $0x4c4] sm:$0xf]
          %v1490 = vld [vmem:[%s1 + $0x4c8] sm:$0xf]
          %v1491 = vld [vmem:[%s1 + $0x4cc] sm:$0xf]
          %v1492 = vld [vmem:[%s1 + $0x4d0] sm:$0xf]
          %v1493 = vld [vmem:[%s1 + $0x4d4] sm:$0xf]
          %v1494 = vld [vmem:[%s1 + $0x4d8] sm:$0xf]
          %v1495 = vld [vmem:[%s1 + $0x4dc] sm:$0xf]
          %v1496 = vld [vmem:[%s1 + $0x4e0] sm:$0xf]
          %v1497 = vld [vmem:[%s1 + $0x4e4] sm:$0xf]
          %v1498 = vld [vmem:[%s1 + $0x4e8] sm:$0xf]
          %v1499 = vld [vmem:[%s1 + $0x4ec] sm:$0xf]
          %v1500 = vld [vmem:[%s1 + $0x4f0] sm:$0xf]
          %v1501 = vld [vmem:[%s1 + $0x4f4] sm:$0xf]
          %v1502 = vld [vmem:[%s1 + $0x4f8] sm:$0xf]
          %v1503 = vld [vmem:[%s1 + $0x4fc] sm:$0xf]
          %v1504 = vld [vmem:[%s1 + $0x500] sm:$0xf]
          %v1505 = vld [vmem:[%s1 + $0x504] sm:$0xf]
          %v1506 = vld [vmem:[%s1 + $0x508] sm:$0xf]
          %v1507 = vld [vmem:[%s1 + $0x50c] sm:$0xf]
          %v1508 = vld [vmem:[%s1 + $0x510] sm:$0xf]
          %v1509 = vld [vmem:[%s1 + $0x514] sm:$0xf]
          %v1510 = vld [vmem:[%s1 + $0x518] sm:$0xf]
          %v1511 = vld [vmem:[%s1 + $0x51c] sm:$0xf]
          %v1512 = vld [vmem:[%s1 + $0x520] sm:$0xf]
          %v1513 = vld [vmem:[%s1 + $0x524] sm:$0xf]
          %v1514 = vld [vmem:[%s1 + $0x528] sm:$0xf]
          %v1515 = vld [vmem:[%s1 + $0x52c] sm:$0xf]
          %v1516 = vld [vmem:[%s1 + $0x530] sm:$0xf]
          %v1517 = vld [vmem:[%s1 + $0x534] sm:$0xf]
          %v1518 = vld [vmem:[%s1 + $0x538] sm:$0xf]
          %v1519 = vld [vmem:[%s1 + $0x53c] sm:$0xf]
          %v1520 = vld [vmem:[%s1 + $0x540] sm:$0xf]
          %v1521 = vld [vmem:[%s1 + $0x544] sm:$0xf]
          %v1522 = vld [vmem:[%s1 + $0x548] sm:$0xf]
          %v1523 = vld [vmem:[%s1 + $0x54c] sm:$0xf]
          %v1524 = vld [vmem:[%s1 + $0x550] sm:$0xf]
          %v1525 = vld [vmem:[%s1 + $0x554] sm:$0xf]
          %v1526 = vld [vmem:[%s1 + $0x558] sm:$0xf]
          %v1527 = vld [vmem:[%s1 + $0x55c] sm:$0xf]
          %v1528 = vld [vmem:[%s1 + $0x560] sm:$0xf]
          %v1529 = vld [vmem:[%s1 + $0x564] sm:$0xf]
          %v1530 = vld [vmem:[%s1 + $0x568] sm:$0xf]
          %v1531 = vld [vmem:[%s1 + $0x56c] sm:$0xf]
          %v1532 = vld [vmem:[%s1 + $0x570] sm:$0xf]
          %v1533 = vld [vmem:[%s1 + $0x574] sm:$0xf]
          %v1534 = vld [vmem:[%s1 + $0x578] sm:$0xf]
          %v1535 = vld [vmem:[%s1 + $0x57c] sm:$0xf]
          %v1536 = vld [vmem:[%s1 + $0x580] sm:$0xf]
          %v1537 = vld [vmem:[%s1 + $0x584] sm:$0xf]
          %v1538 = vld [vmem:[%s1 + $0x588] sm:$0xf]
          %v1539 = vld [vmem:[%s1 + $0x58c] sm:$0xf]
          %v1540 = vld [vmem:[%s1 + $0x590] sm:$0xf]
          %v1541 = vld [vmem:[%s1 + $0x594] sm:$0xf]
          %v1542 = vld [vmem:[%s1 + $0x598] sm:$0xf]
          %v1543 = vld [vmem:[%s1 + $0x59c] sm:$0xf]
          %v1544 = vld [vmem:[%s1 + $0x5a0] sm:$0xf]
          %v1545 = vld [vmem:[%s1 + $0x5a4] sm:$0xf]
          %v1546 = vld [vmem:[%s1 + $0x5a8] sm:$0xf]
          %v1547 = vld [vmem:[%s1 + $0x5ac] sm:$0xf]
          %v1548 = vld [vmem:[%s1 + $0x5b0] sm:$0xf]
          %v1549 = vld [vmem:[%s1 + $0x5b4] sm:$0xf]
          %v1550 = vld [vmem:[%s1 + $0x5b8] sm:$0xf]
          %v1551 = vld [vmem:[%s1 + $0x5bc] sm:$0xf]
          %v1552 = vld [vmem:[%s1 + $0x5c0] sm:$0xf]
          %v1553 = vld [vmem:[%s1 + $0x5c4] sm:$0xf]
          %v1554 = vld [vmem:[%s1 + $0x5c8] sm:$0xf]
          %v1555 = vld [vmem:[%s1 + $0x5cc] sm:$0xf]
          %v1556 = vld [vmem:[%s1 + $0x5d0] sm:$0xf]
          %v1557 = vld [vmem:[%s1 + $0x5d4] sm:$0xf]
          %v1558 = vld [vmem:[%s1 + $0x5d8] sm:$0xf]
          %v1559 = vld [vmem:[%s1 + $0x5dc] sm:$0xf]
          %v1560 = vld [vmem:[%s1 + $0x5e0] sm:$0xf]
          %v1561 = vld [vmem:[%s1 + $0x5e4] sm:$0xf]
          %v1562 = vld [vmem:[%s1 + $0x5e8] sm:$0xf]
          %v1563 = vld [vmem:[%s1 + $0x5ec] sm:$0xf]
          %v1564 = vld [vmem:[%s1 + $0x5f0] sm:$0xf]
          %v1565 = vld [vmem:[%s1 + $0x5f4] sm:$0xf]
          %v1566 = vld [vmem:[%s1 + $0x5f8] sm:$0xf]
          %v1567 = vld [vmem:[%s1 + $0x5fc] sm:$0xf]
          %v1568 = vld [vmem:[%s2] sm:$0x1]
          %v1570 = vlaneseq
          %v1571 = vshrl.u32 %v1570, 7
          %v1572 = vsub.s32 0, %v1571
          %v1573 = vrot.slane %v1568, %v1572
          %v1959 = vunpack.c.l.b16 %v1184
          %v1960 = vunpack.c.l.b16 %v1185
          %v1961 = vunpack.c.l.b16 %v1186
          %v1962 = vunpack.c.l.b16 %v1187
          %v1963 = vunpack.c.l.b16 %v1188
          %v1964 = vunpack.c.l.b16 %v1189
          %v1965 = vunpack.c.l.b16 %v1190
          %v1966 = vunpack.c.l.b16 %v1191
          %v1967 = vunpack.c.l.b16 %v1192
          %v1968 = vunpack.c.l.b16 %v1193
          %v1969 = vunpack.c.l.b16 %v1194
          %v1970 = vunpack.c.l.b16 %v1195
          %v1971 = vunpack.c.l.b16 %v1196
          %v1972 = vunpack.c.l.b16 %v1197
          %v1973 = vunpack.c.l.b16 %v1198
          %v1974 = vunpack.c.l.b16 %v1199
          %v1975 = vunpack.c.l.b16 %v1200
          %v1976 = vunpack.c.l.b16 %v1201
          %v1977 = vunpack.c.l.b16 %v1202
          %v1978 = vunpack.c.l.b16 %v1203
          %v1979 = vunpack.c.l.b16 %v1204
          %v1980 = vunpack.c.l.b16 %v1205
          %v1981 = vunpack.c.l.b16 %v1206
          %v1982 = vunpack.c.l.b16 %v1207
          %v1983 = vunpack.c.l.b16 %v1208
          %v1984 = vunpack.c.l.b16 %v1209
          %v1985 = vunpack.c.l.b16 %v1210
          %v1986 = vunpack.c.l.b16 %v1211
          %v1987 = vunpack.c.l.b16 %v1212
          %v1988 = vunpack.c.l.b16 %v1213
          %v1989 = vunpack.c.l.b16 %v1214
          %v1990 = vunpack.c.l.b16 %v1215
          %v1991 = vunpack.c.l.b16 %v1216
          %v1992 = vunpack.c.l.b16 %v1217
          %v1993 = vunpack.c.l.b16 %v1218
          %v1994 = vunpack.c.l.b16 %v1219
          %v1995 = vunpack.c.l.b16 %v1220
          %v1996 = vunpack.c.l.b16 %v1221
          %v1997 = vunpack.c.l.b16 %v1222
          %v1998 = vunpack.c.l.b16 %v1223
          %v1999 = vunpack.c.l.b16 %v1224
          %v2000 = vunpack.c.l.b16 %v1225
          %v2001 = vunpack.c.l.b16 %v1226
          %v2002 = vunpack.c.l.b16 %v1227
          %v2003 = vunpack.c.l.b16 %v1228
          %v2004 = vunpack.c.l.b16 %v1229
          %v2005 = vunpack.c.l.b16 %v1230
          %v2006 = vunpack.c.l.b16 %v1231
          %v2007 = vunpack.c.l.b16 %v1232
          %v2008 = vunpack.c.l.b16 %v1233
          %v2009 = vunpack.c.l.b16 %v1234
          %v2010 = vunpack.c.l.b16 %v1235
          %v2011 = vunpack.c.l.b16 %v1236
          %v2012 = vunpack.c.l.b16 %v1237
          %v2013 = vunpack.c.l.b16 %v1238
          %v2014 = vunpack.c.l.b16 %v1239
          %v2015 = vunpack.c.l.b16 %v1240
          %v2016 = vunpack.c.l.b16 %v1241
          %v2017 = vunpack.c.l.b16 %v1242
          %v2018 = vunpack.c.l.b16 %v1243
          %v2019 = vunpack.c.l.b16 %v1244
          %v2020 = vunpack.c.l.b16 %v1245
          %v2021 = vunpack.c.l.b16 %v1246
          %v2022 = vunpack.c.l.b16 %v1247
          %v2023 = vunpack.c.l.b16 %v1248
          %v2024 = vunpack.c.l.b16 %v1249
          %v2025 = vunpack.c.l.b16 %v1250
          %v2026 = vunpack.c.l.b16 %v1251
          %v2027 = vunpack.c.l.b16 %v1252
          %v2028 = vunpack.c.l.b16 %v1253
          %v2029 = vunpack.c.l.b16 %v1254
          %v2030 = vunpack.c.l.b16 %v1255
          %v2031 = vunpack.c.l.b16 %v1256
          %v2032 = vunpack.c.l.b16 %v1257
          %v2033 = vunpack.c.l.b16 %v1258
          %v2034 = vunpack.c.l.b16 %v1259
          %v2035 = vunpack.c.l.b16 %v1260
          %v2036 = vunpack.c.l.b16 %v1261
          %v2037 = vunpack.c.l.b16 %v1262
          %v2038 = vunpack.c.l.b16 %v1263
          %v2039 = vunpack.c.l.b16 %v1264
          %v2040 = vunpack.c.l.b16 %v1265
          %v2041 = vunpack.c.l.b16 %v1266
          %v2042 = vunpack.c.l.b16 %v1267
          %v2043 = vunpack.c.l.b16 %v1268
          %v2044 = vunpack.c.l.b16 %v1269
          %v2045 = vunpack.c.l.b16 %v1270
          %v2046 = vunpack.c.l.b16 %v1271
          %v2047 = vunpack.c.l.b16 %v1272
          %v2048 = vunpack.c.l.b16 %v1273
          %v2049 = vunpack.c.l.b16 %v1274
          %v2050 = vunpack.c.l.b16 %v1275
          %v2051 = vunpack.c.l.b16 %v1276
          %v2052 = vunpack.c.l.b16 %v1277
          %v2053 = vunpack.c.l.b16 %v1278
          %v2054 = vunpack.c.l.b16 %v1279
          %v2055 = vunpack.c.l.b16 %v1280
          %v2056 = vunpack.c.l.b16 %v1281
          %v2057 = vunpack.c.l.b16 %v1282
          %v2058 = vunpack.c.l.b16 %v1283
          %v2059 = vunpack.c.l.b16 %v1284
          %v2060 = vunpack.c.l.b16 %v1285
          %v2061 = vunpack.c.l.b16 %v1286
          %v2062 = vunpack.c.l.b16 %v1287
          %v2063 = vunpack.c.l.b16 %v1288
          %v2064 = vunpack.c.l.b16 %v1289
          %v2065 = vunpack.c.l.b16 %v1290
          %v2066 = vunpack.c.l.b16 %v1291
          %v2067 = vunpack.c.l.b16 %v1292
          %v2068 = vunpack.c.l.b16 %v1293
          %v2069 = vunpack.c.l.b16 %v1294
          %v2070 = vunpack.c.l.b16 %v1295
          %v2071 = vunpack.c.l.b16 %v1296
          %v2072 = vunpack.c.l.b16 %v1297
          %v2073 = vunpack.c.l.b16 %v1298
          %v2074 = vunpack.c.l.b16 %v1299
          %v2075 = vunpack.c.l.b16 %v1300
          %v2076 = vunpack.c.l.b16 %v1301
          %v2077 = vunpack.c.l.b16 %v1302
          %v2078 = vunpack.c.l.b16 %v1303
          %v2079 = vunpack.c.l.b16 %v1304
          %v2080 = vunpack.c.l.b16 %v1305
          %v2081 = vunpack.c.l.b16 %v1306
          %v2082 = vunpack.c.l.b16 %v1307
          %v2083 = vunpack.c.l.b16 %v1308
          %v2084 = vunpack.c.l.b16 %v1309
          %v2085 = vunpack.c.l.b16 %v1310
          %v2086 = vunpack.c.l.b16 %v1311
          %v2087 = vunpack.c.l.b16 %v1312
          %v2088 = vunpack.c.l.b16 %v1313
          %v2089 = vunpack.c.l.b16 %v1314
          %v2090 = vunpack.c.l.b16 %v1315
          %v2091 = vunpack.c.l.b16 %v1316
          %v2092 = vunpack.c.l.b16 %v1317
          %v2093 = vunpack.c.l.b16 %v1318
          %v2094 = vunpack.c.l.b16 %v1319
          %v2095 = vunpack.c.l.b16 %v1320
          %v2096 = vunpack.c.l.b16 %v1321
          %v2097 = vunpack.c.l.b16 %v1322
          %v2098 = vunpack.c.l.b16 %v1323
          %v2099 = vunpack.c.l.b16 %v1324
          %v2100 = vunpack.c.l.b16 %v1325
          %v2101 = vunpack.c.l.b16 %v1326
          %v2102 = vunpack.c.l.b16 %v1327
          %v2103 = vunpack.c.l.b16 %v1328
          %v2104 = vunpack.c.l.b16 %v1329
          %v2105 = vunpack.c.l.b16 %v1330
          %v2106 = vunpack.c.l.b16 %v1331
          %v2107 = vunpack.c.l.b16 %v1332
          %v2108 = vunpack.c.l.b16 %v1333
          %v2109 = vunpack.c.l.b16 %v1334
          %v2110 = vunpack.c.l.b16 %v1335
          %v2111 = vunpack.c.l.b16 %v1336
          %v2112 = vunpack.c.l.b16 %v1337
          %v2113 = vunpack.c.l.b16 %v1338
          %v2114 = vunpack.c.l.b16 %v1339
          %v2115 = vunpack.c.l.b16 %v1340
          %v2116 = vunpack.c.l.b16 %v1341
          %v2117 = vunpack.c.l.b16 %v1342
          %v2118 = vunpack.c.l.b16 %v1343
          %v2119 = vunpack.c.l.b16 %v1344
          %v2120 = vunpack.c.l.b16 %v1345
          %v2121 = vunpack.c.l.b16 %v1346
          %v2122 = vunpack.c.l.b16 %v1347
          %v2123 = vunpack.c.l.b16 %v1348
          %v2124 = vunpack.c.l.b16 %v1349
          %v2125 = vunpack.c.l.b16 %v1350
          %v2126 = vunpack.c.l.b16 %v1351
          %v2127 = vunpack.c.l.b16 %v1352
          %v2128 = vunpack.c.l.b16 %v1353
          %v2129 = vunpack.c.l.b16 %v1354
          %v2130 = vunpack.c.l.b16 %v1355
          %v2131 = vunpack.c.l.b16 %v1356
          %v2132 = vunpack.c.l.b16 %v1357
          %v2133 = vunpack.c.l.b16 %v1358
          %v2134 = vunpack.c.l.b16 %v1359
          %v2135 = vunpack.c.l.b16 %v1360
          %v2136 = vunpack.c.l.b16 %v1361
          %v2137 = vunpack.c.l.b16 %v1362
          %v2138 = vunpack.c.l.b16 %v1363
          %v2139 = vunpack.c.l.b16 %v1364
          %v2140 = vunpack.c.l.b16 %v1365
          %v2141 = vunpack.c.l.b16 %v1366
          %v2142 = vunpack.c.l.b16 %v1367
          %v2143 = vunpack.c.l.b16 %v1368
          %v2144 = vunpack.c.l.b16 %v1369
          %v2145 = vunpack.c.l.b16 %v1370
          %v2146 = vunpack.c.l.b16 %v1371
          %v2147 = vunpack.c.l.b16 %v1372
          %v2148 = vunpack.c.l.b16 %v1373
          %v2149 = vunpack.c.l.b16 %v1374
          %v2150 = vunpack.c.l.b16 %v1375
          %v2151 = vunpack.c.l.b16 %v1376
          %v2152 = vunpack.c.l.b16 %v1377
          %v2153 = vunpack.c.l.b16 %v1378
          %v2154 = vunpack.c.l.b16 %v1379
          %v2155 = vunpack.c.l.b16 %v1380
          %v2156 = vunpack.c.l.b16 %v1381
          %v2157 = vunpack.c.l.b16 %v1382
          %v2158 = vunpack.c.l.b16 %v1383
          %v2159 = vunpack.c.l.b16 %v1384
          %v2160 = vunpack.c.l.b16 %v1385
          %v2161 = vunpack.c.l.b16 %v1386
          %v2162 = vunpack.c.l.b16 %v1387
          %v2163 = vunpack.c.l.b16 %v1388
          %v2164 = vunpack.c.l.b16 %v1389
          %v2165 = vunpack.c.l.b16 %v1390
          %v2166 = vunpack.c.l.b16 %v1391
          %v2167 = vunpack.c.l.b16 %v1392
          %v2168 = vunpack.c.l.b16 %v1393
          %v2169 = vunpack.c.l.b16 %v1394
          %v2170 = vunpack.c.l.b16 %v1395
          %v2171 = vunpack.c.l.b16 %v1396
          %v2172 = vunpack.c.l.b16 %v1397
          %v2173 = vunpack.c.l.b16 %v1398
          %v2174 = vunpack.c.l.b16 %v1399
          %v2175 = vunpack.c.l.b16 %v1400
          %v2176 = vunpack.c.l.b16 %v1401
          %v2177 = vunpack.c.l.b16 %v1402
          %v2178 = vunpack.c.l.b16 %v1403
          %v2179 = vunpack.c.l.b16 %v1404
          %v2180 = vunpack.c.l.b16 %v1405
          %v2181 = vunpack.c.l.b16 %v1406
          %v2182 = vunpack.c.l.b16 %v1407
          %v2183 = vunpack.c.l.b16 %v1408
          %v2184 = vunpack.c.l.b16 %v1409
          %v2185 = vunpack.c.l.b16 %v1410
          %v2186 = vunpack.c.l.b16 %v1411
          %v2187 = vunpack.c.l.b16 %v1412
          %v2188 = vunpack.c.l.b16 %v1413
          %v2189 = vunpack.c.l.b16 %v1414
          %v2190 = vunpack.c.l.b16 %v1415
          %v2191 = vunpack.c.l.b16 %v1416
          %v2192 = vunpack.c.l.b16 %v1417
          %v2193 = vunpack.c.l.b16 %v1418
          %v2194 = vunpack.c.l.b16 %v1419
          %v2195 = vunpack.c.l.b16 %v1420
          %v2196 = vunpack.c.l.b16 %v1421
          %v2197 = vunpack.c.l.b16 %v1422
          %v2198 = vunpack.c.l.b16 %v1423
          %v2199 = vunpack.c.l.b16 %v1424
          %v2200 = vunpack.c.l.b16 %v1425
          %v2201 = vunpack.c.l.b16 %v1426
          %v2202 = vunpack.c.l.b16 %v1427
          %v2203 = vunpack.c.l.b16 %v1428
          %v2204 = vunpack.c.l.b16 %v1429
          %v2205 = vunpack.c.l.b16 %v1430
          %v2206 = vunpack.c.l.b16 %v1431
          %v2207 = vunpack.c.l.b16 %v1432
          %v2208 = vunpack.c.l.b16 %v1433
          %v2209 = vunpack.c.l.b16 %v1434
          %v2210 = vunpack.c.l.b16 %v1435
          %v2211 = vunpack.c.l.b16 %v1436
          %v2212 = vunpack.c.l.b16 %v1437
          %v2213 = vunpack.c.l.b16 %v1438
          %v2214 = vunpack.c.l.b16 %v1439
          %v2215 = vunpack.c.l.b16 %v1440
          %v2216 = vunpack.c.l.b16 %v1441
          %v2217 = vunpack.c.l.b16 %v1442
          %v2218 = vunpack.c.l.b16 %v1443
          %v2219 = vunpack.c.l.b16 %v1444
          %v2220 = vunpack.c.l.b16 %v1445
          %v2221 = vunpack.c.l.b16 %v1446
          %v2222 = vunpack.c.l.b16 %v1447
          %v2223 = vunpack.c.l.b16 %v1448
          %v2224 = vunpack.c.l.b16 %v1449
          %v2225 = vunpack.c.l.b16 %v1450
          %v2226 = vunpack.c.l.b16 %v1451
          %v2227 = vunpack.c.l.b16 %v1452
          %v2228 = vunpack.c.l.b16 %v1453
          %v2229 = vunpack.c.l.b16 %v1454
          %v2230 = vunpack.c.l.b16 %v1455
          %v2231 = vunpack.c.l.b16 %v1456
          %v2232 = vunpack.c.l.b16 %v1457
          %v2233 = vunpack.c.l.b16 %v1458
          %v2234 = vunpack.c.l.b16 %v1459
          %v2235 = vunpack.c.l.b16 %v1460
          %v2236 = vunpack.c.l.b16 %v1461
          %v2237 = vunpack.c.l.b16 %v1462
          %v2238 = vunpack.c.l.b16 %v1463
          %v2239 = vunpack.c.l.b16 %v1464
          %v2240 = vunpack.c.l.b16 %v1465
          %v2241 = vunpack.c.l.b16 %v1466
          %v2242 = vunpack.c.l.b16 %v1467
          %v2243 = vunpack.c.l.b16 %v1468
          %v2244 = vunpack.c.l.b16 %v1469
          %v2245 = vunpack.c.l.b16 %v1470
          %v2246 = vunpack.c.l.b16 %v1471
          %v2247 = vunpack.c.l.b16 %v1472
          %v2248 = vunpack.c.l.b16 %v1473
          %v2249 = vunpack.c.l.b16 %v1474
          %v2250 = vunpack.c.l.b16 %v1475
          %v2251 = vunpack.c.l.b16 %v1476
          %v2252 = vunpack.c.l.b16 %v1477
          %v2253 = vunpack.c.l.b16 %v1478
          %v2254 = vunpack.c.l.b16 %v1479
          %v2255 = vunpack.c.l.b16 %v1480
          %v2256 = vunpack.c.l.b16 %v1481
          %v2257 = vunpack.c.l.b16 %v1482
          %v2258 = vunpack.c.l.b16 %v1483
          %v2259 = vunpack.c.l.b16 %v1484
          %v2260 = vunpack.c.l.b16 %v1485
          %v2261 = vunpack.c.l.b16 %v1486
          %v2262 = vunpack.c.l.b16 %v1487
          %v2263 = vunpack.c.l.b16 %v1488
          %v2264 = vunpack.c.l.b16 %v1489
          %v2265 = vunpack.c.l.b16 %v1490
          %v2266 = vunpack.c.l.b16 %v1491
          %v2267 = vunpack.c.l.b16 %v1492
          %v2268 = vunpack.c.l.b16 %v1493
          %v2269 = vunpack.c.l.b16 %v1494
          %v2270 = vunpack.c.l.b16 %v1495
          %v2271 = vunpack.c.l.b16 %v1496
          %v2272 = vunpack.c.l.b16 %v1497
          %v2273 = vunpack.c.l.b16 %v1498
          %v2274 = vunpack.c.l.b16 %v1499
          %v2275 = vunpack.c.l.b16 %v1500
          %v2276 = vunpack.c.l.b16 %v1501
          %v2277 = vunpack.c.l.b16 %v1502
          %v2278 = vunpack.c.l.b16 %v1503
          %v2279 = vunpack.c.l.b16 %v1504
          %v2280 = vunpack.c.l.b16 %v1505
          %v2281 = vunpack.c.l.b16 %v1506
          %v2282 = vunpack.c.l.b16 %v1507
          %v2283 = vunpack.c.l.b16 %v1508
          %v2284 = vunpack.c.l.b16 %v1509
          %v2285 = vunpack.c.l.b16 %v1510
          %v2286 = vunpack.c.l.b16 %v1511
          %v2287 = vunpack.c.l.b16 %v1512
          %v2288 = vunpack.c.l.b16 %v1513
          %v2289 = vunpack.c.l.b16 %v1514
          %v2290 = vunpack.c.l.b16 %v1515
          %v2291 = vunpack.c.l.b16 %v1516
          %v2292 = vunpack.c.l.b16 %v1517
          %v2293 = vunpack.c.l.b16 %v1518
          %v2294 = vunpack.c.l.b16 %v1519
          %v2295 = vunpack.c.l.b16 %v1520
          %v2296 = vunpack.c.l.b16 %v1521
          %v2297 = vunpack.c.l.b16 %v1522
          %v2298 = vunpack.c.l.b16 %v1523
          %v2299 = vunpack.c.l.b16 %v1524
          %v2300 = vunpack.c.l.b16 %v1525
          %v2301 = vunpack.c.l.b16 %v1526
          %v2302 = vunpack.c.l.b16 %v1527
          %v2303 = vunpack.c.l.b16 %v1528
          %v2304 = vunpack.c.l.b16 %v1529
          %v2305 = vunpack.c.l.b16 %v1530
          %v2306 = vunpack.c.l.b16 %v1531
          %v2307 = vunpack.c.l.b16 %v1532
          %v2308 = vunpack.c.l.b16 %v1533
          %v2309 = vunpack.c.l.b16 %v1534
          %v2310 = vunpack.c.l.b16 %v1535
          %v2311 = vunpack.c.l.b16 %v1536
          %v2312 = vunpack.c.l.b16 %v1537
          %v2313 = vunpack.c.l.b16 %v1538
          %v2314 = vunpack.c.l.b16 %v1539
          %v2315 = vunpack.c.l.b16 %v1540
          %v2316 = vunpack.c.l.b16 %v1541
          %v2317 = vunpack.c.l.b16 %v1542
          %v2318 = vunpack.c.l.b16 %v1543
          %v2319 = vunpack.c.l.b16 %v1544
          %v2320 = vunpack.c.l.b16 %v1545
          %v2321 = vunpack.c.l.b16 %v1546
          %v2322 = vunpack.c.l.b16 %v1547
          %v2323 = vunpack.c.l.b16 %v1548
          %v2324 = vunpack.c.l.b16 %v1549
          %v2325 = vunpack.c.l.b16 %v1550
          %v2326 = vunpack.c.l.b16 %v1551
          %v2327 = vunpack.c.l.b16 %v1552
          %v2328 = vunpack.c.l.b16 %v1553
          %v2329 = vunpack.c.l.b16 %v1554
          %v2330 = vunpack.c.l.b16 %v1555
          %v2331 = vunpack.c.l.b16 %v1556
          %v2332 = vunpack.c.l.b16 %v1557
          %v2333 = vunpack.c.l.b16 %v1558
          %v2334 = vunpack.c.l.b16 %v1559
          %v2335 = vunpack.c.l.b16 %v1560
          %v2336 = vunpack.c.l.b16 %v1561
          %v2337 = vunpack.c.l.b16 %v1562
          %v2338 = vunpack.c.l.b16 %v1563
          %v2339 = vunpack.c.l.b16 %v1564
          %v2340 = vunpack.c.l.b16 %v1565
          %v2341 = vunpack.c.l.b16 %v1566
          %v2342 = vunpack.c.l.b16 %v1567
          %v2343 = vpack.c.b16 %v1960, %v1959
          %v2344 = vpack.c.b16 %v1962, %v1961
          %v2345 = vpack.c.b16 %v1964, %v1963
          %v2346 = vpack.c.b16 %v1966, %v1965
          %v2347 = vpack.c.b16 %v1968, %v1967
          %v2348 = vpack.c.b16 %v1970, %v1969
          %v2349 = vpack.c.b16 %v1972, %v1971
          %v2350 = vpack.c.b16 %v1974, %v1973
          %v2351 = vpack.c.b16 %v1976, %v1975
          %v2352 = vpack.c.b16 %v1978, %v1977
          %v2353 = vpack.c.b16 %v1980, %v1979
          %v2354 = vpack.c.b16 %v1982, %v1981
          %v2355 = vpack.c.b16 %v1984, %v1983
          %v2356 = vpack.c.b16 %v1986, %v1985
          %v2357 = vpack.c.b16 %v1988, %v1987
          %v2358 = vpack.c.b16 %v1990, %v1989
          %v2359 = vpack.c.b16 %v1992, %v1991
          %v2360 = vpack.c.b16 %v1994, %v1993
          %v2361 = vpack.c.b16 %v1996, %v1995
          %v2362 = vpack.c.b16 %v1998, %v1997
          %v2363 = vpack.c.b16 %v2000, %v1999
          %v2364 = vpack.c.b16 %v2002, %v2001
          %v2365 = vpack.c.b16 %v2004, %v2003
          %v2366 = vpack.c.b16 %v2006, %v2005
          %v2367 = vpack.c.b16 %v2008, %v2007
          %v2368 = vpack.c.b16 %v2010, %v2009
          %v2369 = vpack.c.b16 %v2012, %v2011
          %v2370 = vpack.c.b16 %v2014, %v2013
          %v2371 = vpack.c.b16 %v2016, %v2015
          %v2372 = vpack.c.b16 %v2018, %v2017
          %v2373 = vpack.c.b16 %v2020, %v2019
          %v2374 = vpack.c.b16 %v2022, %v2021
          %v2375 = vpack.c.b16 %v2024, %v2023
          %v2376 = vpack.c.b16 %v2026, %v2025
          %v2377 = vpack.c.b16 %v2028, %v2027
          %v2378 = vpack.c.b16 %v2030, %v2029
          %v2379 = vpack.c.b16 %v2032, %v2031
          %v2380 = vpack.c.b16 %v2034, %v2033
          %v2381 = vpack.c.b16 %v2036, %v2035
          %v2382 = vpack.c.b16 %v2038, %v2037
          %v2383 = vpack.c.b16 %v2040, %v2039
          %v2384 = vpack.c.b16 %v2042, %v2041
          %v2385 = vpack.c.b16 %v2044, %v2043
          %v2386 = vpack.c.b16 %v2046, %v2045
          %v2387 = vpack.c.b16 %v2048, %v2047
          %v2388 = vpack.c.b16 %v2050, %v2049
          %v2389 = vpack.c.b16 %v2052, %v2051
          %v2390 = vpack.c.b16 %v2054, %v2053
          %v2391 = vpack.c.b16 %v2056, %v2055
          %v2392 = vpack.c.b16 %v2058, %v2057
          %v2393 = vpack.c.b16 %v2060, %v2059
          %v2394 = vpack.c.b16 %v2062, %v2061
          %v2395 = vpack.c.b16 %v2064, %v2063
          %v2396 = vpack.c.b16 %v2066, %v2065
          %v2397 = vpack.c.b16 %v2068, %v2067
          %v2398 = vpack.c.b16 %v2070, %v2069
          %v2399 = vpack.c.b16 %v2072, %v2071
          %v2400 = vpack.c.b16 %v2074, %v2073
          %v2401 = vpack.c.b16 %v2076, %v2075
          %v2402 = vpack.c.b16 %v2078, %v2077
          %v2403 = vpack.c.b16 %v2080, %v2079
          %v2404 = vpack.c.b16 %v2082, %v2081
          %v2405 = vpack.c.b16 %v2084, %v2083
          %v2406 = vpack.c.b16 %v2086, %v2085
          %v2407 = vpack.c.b16 %v2088, %v2087
          %v2408 = vpack.c.b16 %v2090, %v2089
          %v2409 = vpack.c.b16 %v2092, %v2091
          %v2410 = vpack.c.b16 %v2094, %v2093
          %v2411 = vpack.c.b16 %v2096, %v2095
          %v2412 = vpack.c.b16 %v2098, %v2097
          %v2413 = vpack.c.b16 %v2100, %v2099
          %v2414 = vpack.c.b16 %v2102, %v2101
          %v2415 = vpack.c.b16 %v2104, %v2103
          %v2416 = vpack.c.b16 %v2106, %v2105
          %v2417 = vpack.c.b16 %v2108, %v2107
          %v2418 = vpack.c.b16 %v2110, %v2109
          %v2419 = vpack.c.b16 %v2112, %v2111
          %v2420 = vpack.c.b16 %v2114, %v2113
          %v2421 = vpack.c.b16 %v2116, %v2115
          %v2422 = vpack.c.b16 %v2118, %v2117
          %v2423 = vpack.c.b16 %v2120, %v2119
          %v2424 = vpack.c.b16 %v2122, %v2121
          %v2425 = vpack.c.b16 %v2124, %v2123
          %v2426 = vpack.c.b16 %v2126, %v2125
          %v2427 = vpack.c.b16 %v2128, %v2127
          %v2428 = vpack.c.b16 %v2130, %v2129
          %v2429 = vpack.c.b16 %v2132, %v2131
          %v2430 = vpack.c.b16 %v2134, %v2133
          %v2431 = vpack.c.b16 %v2136, %v2135
          %v2432 = vpack.c.b16 %v2138, %v2137
          %v2433 = vpack.c.b16 %v2140, %v2139
          %v2434 = vpack.c.b16 %v2142, %v2141
          %v2435 = vpack.c.b16 %v2144, %v2143
          %v2436 = vpack.c.b16 %v2146, %v2145
          %v2437 = vpack.c.b16 %v2148, %v2147
          %v2438 = vpack.c.b16 %v2150, %v2149
          %v2439 = vpack.c.b16 %v2152, %v2151
          %v2440 = vpack.c.b16 %v2154, %v2153
          %v2441 = vpack.c.b16 %v2156, %v2155
          %v2442 = vpack.c.b16 %v2158, %v2157
          %v2443 = vpack.c.b16 %v2160, %v2159
          %v2444 = vpack.c.b16 %v2162, %v2161
          %v2445 = vpack.c.b16 %v2164, %v2163
          %v2446 = vpack.c.b16 %v2166, %v2165
          %v2447 = vpack.c.b16 %v2168, %v2167
          %v2448 = vpack.c.b16 %v2170, %v2169
          %v2449 = vpack.c.b16 %v2172, %v2171
          %v2450 = vpack.c.b16 %v2174, %v2173
          %v2451 = vpack.c.b16 %v2176, %v2175
          %v2452 = vpack.c.b16 %v2178, %v2177
          %v2453 = vpack.c.b16 %v2180, %v2179
          %v2454 = vpack.c.b16 %v2182, %v2181
          %v2455 = vpack.c.b16 %v2184, %v2183
          %v2456 = vpack.c.b16 %v2186, %v2185
          %v2457 = vpack.c.b16 %v2188, %v2187
          %v2458 = vpack.c.b16 %v2190, %v2189
          %v2459 = vpack.c.b16 %v2192, %v2191
          %v2460 = vpack.c.b16 %v2194, %v2193
          %v2461 = vpack.c.b16 %v2196, %v2195
          %v2462 = vpack.c.b16 %v2198, %v2197
          %v2463 = vpack.c.b16 %v2200, %v2199
          %v2464 = vpack.c.b16 %v2202, %v2201
          %v2465 = vpack.c.b16 %v2204, %v2203
          %v2466 = vpack.c.b16 %v2206, %v2205
          %v2467 = vpack.c.b16 %v2208, %v2207
          %v2468 = vpack.c.b16 %v2210, %v2209
          %v2469 = vpack.c.b16 %v2212, %v2211
          %v2470 = vpack.c.b16 %v2214, %v2213
          %v2471 = vpack.c.b16 %v2216, %v2215
          %v2472 = vpack.c.b16 %v2218, %v2217
          %v2473 = vpack.c.b16 %v2220, %v2219
          %v2474 = vpack.c.b16 %v2222, %v2221
          %v2475 = vpack.c.b16 %v2224, %v2223
          %v2476 = vpack.c.b16 %v2226, %v2225
          %v2477 = vpack.c.b16 %v2228, %v2227
          %v2478 = vpack.c.b16 %v2230, %v2229
          %v2479 = vpack.c.b16 %v2232, %v2231
          %v2480 = vpack.c.b16 %v2234, %v2233
          %v2481 = vpack.c.b16 %v2236, %v2235
          %v2482 = vpack.c.b16 %v2238, %v2237
          %v2483 = vpack.c.b16 %v2240, %v2239
          %v2484 = vpack.c.b16 %v2242, %v2241
          %v2485 = vpack.c.b16 %v2244, %v2243
          %v2486 = vpack.c.b16 %v2246, %v2245
          %v2487 = vpack.c.b16 %v2248, %v2247
          %v2488 = vpack.c.b16 %v2250, %v2249
          %v2489 = vpack.c.b16 %v2252, %v2251
          %v2490 = vpack.c.b16 %v2254, %v2253
          %v2491 = vpack.c.b16 %v2256, %v2255
          %v2492 = vpack.c.b16 %v2258, %v2257
          %v2493 = vpack.c.b16 %v2260, %v2259
          %v2494 = vpack.c.b16 %v2262, %v2261
          %v2495 = vpack.c.b16 %v2264, %v2263
          %v2496 = vpack.c.b16 %v2266, %v2265
          %v2497 = vpack.c.b16 %v2268, %v2267
          %v2498 = vpack.c.b16 %v2270, %v2269
          %v2499 = vpack.c.b16 %v2272, %v2271
          %v2500 = vpack.c.b16 %v2274, %v2273
          %v2501 = vpack.c.b16 %v2276, %v2275
          %v2502 = vpack.c.b16 %v2278, %v2277
          %v2503 = vpack.c.b16 %v2280, %v2279
          %v2504 = vpack.c.b16 %v2282, %v2281
          %v2505 = vpack.c.b16 %v2284, %v2283
          %v2506 = vpack.c.b16 %v2286, %v2285
          %v2507 = vpack.c.b16 %v2288, %v2287
          %v2508 = vpack.c.b16 %v2290, %v2289
          %v2509 = vpack.c.b16 %v2292, %v2291
          %v2510 = vpack.c.b16 %v2294, %v2293
          %v2511 = vpack.c.b16 %v2296, %v2295
          %v2512 = vpack.c.b16 %v2298, %v2297
          %v2513 = vpack.c.b16 %v2300, %v2299
          %v2514 = vpack.c.b16 %v2302, %v2301
          %v2515 = vpack.c.b16 %v2304, %v2303
          %v2516 = vpack.c.b16 %v2306, %v2305
          %v2517 = vpack.c.b16 %v2308, %v2307
          %v2518 = vpack.c.b16 %v2310, %v2309
          %v2519 = vpack.c.b16 %v2312, %v2311
          %v2520 = vpack.c.b16 %v2314, %v2313
          %v2521 = vpack.c.b16 %v2316, %v2315
          %v2522 = vpack.c.b16 %v2318, %v2317
          %v2523 = vpack.c.b16 %v2320, %v2319
          %v2524 = vpack.c.b16 %v2322, %v2321
          %v2525 = vpack.c.b16 %v2324, %v2323
          %v2526 = vpack.c.b16 %v2326, %v2325
          %v2527 = vpack.c.b16 %v2328, %v2327
          %v2528 = vpack.c.b16 %v2330, %v2329
          %v2529 = vpack.c.b16 %v2332, %v2331
          %v2530 = vpack.c.b16 %v2334, %v2333
          %v2531 = vpack.c.b16 %v2336, %v2335
          %v2532 = vpack.c.b16 %v2338, %v2337
          %v2533 = vpack.c.b16 %v2340, %v2339
          %v2534 = vpack.c.b16 %v2342, %v2341
          %2727 = vmatprep.subr.bf16.mxu0 0
          %2728 = vmatpush1.bf16.msra.mxu0 %v2350
          %2729 = vmatprep.subr.bf16.mxu0 0
          %2730 = vmatpush1.bf16.msra.mxu0 %v2349
          %2731 = vmatprep.subr.bf16.mxu0 0
          %2732 = vmatpush1.bf16.msra.mxu0 %v2348
          %2733 = vmatprep.subr.bf16.mxu0 0
          %2734 = vmatpush1.bf16.msra.mxu0 %v2347
          %2735 = vmatprep.subr.bf16.mxu0 0
          %2736 = vmatpush1.bf16.msra.mxu0 %v2346
          %2737 = vmatprep.subr.bf16.mxu0 0
          %2738 = vmatpush1.bf16.msra.mxu0 %v2345
          %2739 = vmatprep.subr.bf16.mxu0 0
          %2740 = vmatpush1.bf16.msra.mxu0 %v2344
          %2741 = vmatprep.subr.bf16.mxu0 0
          %2742 = vmatpush1.bf16.msra.mxu0 %v2343
          %2743 = vmatprep.subr.bf16.mxu0 0
          %2744 = vmatpush2.bf16.msra.mxu0 %v2358
          %2745 = vmatprep.subr.bf16.mxu0 0
          %2746 = vmatpush2.bf16.msra.mxu0 %v2357
          %2747 = vmatprep.subr.bf16.mxu0 0
          %2748 = vmatpush2.bf16.msra.mxu0 %v2356
          %2749 = vmatprep.subr.bf16.mxu0 0
          %2750 = vmatpush2.bf16.msra.mxu0 %v2355
          %2751 = vmatprep.subr.bf16.mxu0 0
          %2752 = vmatpush2.bf16.msra.mxu0 %v2354
          %2753 = vmatprep.subr.bf16.mxu0 0
          %2754 = vmatpush2.bf16.msra.mxu0 %v2353
          %2755 = vmatprep.subr.bf16.mxu0 0
          %2756 = vmatpush2.bf16.msra.mxu0 %v2352
          %2757 = vmatprep.subr.bf16.mxu0 0
          %2758 = vmatpush2.bf16.msra.mxu0 %v2351
          %2759 = vmatprep.mubr.bf16.mxu0 %v1089
          %2760 = vmatmul.mubr.bf16.gmra.mxu0 %v1088
          %v2761 = vpop.f32.mrf.mxu0
          %v2762 = vadd.f32 %v1573, %v2761
          %v2763 = vpop.f32.mrf.mxu0
          %v2764 = vpop.f32.mrf.mxu0
          %v2765 = vadd.f32 %v1573, %v2764
          %v2766 = vpop.f32.mrf.mxu0
          %2767 = vmatprep.mubr.bf16.mxu0 %v1113
          %2768 = vmatmul.mubr.bf16.gmra.mxu0 %v1112
          %v2769 = vpop.f32.mrf.mxu0
          %v2770 = vadd.f32 %v1573, %v2769
          %v2771 = vpop.f32.mrf.mxu0
          %v2772 = vpop.f32.mrf.mxu0
          %v2773 = vadd.f32 %v1573, %v2772
          %v2774 = vpop.f32.mrf.mxu0
          %2775 = vmatprep.mubr.bf16.mxu0 %v1137
          %2776 = vmatmul.mubr.bf16.gmra.mxu0 %v1136
          %v2777 = vpop.f32.mrf.mxu0
          %v2778 = vadd.f32 %v1573, %v2777
          %v2779 = vpop.f32.mrf.mxu0
          %v2780 = vpop.f32.mrf.mxu0
          %v2781 = vadd.f32 %v1573, %v2780
          %v2782 = vpop.f32.mrf.mxu0
          %2783 = vmatprep.mubr.bf16.mxu0 %v1161
          %2784 = vmatmul.mubr.bf16.gmra.mxu0 %v1160
          %v2785 = vpop.f32.mrf.mxu0
          %v2786 = vadd.f32 %v1573, %v2785
          %v2787 = vpop.f32.mrf.mxu0
          %v2788 = vpop.f32.mrf.mxu0
          %v2789 = vadd.f32 %v1573, %v2788
          %v2790 = vpop.f32.mrf.mxu0
          %2791 = vdwg.mxu0
          %2792 = vmatprep.subr.bf16.mxu0 0
          %2793 = vmatpush1.bf16.msra.mxu0 %v2366
          %2794 = vmatprep.subr.bf16.mxu0 0
          %2795 = vmatpush1.bf16.msra.mxu0 %v2365
          %2796 = vmatprep.subr.bf16.mxu0 0
          %2797 = vmatpush1.bf16.msra.mxu0 %v2364
          %2798 = vmatprep.subr.bf16.mxu0 0
          %2799 = vmatpush1.bf16.msra.mxu0 %v2363
          %2800 = vmatprep.subr.bf16.mxu0 0
          %2801 = vmatpush1.bf16.msra.mxu0 %v2362
          %2802 = vmatprep.subr.bf16.mxu0 0
          %2803 = vmatpush1.bf16.msra.mxu0 %v2361
          %2804 = vmatprep.subr.bf16.mxu0 0
          %2805 = vmatpush1.bf16.msra.mxu0 %v2360
          %2806 = vmatprep.subr.bf16.mxu0 0
          %2807 = vmatpush1.bf16.msra.mxu0 %v2359
          %2808 = vmatprep.subr.bf16.mxu0 0
          %2809 = vmatpush2.bf16.msra.mxu0 %v2374
          %2810 = vmatprep.subr.bf16.mxu0 0
          %2811 = vmatpush2.bf16.msra.mxu0 %v2373
          %2812 = vmatprep.subr.bf16.mxu0 0
          %2813 = vmatpush2.bf16.msra.mxu0 %v2372
          %2814 = vmatprep.subr.bf16.mxu0 0
          %2815 = vmatpush2.bf16.msra.mxu0 %v2371
          %2816 = vmatprep.subr.bf16.mxu0 0
          %2817 = vmatpush2.bf16.msra.mxu0 %v2370
          %2818 = vmatprep.subr.bf16.mxu0 0
          %2819 = vmatpush2.bf16.msra.mxu0 %v2369
          %2820 = vmatprep.subr.bf16.mxu0 0
          %2821 = vmatpush2.bf16.msra.mxu0 %v2368
          %2822 = vmatprep.subr.bf16.mxu0 0
          %2823 = vmatpush2.bf16.msra.mxu0 %v2367
          %2824 = vmatprep.mubr.bf16.mxu0 %v1091
          %2825 = vmatmul.mubr.bf16.gmra.mxu0 %v1090
          %v2826 = vpop.f32.mrf.mxu0
          %v2827 = vadd.f32 %v2762, %v2826
          %v2828 = vpop.f32.mrf.mxu0
          %v2829 = vpop.f32.mrf.mxu0
          %v2830 = vadd.f32 %v2765, %v2829
          %v2831 = vpop.f32.mrf.mxu0
          %2832 = vmatprep.mubr.bf16.mxu0 %v1115
          %2833 = vmatmul.mubr.bf16.gmra.mxu0 %v1114
          %v2834 = vpop.f32.mrf.mxu0
          %v2835 = vadd.f32 %v2770, %v2834
          %v2836 = vpop.f32.mrf.mxu0
          %v2837 = vpop.f32.mrf.mxu0
          %v2838 = vadd.f32 %v2773, %v2837
          %v2839 = vpop.f32.mrf.mxu0
          %2840 = vmatprep.mubr.bf16.mxu0 %v1139
          %2841 = vmatmul.mubr.bf16.gmra.mxu0 %v1138
          %v2842 = vpop.f32.mrf.mxu0
          %v2843 = vadd.f32 %v2778, %v2842
          %v2844 = vpop.f32.mrf.mxu0
          %v2845 = vpop.f32.mrf.mxu0
          %v2846 = vadd.f32 %v2781, %v2845
          %v2847 = vpop.f32.mrf.mxu0
          %2848 = vmatprep.mubr.bf16.mxu0 %v1163
          %2849 = vmatmul.mubr.bf16.gmra.mxu0 %v1162
          %v2850 = vpop.f32.mrf.mxu0
          %v2851 = vadd.f32 %v2786, %v2850
          %v2852 = vpop.f32.mrf.mxu0
          %v2853 = vpop.f32.mrf.mxu0
          %v2854 = vadd.f32 %v2789, %v2853
          %v2855 = vpop.f32.mrf.mxu0
          %2856 = vdwg.mxu0
          %2857 = vmatprep.subr.bf16.mxu0 0
          %2858 = vmatpush1.bf16.msra.mxu0 %v2382
          %2859 = vmatprep.subr.bf16.mxu0 0
          %2860 = vmatpush1.bf16.msra.mxu0 %v2381
          %2861 = vmatprep.subr.bf16.mxu0 0
          %2862 = vmatpush1.bf16.msra.mxu0 %v2380
          %2863 = vmatprep.subr.bf16.mxu0 0
          %2864 = vmatpush1.bf16.msra.mxu0 %v2379
          %2865 = vmatprep.subr.bf16.mxu0 0
          %2866 = vmatpush1.bf16.msra.mxu0 %v2378
          %2867 = vmatprep.subr.bf16.mxu0 0
          %2868 = vmatpush1.bf16.msra.mxu0 %v2377
          %2869 = vmatprep.subr.bf16.mxu0 0
          %2870 = vmatpush1.bf16.msra.mxu0 %v2376
          %2871 = vmatprep.subr.bf16.mxu0 0
          %2872 = vmatpush1.bf16.msra.mxu0 %v2375
          %2873 = vmatprep.subr.bf16.mxu0 0
          %2874 = vmatpush2.bf16.msra.mxu0 %v2390
          %2875 = vmatprep.subr.bf16.mxu0 0
          %2876 = vmatpush2.bf16.msra.mxu0 %v2389
          %2877 = vmatprep.subr.bf16.mxu0 0
          %2878 = vmatpush2.bf16.msra.mxu0 %v2388
          %2879 = vmatprep.subr.bf16.mxu0 0
          %2880 = vmatpush2.bf16.msra.mxu0 %v2387
          %2881 = vmatprep.subr.bf16.mxu0 0
          %2882 = vmatpush2.bf16.msra.mxu0 %v2386
          %2883 = vmatprep.subr.bf16.mxu0 0
          %2884 = vmatpush2.bf16.msra.mxu0 %v2385
          %2885 = vmatprep.subr.bf16.mxu0 0
          %2886 = vmatpush2.bf16.msra.mxu0 %v2384
          %2887 = vmatprep.subr.bf16.mxu0 0
          %2888 = vmatpush2.bf16.msra.mxu0 %v2383
          %2889 = vmatprep.mubr.bf16.mxu0 %v1093
          %2890 = vmatmul.mubr.bf16.gmra.mxu0 %v1092
          %v2891 = vpop.f32.mrf.mxu0
          %v2892 = vadd.f32 %v2827, %v2891
          %v2893 = vpop.f32.mrf.mxu0
          %v2894 = vpop.f32.mrf.mxu0
          %v2895 = vadd.f32 %v2830, %v2894
          %v2896 = vpop.f32.mrf.mxu0
          %2897 = vmatprep.mubr.bf16.mxu0 %v1117
          %2898 = vmatmul.mubr.bf16.gmra.mxu0 %v1116
          %v2899 = vpop.f32.mrf.mxu0
          %v2900 = vadd.f32 %v2835, %v2899
          %v2901 = vpop.f32.mrf.mxu0
          %v2902 = vpop.f32.mrf.mxu0
          %v2903 = vadd.f32 %v2838, %v2902
          %v2904 = vpop.f32.mrf.mxu0
          %2905 = vmatprep.mubr.bf16.mxu0 %v1141
          %2906 = vmatmul.mubr.bf16.gmra.mxu0 %v1140
          %v2907 = vpop.f32.mrf.mxu0
          %v2908 = vadd.f32 %v2843, %v2907
          %v2909 = vpop.f32.mrf.mxu0
          %v2910 = vpop.f32.mrf.mxu0
          %v2911 = vadd.f32 %v2846, %v2910
          %v2912 = vpop.f32.mrf.mxu0
          %2913 = vmatprep.mubr.bf16.mxu0 %v1165
          %2914 = vmatmul.mubr.bf16.gmra.mxu0 %v1164
          %v2915 = vpop.f32.mrf.mxu0
          %v2916 = vadd.f32 %v2851, %v2915
          %v2917 = vpop.f32.mrf.mxu0
          %v2918 = vpop.f32.mrf.mxu0
          %v2919 = vadd.f32 %v2854, %v2918
          %v2920 = vpop.f32.mrf.mxu0
          %2921 = vdwg.mxu0
          %2922 = vmatprep.subr.bf16.mxu0 0
          %2923 = vmatpush1.bf16.msra.mxu0 %v2398
          %2924 = vmatprep.subr.bf16.mxu0 0
          %2925 = vmatpush1.bf16.msra.mxu0 %v2397
          %2926 = vmatprep.subr.bf16.mxu0 0
          %2927 = vmatpush1.bf16.msra.mxu0 %v2396
          %2928 = vmatprep.subr.bf16.mxu0 0
          %2929 = vmatpush1.bf16.msra.mxu0 %v2395
          %2930 = vmatprep.subr.bf16.mxu0 0
          %2931 = vmatpush1.bf16.msra.mxu0 %v2394
          %2932 = vmatprep.subr.bf16.mxu0 0
          %2933 = vmatpush1.bf16.msra.mxu0 %v2393
          %2934 = vmatprep.subr.bf16.mxu0 0
          %2935 = vmatpush1.bf16.msra.mxu0 %v2392
          %2936 = vmatprep.subr.bf16.mxu0 0
          %2937 = vmatpush1.bf16.msra.mxu0 %v2391
          %2938 = vmatprep.subr.bf16.mxu0 0
          %2939 = vmatpush2.bf16.msra.mxu0 %v2406
          %2940 = vmatprep.subr.bf16.mxu0 0
          %2941 = vmatpush2.bf16.msra.mxu0 %v2405
          %2942 = vmatprep.subr.bf16.mxu0 0
          %2943 = vmatpush2.bf16.msra.mxu0 %v2404
          %2944 = vmatprep.subr.bf16.mxu0 0
          %2945 = vmatpush2.bf16.msra.mxu0 %v2403
          %2946 = vmatprep.subr.bf16.mxu0 0
          %2947 = vmatpush2.bf16.msra.mxu0 %v2402
          %2948 = vmatprep.subr.bf16.mxu0 0
          %2949 = vmatpush2.bf16.msra.mxu0 %v2401
          %2950 = vmatprep.subr.bf16.mxu0 0
          %2951 = vmatpush2.bf16.msra.mxu0 %v2400
          %2952 = vmatprep.subr.bf16.mxu0 0
          %2953 = vmatpush2.bf16.msra.mxu0 %v2399
          %2954 = vmatprep.mubr.bf16.mxu0 %v1095
          %2955 = vmatmul.mubr.bf16.gmra.mxu0 %v1094
          %v2956 = vpop.f32.mrf.mxu0
          %v2957 = vadd.f32 %v2892, %v2956
          %v2958 = vpop.f32.mrf.mxu0
          %v2959 = vpop.f32.mrf.mxu0
          %v2960 = vadd.f32 %v2895, %v2959
          %v2961 = vpop.f32.mrf.mxu0
          %2962 = vmatprep.mubr.bf16.mxu0 %v1119
          %2963 = vmatmul.mubr.bf16.gmra.mxu0 %v1118
          %v2964 = vpop.f32.mrf.mxu0
          %v2965 = vadd.f32 %v2900, %v2964
          %v2966 = vpop.f32.mrf.mxu0
          %v2967 = vpop.f32.mrf.mxu0
          %v2968 = vadd.f32 %v2903, %v2967
          %v2969 = vpop.f32.mrf.mxu0
          %2970 = vmatprep.mubr.bf16.mxu0 %v1143
          %2971 = vmatmul.mubr.bf16.gmra.mxu0 %v1142
          %v2972 = vpop.f32.mrf.mxu0
          %v2973 = vadd.f32 %v2908, %v2972
          %v2974 = vpop.f32.mrf.mxu0
          %v2975 = vpop.f32.mrf.mxu0
          %v2976 = vadd.f32 %v2911, %v2975
          %v2977 = vpop.f32.mrf.mxu0
          %2978 = vmatprep.mubr.bf16.mxu0 %v1167
          %2979 = vmatmul.mubr.bf16.gmra.mxu0 %v1166
          %v2980 = vpop.f32.mrf.mxu0
          %v2981 = vadd.f32 %v2916, %v2980
          %v2982 = vpop.f32.mrf.mxu0
          %v2983 = vpop.f32.mrf.mxu0
          %v2984 = vadd.f32 %v2919, %v2983
          %v2985 = vpop.f32.mrf.mxu0
          %2986 = vdwg.mxu0
          %2987 = vmatprep.subr.bf16.mxu0 0
          %2988 = vmatpush1.bf16.msra.mxu0 %v2414
          %2989 = vmatprep.subr.bf16.mxu0 0
          %2990 = vmatpush1.bf16.msra.mxu0 %v2413
          %2991 = vmatprep.subr.bf16.mxu0 0
          %2992 = vmatpush1.bf16.msra.mxu0 %v2412
          %2993 = vmatprep.subr.bf16.mxu0 0
          %2994 = vmatpush1.bf16.msra.mxu0 %v2411
          %2995 = vmatprep.subr.bf16.mxu0 0
          %2996 = vmatpush1.bf16.msra.mxu0 %v2410
          %2997 = vmatprep.subr.bf16.mxu0 0
          %2998 = vmatpush1.bf16.msra.mxu0 %v2409
          %2999 = vmatprep.subr.bf16.mxu0 0
          %3000 = vmatpush1.bf16.msra.mxu0 %v2408
          %3001 = vmatprep.subr.bf16.mxu0 0
          %3002 = vmatpush1.bf16.msra.mxu0 %v2407
          %3003 = vmatprep.subr.bf16.mxu0 0
          %3004 = vmatpush2.bf16.msra.mxu0 %v2422
          %3005 = vmatprep.subr.bf16.mxu0 0
          %3006 = vmatpush2.bf16.msra.mxu0 %v2421
          %3007 = vmatprep.subr.bf16.mxu0 0
          %3008 = vmatpush2.bf16.msra.mxu0 %v2420
          %3009 = vmatprep.subr.bf16.mxu0 0
          %3010 = vmatpush2.bf16.msra.mxu0 %v2419
          %3011 = vmatprep.subr.bf16.mxu0 0
          %3012 = vmatpush2.bf16.msra.mxu0 %v2418
          %3013 = vmatprep.subr.bf16.mxu0 0
          %3014 = vmatpush2.bf16.msra.mxu0 %v2417
          %3015 = vmatprep.subr.bf16.mxu0 0
          %3016 = vmatpush2.bf16.msra.mxu0 %v2416
          %3017 = vmatprep.subr.bf16.mxu0 0
          %3018 = vmatpush2.bf16.msra.mxu0 %v2415
          %3019 = vmatprep.mubr.bf16.mxu0 %v1097
          %3020 = vmatmul.mubr.bf16.gmra.mxu0 %v1096
          %v3021 = vpop.f32.mrf.mxu0
          %v3022 = vadd.f32 %v2957, %v3021
          %v3023 = vpop.f32.mrf.mxu0
          %v3024 = vpop.f32.mrf.mxu0
          %v3025 = vadd.f32 %v2960, %v3024
          %v3026 = vpop.f32.mrf.mxu0
          %3027 = vmatprep.mubr.bf16.mxu0 %v1121
          %3028 = vmatmul.mubr.bf16.gmra.mxu0 %v1120
          %v3029 = vpop.f32.mrf.mxu0
          %v3030 = vadd.f32 %v2965, %v3029
          %v3031 = vpop.f32.mrf.mxu0
          %v3032 = vpop.f32.mrf.mxu0
          %v3033 = vadd.f32 %v2968, %v3032
          %v3034 = vpop.f32.mrf.mxu0
          %3035 = vmatprep.mubr.bf16.mxu0 %v1145
          %3036 = vmatmul.mubr.bf16.gmra.mxu0 %v1144
          %v3037 = vpop.f32.mrf.mxu0
          %v3038 = vadd.f32 %v2973, %v3037
          %v3039 = vpop.f32.mrf.mxu0
          %v3040 = vpop.f32.mrf.mxu0
          %v3041 = vadd.f32 %v2976, %v3040
          %v3042 = vpop.f32.mrf.mxu0
          %3043 = vmatprep.mubr.bf16.mxu0 %v1169
          %3044 = vmatmul.mubr.bf16.gmra.mxu0 %v1168
          %v3045 = vpop.f32.mrf.mxu0
          %v3046 = vadd.f32 %v2981, %v3045
          %v3047 = vpop.f32.mrf.mxu0
          %v3048 = vpop.f32.mrf.mxu0
          %v3049 = vadd.f32 %v2984, %v3048
          %v3050 = vpop.f32.mrf.mxu0
          %3051 = vdwg.mxu0
          %3052 = vmatprep.subr.bf16.mxu0 0
          %3053 = vmatpush1.bf16.msra.mxu0 %v2430
          %3054 = vmatprep.subr.bf16.mxu0 0
          %3055 = vmatpush1.bf16.msra.mxu0 %v2429
          %3056 = vmatprep.subr.bf16.mxu0 0
          %3057 = vmatpush1.bf16.msra.mxu0 %v2428
          %3058 = vmatprep.subr.bf16.mxu0 0
          %3059 = vmatpush1.bf16.msra.mxu0 %v2427
          %3060 = vmatprep.subr.bf16.mxu0 0
          %3061 = vmatpush1.bf16.msra.mxu0 %v2426
          %3062 = vmatprep.subr.bf16.mxu0 0
          %3063 = vmatpush1.bf16.msra.mxu0 %v2425
          %3064 = vmatprep.subr.bf16.mxu0 0
          %3065 = vmatpush1.bf16.msra.mxu0 %v2424
          %3066 = vmatprep.subr.bf16.mxu0 0
          %3067 = vmatpush1.bf16.msra.mxu0 %v2423
          %3068 = vmatprep.subr.bf16.mxu0 0
          %3069 = vmatpush2.bf16.msra.mxu0 %v2438
          %3070 = vmatprep.subr.bf16.mxu0 0
          %3071 = vmatpush2.bf16.msra.mxu0 %v2437
          %3072 = vmatprep.subr.bf16.mxu0 0
          %3073 = vmatpush2.bf16.msra.mxu0 %v2436
          %3074 = vmatprep.subr.bf16.mxu0 0
          %3075 = vmatpush2.bf16.msra.mxu0 %v2435
          %3076 = vmatprep.subr.bf16.mxu0 0
          %3077 = vmatpush2.bf16.msra.mxu0 %v2434
          %3078 = vmatprep.subr.bf16.mxu0 0
          %3079 = vmatpush2.bf16.msra.mxu0 %v2433
          %3080 = vmatprep.subr.bf16.mxu0 0
          %3081 = vmatpush2.bf16.msra.mxu0 %v2432
          %3082 = vmatprep.subr.bf16.mxu0 0
          %3083 = vmatpush2.bf16.msra.mxu0 %v2431
          %3084 = vmatprep.mubr.bf16.mxu0 %v1099
          %3085 = vmatmul.mubr.bf16.gmra.mxu0 %v1098
          %v3086 = vpop.f32.mrf.mxu0
          %v3087 = vadd.f32 %v3022, %v3086
          %v3088 = vpop.f32.mrf.mxu0
          %v3089 = vpop.f32.mrf.mxu0
          %v3090 = vadd.f32 %v3025, %v3089
          %v3091 = vpop.f32.mrf.mxu0
          %3092 = vmatprep.mubr.bf16.mxu0 %v1123
          %3093 = vmatmul.mubr.bf16.gmra.mxu0 %v1122
          %v3094 = vpop.f32.mrf.mxu0
          %v3095 = vadd.f32 %v3030, %v3094
          %v3096 = vpop.f32.mrf.mxu0
          %v3097 = vpop.f32.mrf.mxu0
          %v3098 = vadd.f32 %v3033, %v3097
          %v3099 = vpop.f32.mrf.mxu0
          %3100 = vmatprep.mubr.bf16.mxu0 %v1147
          %3101 = vmatmul.mubr.bf16.gmra.mxu0 %v1146
          %v3102 = vpop.f32.mrf.mxu0
          %v3103 = vadd.f32 %v3038, %v3102
          %v3104 = vpop.f32.mrf.mxu0
          %v3105 = vpop.f32.mrf.mxu0
          %v3106 = vadd.f32 %v3041, %v3105
          %v3107 = vpop.f32.mrf.mxu0
          %3108 = vmatprep.mubr.bf16.mxu0 %v1171
          %3109 = vmatmul.mubr.bf16.gmra.mxu0 %v1170
          %v3110 = vpop.f32.mrf.mxu0
          %v3111 = vadd.f32 %v3046, %v3110
          %v3112 = vpop.f32.mrf.mxu0
          %v3113 = vpop.f32.mrf.mxu0
          %v3114 = vadd.f32 %v3049, %v3113
          %v3115 = vpop.f32.mrf.mxu0
          %3116 = vdwg.mxu0
          %3117 = vmatprep.subr.bf16.mxu0 0
          %3118 = vmatpush1.bf16.msra.mxu0 %v2446
          %3119 = vmatprep.subr.bf16.mxu0 0
          %3120 = vmatpush1.bf16.msra.mxu0 %v2445
          %3121 = vmatprep.subr.bf16.mxu0 0
          %3122 = vmatpush1.bf16.msra.mxu0 %v2444
          %3123 = vmatprep.subr.bf16.mxu0 0
          %3124 = vmatpush1.bf16.msra.mxu0 %v2443
          %3125 = vmatprep.subr.bf16.mxu0 0
          %3126 = vmatpush1.bf16.msra.mxu0 %v2442
          %3127 = vmatprep.subr.bf16.mxu0 0
          %3128 = vmatpush1.bf16.msra.mxu0 %v2441
          %3129 = vmatprep.subr.bf16.mxu0 0
          %3130 = vmatpush1.bf16.msra.mxu0 %v2440
          %3131 = vmatprep.subr.bf16.mxu0 0
          %3132 = vmatpush1.bf16.msra.mxu0 %v2439
          %3133 = vmatprep.subr.bf16.mxu0 0
          %3134 = vmatpush2.bf16.msra.mxu0 %v2454
          %3135 = vmatprep.subr.bf16.mxu0 0
          %3136 = vmatpush2.bf16.msra.mxu0 %v2453
          %3137 = vmatprep.subr.bf16.mxu0 0
          %3138 = vmatpush2.bf16.msra.mxu0 %v2452
          %3139 = vmatprep.subr.bf16.mxu0 0
          %3140 = vmatpush2.bf16.msra.mxu0 %v2451
          %3141 = vmatprep.subr.bf16.mxu0 0
          %3142 = vmatpush2.bf16.msra.mxu0 %v2450
          %3143 = vmatprep.subr.bf16.mxu0 0
          %3144 = vmatpush2.bf16.msra.mxu0 %v2449
          %3145 = vmatprep.subr.bf16.mxu0 0
          %3146 = vmatpush2.bf16.msra.mxu0 %v2448
          %3147 = vmatprep.subr.bf16.mxu0 0
          %3148 = vmatpush2.bf16.msra.mxu0 %v2447
          %3149 = vmatprep.mubr.bf16.mxu0 %v1101
          %3150 = vmatmul.mubr.bf16.gmra.mxu0 %v1100
          %v3151 = vpop.f32.mrf.mxu0
          %v3152 = vadd.f32 %v3087, %v3151
          %v3153 = vpop.f32.mrf.mxu0
          %v3154 = vpop.f32.mrf.mxu0
          %v3155 = vadd.f32 %v3090, %v3154
          %v3156 = vpop.f32.mrf.mxu0
          %3157 = vmatprep.mubr.bf16.mxu0 %v1125
          %3158 = vmatmul.mubr.bf16.gmra.mxu0 %v1124
          %v3159 = vpop.f32.mrf.mxu0
          %v3160 = vadd.f32 %v3095, %v3159
          %v3161 = vpop.f32.mrf.mxu0
          %v3162 = vpop.f32.mrf.mxu0
          %v3163 = vadd.f32 %v3098, %v3162
          %v3164 = vpop.f32.mrf.mxu0
          %3165 = vmatprep.mubr.bf16.mxu0 %v1149
          %3166 = vmatmul.mubr.bf16.gmra.mxu0 %v1148
          %v3167 = vpop.f32.mrf.mxu0
          %v3168 = vadd.f32 %v3103, %v3167
          %v3169 = vpop.f32.mrf.mxu0
          %v3170 = vpop.f32.mrf.mxu0
          %v3171 = vadd.f32 %v3106, %v3170
          %v3172 = vpop.f32.mrf.mxu0
          %3173 = vmatprep.mubr.bf16.mxu0 %v1173
          %3174 = vmatmul.mubr.bf16.gmra.mxu0 %v1172
          %v3175 = vpop.f32.mrf.mxu0
          %v3176 = vadd.f32 %v3111, %v3175
          %v3177 = vpop.f32.mrf.mxu0
          %v3178 = vpop.f32.mrf.mxu0
          %v3179 = vadd.f32 %v3114, %v3178
          %v3180 = vpop.f32.mrf.mxu0
          %3181 = vdwg.mxu0
          %3182 = vmatprep.subr.bf16.mxu0 0
          %3183 = vmatpush1.bf16.msra.mxu0 %v2462
          %3184 = vmatprep.subr.bf16.mxu0 0
          %3185 = vmatpush1.bf16.msra.mxu0 %v2461
          %3186 = vmatprep.subr.bf16.mxu0 0
          %3187 = vmatpush1.bf16.msra.mxu0 %v2460
          %3188 = vmatprep.subr.bf16.mxu0 0
          %3189 = vmatpush1.bf16.msra.mxu0 %v2459
          %3190 = vmatprep.subr.bf16.mxu0 0
          %3191 = vmatpush1.bf16.msra.mxu0 %v2458
          %3192 = vmatprep.subr.bf16.mxu0 0
          %3193 = vmatpush1.bf16.msra.mxu0 %v2457
          %3194 = vmatprep.subr.bf16.mxu0 0
          %3195 = vmatpush1.bf16.msra.mxu0 %v2456
          %3196 = vmatprep.subr.bf16.mxu0 0
          %3197 = vmatpush1.bf16.msra.mxu0 %v2455
          %3198 = vmatprep.subr.bf16.mxu0 0
          %3199 = vmatpush2.bf16.msra.mxu0 %v2470
          %3200 = vmatprep.subr.bf16.mxu0 0
          %3201 = vmatpush2.bf16.msra.mxu0 %v2469
          %3202 = vmatprep.subr.bf16.mxu0 0
          %3203 = vmatpush2.bf16.msra.mxu0 %v2468
          %3204 = vmatprep.subr.bf16.mxu0 0
          %3205 = vmatpush2.bf16.msra.mxu0 %v2467
          %3206 = vmatprep.subr.bf16.mxu0 0
          %3207 = vmatpush2.bf16.msra.mxu0 %v2466
          %3208 = vmatprep.subr.bf16.mxu0 0
          %3209 = vmatpush2.bf16.msra.mxu0 %v2465
          %3210 = vmatprep.subr.bf16.mxu0 0
          %3211 = vmatpush2.bf16.msra.mxu0 %v2464
          %3212 = vmatprep.subr.bf16.mxu0 0
          %3213 = vmatpush2.bf16.msra.mxu0 %v2463
          %3214 = vmatprep.mubr.bf16.mxu0 %v1103
          %3215 = vmatmul.mubr.bf16.gmra.mxu0 %v1102
          %v3216 = vpop.f32.mrf.mxu0
          %v3217 = vadd.f32 %v3152, %v3216
          %v3218 = vpop.f32.mrf.mxu0
          %v3219 = vpop.f32.mrf.mxu0
          %v3220 = vadd.f32 %v3155, %v3219
          %v3221 = vpop.f32.mrf.mxu0
          %3222 = vmatprep.mubr.bf16.mxu0 %v1127
          %3223 = vmatmul.mubr.bf16.gmra.mxu0 %v1126
          %v3224 = vpop.f32.mrf.mxu0
          %v3225 = vadd.f32 %v3160, %v3224
          %v3226 = vpop.f32.mrf.mxu0
          %v3227 = vpop.f32.mrf.mxu0
          %v3228 = vadd.f32 %v3163, %v3227
          %v3229 = vpop.f32.mrf.mxu0
          %3230 = vmatprep.mubr.bf16.mxu0 %v1151
          %3231 = vmatmul.mubr.bf16.gmra.mxu0 %v1150
          %v3232 = vpop.f32.mrf.mxu0
          %v3233 = vadd.f32 %v3168, %v3232
          %v3234 = vpop.f32.mrf.mxu0
          %v3235 = vpop.f32.mrf.mxu0
          %v3236 = vadd.f32 %v3171, %v3235
          %v3237 = vpop.f32.mrf.mxu0
          %3238 = vmatprep.mubr.bf16.mxu0 %v1175
          %3239 = vmatmul.mubr.bf16.gmra.mxu0 %v1174
          %v3240 = vpop.f32.mrf.mxu0
          %v3241 = vadd.f32 %v3176, %v3240
          %v3242 = vpop.f32.mrf.mxu0
          %v3243 = vpop.f32.mrf.mxu0
          %v3244 = vadd.f32 %v3179, %v3243
          %v3245 = vpop.f32.mrf.mxu0
          %3246 = vdwg.mxu0
          %3247 = vmatprep.subr.bf16.mxu0 0
          %3248 = vmatpush1.bf16.msra.mxu0 %v2478
          %3249 = vmatprep.subr.bf16.mxu0 0
          %3250 = vmatpush1.bf16.msra.mxu0 %v2477
          %3251 = vmatprep.subr.bf16.mxu0 0
          %3252 = vmatpush1.bf16.msra.mxu0 %v2476
          %3253 = vmatprep.subr.bf16.mxu0 0
          %3254 = vmatpush1.bf16.msra.mxu0 %v2475
          %3255 = vmatprep.subr.bf16.mxu0 0
          %3256 = vmatpush1.bf16.msra.mxu0 %v2474
          %3257 = vmatprep.subr.bf16.mxu0 0
          %3258 = vmatpush1.bf16.msra.mxu0 %v2473
          %3259 = vmatprep.subr.bf16.mxu0 0
          %3260 = vmatpush1.bf16.msra.mxu0 %v2472
          %3261 = vmatprep.subr.bf16.mxu0 0
          %3262 = vmatpush1.bf16.msra.mxu0 %v2471
          %3263 = vmatprep.subr.bf16.mxu0 0
          %3264 = vmatpush2.bf16.msra.mxu0 %v2486
          %3265 = vmatprep.subr.bf16.mxu0 0
          %3266 = vmatpush2.bf16.msra.mxu0 %v2485
          %3267 = vmatprep.subr.bf16.mxu0 0
          %3268 = vmatpush2.bf16.msra.mxu0 %v2484
          %3269 = vmatprep.subr.bf16.mxu0 0
          %3270 = vmatpush2.bf16.msra.mxu0 %v2483
          %3271 = vmatprep.subr.bf16.mxu0 0
          %3272 = vmatpush2.bf16.msra.mxu0 %v2482
          %3273 = vmatprep.subr.bf16.mxu0 0
          %3274 = vmatpush2.bf16.msra.mxu0 %v2481
          %3275 = vmatprep.subr.bf16.mxu0 0
          %3276 = vmatpush2.bf16.msra.mxu0 %v2480
          %3277 = vmatprep.subr.bf16.mxu0 0
          %3278 = vmatpush2.bf16.msra.mxu0 %v2479
          %3279 = vmatprep.mubr.bf16.mxu0 %v1105
          %3280 = vmatmul.mubr.bf16.gmra.mxu0 %v1104
          %v3281 = vpop.f32.mrf.mxu0
          %v3282 = vadd.f32 %v3217, %v3281
          %v3283 = vpop.f32.mrf.mxu0
          %v3284 = vpop.f32.mrf.mxu0
          %v3285 = vadd.f32 %v3220, %v3284
          %v3286 = vpop.f32.mrf.mxu0
          %3287 = vmatprep.mubr.bf16.mxu0 %v1129
          %3288 = vmatmul.mubr.bf16.gmra.mxu0 %v1128
          %v3289 = vpop.f32.mrf.mxu0
          %v3290 = vadd.f32 %v3225, %v3289
          %v3291 = vpop.f32.mrf.mxu0
          %v3292 = vpop.f32.mrf.mxu0
          %v3293 = vadd.f32 %v3228, %v3292
          %v3294 = vpop.f32.mrf.mxu0
          %3295 = vmatprep.mubr.bf16.mxu0 %v1153
          %3296 = vmatmul.mubr.bf16.gmra.mxu0 %v1152
          %v3297 = vpop.f32.mrf.mxu0
          %v3298 = vadd.f32 %v3233, %v3297
          %v3299 = vpop.f32.mrf.mxu0
          %v3300 = vpop.f32.mrf.mxu0
          %v3301 = vadd.f32 %v3236, %v3300
          %v3302 = vpop.f32.mrf.mxu0
          %3303 = vmatprep.mubr.bf16.mxu0 %v1177
          %3304 = vmatmul.mubr.bf16.gmra.mxu0 %v1176
          %v3305 = vpop.f32.mrf.mxu0
          %v3306 = vadd.f32 %v3241, %v3305
          %v3307 = vpop.f32.mrf.mxu0
          %v3308 = vpop.f32.mrf.mxu0
          %v3309 = vadd.f32 %v3244, %v3308
          %v3310 = vpop.f32.mrf.mxu0
          %3311 = vdwg.mxu0
          %3312 = vmatprep.subr.bf16.mxu0 0
          %3313 = vmatpush1.bf16.msra.mxu0 %v2494
          %3314 = vmatprep.subr.bf16.mxu0 0
          %3315 = vmatpush1.bf16.msra.mxu0 %v2493
          %3316 = vmatprep.subr.bf16.mxu0 0
          %3317 = vmatpush1.bf16.msra.mxu0 %v2492
          %3318 = vmatprep.subr.bf16.mxu0 0
          %3319 = vmatpush1.bf16.msra.mxu0 %v2491
          %3320 = vmatprep.subr.bf16.mxu0 0
          %3321 = vmatpush1.bf16.msra.mxu0 %v2490
          %3322 = vmatprep.subr.bf16.mxu0 0
          %3323 = vmatpush1.bf16.msra.mxu0 %v2489
          %3324 = vmatprep.subr.bf16.mxu0 0
          %3325 = vmatpush1.bf16.msra.mxu0 %v2488
          %3326 = vmatprep.subr.bf16.mxu0 0
          %3327 = vmatpush1.bf16.msra.mxu0 %v2487
          %3328 = vmatprep.subr.bf16.mxu0 0
          %3329 = vmatpush2.bf16.msra.mxu0 %v2502
          %3330 = vmatprep.subr.bf16.mxu0 0
          %3331 = vmatpush2.bf16.msra.mxu0 %v2501
          %3332 = vmatprep.subr.bf16.mxu0 0
          %3333 = vmatpush2.bf16.msra.mxu0 %v2500
          %3334 = vmatprep.subr.bf16.mxu0 0
          %3335 = vmatpush2.bf16.msra.mxu0 %v2499
          %3336 = vmatprep.subr.bf16.mxu0 0
          %3337 = vmatpush2.bf16.msra.mxu0 %v2498
          %3338 = vmatprep.subr.bf16.mxu0 0
          %3339 = vmatpush2.bf16.msra.mxu0 %v2497
          %3340 = vmatprep.subr.bf16.mxu0 0
          %3341 = vmatpush2.bf16.msra.mxu0 %v2496
          %3342 = vmatprep.subr.bf16.mxu0 0
          %3343 = vmatpush2.bf16.msra.mxu0 %v2495
          %3344 = vmatprep.mubr.bf16.mxu0 %v1107
          %3345 = vmatmul.mubr.bf16.gmra.mxu0 %v1106
          %v3346 = vpop.f32.mrf.mxu0
          %v3347 = vadd.f32 %v3282, %v3346
          %v3348 = vpop.f32.mrf.mxu0
          %v3349 = vpop.f32.mrf.mxu0
          %v3350 = vadd.f32 %v3285, %v3349
          %v3351 = vpop.f32.mrf.mxu0
          %3352 = vmatprep.mubr.bf16.mxu0 %v1131
          %3353 = vmatmul.mubr.bf16.gmra.mxu0 %v1130
          %v3354 = vpop.f32.mrf.mxu0
          %v3355 = vadd.f32 %v3290, %v3354
          %v3356 = vpop.f32.mrf.mxu0
          %v3357 = vpop.f32.mrf.mxu0
          %v3358 = vadd.f32 %v3293, %v3357
          %v3359 = vpop.f32.mrf.mxu0
          %3360 = vmatprep.mubr.bf16.mxu0 %v1155
          %3361 = vmatmul.mubr.bf16.gmra.mxu0 %v1154
          %v3362 = vpop.f32.mrf.mxu0
          %v3363 = vadd.f32 %v3298, %v3362
          %v3364 = vpop.f32.mrf.mxu0
          %v3365 = vpop.f32.mrf.mxu0
          %v3366 = vadd.f32 %v3301, %v3365
          %v3367 = vpop.f32.mrf.mxu0
          %3368 = vmatprep.mubr.bf16.mxu0 %v1179
          %3369 = vmatmul.mubr.bf16.gmra.mxu0 %v1178
          %v3370 = vpop.f32.mrf.mxu0
          %v3371 = vadd.f32 %v3306, %v3370
          %v3372 = vpop.f32.mrf.mxu0
          %v3373 = vpop.f32.mrf.mxu0
          %v3374 = vadd.f32 %v3309, %v3373
          %v3375 = vpop.f32.mrf.mxu0
          %3376 = vdwg.mxu0
          %3377 = vmatprep.subr.bf16.mxu0 0
          %3378 = vmatpush1.bf16.msra.mxu0 %v2510
          %3379 = vmatprep.subr.bf16.mxu0 0
          %3380 = vmatpush1.bf16.msra.mxu0 %v2509
          %3381 = vmatprep.subr.bf16.mxu0 0
          %3382 = vmatpush1.bf16.msra.mxu0 %v2508
          %3383 = vmatprep.subr.bf16.mxu0 0
          %3384 = vmatpush1.bf16.msra.mxu0 %v2507
          %3385 = vmatprep.subr.bf16.mxu0 0
          %3386 = vmatpush1.bf16.msra.mxu0 %v2506
          %3387 = vmatprep.subr.bf16.mxu0 0
          %3388 = vmatpush1.bf16.msra.mxu0 %v2505
          %3389 = vmatprep.subr.bf16.mxu0 0
          %3390 = vmatpush1.bf16.msra.mxu0 %v2504
          %3391 = vmatprep.subr.bf16.mxu0 0
          %3392 = vmatpush1.bf16.msra.mxu0 %v2503
          %3393 = vmatprep.subr.bf16.mxu0 0
          %3394 = vmatpush2.bf16.msra.mxu0 %v2518
          %3395 = vmatprep.subr.bf16.mxu0 0
          %3396 = vmatpush2.bf16.msra.mxu0 %v2517
          %3397 = vmatprep.subr.bf16.mxu0 0
          %3398 = vmatpush2.bf16.msra.mxu0 %v2516
          %3399 = vmatprep.subr.bf16.mxu0 0
          %3400 = vmatpush2.bf16.msra.mxu0 %v2515
          %3401 = vmatprep.subr.bf16.mxu0 0
          %3402 = vmatpush2.bf16.msra.mxu0 %v2514
          %3403 = vmatprep.subr.bf16.mxu0 0
          %3404 = vmatpush2.bf16.msra.mxu0 %v2513
          %3405 = vmatprep.subr.bf16.mxu0 0
          %3406 = vmatpush2.bf16.msra.mxu0 %v2512
          %3407 = vmatprep.subr.bf16.mxu0 0
          %3408 = vmatpush2.bf16.msra.mxu0 %v2511
          %3409 = vmatprep.mubr.bf16.mxu0 %v1109
          %3410 = vmatmul.mubr.bf16.gmra.mxu0 %v1108
          %v3411 = vpop.f32.mrf.mxu0
          %v3412 = vadd.f32 %v3347, %v3411
          %v3413 = vpop.f32.mrf.mxu0
          %v3414 = vpop.f32.mrf.mxu0
          %v3415 = vadd.f32 %v3350, %v3414
          %v3416 = vpop.f32.mrf.mxu0
          %3417 = vmatprep.mubr.bf16.mxu0 %v1133
          %3418 = vmatmul.mubr.bf16.gmra.mxu0 %v1132
          %v3419 = vpop.f32.mrf.mxu0
          %v3420 = vadd.f32 %v3355, %v3419
          %v3421 = vpop.f32.mrf.mxu0
          %v3422 = vpop.f32.mrf.mxu0
          %v3423 = vadd.f32 %v3358, %v3422
          %v3424 = vpop.f32.mrf.mxu0
          %3425 = vmatprep.mubr.bf16.mxu0 %v1157
          %3426 = vmatmul.mubr.bf16.gmra.mxu0 %v1156
          %v3427 = vpop.f32.mrf.mxu0
          %v3428 = vadd.f32 %v3363, %v3427
          %v3429 = vpop.f32.mrf.mxu0
          %v3430 = vpop.f32.mrf.mxu0
          %v3431 = vadd.f32 %v3366, %v3430
          %v3432 = vpop.f32.mrf.mxu0
          %3433 = vmatprep.mubr.bf16.mxu0 %v1181
          %3434 = vmatmul.mubr.bf16.gmra.mxu0 %v1180
          %v3435 = vpop.f32.mrf.mxu0
          %v3436 = vadd.f32 %v3371, %v3435
          %v3437 = vpop.f32.mrf.mxu0
          %v3438 = vpop.f32.mrf.mxu0
          %v3439 = vadd.f32 %v3374, %v3438
          %v3440 = vpop.f32.mrf.mxu0
          %3441 = vdwg.mxu0
          %3442 = vmatprep.subr.bf16.mxu0 0
          %3443 = vmatpush1.bf16.msra.mxu0 %v2526
          %3444 = vmatprep.subr.bf16.mxu0 0
          %3445 = vmatpush1.bf16.msra.mxu0 %v2525
          %3446 = vmatprep.subr.bf16.mxu0 0
          %3447 = vmatpush1.bf16.msra.mxu0 %v2524
          %3448 = vmatprep.subr.bf16.mxu0 0
          %3449 = vmatpush1.bf16.msra.mxu0 %v2523
          %3450 = vmatprep.subr.bf16.mxu0 0
          %3451 = vmatpush1.bf16.msra.mxu0 %v2522
          %3452 = vmatprep.subr.bf16.mxu0 0
          %3453 = vmatpush1.bf16.msra.mxu0 %v2521
          %3454 = vmatprep.subr.bf16.mxu0 0
          %3455 = vmatpush1.bf16.msra.mxu0 %v2520
          %3456 = vmatprep.subr.bf16.mxu0 0
          %3457 = vmatpush1.bf16.msra.mxu0 %v2519
          %3458 = vmatprep.subr.bf16.mxu0 0
          %3459 = vmatpush2.bf16.msra.mxu0 %v2534
          %3460 = vmatprep.subr.bf16.mxu0 0
          %3461 = vmatpush2.bf16.msra.mxu0 %v2533
          %3462 = vmatprep.subr.bf16.mxu0 0
          %3463 = vmatpush2.bf16.msra.mxu0 %v2532
          %3464 = vmatprep.subr.bf16.mxu0 0
          %3465 = vmatpush2.bf16.msra.mxu0 %v2531
          %3466 = vmatprep.subr.bf16.mxu0 0
          %3467 = vmatpush2.bf16.msra.mxu0 %v2530
          %3468 = vmatprep.subr.bf16.mxu0 0
          %3469 = vmatpush2.bf16.msra.mxu0 %v2529
          %3470 = vmatprep.subr.bf16.mxu0 0
          %3471 = vmatpush2.bf16.msra.mxu0 %v2528
          %3472 = vmatprep.subr.bf16.mxu0 0
          %3473 = vmatpush2.bf16.msra.mxu0 %v2527
          %3474 = vmatprep.mubr.bf16.mxu0 %v1111
          %3475 = vmatmul.mubr.bf16.gmra.mxu0 %v1110
          %v3476 = vpop.f32.mrf.mxu0
          %v3477 = vadd.f32 %v3412, %v3476
          %v3478 = vpop.f32.mrf.mxu0
          %v3479 = vpop.f32.mrf.mxu0
          %v3480 = vadd.f32 %v3415, %v3479
          %v3481 = vpop.f32.mrf.mxu0
          %3482 = vmatprep.mubr.bf16.mxu0 %v1135
          %3483 = vmatmul.mubr.bf16.gmra.mxu0 %v1134
          %v3484 = vpop.f32.mrf.mxu0
          %v3485 = vadd.f32 %v3420, %v3484
          %v3486 = vpop.f32.mrf.mxu0
          %v3487 = vpop.f32.mrf.mxu0
          %v3488 = vadd.f32 %v3423, %v3487
          %v3489 = vpop.f32.mrf.mxu0
          %3490 = vmatprep.mubr.bf16.mxu0 %v1159
          %3491 = vmatmul.mubr.bf16.gmra.mxu0 %v1158
          %v3492 = vpop.f32.mrf.mxu0
          %v3493 = vadd.f32 %v3428, %v3492
          %v3494 = vpop.f32.mrf.mxu0
          %v3495 = vpop.f32.mrf.mxu0
          %v3496 = vadd.f32 %v3431, %v3495
          %v3497 = vpop.f32.mrf.mxu0
          %3498 = vmatprep.mubr.bf16.mxu0 %v1183
          %3499 = vmatmul.mubr.bf16.gmra.mxu0 %v1182
          %v3500 = vpop.f32.mrf.mxu0
          %v3501 = vadd.f32 %v3436, %v3500
          %v3502 = vpop.f32.mrf.mxu0
          %v3503 = vpop.f32.mrf.mxu0
          %v3504 = vadd.f32 %v3439, %v3503
          %v3505 = vpop.f32.mrf.mxu0
          %3506 = vdwg.mxu0
          %v3507 = vlaneseq
          %v3508 = vshrl.u32 %v3507, 7
          %v3509 = vadd.s32 %v3508, 8
          %v3510 = vadd.s32 %v3508, 16
          %v3511 = vadd.s32 %v3508, 24
          %v3512 = vadd.s32 %v3508, 32
          %v3513 = vadd.s32 %v3508, 40
          %v3514 = vadd.s32 %v3508, 48
          %v3515 = vadd.s32 %v3508, 56
          %vm3516 = vcmp.eq.s32.totalorder %v3508, 0
          %vm3517 = vcmp.eq.s32.totalorder %v3509, 0
          %vm3518 = vcmp.eq.s32.totalorder %v3510, 0
          %vm3519 = vcmp.eq.s32.totalorder %v3511, 0
          %vm3520 = vcmp.eq.s32.totalorder %v3512, 0
          %vm3521 = vcmp.eq.s32.totalorder %v3513, 0
          %vm3522 = vcmp.eq.s32.totalorder %v3514, 0
          %vm3523 = vcmp.eq.s32.totalorder %v3515, 0
          %v3524 = vld [vmem:[%s3] sm:$0x1]
          %v3525 = vsel %vm3516, 1, 0
          %v3526 = vsel %vm3517, 1, 0
          %v3527 = vsel %vm3518, 1, 0
          %v3528 = vsel %vm3519, 1, 0
          %v3529 = vsel %vm3520, 1, 0
          %v3530 = vsel %vm3521, 1, 0
          %v3531 = vsel %vm3522, 1, 0
          %v3532 = vsel %vm3523, 1, 0
          %vm3533 = vcmp.eq.s32.totalorder %v3525, 1
          %vm3534 = vcmp.eq.s32.totalorder %v3526, 1
          %vm3535 = vcmp.eq.s32.totalorder %v3527, 1
          %vm3536 = vcmp.eq.s32.totalorder %v3528, 1
          %vm3537 = vcmp.eq.s32.totalorder %v3529, 1
          %vm3538 = vcmp.eq.s32.totalorder %v3530, 1
          %vm3539 = vcmp.eq.s32.totalorder %v3531, 1
          %vm3540 = vcmp.eq.s32.totalorder %v3532, 1
          %v3542 = vlaneseq
          %v3543 = vshrl.u32 %v3542, 7
          %v3544 = vsub.s32 0, %v3543
          %v3545 = vrot.slane %v3524, %v3544
          %v3547 = vsel %vm3533, %v3545, %v3477
          %v3548 = vsel %vm3534, %v3545, %v3480
          %v3549 = vsel %vm3535, %v3545, %v3485
          %v3550 = vsel %vm3536, %v3545, %v3488
          %v3551 = vsel %vm3537, %v3545, %v3493
          %v3552 = vsel %vm3538, %v3545, %v3496
          %v3553 = vsel %vm3539, %v3545, %v3501
          %v3554 = vsel %vm3540, %v3545, %v3504
          %v3555 = vld [vmem:[%s4] sm:$0xff]
          %v3556 = vld [vmem:[%s4 + $0x8] sm:$0xff]
          %v3557 = vld [vmem:[%s4 + $0x10] sm:$0xff]
          %v3558 = vld [vmem:[%s4 + $0x18] sm:$0xff]
          %v3559 = vld [vmem:[%s4 + $0x20] sm:$0xff]
          %v3560 = vld [vmem:[%s4 + $0x28] sm:$0xff]
          %v3561 = vld [vmem:[%s4 + $0x30] sm:$0xff]
          %v3562 = vld [vmem:[%s4 + $0x38] sm:$0xff]
          %v3563 = vadd.f32 %v3547, %v3555
          %v3564 = vadd.f32 %v3548, %v3556
          %v3565 = vadd.f32 %v3549, %v3557
          %v3566 = vadd.f32 %v3550, %v3558
          %v3567 = vadd.f32 %v3551, %v3559
          %v3568 = vadd.f32 %v3552, %v3560
          %v3569 = vadd.f32 %v3553, %v3561
          %v3570 = vadd.f32 %v3554, %v3562
          %v3571 = vld [vmem:[%s5] sm:$0x1]
          %v3572 = vld [vmem:[%s6] sm:$0x1]
          %3573 = vadd.xlane.f32.xlu0 %v3563
          %v3574 = vpop.xlane.xlu0 %3573
          %3575 = vadd.xlane.f32.xlu0 %v3564
          %v3576 = vpop.xlane.xlu0 %3575
          %3577 = vadd.xlane.f32.xlu0 %v3565
          %v3578 = vpop.xlane.xlu0 %3577
          %3579 = vadd.xlane.f32.xlu0 %v3566
          %v3580 = vpop.xlane.xlu0 %3579
          %3581 = vadd.xlane.f32.xlu0 %v3567
          %v3582 = vpop.xlane.xlu0 %3581
          %3583 = vadd.xlane.f32.xlu0 %v3568
          %v3584 = vpop.xlane.xlu0 %3583
          %3585 = vadd.xlane.f32.xlu0 %v3569
          %v3586 = vpop.xlane.xlu0 %3585
          %3587 = vadd.xlane.f32.xlu0 %v3570
          %v3588 = vpop.xlane.xlu0 %3587
          %v3589 = vrcp.pop 128.0
          %v3590 = vmul.f32 %v3574, %v3589
          %v3591 = vmul.f32 %v3576, %v3589
          %v3592 = vmul.f32 %v3578, %v3589
          %v3593 = vmul.f32 %v3580, %v3589
          %v3594 = vmul.f32 %v3582, %v3589
          %v3595 = vmul.f32 %v3584, %v3589
          %v3596 = vmul.f32 %v3586, %v3589
          %v3597 = vmul.f32 %v3588, %v3589
          %v3598 = vsub.f32 %v3563, %v3590
          %v3599 = vsub.f32 %v3564, %v3591
          %v3600 = vsub.f32 %v3565, %v3592
          %v3601 = vsub.f32 %v3566, %v3593
          %v3602 = vsub.f32 %v3567, %v3594
          %v3603 = vsub.f32 %v3568, %v3595
          %v3604 = vsub.f32 %v3569, %v3596
          %v3605 = vsub.f32 %v3570, %v3597
          %v3606 = vmul.f32 %v3598, %v3598
          %v3607 = vmul.f32 %v3599, %v3599
          %v3608 = vmul.f32 %v3600, %v3600
          %v3609 = vmul.f32 %v3601, %v3601
          %v3610 = vmul.f32 %v3602, %v3602
          %v3611 = vmul.f32 %v3603, %v3603
          %v3612 = vmul.f32 %v3604, %v3604
          %v3613 = vmul.f32 %v3605, %v3605
          %3614 = vadd.xlane.f32.xlu0 %v3606
          %v3615 = vpop.xlane.xlu0 %3614
          %3616 = vadd.xlane.f32.xlu0 %v3607
          %v3617 = vpop.xlane.xlu0 %3616
          %3618 = vadd.xlane.f32.xlu0 %v3608
          %v3619 = vpop.xlane.xlu0 %3618
          %3620 = vadd.xlane.f32.xlu0 %v3609
          %v3621 = vpop.xlane.xlu0 %3620
          %3622 = vadd.xlane.f32.xlu0 %v3610
          %v3623 = vpop.xlane.xlu0 %3622
          %3624 = vadd.xlane.f32.xlu0 %v3611
          %v3625 = vpop.xlane.xlu0 %3624
          %3626 = vadd.xlane.f32.xlu0 %v3612
          %v3627 = vpop.xlane.xlu0 %3626
          %3628 = vadd.xlane.f32.xlu0 %v3613
          %v3629 = vpop.xlane.xlu0 %3628
          %v3630 = vmul.f32 %v3615, %v3589
          %v3631 = vmul.f32 %v3617, %v3589
          %v3632 = vmul.f32 %v3619, %v3589
          %v3633 = vmul.f32 %v3621, %v3589
          %v3634 = vmul.f32 %v3623, %v3589
          %v3635 = vmul.f32 %v3625, %v3589
          %v3636 = vmul.f32 %v3627, %v3589
          %v3637 = vmul.f32 %v3629, %v3589
          %v3638 = vadd.f32 %v3630, 1e-05
          %v3639 = vadd.f32 %v3631, 1e-05
          %v3640 = vadd.f32 %v3632, 1e-05
          %v3641 = vadd.f32 %v3633, 1e-05
          %v3642 = vadd.f32 %v3634, 1e-05
          %v3643 = vadd.f32 %v3635, 1e-05
          %v3644 = vadd.f32 %v3636, 1e-05
          %v3645 = vadd.f32 %v3637, 1e-05
          %v3646 = vrsqrt.pop %v3638
          %v3647 = vrsqrt.pop %v3639
          %v3648 = vrsqrt.pop %v3640
          %v3649 = vrsqrt.pop %v3641
          %v3650 = vrsqrt.pop %v3642
          %v3651 = vrsqrt.pop %v3643
          %v3652 = vrsqrt.pop %v3644
          %v3653 = vrsqrt.pop %v3645
          %v3654 = vmul.f32 %v3598, %v3646
          %v3655 = vmul.f32 %v3599, %v3647
          %v3656 = vmul.f32 %v3600, %v3648
          %v3657 = vmul.f32 %v3601, %v3649
          %v3658 = vmul.f32 %v3602, %v3650
          %v3659 = vmul.f32 %v3603, %v3651
          %v3660 = vmul.f32 %v3604, %v3652
          %v3661 = vmul.f32 %v3605, %v3653
          %v3663 = vlaneseq
          %v3664 = vshrl.u32 %v3663, 7
          %v3665 = vsub.s32 0, %v3664
          %v3666 = vrot.slane %v3571, %v3665
          %v3668 = vmul.f32 %v3654, %v3666
          %v3669 = vmul.f32 %v3655, %v3666
          %v3670 = vmul.f32 %v3656, %v3666
          %v3671 = vmul.f32 %v3657, %v3666
          %v3672 = vmul.f32 %v3658, %v3666
          %v3673 = vmul.f32 %v3659, %v3666
          %v3674 = vmul.f32 %v3660, %v3666
          %v3675 = vmul.f32 %v3661, %v3666
          %v3677 = vlaneseq
          %v3678 = vshrl.u32 %v3677, 7
          %v3679 = vsub.s32 0, %v3678
          %v3680 = vrot.slane %v3572, %v3679
          %v3682 = vadd.f32 %v3668, %v3680
          %v3683 = vadd.f32 %v3669, %v3680
          %v3684 = vadd.f32 %v3670, %v3680
          %v3685 = vadd.f32 %v3671, %v3680
          %v3686 = vadd.f32 %v3672, %v3680
          %v3687 = vadd.f32 %v3673, %v3680
          %v3688 = vadd.f32 %v3674, %v3680
          %v3689 = vadd.f32 %v3675, %v3680
          %3690 = vst [vmem:[#allocation2] sm:$0xff] %v3682
          %3691 = vst [vmem:[#allocation2 + $0x8] sm:$0xff] %v3683
          %3692 = vst [vmem:[#allocation2 + $0x10] sm:$0xff] %v3684
          %3693 = vst [vmem:[#allocation2 + $0x18] sm:$0xff] %v3685
          %3694 = vst [vmem:[#allocation2 + $0x20] sm:$0xff] %v3686
          %3695 = vst [vmem:[#allocation2 + $0x28] sm:$0xff] %v3687
          %3696 = vst [vmem:[#allocation2 + $0x30] sm:$0xff] %v3688
          %3697 = vst [vmem:[#allocation2 + $0x38] sm:$0xff] %v3689
        $region112: #{clip_image_features.1} parent=107 // pred_fallthru
          _
        %v3698 = vld [vmem:[#allocation2] sm:$0xff]
        %v3699 = vld [vmem:[#allocation2 + $0x8] sm:$0xff]
        %v3700 = vld [vmem:[#allocation2 + $0x10] sm:$0xff]
        %v3701 = vld [vmem:[#allocation2 + $0x18] sm:$0xff]
        %v3702 = vld [vmem:[#allocation2 + $0x20] sm:$0xff]
        %v3703 = vld [vmem:[#allocation2 + $0x28] sm:$0xff]
        %v3704 = vld [vmem:[#allocation2 + $0x30] sm:$0xff]
        %v3705 = vld [vmem:[#allocation2 + $0x38] sm:$0xff]
        %v3706 = vld [vmem:[%s847] sm:$0x1]
        %v3707 = vld [vmem:[%s850] sm:$0x1]
        %3708 = vadd.xlane.f32.xlu0 %v3698
        %v3709 = vpop.xlane.xlu0 %3708
        %3710 = vadd.xlane.f32.xlu0 %v3699
        %v3711 = vpop.xlane.xlu0 %3710
        %3712 = vadd.xlane.f32.xlu0 %v3700
        %v3713 = vpop.xlane.xlu0 %3712
        %3714 = vadd.xlane.f32.xlu0 %v3701
        %v3715 = vpop.xlane.xlu0 %3714
        %3716 = vadd.xlane.f32.xlu0 %v3702
        %v3717 = vpop.xlane.xlu0 %3716
        %3718 = vadd.xlane.f32.xlu0 %v3703
        %v3719 = vpop.xlane.xlu0 %3718
        %3720 = vadd.xlane.f32.xlu0 %v3704
        %v3721 = vpop.xlane.xlu0 %3720
        %3722 = vadd.xlane.f32.xlu0 %v3705
        %v3723 = vpop.xlane.xlu0 %3722
        %v3724 = vrcp.pop 128.0
        %v3725 = vmul.f32 %v3709, %v3724
        %v3726 = vmul.f32 %v3711, %v3724
        %v3727 = vmul.f32 %v3713, %v3724
        %v3728 = vmul.f32 %v3715, %v3724
        %v3729 = vmul.f32 %v3717, %v3724
        %v3730 = vmul.f32 %v3719, %v3724
        %v3731 = vmul.f32 %v3721, %v3724
        %v3732 = vmul.f32 %v3723, %v3724
        %v3733 = vsub.f32 %v3698, %v3725
        %v3734 = vsub.f32 %v3699, %v3726
        %v3735 = vsub.f32 %v3700, %v3727
        %v3736 = vsub.f32 %v3701, %v3728
        %v3737 = vsub.f32 %v3702, %v3729
        %v3738 = vsub.f32 %v3703, %v3730
        %v3739 = vsub.f32 %v3704, %v3731
        %v3740 = vsub.f32 %v3705, %v3732
        %v3741 = vmul.f32 %v3733, %v3733
        %v3742 = vmul.f32 %v3734, %v3734
        %v3743 = vmul.f32 %v3735, %v3735
        %v3744 = vmul.f32 %v3736, %v3736
        %v3745 = vmul.f32 %v3737, %v3737
        %v3746 = vmul.f32 %v3738, %v3738
        %v3747 = vmul.f32 %v3739, %v3739
        %v3748 = vmul.f32 %v3740, %v3740
        %3749 = vadd.xlane.f32.xlu0 %v3741
        %v3750 = vpop.xlane.xlu0 %3749
        %3751 = vadd.xlane.f32.xlu0 %v3742
        %v3752 = vpop.xlane.xlu0 %3751
        %3753 = vadd.xlane.f32.xlu0 %v3743
        %v3754 = vpop.xlane.xlu0 %3753
        %3755 = vadd.xlane.f32.xlu0 %v3744
        %v3756 = vpop.xlane.xlu0 %3755
        %3757 = vadd.xlane.f32.xlu0 %v3745
        %v3758 = vpop.xlane.xlu0 %3757
        %3759 = vadd.xlane.f32.xlu0 %v3746
        %v3760 = vpop.xlane.xlu0 %3759
        %3761 = vadd.xlane.f32.xlu0 %v3747
        %v3762 = vpop.xlane.xlu0 %3761
        %3763 = vadd.xlane.f32.xlu0 %v3748
        %v3764 = vpop.xlane.xlu0 %3763
        %v3765 = vmul.f32 %v3750, %v3724
        %v3766 = vmul.f32 %v3752, %v3724
        %v3767 = vmul.f32 %v3754, %v3724
        %v3768 = vmul.f32 %v3756, %v3724
        %v3769 = vmul.f32 %v3758, %v3724
        %v3770 = vmul.f32 %v3760, %v3724
        %v3771 = vmul.f32 %v3762, %v3724
        %v3772 = vmul.f32 %v3764, %v3724
        %v3773 = vadd.f32 %v3765, 1e-05
        %v3774 = vadd.f32 %v3766, 1e-05
        %v3775 = vadd.f32 %v3767, 1e-05
        %v3776 = vadd.f32 %v3768, 1e-05
        %v3777 = vadd.f32 %v3769, 1e-05
        %v3778 = vadd.f32 %v3770, 1e-05
        %v3779 = vadd.f32 %v3771, 1e-05
        %v3780 = vadd.f32 %v3772, 1e-05
        %v3781 = vrsqrt.pop %v3773
        %v3782 = vrsqrt.pop %v3774
        %v3783 = vrsqrt.pop %v3775
        %v3784 = vrsqrt.pop %v3776
        %v3785 = vrsqrt.pop %v3777
        %v3786 = vrsqrt.pop %v3778
        %v3787 = vrsqrt.pop %v3779
        %v3788 = vrsqrt.pop %v3780
        %v3789 = vmul.f32 %v3733, %v3781
        %v3790 = vmul.f32 %v3734, %v3782
        %v3791 = vmul.f32 %v3735, %v3783
        %v3792 = vmul.f32 %v3736, %v3784
        %v3793 = vmul.f32 %v3737, %v3785
        %v3794 = vmul.f32 %v3738, %v3786
        %v3795 = vmul.f32 %v3739, %v3787
        %v3796 = vmul.f32 %v3740, %v3788
        %v3798 = vlaneseq
        %v3799 = vshrl.u32 %v3798, 7
        %v3800 = vsub.s32 0, %v3799
        %v3801 = vrot.slane %v3706, %v3800
        %v3803 = vmul.f32 %v3789, %v3801
        %v3804 = vmul.f32 %v3790, %v3801
        %v3805 = vmul.f32 %v3791, %v3801
        %v3806 = vmul.f32 %v3792, %v3801
        %v3807 = vmul.f32 %v3793, %v3801
        %v3808 = vmul.f32 %v3794, %v3801
        %v3809 = vmul.f32 %v3795, %v3801
        %v3810 = vmul.f32 %v3796, %v3801
        %v3812 = vlaneseq
        %v3813 = vshrl.u32 %v3812, 7
        %v3814 = vsub.s32 0, %v3813
        %v3815 = vrot.slane %v3707, %v3814
        %v3817 = vadd.f32 %v3803, %v3815
        %v3818 = vadd.f32 %v3804, %v3815
        %v3819 = vadd.f32 %v3805, %v3815
        %v3820 = vadd.f32 %v3806, %v3815
        %v3821 = vadd.f32 %v3807, %v3815
        %v3822 = vadd.f32 %v3808, %v3815
        %v3823 = vadd.f32 %v3809, %v3815
        %v3824 = vadd.f32 %v3810, %v3815
        %v3825 = vpack.c.bf16 %v3818, %v3817
        %v3826 = vpack.c.bf16 %v3820, %v3819
        %v3827 = vpack.c.bf16 %v3822, %v3821
        %v3828 = vpack.c.bf16 %v3824, %v3823
        %v3829 = vld [vmem:[%s855] sm:$0xff]
        %v3830 = vld [vmem:[%s855 + $0x8] sm:$0xf]
        %v3831 = vld [vmem:[%s855 + $0xc] sm:$0xff]
        %v3832 = vld [vmem:[%s855 + $0x14] sm:$0xf]
        %v3833 = vld [vmem:[%s855 + $0x18] sm:$0xff]
        %v3834 = vld [vmem:[%s855 + $0x20] sm:$0xf]
        %v3835 = vld [vmem:[%s855 + $0x24] sm:$0xff]
        %v3836 = vld [vmem:[%s855 + $0x2c] sm:$0xf]
        %v3837 = vld [vmem:[%s855 + $0x30] sm:$0xff]
        %v3838 = vld [vmem:[%s855 + $0x38] sm:$0xf]
        %v3839 = vld [vmem:[%s855 + $0x3c] sm:$0xff]
        %v3840 = vld [vmem:[%s855 + $0x44] sm:$0xf]
        %v3841 = vld [vmem:[%s855 + $0x48] sm:$0xff]
        %v3842 = vld [vmem:[%s855 + $0x50] sm:$0xf]
        %v3843 = vld [vmem:[%s855 + $0x54] sm:$0xff]
        %v3844 = vld [vmem:[%s855 + $0x5c] sm:$0xf]
        %v3845 = vld [vmem:[%s855 + $0x60] sm:$0xff]
        %v3846 = vld [vmem:[%s855 + $0x68] sm:$0xf]
        %v3847 = vld [vmem:[%s855 + $0x6c] sm:$0xff]
        %v3848 = vld [vmem:[%s855 + $0x74] sm:$0xf]
        %v3849 = vld [vmem:[%s855 + $0x78] sm:$0xff]
        %v3850 = vld [vmem:[%s855 + $0x80] sm:$0xf]
        %v3851 = vld [vmem:[%s855 + $0x84] sm:$0xff]
        %v3852 = vld [vmem:[%s855 + $0x8c] sm:$0xf]
        %v3853 = vld [vmem:[%s855 + $0x90] sm:$0xff]
        %v3854 = vld [vmem:[%s855 + $0x98] sm:$0xf]
        %v3855 = vld [vmem:[%s855 + $0x9c] sm:$0xff]
        %v3856 = vld [vmem:[%s855 + $0xa4] sm:$0xf]
        %v3857 = vld [vmem:[%s855 + $0xa8] sm:$0xff]
        %v3858 = vld [vmem:[%s855 + $0xb0] sm:$0xf]
        %v3859 = vld [vmem:[%s855 + $0xb4] sm:$0xff]
        %v3860 = vld [vmem:[%s855 + $0xbc] sm:$0xf]
        %v3861 = vld [vmem:[%s859] sm:$0x7]
        %v3863 = vlaneseq
        %v3864 = vshrl.u32 %v3863, 7
        %v3865 = vsub.s32 0, %v3864
        %v3866 = vrot.slane %v3861, %v3865
        %v3867 = vlaneseq
        %v3868 = vshrl.u32 %v3867, 7
        %v3869 = vsub.s32 1, %v3868
        %v3870 = vrot.slane %v3861, %v3869
        %v3871 = vlaneseq
        %v3872 = vshrl.u32 %v3871, 7
        %v3873 = vsub.s32 2, %v3872
        %v3874 = vrot.slane %v3861, %v3873
        %v3910 = vunpack.c.l.b16 %v3829
        %v3911 = vunpack.c.h.b16 %v3829
        %v3912 = vunpack.c.l.b16 %v3830
        %v3913 = vunpack.c.l.b16 %v3831
        %v3914 = vunpack.c.h.b16 %v3831
        %v3915 = vunpack.c.l.b16 %v3832
        %v3916 = vunpack.c.l.b16 %v3833
        %v3917 = vunpack.c.h.b16 %v3833
        %v3918 = vunpack.c.l.b16 %v3834
        %v3919 = vunpack.c.l.b16 %v3835
        %v3920 = vunpack.c.h.b16 %v3835
        %v3921 = vunpack.c.l.b16 %v3836
        %v3922 = vunpack.c.l.b16 %v3837
        %v3923 = vunpack.c.h.b16 %v3837
        %v3924 = vunpack.c.l.b16 %v3838
        %v3925 = vunpack.c.l.b16 %v3839
        %v3926 = vunpack.c.h.b16 %v3839
        %v3927 = vunpack.c.l.b16 %v3840
        %v3928 = vunpack.c.l.b16 %v3841
        %v3929 = vunpack.c.h.b16 %v3841
        %v3930 = vunpack.c.l.b16 %v3842
        %v3931 = vunpack.c.l.b16 %v3843
        %v3932 = vunpack.c.h.b16 %v3843
        %v3933 = vunpack.c.l.b16 %v3844
        %v3934 = vunpack.c.l.b16 %v3845
        %v3935 = vunpack.c.h.b16 %v3845
        %v3936 = vunpack.c.l.b16 %v3846
        %v3937 = vunpack.c.l.b16 %v3847
        %v3938 = vunpack.c.h.b16 %v3847
        %v3939 = vunpack.c.l.b16 %v3848
        %v3940 = vunpack.c.l.b16 %v3849
        %v3941 = vunpack.c.h.b16 %v3849
        %v3942 = vunpack.c.l.b16 %v3850
        %v3943 = vunpack.c.l.b16 %v3851
        %v3944 = vunpack.c.h.b16 %v3851
        %v3945 = vunpack.c.l.b16 %v3852
        %v3946 = vunpack.c.l.b16 %v3853
        %v3947 = vunpack.c.h.b16 %v3853
        %v3948 = vunpack.c.l.b16 %v3854
        %v3949 = vunpack.c.l.b16 %v3855
        %v3950 = vunpack.c.h.b16 %v3855
        %v3951 = vunpack.c.l.b16 %v3856
        %v3952 = vunpack.c.l.b16 %v3857
        %v3953 = vunpack.c.h.b16 %v3857
        %v3954 = vunpack.c.l.b16 %v3858
        %v3955 = vunpack.c.l.b16 %v3859
        %v3956 = vunpack.c.h.b16 %v3859
        %v3957 = vunpack.c.l.b16 %v3860
        %v3958 = vpack.c.b16 %v3913, %v3910
        %v3959 = vpack.c.b16 %v3914, %v3911
        %v3960 = vpack.c.b16 %v3915, %v3912
        %v3961 = vpack.c.b16 %v3919, %v3916
        %v3962 = vpack.c.b16 %v3920, %v3917
        %v3963 = vpack.c.b16 %v3921, %v3918
        %v3964 = vpack.c.b16 %v3925, %v3922
        %v3965 = vpack.c.b16 %v3926, %v3923
        %v3966 = vpack.c.b16 %v3927, %v3924
        %v3967 = vpack.c.b16 %v3931, %v3928
        %v3968 = vpack.c.b16 %v3932, %v3929
        %v3969 = vpack.c.b16 %v3933, %v3930
        %v3970 = vpack.c.b16 %v3937, %v3934
        %v3971 = vpack.c.b16 %v3938, %v3935
        %v3972 = vpack.c.b16 %v3939, %v3936
        %v3973 = vpack.c.b16 %v3943, %v3940
        %v3974 = vpack.c.b16 %v3944, %v3941
        %v3975 = vpack.c.b16 %v3945, %v3942
        %v3976 = vpack.c.b16 %v3949, %v3946
        %v3977 = vpack.c.b16 %v3950, %v3947
        %v3978 = vpack.c.b16 %v3951, %v3948
        %v3979 = vpack.c.b16 %v3955, %v3952
        %v3980 = vpack.c.b16 %v3956, %v3953
        %v3981 = vpack.c.b16 %v3957, %v3954
        %4006 = vmatprep.subr.bf16.mxu0 %v3980
        %4007 = vmatpush1.bf16.msra.mxu0 %v3979
        %4008 = vmatprep.subr.bf16.mxu0 %v3977
        %4009 = vmatpush1.bf16.msra.mxu0 %v3976
        %4010 = vmatprep.subr.bf16.mxu0 %v3974
        %4011 = vmatpush1.bf16.msra.mxu0 %v3973
        %4012 = vmatprep.subr.bf16.mxu0 %v3971
        %4013 = vmatpush1.bf16.msra.mxu0 %v3970
        %4014 = vmatprep.subr.bf16.mxu0 %v3968
        %4015 = vmatpush1.bf16.msra.mxu0 %v3967
        %4016 = vmatprep.subr.bf16.mxu0 %v3965
        %4017 = vmatpush1.bf16.msra.mxu0 %v3964
        %4018 = vmatprep.subr.bf16.mxu0 %v3962
        %4019 = vmatpush1.bf16.msra.mxu0 %v3961
        %4020 = vmatprep.subr.bf16.mxu0 %v3959
        %4021 = vmatpush1.bf16.msra.mxu0 %v3958
        %4022 = vmatprep.subr.bf16.mxu0 0
        %4023 = vmatpush2.bf16.msra.mxu0 0
        %4024 = vmatprep.subr.bf16.mxu0 0
        %4025 = vmatpush2.bf16.msra.mxu0 0
        %4026 = vmatprep.subr.bf16.mxu0 0
        %4027 = vmatpush2.bf16.msra.mxu0 0
        %4028 = vmatprep.subr.bf16.mxu0 0
        %4029 = vmatpush2.bf16.msra.mxu0 0
        %4030 = vmatprep.subr.bf16.mxu0 0
        %4031 = vmatpush2.bf16.msra.mxu0 0
        %4032 = vmatprep.subr.bf16.mxu0 0
        %4033 = vmatpush2.bf16.msra.mxu0 0
        %4034 = vmatprep.subr.bf16.mxu0 0
        %4035 = vmatpush2.bf16.msra.mxu0 0
        %4036 = vmatprep.subr.bf16.mxu0 0
        %4037 = vmatpush2.bf16.msra.mxu0 0
        %4038 = vmatprep.mubr.bf16.mxu0 0
        %4039 = vmatmul.mubr.bf16.gmra.mxu0 %v3825
        %v4040 = vpop.f32.mrf.mxu0
        %v4041 = vadd.f32 %v3866, %v4040
        %v4042 = vpop.f32.mrf.mxu0
        %v4043 = vadd.f32 %v3870, %v4042
        %v4044 = vpop.f32.mrf.mxu0
        %v4045 = vadd.f32 %v3866, %v4044
        %v4046 = vpop.f32.mrf.mxu0
        %v4047 = vadd.f32 %v3870, %v4046
        %4048 = vmatprep.mubr.bf16.mxu0 0
        %4049 = vmatmul.mubr.bf16.gmra.mxu0 %v3826
        %v4050 = vpop.f32.mrf.mxu0
        %v4051 = vadd.f32 %v3866, %v4050
        %v4052 = vpop.f32.mrf.mxu0
        %v4053 = vadd.f32 %v3870, %v4052
        %v4054 = vpop.f32.mrf.mxu0
        %v4055 = vadd.f32 %v3866, %v4054
        %v4056 = vpop.f32.mrf.mxu0
        %v4057 = vadd.f32 %v3870, %v4056
        %4058 = vmatprep.mubr.bf16.mxu0 0
        %4059 = vmatmul.mubr.bf16.gmra.mxu0 %v3827
        %v4060 = vpop.f32.mrf.mxu0
        %v4061 = vadd.f32 %v3866, %v4060
        %v4062 = vpop.f32.mrf.mxu0
        %v4063 = vadd.f32 %v3870, %v4062
        %v4064 = vpop.f32.mrf.mxu0
        %v4065 = vadd.f32 %v3866, %v4064
        %v4066 = vpop.f32.mrf.mxu0
        %v4067 = vadd.f32 %v3870, %v4066
        %4068 = vmatprep.mubr.bf16.mxu0 0
        %4069 = vmatmul.mubr.bf16.gmra.mxu0 %v3828
        %v4070 = vpop.f32.mrf.mxu0
        %v4071 = vadd.f32 %v3866, %v4070
        %v4072 = vpop.f32.mrf.mxu0
        %v4073 = vadd.f32 %v3870, %v4072
        %v4074 = vpop.f32.mrf.mxu0
        %v4075 = vadd.f32 %v3866, %v4074
        %v4076 = vpop.f32.mrf.mxu0
        %v4077 = vadd.f32 %v3870, %v4076
        %4078 = vdwg.mxu0
        %4079 = vmatprep.subr.bf16.mxu0 0
        %4080 = vmatpush1.bf16.msra.mxu0 %v3981
        %4081 = vmatprep.subr.bf16.mxu0 0
        %4082 = vmatpush1.bf16.msra.mxu0 %v3978
        %4083 = vmatprep.subr.bf16.mxu0 0
        %4084 = vmatpush1.bf16.msra.mxu0 %v3975
        %4085 = vmatprep.subr.bf16.mxu0 0
        %4086 = vmatpush1.bf16.msra.mxu0 %v3972
        %4087 = vmatprep.subr.bf16.mxu0 0
        %4088 = vmatpush1.bf16.msra.mxu0 %v3969
        %4089 = vmatprep.subr.bf16.mxu0 0
        %4090 = vmatpush1.bf16.msra.mxu0 %v3966
        %4091 = vmatprep.subr.bf16.mxu0 0
        %4092 = vmatpush1.bf16.msra.mxu0 %v3963
        %4093 = vmatprep.subr.bf16.mxu0 0
        %4094 = vmatpush1.bf16.msra.mxu0 %v3960
        %4095 = vmatprep.subr.bf16.mxu0 0
        %4096 = vmatpush2.bf16.msra.mxu0 0
        %4097 = vmatprep.subr.bf16.mxu0 0
        %4098 = vmatpush2.bf16.msra.mxu0 0
        %4099 = vmatprep.subr.bf16.mxu0 0
        %4100 = vmatpush2.bf16.msra.mxu0 0
        %4101 = vmatprep.subr.bf16.mxu0 0
        %4102 = vmatpush2.bf16.msra.mxu0 0
        %4103 = vmatprep.subr.bf16.mxu0 0
        %4104 = vmatpush2.bf16.msra.mxu0 0
        %4105 = vmatprep.subr.bf16.mxu0 0
        %4106 = vmatpush2.bf16.msra.mxu0 0
        %4107 = vmatprep.subr.bf16.mxu0 0
        %4108 = vmatpush2.bf16.msra.mxu0 0
        %4109 = vmatprep.subr.bf16.mxu0 0
        %4110 = vmatpush2.bf16.msra.mxu0 0
        %4111 = vmatprep.mubr.bf16.mxu0 0
        %4112 = vmatmul.mubr.bf16.gmra.mxu0 %v3825
        %v4113 = vpop.f32.mrf.mxu0
        %v4114 = vadd.f32 %v3874, %v4113
        %v4115 = vpop.f32.mrf.mxu0
        %v4116 = vpop.f32.mrf.mxu0
        %v4117 = vadd.f32 %v3874, %v4116
        %v4118 = vpop.f32.mrf.mxu0
        %4119 = vmatprep.mubr.bf16.mxu0 0
        %4120 = vmatmul.mubr.bf16.gmra.mxu0 %v3826
        %v4121 = vpop.f32.mrf.mxu0
        %v4122 = vadd.f32 %v3874, %v4121
        %v4123 = vpop.f32.mrf.mxu0
        %v4124 = vpop.f32.mrf.mxu0
        %v4125 = vadd.f32 %v3874, %v4124
        %v4126 = vpop.f32.mrf.mxu0
        %4127 = vmatprep.mubr.bf16.mxu0 0
        %4128 = vmatmul.mubr.bf16.gmra.mxu0 %v3827
        %v4129 = vpop.f32.mrf.mxu0
        %v4130 = vadd.f32 %v3874, %v4129
        %v4131 = vpop.f32.mrf.mxu0
        %v4132 = vpop.f32.mrf.mxu0
        %v4133 = vadd.f32 %v3874, %v4132
        %v4134 = vpop.f32.mrf.mxu0
        %4135 = vmatprep.mubr.bf16.mxu0 0
        %4136 = vmatmul.mubr.bf16.gmra.mxu0 %v3828
        %v4137 = vpop.f32.mrf.mxu0
        %v4138 = vadd.f32 %v3874, %v4137
        %v4139 = vpop.f32.mrf.mxu0
        %v4140 = vpop.f32.mrf.mxu0
        %v4141 = vadd.f32 %v3874, %v4140
        %v4142 = vpop.f32.mrf.mxu0
        %4143 = vdwg.mxu0
        %v4144 = vlaneseq
        %v4145 = vand.u32 %v4144, 127
        %vm4146 = vcmp.lt.s32.totalorder %v4145, 50
        %v4147 = vmul.f32 %v4041, 0.17677669
        %v4148 = vmul.f32 %v4045, 0.17677669
        %v4149 = vmul.f32 %v4051, 0.17677669
        %v4150 = vmul.f32 %v4055, 0.17677669
        %v4151 = vmul.f32 %v4061, 0.17677669
        %v4152 = vmul.f32 %v4065, 0.17677669
        %v4153 = vmul.f32 %v4071, 0.17677669
        %v4154 = vmul.f32 %v4075, 0.17677669
        %v4155 = vpack.c.bf16 %v4148, %v4147
        %v4156 = vpack.c.bf16 %v4150, %v4149
        %v4157 = vpack.c.bf16 %v4152, %v4151
        %v4158 = vpack.c.bf16 %v4154, %v4153
        %v4159 = vpack.c.bf16 %v4047, %v4043
        %v4160 = vpack.c.bf16 %v4057, %v4053
        %v4161 = vpack.c.bf16 %v4067, %v4063
        %v4162 = vpack.c.bf16 %v4077, %v4073
        %v4163 = vpack.c.bf16 %v4117, %v4114
        %v4164 = vpack.c.bf16 %v4125, %v4122
        %v4165 = vpack.c.bf16 %v4133, %v4130
        %v4166 = vpack.c.bf16 %v4141, %v4138
        %vm4167 = vcmask 261120
        %v4169 = vsel %vm4167, %v4155, 0
        %v4172 = vsel %vm4167, %v4156, 0
        %v4175 = vsel %vm4167, %v4157, 0
        %v4178 = vsel %vm4167, %v4158, 0
        %v4181 = vsel %vm4167, %v4159, 0
        %v4184 = vsel %vm4167, %v4160, 0
        %v4187 = vsel %vm4167, %v4161, 0
        %v4190 = vsel %vm4167, %v4162, 0
        %4192 = vmatprep.subr.bf16.mxu0 0
        %4193 = vmatpush1.bf16.xpose.msra.mxu0 0
        %4194 = vmatprep.subr.bf16.mxu0 0
        %4195 = vmatpush1.bf16.xpose.msra.mxu0 0
        %4196 = vmatprep.subr.bf16.mxu0 0
        %4197 = vmatpush1.bf16.xpose.msra.mxu0 0
        %4198 = vmatprep.subr.bf16.mxu0 0
        %4199 = vmatpush1.bf16.xpose.msra.mxu0 0
        %4200 = vmatprep.subr.bf16.mxu0 0
        %4201 = vmatpush1.bf16.xpose.msra.mxu0 %v4190
        %4202 = vmatprep.subr.bf16.mxu0 0
        %4203 = vmatpush1.bf16.xpose.msra.mxu0 %v4187
        %4204 = vmatprep.subr.bf16.mxu0 0
        %4205 = vmatpush1.bf16.xpose.msra.mxu0 %v4184
        %4206 = vmatprep.subr.bf16.mxu0 0
        %4207 = vmatpush1.bf16.xpose.msra.mxu0 %v4181
        %4208 = vmatprep.subr.bf16.mxu0 0
        %4209 = vmatpush2.bf16.xpose.msra.mxu0 0
        %4210 = vmatprep.subr.bf16.mxu0 0
        %4211 = vmatpush2.bf16.xpose.msra.mxu0 0
        %4212 = vmatprep.subr.bf16.mxu0 0
        %4213 = vmatpush2.bf16.xpose.msra.mxu0 0
        %4214 = vmatprep.subr.bf16.mxu0 0
        %4215 = vmatpush2.bf16.xpose.msra.mxu0 0
        %4216 = vmatprep.subr.bf16.mxu0 0
        %4217 = vmatpush2.bf16.xpose.msra.mxu0 0
        %4218 = vmatprep.subr.bf16.mxu0 0
        %4219 = vmatpush2.bf16.xpose.msra.mxu0 0
        %4220 = vmatprep.subr.bf16.mxu0 0
        %4221 = vmatpush2.bf16.xpose.msra.mxu0 0
        %4222 = vmatprep.subr.bf16.mxu0 0
        %4223 = vmatpush2.bf16.xpose.msra.mxu0 0
        %4224 = vmatprep.mubr.bf16.mxu0 0
        %4225 = vmatmul.mubr.bf16.gmra.mxu0 %v4169
        %v4226 = vpop.f32.mrf.mxu0
        %v4227 = vadd.f32 0.0, %v4226
        %v4228 = vpop.f32.mrf.mxu0
        %v4229 = vpop.f32.mrf.mxu0
        %v4230 = vadd.f32 0.0, %v4229
        %v4231 = vpop.f32.mrf.mxu0
        %4232 = vmatprep.mubr.bf16.mxu0 0
        %4233 = vmatmul.mubr.bf16.gmra.mxu0 %v4172
        %v4234 = vpop.f32.mrf.mxu0
        %v4235 = vadd.f32 0.0, %v4234
        %v4236 = vpop.f32.mrf.mxu0
        %v4237 = vpop.f32.mrf.mxu0
        %v4238 = vadd.f32 0.0, %v4237
        %v4239 = vpop.f32.mrf.mxu0
        %4240 = vmatprep.mubr.bf16.mxu0 0
        %4241 = vmatmul.mubr.bf16.gmra.mxu0 %v4175
        %v4242 = vpop.f32.mrf.mxu0
        %v4243 = vadd.f32 0.0, %v4242
        %v4244 = vpop.f32.mrf.mxu0
        %v4245 = vpop.f32.mrf.mxu0
        %v4246 = vadd.f32 0.0, %v4245
        %v4247 = vpop.f32.mrf.mxu0
        %4248 = vmatprep.mubr.bf16.mxu0 0
        %4249 = vmatmul.mubr.bf16.gmra.mxu0 %v4178
        %v4250 = vpop.f32.mrf.mxu0
        %v4251 = vadd.f32 0.0, %v4250
        %v4252 = vpop.f32.mrf.mxu0
        %v4253 = vpop.f32.mrf.mxu0
        %v4254 = vadd.f32 0.0, %v4253
        %v4255 = vpop.f32.mrf.mxu0
        %4256 = vdwg.mxu0
        %v4257 = vsel %vm4146, %v4227, -1e+30
        %v4258 = vsel %vm4146, %v4230, -1e+30
        %v4259 = vsel %vm4146, %v4235, -1e+30
        %v4260 = vsel %vm4146, %v4238, -1e+30
        %v4261 = vsel %vm4146, %v4243, -1e+30
        %v4262 = vsel %vm4146, %v4246, -1e+30
        %v4263 = vsel %vm4146, %v4251, -1e+30
        %v4264 = vsel %vm4146, %v4254, -1e+30
        %vm4265 = vcmask 523264
        %v4266 = vsel %vm4265, %v4257, -inf
        %4267 = vmax.xlane.f32.xlu0 %v4266
        %v4268 = vpop.xlane.xlu0 %4267
        %v4269 = vsel %vm4265, %v4258, -inf
        %4270 = vmax.xlane.f32.xlu0 %v4269
        %v4271 = vpop.xlane.xlu0 %4270
        %v4272 = vsel %vm4265, %v4259, -inf
        %4273 = vmax.xlane.f32.xlu0 %v4272
        %v4274 = vpop.xlane.xlu0 %4273
        %v4275 = vsel %vm4265, %v4260, -inf
        %4276 = vmax.xlane.f32.xlu0 %v4275
        %v4277 = vpop.xlane.xlu0 %4276
        %v4278 = vsel %vm4265, %v4261, -inf
        %4279 = vmax.xlane.f32.xlu0 %v4278
        %v4280 = vpop.xlane.xlu0 %4279
        %v4281 = vsel %vm4265, %v4262, -inf
        %4282 = vmax.xlane.f32.xlu0 %v4281
        %v4283 = vpop.xlane.xlu0 %4282
        %v4284 = vsel %vm4265, %v4263, -inf
        %4285 = vmax.xlane.f32.xlu0 %v4284
        %v4286 = vpop.xlane.xlu0 %4285
        %v4287 = vsel %vm4265, %v4264, -inf
        %4288 = vmax.xlane.f32.xlu0 %v4287
        %v4289 = vpop.xlane.xlu0 %4288
        %v4290 = vsub.f32 %v4257, %v4268
        %v4291 = vsub.f32 %v4258, %v4271
        %v4292 = vsub.f32 %v4259, %v4274
        %v4293 = vsub.f32 %v4260, %v4277
        %v4294 = vsub.f32 %v4261, %v4280
        %v4295 = vsub.f32 %v4262, %v4283
        %v4296 = vsub.f32 %v4263, %v4286
        %v4297 = vsub.f32 %v4264, %v4289
        %v4298 = vmul.f32 %v4290, 1.442695
        %v4299 = vpow.pop %v4298
        %v4300 = vmul.f32 %v4291, 1.442695
        %v4301 = vpow.pop %v4300
        %v4302 = vmul.f32 %v4292, 1.442695
        %v4303 = vpow.pop %v4302
        %v4304 = vmul.f32 %v4293, 1.442695
        %v4305 = vpow.pop %v4304
        %v4306 = vmul.f32 %v4294, 1.442695
        %v4307 = vpow.pop %v4306
        %v4308 = vmul.f32 %v4295, 1.442695
        %v4309 = vpow.pop %v4308
        %v4310 = vmul.f32 %v4296, 1.442695
        %v4311 = vpow.pop %v4310
        %v4312 = vmul.f32 %v4297, 1.442695
        %v4313 = vpow.pop %v4312
        %v4314 = vsel %vm4265, %v4299, 0.0
        %4315 = vadd.xlane.f32.xlu0 %v4314
        %v4316 = vpop.xlane.xlu0 %4315
        %v4317 = vsel %vm4265, %v4301, 0.0
        %4318 = vadd.xlane.f32.xlu0 %v4317
        %v4319 = vpop.xlane.xlu0 %4318
        %v4320 = vsel %vm4265, %v4303, 0.0
        %4321 = vadd.xlane.f32.xlu0 %v4320
        %v4322 = vpop.xlane.xlu0 %4321
        %v4323 = vsel %vm4265, %v4305, 0.0
        %4324 = vadd.xlane.f32.xlu0 %v4323
        %v4325 = vpop.xlane.xlu0 %4324
        %v4326 = vsel %vm4265, %v4307, 0.0
        %4327 = vadd.xlane.f32.xlu0 %v4326
        %v4328 = vpop.xlane.xlu0 %4327
        %v4329 = vsel %vm4265, %v4309, 0.0
        %4330 = vadd.xlane.f32.xlu0 %v4329
        %v4331 = vpop.xlane.xlu0 %4330
        %v4332 = vsel %vm4265, %v4311, 0.0
        %4333 = vadd.xlane.f32.xlu0 %v4332
        %v4334 = vpop.xlane.xlu0 %4333
        %v4335 = vsel %vm4265, %v4313, 0.0
        %4336 = vadd.xlane.f32.xlu0 %v4335
        %v4337 = vpop.xlane.xlu0 %4336
        %v4338 = vrcp.pop %v4316
        %v4339 = vrcp.pop %v4319
        %v4340 = vrcp.pop %v4322
        %v4341 = vrcp.pop %v4325
        %v4342 = vrcp.pop %v4328
        %v4343 = vrcp.pop %v4331
        %v4344 = vrcp.pop %v4334
        %v4345 = vrcp.pop %v4337
        %v4346 = vmul.f32 %v4299, %v4338
        %v4347 = vmul.f32 %v4301, %v4339
        %v4348 = vmul.f32 %v4303, %v4340
        %v4349 = vmul.f32 %v4305, %v4341
        %v4350 = vmul.f32 %v4307, %v4342
        %v4351 = vmul.f32 %v4309, %v4343
        %v4352 = vmul.f32 %v4311, %v4344
        %v4353 = vmul.f32 %v4313, %v4345
        %v4354 = vpack.c.bf16 %v4347, %v4346
        %v4355 = vpack.c.bf16 %v4349, %v4348
        %v4356 = vpack.c.bf16 %v4351, %v4350
        %v4357 = vpack.c.bf16 %v4353, %v4352
        %v4359 = vsel %vm4265, %v4354, 0
        %v4362 = vsel %vm4265, %v4355, 0
        %v4365 = vsel %vm4265, %v4356, 0
        %v4368 = vsel %vm4265, %v4357, 0
        %4370 = vmatprep.subr.bf16.mxu0 0
        %4371 = vmatpush1.bf16.msra.mxu0 0
        %4372 = vmatprep.subr.bf16.mxu0 0
        %4373 = vmatpush1.bf16.msra.mxu0 0
        %4374 = vmatprep.subr.bf16.mxu0 0
        %4375 = vmatpush1.bf16.msra.mxu0 0
        %4376 = vmatprep.subr.bf16.mxu0 0
        %4377 = vmatpush1.bf16.msra.mxu0 0
        %4378 = vmatprep.subr.bf16.mxu0 0
        %4379 = vmatpush1.bf16.msra.mxu0 %v4166
        %4380 = vmatprep.subr.bf16.mxu0 0
        %4381 = vmatpush1.bf16.msra.mxu0 %v4165
        %4382 = vmatprep.subr.bf16.mxu0 0
        %4383 = vmatpush1.bf16.msra.mxu0 %v4164
        %4384 = vmatprep.subr.bf16.mxu0 0
        %4385 = vmatpush1.bf16.msra.mxu0 %v4163
        %4386 = vmatprep.subr.bf16.mxu0 0
        %4387 = vmatpush2.bf16.msra.mxu0 0
        %4388 = vmatprep.subr.bf16.mxu0 0
        %4389 = vmatpush2.bf16.msra.mxu0 0
        %4390 = vmatprep.subr.bf16.mxu0 0
        %4391 = vmatpush2.bf16.msra.mxu0 0
        %4392 = vmatprep.subr.bf16.mxu0 0
        %4393 = vmatpush2.bf16.msra.mxu0 0
        %4394 = vmatprep.subr.bf16.mxu0 0
        %4395 = vmatpush2.bf16.msra.mxu0 0
        %4396 = vmatprep.subr.bf16.mxu0 0
        %4397 = vmatpush2.bf16.msra.mxu0 0
        %4398 = vmatprep.subr.bf16.mxu0 0
        %4399 = vmatpush2.bf16.msra.mxu0 0
        %4400 = vmatprep.subr.bf16.mxu0 0
        %4401 = vmatpush2.bf16.msra.mxu0 0
        %4402 = vmatprep.mubr.bf16.mxu0 0
        %4403 = vmatmul.mubr.bf16.gmra.mxu0 %v4359
        %v4404 = vpop.f32.mrf.mxu0
        %v4405 = vadd.f32 0.0, %v4404
        %v4406 = vpop.f32.mrf.mxu0
        %v4407 = vpop.f32.mrf.mxu0
        %v4408 = vadd.f32 0.0, %v4407
        %v4409 = vpop.f32.mrf.mxu0
        %4410 = vmatprep.mubr.bf16.mxu0 0
        %4411 = vmatmul.mubr.bf16.gmra.mxu0 %v4362
        %v4412 = vpop.f32.mrf.mxu0
        %v4413 = vadd.f32 0.0, %v4412
        %v4414 = vpop.f32.mrf.mxu0
        %v4415 = vpop.f32.mrf.mxu0
        %v4416 = vadd.f32 0.0, %v4415
        %v4417 = vpop.f32.mrf.mxu0
        %4418 = vmatprep.mubr.bf16.mxu0 0
        %4419 = vmatmul.mubr.bf16.gmra.mxu0 %v4365
        %v4420 = vpop.f32.mrf.mxu0
        %v4421 = vadd.f32 0.0, %v4420
        %v4422 = vpop.f32.mrf.mxu0
        %v4423 = vpop.f32.mrf.mxu0
        %v4424 = vadd.f32 0.0, %v4423
        %v4425 = vpop.f32.mrf.mxu0
        %4426 = vmatprep.mubr.bf16.mxu0 0
        %4427 = vmatmul.mubr.bf16.gmra.mxu0 %v4368
        %v4428 = vpop.f32.mrf.mxu0
        %v4429 = vadd.f32 0.0, %v4428
        %v4430 = vpop.f32.mrf.mxu0
        %v4431 = vpop.f32.mrf.mxu0
        %v4432 = vadd.f32 0.0, %v4431
        %v4433 = vpop.f32.mrf.mxu0
        %4434 = vdwg.mxu0
        %4439 = vrot.lane.b32.xlu0 %v4155, 96
        %v4440 = vpop.permute.xlu0 %4439
        %4441 = vrot.lane.b32.xlu0 %v4156, 96
        %v4442 = vpop.permute.xlu0 %4441
        %4443 = vrot.lane.b32.xlu0 %v4157, 96
        %v4444 = vpop.permute.xlu0 %4443
        %4445 = vrot.lane.b32.xlu0 %v4158, 96
        %v4446 = vpop.permute.xlu0 %4445
        %4451 = vrot.lane.b32.xlu0 %v4159, 96
        %v4452 = vpop.permute.xlu0 %4451
        %4453 = vrot.lane.b32.xlu0 %v4160, 96
        %v4454 = vpop.permute.xlu0 %4453
        %4455 = vrot.lane.b32.xlu0 %v4161, 96
        %v4456 = vpop.permute.xlu0 %4455
        %4457 = vrot.lane.b32.xlu0 %v4162, 96
        %v4458 = vpop.permute.xlu0 %4457
        %v4460 = vsel %vm4167, %v4440, 0
        %v4463 = vsel %vm4167, %v4442, 0
        %v4466 = vsel %vm4167, %v4444, 0
        %v4469 = vsel %vm4167, %v4446, 0
        %v4472 = vsel %vm4167, %v4452, 0
        %v4475 = vsel %vm4167, %v4454, 0
        %v4478 = vsel %vm4167, %v4456, 0
        %v4481 = vsel %vm4167, %v4458, 0
        %4483 = vmatprep.subr.bf16.mxu0 0
        %4484 = vmatpush1.bf16.xpose.msra.mxu0 0
        %4485 = vmatprep.subr.bf16.mxu0 0
        %4486 = vmatpush1.bf16.xpose.msra.mxu0 0
        %4487 = vmatprep.subr.bf16.mxu0 0
        %4488 = vmatpush1.bf16.xpose.msra.mxu0 0
        %4489 = vmatprep.subr.bf16.mxu0 0
        %4490 = vmatpush1.bf16.xpose.msra.mxu0 0
        %4491 = vmatprep.subr.bf16.mxu0 0
        %4492 = vmatpush1.bf16.xpose.msra.mxu0 %v4481
        %4493 = vmatprep.subr.bf16.mxu0 0
        %4494 = vmatpush1.bf16.xpose.msra.mxu0 %v4478
        %4495 = vmatprep.subr.bf16.mxu0 0
        %4496 = vmatpush1.bf16.xpose.msra.mxu0 %v4475
        %4497 = vmatprep.subr.bf16.mxu0 0
        %4498 = vmatpush1.bf16.xpose.msra.mxu0 %v4472
        %4499 = vmatprep.subr.bf16.mxu0 0
        %4500 = vmatpush2.bf16.xpose.msra.mxu0 0
        %4501 = vmatprep.subr.bf16.mxu0 0
        %4502 = vmatpush2.bf16.xpose.msra.mxu0 0
        %4503 = vmatprep.subr.bf16.mxu0 0
        %4504 = vmatpush2.bf16.xpose.msra.mxu0 0
        %4505 = vmatprep.subr.bf16.mxu0 0
        %4506 = vmatpush2.bf16.xpose.msra.mxu0 0
        %4507 = vmatprep.subr.bf16.mxu0 0
        %4508 = vmatpush2.bf16.xpose.msra.mxu0 0
        %4509 = vmatprep.subr.bf16.mxu0 0
        %4510 = vmatpush2.bf16.xpose.msra.mxu0 0
        %4511 = vmatprep.subr.bf16.mxu0 0
        %4512 = vmatpush2.bf16.xpose.msra.mxu0 0
        %4513 = vmatprep.subr.bf16.mxu0 0
        %4514 = vmatpush2.bf16.xpose.msra.mxu0 0
        %4515 = vmatprep.mubr.bf16.mxu0 0
        %4516 = vmatmul.mubr.bf16.gmra.mxu0 %v4460
        %v4517 = vpop.f32.mrf.mxu0
        %v4518 = vadd.f32 0.0, %v4517
        %v4519 = vpop.f32.mrf.mxu0
        %v4520 = vpop.f32.mrf.mxu0
        %v4521 = vadd.f32 0.0, %v4520
        %v4522 = vpop.f32.mrf.mxu0
        %4523 = vmatprep.mubr.bf16.mxu0 0
        %4524 = vmatmul.mubr.bf16.gmra.mxu0 %v4463
        %v4525 = vpop.f32.mrf.mxu0
        %v4526 = vadd.f32 0.0, %v4525
        %v4527 = vpop.f32.mrf.mxu0
        %v4528 = vpop.f32.mrf.mxu0
        %v4529 = vadd.f32 0.0, %v4528
        %v4530 = vpop.f32.mrf.mxu0
        %4531 = vmatprep.mubr.bf16.mxu0 0
        %4532 = vmatmul.mubr.bf16.gmra.mxu0 %v4466
        %v4533 = vpop.f32.mrf.mxu0
        %v4534 = vadd.f32 0.0, %v4533
        %v4535 = vpop.f32.mrf.mxu0
        %v4536 = vpop.f32.mrf.mxu0
        %v4537 = vadd.f32 0.0, %v4536
        %v4538 = vpop.f32.mrf.mxu0
        %4539 = vmatprep.mubr.bf16.mxu0 0
        %4540 = vmatmul.mubr.bf16.gmra.mxu0 %v4469
        %v4541 = vpop.f32.mrf.mxu0
        %v4542 = vadd.f32 0.0, %v4541
        %v4543 = vpop.f32.mrf.mxu0
        %v4544 = vpop.f32.mrf.mxu0
        %v4545 = vadd.f32 0.0, %v4544
        %v4546 = vpop.f32.mrf.mxu0
        %4547 = vdwg.mxu0
        %v4548 = vsel %vm4146, %v4518, -1e+30
        %v4549 = vsel %vm4146, %v4521, -1e+30
        %v4550 = vsel %vm4146, %v4526, -1e+30
        %v4551 = vsel %vm4146, %v4529, -1e+30
        %v4552 = vsel %vm4146, %v4534, -1e+30
        %v4553 = vsel %vm4146, %v4537, -1e+30
        %v4554 = vsel %vm4146, %v4542, -1e+30
        %v4555 = vsel %vm4146, %v4545, -1e+30
        %v4556 = vsel %vm4265, %v4548, -inf
        %4557 = vmax.xlane.f32.xlu0 %v4556
        %v4558 = vpop.xlane.xlu0 %4557
        %v4559 = vsel %vm4265, %v4549, -inf
        %4560 = vmax.xlane.f32.xlu0 %v4559
        %v4561 = vpop.xlane.xlu0 %4560
        %v4562 = vsel %vm4265, %v4550, -inf
        %4563 = vmax.xlane.f32.xlu0 %v4562
        %v4564 = vpop.xlane.xlu0 %4563
        %v4565 = vsel %vm4265, %v4551, -inf
        %4566 = vmax.xlane.f32.xlu0 %v4565
        %v4567 = vpop.xlane.xlu0 %4566
        %v4568 = vsel %vm4265, %v4552, -inf
        %4569 = vmax.xlane.f32.xlu0 %v4568
        %v4570 = vpop.xlane.xlu0 %4569
        %v4571 = vsel %vm4265, %v4553, -inf
        %4572 = vmax.xlane.f32.xlu0 %v4571
        %v4573 = vpop.xlane.xlu0 %4572
        %v4574 = vsel %vm4265, %v4554, -inf
        %4575 = vmax.xlane.f32.xlu0 %v4574
        %v4576 = vpop.xlane.xlu0 %4575
        %v4577 = vsel %vm4265, %v4555, -inf
        %4578 = vmax.xlane.f32.xlu0 %v4577
        %v4579 = vpop.xlane.xlu0 %4578
        %v4580 = vsub.f32 %v4548, %v4558
        %v4581 = vsub.f32 %v4549, %v4561
        %v4582 = vsub.f32 %v4550, %v4564
        %v4583 = vsub.f32 %v4551, %v4567
        %v4584 = vsub.f32 %v4552, %v4570
        %v4585 = vsub.f32 %v4553, %v4573
        %v4586 = vsub.f32 %v4554, %v4576
        %v4587 = vsub.f32 %v4555, %v4579
        %v4588 = vmul.f32 %v4580, 1.442695
        %v4589 = vpow.pop %v4588
        %v4590 = vmul.f32 %v4581, 1.442695
        %v4591 = vpow.pop %v4590
        %v4592 = vmul.f32 %v4582, 1.442695
        %v4593 = vpow.pop %v4592
        %v4594 = vmul.f32 %v4583, 1.442695
        %v4595 = vpow.pop %v4594
        %v4596 = vmul.f32 %v4584, 1.442695
        %v4597 = vpow.pop %v4596
        %v4598 = vmul.f32 %v4585, 1.442695
        %v4599 = vpow.pop %v4598
        %v4600 = vmul.f32 %v4586, 1.442695
        %v4601 = vpow.pop %v4600
        %v4602 = vmul.f32 %v4587, 1.442695
        %v4603 = vpow.pop %v4602
        %v4604 = vsel %vm4265, %v4589, 0.0
        %4605 = vadd.xlane.f32.xlu0 %v4604
        %v4606 = vpop.xlane.xlu0 %4605
        %v4607 = vsel %vm4265, %v4591, 0.0
        %4608 = vadd.xlane.f32.xlu0 %v4607
        %v4609 = vpop.xlane.xlu0 %4608
        %v4610 = vsel %vm4265, %v4593, 0.0
        %4611 = vadd.xlane.f32.xlu0 %v4610
        %v4612 = vpop.xlane.xlu0 %4611
        %v4613 = vsel %vm4265, %v4595, 0.0
        %4614 = vadd.xlane.f32.xlu0 %v4613
        %v4615 = vpop.xlane.xlu0 %4614
        %v4616 = vsel %vm4265, %v4597, 0.0
        %4617 = vadd.xlane.f32.xlu0 %v4616
        %v4618 = vpop.xlane.xlu0 %4617
        %v4619 = vsel %vm4265, %v4599, 0.0
        %4620 = vadd.xlane.f32.xlu0 %v4619
        %v4621 = vpop.xlane.xlu0 %4620
        %v4622 = vsel %vm4265, %v4601, 0.0
        %4623 = vadd.xlane.f32.xlu0 %v4622
        %v4624 = vpop.xlane.xlu0 %4623
        %v4625 = vsel %vm4265, %v4603, 0.0
        %4626 = vadd.xlane.f32.xlu0 %v4625
        %v4627 = vpop.xlane.xlu0 %4626
        %v4628 = vrcp.pop %v4606
        %v4629 = vrcp.pop %v4609
        %v4630 = vrcp.pop %v4612
        %v4631 = vrcp.pop %v4615
        %v4632 = vrcp.pop %v4618
        %v4633 = vrcp.pop %v4621
        %v4634 = vrcp.pop %v4624
        %v4635 = vrcp.pop %v4627
        %v4636 = vmul.f32 %v4589, %v4628
        %v4637 = vmul.f32 %v4591, %v4629
        %v4638 = vmul.f32 %v4593, %v4630
        %v4639 = vmul.f32 %v4595, %v4631
        %v4640 = vmul.f32 %v4597, %v4632
        %v4641 = vmul.f32 %v4599, %v4633
        %v4642 = vmul.f32 %v4601, %v4634
        %v4643 = vmul.f32 %v4603, %v4635
        %v4644 = vpack.c.bf16 %v4637, %v4636
        %v4645 = vpack.c.bf16 %v4639, %v4638
        %v4646 = vpack.c.bf16 %v4641, %v4640
        %v4647 = vpack.c.bf16 %v4643, %v4642
        %4652 = vrot.lane.b32.xlu0 %v4163, 96
        %v4653 = vpop.permute.xlu0 %4652
        %4654 = vrot.lane.b32.xlu0 %v4164, 96
        %v4655 = vpop.permute.xlu0 %4654
        %4656 = vrot.lane.b32.xlu0 %v4165, 96
        %v4657 = vpop.permute.xlu0 %4656
        %4658 = vrot.lane.b32.xlu0 %v4166, 96
        %v4659 = vpop.permute.xlu0 %4658
        %v4665 = vsel %vm4265, %v4644, 0
        %v4668 = vsel %vm4265, %v4645, 0
        %v4671 = vsel %vm4265, %v4646, 0
        %v4674 = vsel %vm4265, %v4647, 0
        %4676 = vmatprep.subr.bf16.mxu0 0
        %4677 = vmatpush1.bf16.msra.mxu0 0
        %4678 = vmatprep.subr.bf16.mxu0 0
        %4679 = vmatpush1.bf16.msra.mxu0 0
        %4680 = vmatprep.subr.bf16.mxu0 0
        %4681 = vmatpush1.bf16.msra.mxu0 0
        %4682 = vmatprep.subr.bf16.mxu0 0
        %4683 = vmatpush1.bf16.msra.mxu0 0
        %4684 = vmatprep.subr.bf16.mxu0 0
        %4685 = vmatpush1.bf16.msra.mxu0 %v4659
        %4686 = vmatprep.subr.bf16.mxu0 0
        %4687 = vmatpush1.bf16.msra.mxu0 %v4657
        %4688 = vmatprep.subr.bf16.mxu0 0
        %4689 = vmatpush1.bf16.msra.mxu0 %v4655
        %4690 = vmatprep.subr.bf16.mxu0 0
        %4691 = vmatpush1.bf16.msra.mxu0 %v4653
        %4692 = vmatprep.subr.bf16.mxu0 0
        %4693 = vmatpush2.bf16.msra.mxu0 0
        %4694 = vmatprep.subr.bf16.mxu0 0
        %4695 = vmatpush2.bf16.msra.mxu0 0
        %4696 = vmatprep.subr.bf16.mxu0 0
        %4697 = vmatpush2.bf16.msra.mxu0 0
        %4698 = vmatprep.subr.bf16.mxu0 0
        %4699 = vmatpush2.bf16.msra.mxu0 0
        %4700 = vmatprep.subr.bf16.mxu0 0
        %4701 = vmatpush2.bf16.msra.mxu0 0
        %4702 = vmatprep.subr.bf16.mxu0 0
        %4703 = vmatpush2.bf16.msra.mxu0 0
        %4704 = vmatprep.subr.bf16.mxu0 0
        %4705 = vmatpush2.bf16.msra.mxu0 0
        %4706 = vmatprep.subr.bf16.mxu0 0
        %4707 = vmatpush2.bf16.msra.mxu0 0
        %4708 = vmatprep.mubr.bf16.mxu0 0
        %4709 = vmatmul.mubr.bf16.gmra.mxu0 %v4665
        %v4710 = vpop.f32.mrf.mxu0
        %v4711 = vadd.f32 0.0, %v4710
        %v4712 = vpop.f32.mrf.mxu0
        %v4713 = vpop.f32.mrf.mxu0
        %v4714 = vadd.f32 0.0, %v4713
        %v4715 = vpop.f32.mrf.mxu0
        %4716 = vmatprep.mubr.bf16.mxu0 0
        %4717 = vmatmul.mubr.bf16.gmra.mxu0 %v4668
        %v4718 = vpop.f32.mrf.mxu0
        %v4719 = vadd.f32 0.0, %v4718
        %v4720 = vpop.f32.mrf.mxu0
        %v4721 = vpop.f32.mrf.mxu0
        %v4722 = vadd.f32 0.0, %v4721
        %v4723 = vpop.f32.mrf.mxu0
        %4724 = vmatprep.mubr.bf16.mxu0 0
        %4725 = vmatmul.mubr.bf16.gmra.mxu0 %v4671
        %v4726 = vpop.f32.mrf.mxu0
        %v4727 = vadd.f32 0.0, %v4726
        %v4728 = vpop.f32.mrf.mxu0
        %v4729 = vpop.f32.mrf.mxu0
        %v4730 = vadd.f32 0.0, %v4729
        %v4731 = vpop.f32.mrf.mxu0
        %4732 = vmatprep.mubr.bf16.mxu0 0
        %4733 = vmatmul.mubr.bf16.gmra.mxu0 %v4674
        %v4734 = vpop.f32.mrf.mxu0
        %v4735 = vadd.f32 0.0, %v4734
        %v4736 = vpop.f32.mrf.mxu0
        %v4737 = vpop.f32.mrf.mxu0
        %v4738 = vadd.f32 0.0, %v4737
        %v4739 = vpop.f32.mrf.mxu0
        %4740 = vdwg.mxu0
        %4741 = vrot.lane.b32.xlu0 %v4155, 64
        %v4742 = vpop.permute.xlu0 %4741
        %4743 = vrot.lane.b32.xlu0 %v4156, 64
        %v4744 = vpop.permute.xlu0 %4743
        %4745 = vrot.lane.b32.xlu0 %v4157, 64
        %v4746 = vpop.permute.xlu0 %4745
        %4747 = vrot.lane.b32.xlu0 %v4158, 64
        %v4748 = vpop.permute.xlu0 %4747
        %4749 = vrot.lane.b32.xlu0 %v4159, 64
        %v4750 = vpop.permute.xlu0 %4749
        %4751 = vrot.lane.b32.xlu0 %v4160, 64
        %v4752 = vpop.permute.xlu0 %4751
        %4753 = vrot.lane.b32.xlu0 %v4161, 64
        %v4754 = vpop.permute.xlu0 %4753
        %4755 = vrot.lane.b32.xlu0 %v4162, 64
        %v4756 = vpop.permute.xlu0 %4755
        %v4758 = vsel %vm4167, %v4742, 0
        %v4761 = vsel %vm4167, %v4744, 0
        %v4764 = vsel %vm4167, %v4746, 0
        %v4767 = vsel %vm4167, %v4748, 0
        %v4770 = vsel %vm4167, %v4750, 0
        %v4773 = vsel %vm4167, %v4752, 0
        %v4776 = vsel %vm4167, %v4754, 0
        %v4779 = vsel %vm4167, %v4756, 0
        %4781 = vmatprep.subr.bf16.mxu0 0
        %4782 = vmatpush1.bf16.xpose.msra.mxu0 0
        %4783 = vmatprep.subr.bf16.mxu0 0
        %4784 = vmatpush1.bf16.xpose.msra.mxu0 0
        %4785 = vmatprep.subr.bf16.mxu0 0
        %4786 = vmatpush1.bf16.xpose.msra.mxu0 0
        %4787 = vmatprep.subr.bf16.mxu0 0
        %4788 = vmatpush1.bf16.xpose.msra.mxu0 0
        %4789 = vmatprep.subr.bf16.mxu0 0
        %4790 = vmatpush1.bf16.xpose.msra.mxu0 %v4779
        %4791 = vmatprep.subr.bf16.mxu0 0
        %4792 = vmatpush1.bf16.xpose.msra.mxu0 %v4776
        %4793 = vmatprep.subr.bf16.mxu0 0
        %4794 = vmatpush1.bf16.xpose.msra.mxu0 %v4773
        %4795 = vmatprep.subr.bf16.mxu0 0
        %4796 = vmatpush1.bf16.xpose.msra.mxu0 %v4770
        %4797 = vmatprep.subr.bf16.mxu0 0
        %4798 = vmatpush2.bf16.xpose.msra.mxu0 0
        %4799 = vmatprep.subr.bf16.mxu0 0
        %4800 = vmatpush2.bf16.xpose.msra.mxu0 0
        %4801 = vmatprep.subr.bf16.mxu0 0
        %4802 = vmatpush2.bf16.xpose.msra.mxu0 0
        %4803 = vmatprep.subr.bf16.mxu0 0
        %4804 = vmatpush2.bf16.xpose.msra.mxu0 0
        %4805 = vmatprep.subr.bf16.mxu0 0
        %4806 = vmatpush2.bf16.xpose.msra.mxu0 0
        %4807 = vmatprep.subr.bf16.mxu0 0
        %4808 = vmatpush2.bf16.xpose.msra.mxu0 0
        %4809 = vmatprep.subr.bf16.mxu0 0
        %4810 = vmatpush2.bf16.xpose.msra.mxu0 0
        %4811 = vmatprep.subr.bf16.mxu0 0
        %4812 = vmatpush2.bf16.xpose.msra.mxu0 0
        %4813 = vmatprep.mubr.bf16.mxu0 0
        %4814 = vmatmul.mubr.bf16.gmra.mxu0 %v4758
        %v4815 = vpop.f32.mrf.mxu0
        %v4816 = vadd.f32 0.0, %v4815
        %v4817 = vpop.f32.mrf.mxu0
        %v4818 = vpop.f32.mrf.mxu0
        %v4819 = vadd.f32 0.0, %v4818
        %v4820 = vpop.f32.mrf.mxu0
        %4821 = vmatprep.mubr.bf16.mxu0 0
        %4822 = vmatmul.mubr.bf16.gmra.mxu0 %v4761
        %v4823 = vpop.f32.mrf.mxu0
        %v4824 = vadd.f32 0.0, %v4823
        %v4825 = vpop.f32.mrf.mxu0
        %v4826 = vpop.f32.mrf.mxu0
        %v4827 = vadd.f32 0.0, %v4826
        %v4828 = vpop.f32.mrf.mxu0
        %4829 = vmatprep.mubr.bf16.mxu0 0
        %4830 = vmatmul.mubr.bf16.gmra.mxu0 %v4764
        %v4831 = vpop.f32.mrf.mxu0
        %v4832 = vadd.f32 0.0, %v4831
        %v4833 = vpop.f32.mrf.mxu0
        %v4834 = vpop.f32.mrf.mxu0
        %v4835 = vadd.f32 0.0, %v4834
        %v4836 = vpop.f32.mrf.mxu0
        %4837 = vmatprep.mubr.bf16.mxu0 0
        %4838 = vmatmul.mubr.bf16.gmra.mxu0 %v4767
        %v4839 = vpop.f32.mrf.mxu0
        %v4840 = vadd.f32 0.0, %v4839
        %v4841 = vpop.f32.mrf.mxu0
        %v4842 = vpop.f32.mrf.mxu0
        %v4843 = vadd.f32 0.0, %v4842
        %v4844 = vpop.f32.mrf.mxu0
        %4845 = vdwg.mxu0
        %v4846 = vsel %vm4146, %v4816, -1e+30
        %v4847 = vsel %vm4146, %v4819, -1e+30
        %v4848 = vsel %vm4146, %v4824, -1e+30
        %v4849 = vsel %vm4146, %v4827, -1e+30
        %v4850 = vsel %vm4146, %v4832, -1e+30
        %v4851 = vsel %vm4146, %v4835, -1e+30
        %v4852 = vsel %vm4146, %v4840, -1e+30
        %v4853 = vsel %vm4146, %v4843, -1e+30
        %v4854 = vsel %vm4265, %v4846, -inf
        %4855 = vmax.xlane.f32.xlu0 %v4854
        %v4856 = vpop.xlane.xlu0 %4855
        %v4857 = vsel %vm4265, %v4847, -inf
        %4858 = vmax.xlane.f32.xlu0 %v4857
        %v4859 = vpop.xlane.xlu0 %4858
        %v4860 = vsel %vm4265, %v4848, -inf
        %4861 = vmax.xlane.f32.xlu0 %v4860
        %v4862 = vpop.xlane.xlu0 %4861
        %v4863 = vsel %vm4265, %v4849, -inf
        %4864 = vmax.xlane.f32.xlu0 %v4863
        %v4865 = vpop.xlane.xlu0 %4864
        %v4866 = vsel %vm4265, %v4850, -inf
        %4867 = vmax.xlane.f32.xlu0 %v4866
        %v4868 = vpop.xlane.xlu0 %4867
        %v4869 = vsel %vm4265, %v4851, -inf
        %4870 = vmax.xlane.f32.xlu0 %v4869
        %v4871 = vpop.xlane.xlu0 %4870
        %v4872 = vsel %vm4265, %v4852, -inf
        %4873 = vmax.xlane.f32.xlu0 %v4872
        %v4874 = vpop.xlane.xlu0 %4873
        %v4875 = vsel %vm4265, %v4853, -inf
        %4876 = vmax.xlane.f32.xlu0 %v4875
        %v4877 = vpop.xlane.xlu0 %4876
        %v4878 = vsub.f32 %v4846, %v4856
        %v4879 = vsub.f32 %v4847, %v4859
        %v4880 = vsub.f32 %v4848, %v4862
        %v4881 = vsub.f32 %v4849, %v4865
        %v4882 = vsub.f32 %v4850, %v4868
        %v4883 = vsub.f32 %v4851, %v4871
        %v4884 = vsub.f32 %v4852, %v4874
        %v4885 = vsub.f32 %v4853, %v4877
        %v4886 = vmul.f32 %v4878, 1.442695
        %v4887 = vpow.pop %v4886
        %v4888 = vmul.f32 %v4879, 1.442695
        %v4889 = vpow.pop %v4888
        %v4890 = vmul.f32 %v4880, 1.442695
        %v4891 = vpow.pop %v4890
        %v4892 = vmul.f32 %v4881, 1.442695
        %v4893 = vpow.pop %v4892
        %v4894 = vmul.f32 %v4882, 1.442695
        %v4895 = vpow.pop %v4894
        %v4896 = vmul.f32 %v4883, 1.442695
        %v4897 = vpow.pop %v4896
        %v4898 = vmul.f32 %v4884, 1.442695
        %v4899 = vpow.pop %v4898
        %v4900 = vmul.f32 %v4885, 1.442695
        %v4901 = vpow.pop %v4900
        %v4902 = vsel %vm4265, %v4887, 0.0
        %4903 = vadd.xlane.f32.xlu0 %v4902
        %v4904 = vpop.xlane.xlu0 %4903
        %v4905 = vsel %vm4265, %v4889, 0.0
        %4906 = vadd.xlane.f32.xlu0 %v4905
        %v4907 = vpop.xlane.xlu0 %4906
        %v4908 = vsel %vm4265, %v4891, 0.0
        %4909 = vadd.xlane.f32.xlu0 %v4908
        %v4910 = vpop.xlane.xlu0 %4909
        %v4911 = vsel %vm4265, %v4893, 0.0
        %4912 = vadd.xlane.f32.xlu0 %v4911
        %v4913 = vpop.xlane.xlu0 %4912
        %v4914 = vsel %vm4265, %v4895, 0.0
        %4915 = vadd.xlane.f32.xlu0 %v4914
        %v4916 = vpop.xlane.xlu0 %4915
        %v4917 = vsel %vm4265, %v4897, 0.0
        %4918 = vadd.xlane.f32.xlu0 %v4917
        %v4919 = vpop.xlane.xlu0 %4918
        %v4920 = vsel %vm4265, %v4899, 0.0
        %4921 = vadd.xlane.f32.xlu0 %v4920
        %v4922 = vpop.xlane.xlu0 %4921
        %v4923 = vsel %vm4265, %v4901, 0.0
        %4924 = vadd.xlane.f32.xlu0 %v4923
        %v4925 = vpop.xlane.xlu0 %4924
        %v4926 = vrcp.pop %v4904
        %v4927 = vrcp.pop %v4907
        %v4928 = vrcp.pop %v4910
        %v4929 = vrcp.pop %v4913
        %v4930 = vrcp.pop %v4916
        %v4931 = vrcp.pop %v4919
        %v4932 = vrcp.pop %v4922
        %v4933 = vrcp.pop %v4925
        %v4934 = vmul.f32 %v4887, %v4926
        %v4935 = vmul.f32 %v4889, %v4927
        %v4936 = vmul.f32 %v4891, %v4928
        %v4937 = vmul.f32 %v4893, %v4929
        %v4938 = vmul.f32 %v4895, %v4930
        %v4939 = vmul.f32 %v4897, %v4931
        %v4940 = vmul.f32 %v4899, %v4932
        %v4941 = vmul.f32 %v4901, %v4933
        %v4942 = vpack.c.bf16 %v4935, %v4934
        %v4943 = vpack.c.bf16 %v4937, %v4936
        %v4944 = vpack.c.bf16 %v4939, %v4938
        %v4945 = vpack.c.bf16 %v4941, %v4940
        %4946 = vrot.lane.b32.xlu0 %v4163, 64
        %v4947 = vpop.permute.xlu0 %4946
        %4948 = vrot.lane.b32.xlu0 %v4164, 64
        %v4949 = vpop.permute.xlu0 %4948
        %4950 = vrot.lane.b32.xlu0 %v4165, 64
        %v4951 = vpop.permute.xlu0 %4950
        %4952 = vrot.lane.b32.xlu0 %v4166, 64
        %v4953 = vpop.permute.xlu0 %4952
        %v4959 = vsel %vm4265, %v4942, 0
        %v4962 = vsel %vm4265, %v4943, 0
        %v4965 = vsel %vm4265, %v4944, 0
        %v4968 = vsel %vm4265, %v4945, 0
        %4970 = vmatprep.subr.bf16.mxu0 0
        %4971 = vmatpush1.bf16.msra.mxu0 0
        %4972 = vmatprep.subr.bf16.mxu0 0
        %4973 = vmatpush1.bf16.msra.mxu0 0
        %4974 = vmatprep.subr.bf16.mxu0 0
        %4975 = vmatpush1.bf16.msra.mxu0 0
        %4976 = vmatprep.subr.bf16.mxu0 0
        %4977 = vmatpush1.bf16.msra.mxu0 0
        %4978 = vmatprep.subr.bf16.mxu0 0
        %4979 = vmatpush1.bf16.msra.mxu0 %v4953
        %4980 = vmatprep.subr.bf16.mxu0 0
        %4981 = vmatpush1.bf16.msra.mxu0 %v4951
        %4982 = vmatprep.subr.bf16.mxu0 0
        %4983 = vmatpush1.bf16.msra.mxu0 %v4949
        %4984 = vmatprep.subr.bf16.mxu0 0
        %4985 = vmatpush1.bf16.msra.mxu0 %v4947
        %4986 = vmatprep.subr.bf16.mxu0 0
        %4987 = vmatpush2.bf16.msra.mxu0 0
        %4988 = vmatprep.subr.bf16.mxu0 0
        %4989 = vmatpush2.bf16.msra.mxu0 0
        %4990 = vmatprep.subr.bf16.mxu0 0
        %4991 = vmatpush2.bf16.msra.mxu0 0
        %4992 = vmatprep.subr.bf16.mxu0 0
        %4993 = vmatpush2.bf16.msra.mxu0 0
        %4994 = vmatprep.subr.bf16.mxu0 0
        %4995 = vmatpush2.bf16.msra.mxu0 0
        %4996 = vmatprep.subr.bf16.mxu0 0
        %4997 = vmatpush2.bf16.msra.mxu0 0
        %4998 = vmatprep.subr.bf16.mxu0 0
        %4999 = vmatpush2.bf16.msra.mxu0 0
        %5000 = vmatprep.subr.bf16.mxu0 0
        %5001 = vmatpush2.bf16.msra.mxu0 0
        %5002 = vmatprep.mubr.bf16.mxu0 0
        %5003 = vmatmul.mubr.bf16.gmra.mxu0 %v4959
        %v5004 = vpop.f32.mrf.mxu0
        %v5005 = vadd.f32 0.0, %v5004
        %v5006 = vpop.f32.mrf.mxu0
        %v5007 = vpop.f32.mrf.mxu0
        %v5008 = vadd.f32 0.0, %v5007
        %v5009 = vpop.f32.mrf.mxu0
        %5010 = vmatprep.mubr.bf16.mxu0 0
        %5011 = vmatmul.mubr.bf16.gmra.mxu0 %v4962
        %v5012 = vpop.f32.mrf.mxu0
        %v5013 = vadd.f32 0.0, %v5012
        %v5014 = vpop.f32.mrf.mxu0
        %v5015 = vpop.f32.mrf.mxu0
        %v5016 = vadd.f32 0.0, %v5015
        %v5017 = vpop.f32.mrf.mxu0
        %5018 = vmatprep.mubr.bf16.mxu0 0
        %5019 = vmatmul.mubr.bf16.gmra.mxu0 %v4965
        %v5020 = vpop.f32.mrf.mxu0
        %v5021 = vadd.f32 0.0, %v5020
        %v5022 = vpop.f32.mrf.mxu0
        %v5023 = vpop.f32.mrf.mxu0
        %v5024 = vadd.f32 0.0, %v5023
        %v5025 = vpop.f32.mrf.mxu0
        %5026 = vmatprep.mubr.bf16.mxu0 0
        %5027 = vmatmul.mubr.bf16.gmra.mxu0 %v4968
        %v5028 = vpop.f32.mrf.mxu0
        %v5029 = vadd.f32 0.0, %v5028
        %v5030 = vpop.f32.mrf.mxu0
        %v5031 = vpop.f32.mrf.mxu0
        %v5032 = vadd.f32 0.0, %v5031
        %v5033 = vpop.f32.mrf.mxu0
        %5034 = vdwg.mxu0
        %5035 = vrot.lane.b32.xlu0 %v4155, 32
        %v5036 = vpop.permute.xlu0 %5035
        %5037 = vrot.lane.b32.xlu0 %v4156, 32
        %v5038 = vpop.permute.xlu0 %5037
        %5039 = vrot.lane.b32.xlu0 %v4157, 32
        %v5040 = vpop.permute.xlu0 %5039
        %5041 = vrot.lane.b32.xlu0 %v4158, 32
        %v5042 = vpop.permute.xlu0 %5041
        %5043 = vrot.lane.b32.xlu0 %v4159, 32
        %v5044 = vpop.permute.xlu0 %5043
        %5045 = vrot.lane.b32.xlu0 %v4160, 32
        %v5046 = vpop.permute.xlu0 %5045
        %5047 = vrot.lane.b32.xlu0 %v4161, 32
        %v5048 = vpop.permute.xlu0 %5047
        %5049 = vrot.lane.b32.xlu0 %v4162, 32
        %v5050 = vpop.permute.xlu0 %5049
        %v5052 = vsel %vm4167, %v5036, 0
        %v5055 = vsel %vm4167, %v5038, 0
        %v5058 = vsel %vm4167, %v5040, 0
        %v5061 = vsel %vm4167, %v5042, 0
        %v5064 = vsel %vm4167, %v5044, 0
        %v5067 = vsel %vm4167, %v5046, 0
        %v5070 = vsel %vm4167, %v5048, 0
        %v5073 = vsel %vm4167, %v5050, 0
        %5075 = vmatprep.subr.bf16.mxu0 0
        %5076 = vmatpush1.bf16.xpose.msra.mxu0 0
        %5077 = vmatprep.subr.bf16.mxu0 0
        %5078 = vmatpush1.bf16.xpose.msra.mxu0 0
        %5079 = vmatprep.subr.bf16.mxu0 0
        %5080 = vmatpush1.bf16.xpose.msra.mxu0 0
        %5081 = vmatprep.subr.bf16.mxu0 0
        %5082 = vmatpush1.bf16.xpose.msra.mxu0 0
        %5083 = vmatprep.subr.bf16.mxu0 0
        %5084 = vmatpush1.bf16.xpose.msra.mxu0 %v5073
        %5085 = vmatprep.subr.bf16.mxu0 0
        %5086 = vmatpush1.bf16.xpose.msra.mxu0 %v5070
        %5087 = vmatprep.subr.bf16.mxu0 0
        %5088 = vmatpush1.bf16.xpose.msra.mxu0 %v5067
        %5089 = vmatprep.subr.bf16.mxu0 0
        %5090 = vmatpush1.bf16.xpose.msra.mxu0 %v5064
        %5091 = vmatprep.subr.bf16.mxu0 0
        %5092 = vmatpush2.bf16.xpose.msra.mxu0 0
        %5093 = vmatprep.subr.bf16.mxu0 0
        %5094 = vmatpush2.bf16.xpose.msra.mxu0 0
        %5095 = vmatprep.subr.bf16.mxu0 0
        %5096 = vmatpush2.bf16.xpose.msra.mxu0 0
        %5097 = vmatprep.subr.bf16.mxu0 0
        %5098 = vmatpush2.bf16.xpose.msra.mxu0 0
        %5099 = vmatprep.subr.bf16.mxu0 0
        %5100 = vmatpush2.bf16.xpose.msra.mxu0 0
        %5101 = vmatprep.subr.bf16.mxu0 0
        %5102 = vmatpush2.bf16.xpose.msra.mxu0 0
        %5103 = vmatprep.subr.bf16.mxu0 0
        %5104 = vmatpush2.bf16.xpose.msra.mxu0 0
        %5105 = vmatprep.subr.bf16.mxu0 0
        %5106 = vmatpush2.bf16.xpose.msra.mxu0 0
        %5107 = vmatprep.mubr.bf16.mxu0 0
        %5108 = vmatmul.mubr.bf16.gmra.mxu0 %v5052
        %v5109 = vpop.f32.mrf.mxu0
        %v5110 = vadd.f32 0.0, %v5109
        %v5111 = vpop.f32.mrf.mxu0
        %v5112 = vpop.f32.mrf.mxu0
        %v5113 = vadd.f32 0.0, %v5112
        %v5114 = vpop.f32.mrf.mxu0
        %5115 = vmatprep.mubr.bf16.mxu0 0
        %5116 = vmatmul.mubr.bf16.gmra.mxu0 %v5055
        %v5117 = vpop.f32.mrf.mxu0
        %v5118 = vadd.f32 0.0, %v5117
        %v5119 = vpop.f32.mrf.mxu0
        %v5120 = vpop.f32.mrf.mxu0
        %v5121 = vadd.f32 0.0, %v5120
        %v5122 = vpop.f32.mrf.mxu0
        %5123 = vmatprep.mubr.bf16.mxu0 0
        %5124 = vmatmul.mubr.bf16.gmra.mxu0 %v5058
        %v5125 = vpop.f32.mrf.mxu0
        %v5126 = vadd.f32 0.0, %v5125
        %v5127 = vpop.f32.mrf.mxu0
        %v5128 = vpop.f32.mrf.mxu0
        %v5129 = vadd.f32 0.0, %v5128
        %v5130 = vpop.f32.mrf.mxu0
        %5131 = vmatprep.mubr.bf16.mxu0 0
        %5132 = vmatmul.mubr.bf16.gmra.mxu0 %v5061
        %v5133 = vpop.f32.mrf.mxu0
        %v5134 = vadd.f32 0.0, %v5133
        %v5135 = vpop.f32.mrf.mxu0
        %v5136 = vpop.f32.mrf.mxu0
        %v5137 = vadd.f32 0.0, %v5136
        %v5138 = vpop.f32.mrf.mxu0
        %5139 = vdwg.mxu0
        %v5140 = vsel %vm4146, %v5110, -1e+30
        %v5141 = vsel %vm4146, %v5113, -1e+30
        %v5142 = vsel %vm4146, %v5118, -1e+30
        %v5143 = vsel %vm4146, %v5121, -1e+30
        %v5144 = vsel %vm4146, %v5126, -1e+30
        %v5145 = vsel %vm4146, %v5129, -1e+30
        %v5146 = vsel %vm4146, %v5134, -1e+30
        %v5147 = vsel %vm4146, %v5137, -1e+30
        %v5148 = vsel %vm4265, %v5140, -inf
        %5149 = vmax.xlane.f32.xlu0 %v5148
        %v5150 = vpop.xlane.xlu0 %5149
        %v5151 = vsel %vm4265, %v5141, -inf
        %5152 = vmax.xlane.f32.xlu0 %v5151
        %v5153 = vpop.xlane.xlu0 %5152
        %v5154 = vsel %vm4265, %v5142, -inf
        %5155 = vmax.xlane.f32.xlu0 %v5154
        %v5156 = vpop.xlane.xlu0 %5155
        %v5157 = vsel %vm4265, %v5143, -inf
        %5158 = vmax.xlane.f32.xlu0 %v5157
        %v5159 = vpop.xlane.xlu0 %5158
        %v5160 = vsel %vm4265, %v5144, -inf
        %5161 = vmax.xlane.f32.xlu0 %v5160
        %v5162 = vpop.xlane.xlu0 %5161
        %v5163 = vsel %vm4265, %v5145, -inf
        %5164 = vmax.xlane.f32.xlu0 %v5163
        %v5165 = vpop.xlane.xlu0 %5164
        %v5166 = vsel %vm4265, %v5146, -inf
        %5167 = vmax.xlane.f32.xlu0 %v5166
        %v5168 = vpop.xlane.xlu0 %5167
        %v5169 = vsel %vm4265, %v5147, -inf
        %5170 = vmax.xlane.f32.xlu0 %v5169
        %v5171 = vpop.xlane.xlu0 %5170
        %v5172 = vsub.f32 %v5140, %v5150
        %v5173 = vsub.f32 %v5141, %v5153
        %v5174 = vsub.f32 %v5142, %v5156
        %v5175 = vsub.f32 %v5143, %v5159
        %v5176 = vsub.f32 %v5144, %v5162
        %v5177 = vsub.f32 %v5145, %v5165
        %v5178 = vsub.f32 %v5146, %v5168
        %v5179 = vsub.f32 %v5147, %v5171
        %v5180 = vmul.f32 %v5172, 1.442695
        %v5181 = vpow.pop %v5180
        %v5182 = vmul.f32 %v5173, 1.442695
        %v5183 = vpow.pop %v5182
        %v5184 = vmul.f32 %v5174, 1.442695
        %v5185 = vpow.pop %v5184
        %v5186 = vmul.f32 %v5175, 1.442695
        %v5187 = vpow.pop %v5186
        %v5188 = vmul.f32 %v5176, 1.442695
        %v5189 = vpow.pop %v5188
        %v5190 = vmul.f32 %v5177, 1.442695
        %v5191 = vpow.pop %v5190
        %v5192 = vmul.f32 %v5178, 1.442695
        %v5193 = vpow.pop %v5192
        %v5194 = vmul.f32 %v5179, 1.442695
        %v5195 = vpow.pop %v5194
        %v5196 = vsel %vm4265, %v5181, 0.0
        %5197 = vadd.xlane.f32.xlu0 %v5196
        %v5198 = vpop.xlane.xlu0 %5197
        %v5199 = vsel %vm4265, %v5183, 0.0
        %5200 = vadd.xlane.f32.xlu0 %v5199
        %v5201 = vpop.xlane.xlu0 %5200
        %v5202 = vsel %vm4265, %v5185, 0.0
        %5203 = vadd.xlane.f32.xlu0 %v5202
        %v5204 = vpop.xlane.xlu0 %5203
        %v5205 = vsel %vm4265, %v5187, 0.0
        %5206 = vadd.xlane.f32.xlu0 %v5205
        %v5207 = vpop.xlane.xlu0 %5206
        %v5208 = vsel %vm4265, %v5189, 0.0
        %5209 = vadd.xlane.f32.xlu0 %v5208
        %v5210 = vpop.xlane.xlu0 %5209
        %v5211 = vsel %vm4265, %v5191, 0.0
        %5212 = vadd.xlane.f32.xlu0 %v5211
        %v5213 = vpop.xlane.xlu0 %5212
        %v5214 = vsel %vm4265, %v5193, 0.0
        %5215 = vadd.xlane.f32.xlu0 %v5214
        %v5216 = vpop.xlane.xlu0 %5215
        %v5217 = vsel %vm4265, %v5195, 0.0
        %5218 = vadd.xlane.f32.xlu0 %v5217
        %v5219 = vpop.xlane.xlu0 %5218
        %v5220 = vrcp.pop %v5198
        %v5221 = vrcp.pop %v5201
        %v5222 = vrcp.pop %v5204
        %v5223 = vrcp.pop %v5207
        %v5224 = vrcp.pop %v5210
        %v5225 = vrcp.pop %v5213
        %v5226 = vrcp.pop %v5216
        %v5227 = vrcp.pop %v5219
        %v5228 = vmul.f32 %v5181, %v5220
        %v5229 = vmul.f32 %v5183, %v5221
        %v5230 = vmul.f32 %v5185, %v5222
        %v5231 = vmul.f32 %v5187, %v5223
        %v5232 = vmul.f32 %v5189, %v5224
        %v5233 = vmul.f32 %v5191, %v5225
        %v5234 = vmul.f32 %v5193, %v5226
        %v5235 = vmul.f32 %v5195, %v5227
        %v5236 = vpack.c.bf16 %v5229, %v5228
        %v5237 = vpack.c.bf16 %v5231, %v5230
        %v5238 = vpack.c.bf16 %v5233, %v5232
        %v5239 = vpack.c.bf16 %v5235, %v5234
        %5240 = vrot.lane.b32.xlu0 %v4163, 32
        %v5241 = vpop.permute.xlu0 %5240
        %5242 = vrot.lane.b32.xlu0 %v4164, 32
        %v5243 = vpop.permute.xlu0 %5242
        %5244 = vrot.lane.b32.xlu0 %v4165, 32
        %v5245 = vpop.permute.xlu0 %5244
        %5246 = vrot.lane.b32.xlu0 %v4166, 32
        %v5247 = vpop.permute.xlu0 %5246
        %v5253 = vsel %vm4265, %v5236, 0
        %v5256 = vsel %vm4265, %v5237, 0
        %v5259 = vsel %vm4265, %v5238, 0
        %v5262 = vsel %vm4265, %v5239, 0
        %5264 = vmatprep.subr.bf16.mxu0 0
        %5265 = vmatpush1.bf16.msra.mxu0 0
        %5266 = vmatprep.subr.bf16.mxu0 0
        %5267 = vmatpush1.bf16.msra.mxu0 0
        %5268 = vmatprep.subr.bf16.mxu0 0
        %5269 = vmatpush1.bf16.msra.mxu0 0
        %5270 = vmatprep.subr.bf16.mxu0 0
        %5271 = vmatpush1.bf16.msra.mxu0 0
        %5272 = vmatprep.subr.bf16.mxu0 0
        %5273 = vmatpush1.bf16.msra.mxu0 %v5247
        %5274 = vmatprep.subr.bf16.mxu0 0
        %5275 = vmatpush1.bf16.msra.mxu0 %v5245
        %5276 = vmatprep.subr.bf16.mxu0 0
        %5277 = vmatpush1.bf16.msra.mxu0 %v5243
        %5278 = vmatprep.subr.bf16.mxu0 0
        %5279 = vmatpush1.bf16.msra.mxu0 %v5241
        %5280 = vmatprep.subr.bf16.mxu0 0
        %5281 = vmatpush2.bf16.msra.mxu0 0
        %5282 = vmatprep.subr.bf16.mxu0 0
        %5283 = vmatpush2.bf16.msra.mxu0 0
        %5284 = vmatprep.subr.bf16.mxu0 0
        %5285 = vmatpush2.bf16.msra.mxu0 0
        %5286 = vmatprep.subr.bf16.mxu0 0
        %5287 = vmatpush2.bf16.msra.mxu0 0
        %5288 = vmatprep.subr.bf16.mxu0 0
        %5289 = vmatpush2.bf16.msra.mxu0 0
        %5290 = vmatprep.subr.bf16.mxu0 0
        %5291 = vmatpush2.bf16.msra.mxu0 0
        %5292 = vmatprep.subr.bf16.mxu0 0
        %5293 = vmatpush2.bf16.msra.mxu0 0
        %5294 = vmatprep.subr.bf16.mxu0 0
        %5295 = vmatpush2.bf16.msra.mxu0 0
        %5296 = vmatprep.mubr.bf16.mxu0 0
        %5297 = vmatmul.mubr.bf16.gmra.mxu0 %v5253
        %v5298 = vpop.f32.mrf.mxu0
        %v5299 = vadd.f32 0.0, %v5298
        %v5300 = vpop.f32.mrf.mxu0
        %v5301 = vpop.f32.mrf.mxu0
        %v5302 = vadd.f32 0.0, %v5301
        %v5303 = vpop.f32.mrf.mxu0
        %5304 = vmatprep.mubr.bf16.mxu0 0
        %5305 = vmatmul.mubr.bf16.gmra.mxu0 %v5256
        %v5306 = vpop.f32.mrf.mxu0
        %v5307 = vadd.f32 0.0, %v5306
        %v5308 = vpop.f32.mrf.mxu0
        %v5309 = vpop.f32.mrf.mxu0
        %v5310 = vadd.f32 0.0, %v5309
        %v5311 = vpop.f32.mrf.mxu0
        %5312 = vmatprep.mubr.bf16.mxu0 0
        %5313 = vmatmul.mubr.bf16.gmra.mxu0 %v5259
        %v5314 = vpop.f32.mrf.mxu0
        %v5315 = vadd.f32 0.0, %v5314
        %v5316 = vpop.f32.mrf.mxu0
        %v5317 = vpop.f32.mrf.mxu0
        %v5318 = vadd.f32 0.0, %v5317
        %v5319 = vpop.f32.mrf.mxu0
        %5320 = vmatprep.mubr.bf16.mxu0 0
        %5321 = vmatmul.mubr.bf16.gmra.mxu0 %v5262
        %v5322 = vpop.f32.mrf.mxu0
        %v5323 = vadd.f32 0.0, %v5322
        %v5324 = vpop.f32.mrf.mxu0
        %v5325 = vpop.f32.mrf.mxu0
        %v5326 = vadd.f32 0.0, %v5325
        %v5327 = vpop.f32.mrf.mxu0
        %5328 = vdwg.mxu0
        %5337 = vrot.lane.b32.xlu0 %v4711, 32
        %v5338 = vpop.permute.xlu0 %5337
        %5339 = vrot.lane.b32.xlu0 %v4714, 32
        %v5340 = vpop.permute.xlu0 %5339
        %5341 = vrot.lane.b32.xlu0 %v4719, 32
        %v5342 = vpop.permute.xlu0 %5341
        %5343 = vrot.lane.b32.xlu0 %v4722, 32
        %v5344 = vpop.permute.xlu0 %5343
        %5345 = vrot.lane.b32.xlu0 %v4727, 32
        %v5346 = vpop.permute.xlu0 %5345
        %5347 = vrot.lane.b32.xlu0 %v4730, 32
        %v5348 = vpop.permute.xlu0 %5347
        %5349 = vrot.lane.b32.xlu0 %v4735, 32
        %v5350 = vpop.permute.xlu0 %5349
        %5351 = vrot.lane.b32.xlu0 %v4738, 32
        %v5352 = vpop.permute.xlu0 %5351
        %5369 = vrot.lane.b32.xlu0 %v5005, 64
        %v5370 = vpop.permute.xlu0 %5369
        %5371 = vrot.lane.b32.xlu0 %v5008, 64
        %v5372 = vpop.permute.xlu0 %5371
        %5373 = vrot.lane.b32.xlu0 %v5013, 64
        %v5374 = vpop.permute.xlu0 %5373
        %5375 = vrot.lane.b32.xlu0 %v5016, 64
        %v5376 = vpop.permute.xlu0 %5375
        %5377 = vrot.lane.b32.xlu0 %v5021, 64
        %v5378 = vpop.permute.xlu0 %5377
        %5379 = vrot.lane.b32.xlu0 %v5024, 64
        %v5380 = vpop.permute.xlu0 %5379
        %5381 = vrot.lane.b32.xlu0 %v5029, 64
        %v5382 = vpop.permute.xlu0 %5381
        %5383 = vrot.lane.b32.xlu0 %v5032, 64
        %v5384 = vpop.permute.xlu0 %5383
        %5401 = vrot.lane.b32.xlu0 %v5299, 96
        %v5402 = vpop.permute.xlu0 %5401
        %5403 = vrot.lane.b32.xlu0 %v5302, 96
        %v5404 = vpop.permute.xlu0 %5403
        %5405 = vrot.lane.b32.xlu0 %v5307, 96
        %v5406 = vpop.permute.xlu0 %5405
        %5407 = vrot.lane.b32.xlu0 %v5310, 96
        %v5408 = vpop.permute.xlu0 %5407
        %5409 = vrot.lane.b32.xlu0 %v5315, 96
        %v5410 = vpop.permute.xlu0 %5409
        %5411 = vrot.lane.b32.xlu0 %v5318, 96
        %v5412 = vpop.permute.xlu0 %5411
        %5413 = vrot.lane.b32.xlu0 %v5323, 96
        %v5414 = vpop.permute.xlu0 %5413
        %5415 = vrot.lane.b32.xlu0 %v5326, 96
        %v5416 = vpop.permute.xlu0 %5415
        %v5425 = vsel %vm4167, %v4405, %v5338
        %v5426 = vsel %vm4167, %v4408, %v5340
        %v5427 = vsel %vm4167, %v4413, %v5342
        %v5428 = vsel %vm4167, %v4416, %v5344
        %v5429 = vsel %vm4167, %v4421, %v5346
        %v5430 = vsel %vm4167, %v4424, %v5348
        %v5431 = vsel %vm4167, %v4429, %v5350
        %v5432 = vsel %vm4167, %v4432, %v5352
        %v5433 = vsel %vm4265, %v5425, %v5370
        %v5434 = vsel %vm4265, %v5426, %v5372
        %v5435 = vsel %vm4265, %v5427, %v5374
        %v5436 = vsel %vm4265, %v5428, %v5376
        %v5437 = vsel %vm4265, %v5429, %v5378
        %v5438 = vsel %vm4265, %v5430, %v5380
        %v5439 = vsel %vm4265, %v5431, %v5382
        %v5440 = vsel %vm4265, %v5432, %v5384
        %vm5441 = vcmask 785408
        %v5442 = vsel %vm5441, %v5433, %v5402
        %v5443 = vsel %vm5441, %v5434, %v5404
        %v5444 = vsel %vm5441, %v5435, %v5406
        %v5445 = vsel %vm5441, %v5436, %v5408
        %v5446 = vsel %vm5441, %v5437, %v5410
        %v5447 = vsel %vm5441, %v5438, %v5412
        %v5448 = vsel %vm5441, %v5439, %v5414
        %v5449 = vsel %vm5441, %v5440, %v5416
        %v5450 = vpack.c.bf16 %v5443, %v5442
        %v5451 = vpack.c.bf16 %v5445, %v5444
        %v5452 = vpack.c.bf16 %v5447, %v5446
        %v5453 = vpack.c.bf16 %v5449, %v5448
        %v5454 = vld [vmem:[%s864] sm:$0xf]
        %v5455 = vld [vmem:[%s864 + $0x4] sm:$0xf]
        %v5456 = vld [vmem:[%s864 + $0x8] sm:$0xf]
        %v5457 = vld [vmem:[%s864 + $0xc] sm:$0xf]
        %v5458 = vld [vmem:[%s864 + $0x10] sm:$0xf]
        %v5459 = vld [vmem:[%s864 + $0x14] sm:$0xf]
        %v5460 = vld [vmem:[%s864 + $0x18] sm:$0xf]
        %v5461 = vld [vmem:[%s864 + $0x1c] sm:$0xf]
        %v5462 = vld [vmem:[%s864 + $0x20] sm:$0xf]
        %v5463 = vld [vmem:[%s864 + $0x24] sm:$0xf]
        %v5464 = vld [vmem:[%s864 + $0x28] sm:$0xf]
        %v5465 = vld [vmem:[%s864 + $0x2c] sm:$0xf]
        %v5466 = vld [vmem:[%s864 + $0x30] sm:$0xf]
        %v5467 = vld [vmem:[%s864 + $0x34] sm:$0xf]
        %v5468 = vld [vmem:[%s864 + $0x38] sm:$0xf]
        %v5469 = vld [vmem:[%s864 + $0x3c] sm:$0xf]
        %v5470 = vld [vmem:[%s867] sm:$0x1]
        %v5472 = vlaneseq
        %v5473 = vshrl.u32 %v5472, 7
        %v5474 = vsub.s32 0, %v5473
        %v5475 = vrot.slane %v5470, %v5474
        %v5493 = vunpack.c.l.b16 %v5454
        %v5494 = vunpack.c.l.b16 %v5455
        %v5495 = vunpack.c.l.b16 %v5456
        %v5496 = vunpack.c.l.b16 %v5457
        %v5497 = vunpack.c.l.b16 %v5458
        %v5498 = vunpack.c.l.b16 %v5459
        %v5499 = vunpack.c.l.b16 %v5460
        %v5500 = vunpack.c.l.b16 %v5461
        %v5501 = vunpack.c.l.b16 %v5462
        %v5502 = vunpack.c.l.b16 %v5463
        %v5503 = vunpack.c.l.b16 %v5464
        %v5504 = vunpack.c.l.b16 %v5465
        %v5505 = vunpack.c.l.b16 %v5466
        %v5506 = vunpack.c.l.b16 %v5467
        %v5507 = vunpack.c.l.b16 %v5468
        %v5508 = vunpack.c.l.b16 %v5469
        %v5509 = vpack.c.b16 %v5494, %v5493
        %v5510 = vpack.c.b16 %v5496, %v5495
        %v5511 = vpack.c.b16 %v5498, %v5497
        %v5512 = vpack.c.b16 %v5500, %v5499
        %v5513 = vpack.c.b16 %v5502, %v5501
        %v5514 = vpack.c.b16 %v5504, %v5503
        %v5515 = vpack.c.b16 %v5506, %v5505
        %v5516 = vpack.c.b16 %v5508, %v5507
        %5525 = vmatprep.subr.bf16.mxu0 0
        %5526 = vmatpush1.bf16.msra.mxu0 %v5516
        %5527 = vmatprep.subr.bf16.mxu0 0
        %5528 = vmatpush1.bf16.msra.mxu0 %v5515
        %5529 = vmatprep.subr.bf16.mxu0 0
        %5530 = vmatpush1.bf16.msra.mxu0 %v5514
        %5531 = vmatprep.subr.bf16.mxu0 0
        %5532 = vmatpush1.bf16.msra.mxu0 %v5513
        %5533 = vmatprep.subr.bf16.mxu0 0
        %5534 = vmatpush1.bf16.msra.mxu0 %v5512
        %5535 = vmatprep.subr.bf16.mxu0 0
        %5536 = vmatpush1.bf16.msra.mxu0 %v5511
        %5537 = vmatprep.subr.bf16.mxu0 0
        %5538 = vmatpush1.bf16.msra.mxu0 %v5510
        %5539 = vmatprep.subr.bf16.mxu0 0
        %5540 = vmatpush1.bf16.msra.mxu0 %v5509
        %5541 = vmatprep.subr.bf16.mxu0 0
        %5542 = vmatpush2.bf16.msra.mxu0 0
        %5543 = vmatprep.subr.bf16.mxu0 0
        %5544 = vmatpush2.bf16.msra.mxu0 0
        %5545 = vmatprep.subr.bf16.mxu0 0
        %5546 = vmatpush2.bf16.msra.mxu0 0
        %5547 = vmatprep.subr.bf16.mxu0 0
        %5548 = vmatpush2.bf16.msra.mxu0 0
        %5549 = vmatprep.subr.bf16.mxu0 0
        %5550 = vmatpush2.bf16.msra.mxu0 0
        %5551 = vmatprep.subr.bf16.mxu0 0
        %5552 = vmatpush2.bf16.msra.mxu0 0
        %5553 = vmatprep.subr.bf16.mxu0 0
        %5554 = vmatpush2.bf16.msra.mxu0 0
        %5555 = vmatprep.subr.bf16.mxu0 0
        %5556 = vmatpush2.bf16.msra.mxu0 0
        %5557 = vmatprep.mubr.bf16.mxu0 0
        %5558 = vmatmul.mubr.bf16.gmra.mxu0 %v5450
        %v5559 = vpop.f32.mrf.mxu0
        %v5560 = vadd.f32 %v5475, %v5559
        %v5561 = vpop.f32.mrf.mxu0
        %v5562 = vpop.f32.mrf.mxu0
        %v5563 = vadd.f32 %v5475, %v5562
        %v5564 = vpop.f32.mrf.mxu0
        %5565 = vmatprep.mubr.bf16.mxu0 0
        %5566 = vmatmul.mubr.bf16.gmra.mxu0 %v5451
        %v5567 = vpop.f32.mrf.mxu0
        %v5568 = vadd.f32 %v5475, %v5567
        %v5569 = vpop.f32.mrf.mxu0
        %v5570 = vpop.f32.mrf.mxu0
        %v5571 = vadd.f32 %v5475, %v5570
        %v5572 = vpop.f32.mrf.mxu0
        %5573 = vmatprep.mubr.bf16.mxu0 0
        %5574 = vmatmul.mubr.bf16.gmra.mxu0 %v5452
        %v5575 = vpop.f32.mrf.mxu0
        %v5576 = vadd.f32 %v5475, %v5575
        %v5577 = vpop.f32.mrf.mxu0
        %v5578 = vpop.f32.mrf.mxu0
        %v5579 = vadd.f32 %v5475, %v5578
        %v5580 = vpop.f32.mrf.mxu0
        %5581 = vmatprep.mubr.bf16.mxu0 0
        %5582 = vmatmul.mubr.bf16.gmra.mxu0 %v5453
        %v5583 = vpop.f32.mrf.mxu0
        %v5584 = vadd.f32 %v5475, %v5583
        %v5585 = vpop.f32.mrf.mxu0
        %v5586 = vpop.f32.mrf.mxu0
        %v5587 = vadd.f32 %v5475, %v5586
        %v5588 = vpop.f32.mrf.mxu0
        %5589 = vdwg.mxu0
        %v5590 = vadd.f32 %v3698, %v5560
        %v5591 = vadd.f32 %v3699, %v5563
        %v5592 = vadd.f32 %v3700, %v5568
        %v5593 = vadd.f32 %v3701, %v5571
        %v5594 = vadd.f32 %v3702, %v5576
        %v5595 = vadd.f32 %v3703, %v5579
        %v5596 = vadd.f32 %v3704, %v5584
        %v5597 = vadd.f32 %v3705, %v5587
        %v5598 = vld [vmem:[%s870] sm:$0x1]
        %v5599 = vld [vmem:[%s873] sm:$0x1]
        %5600 = vadd.xlane.f32.xlu0 %v5590
        %v5601 = vpop.xlane.xlu0 %5600
        %5602 = vadd.xlane.f32.xlu0 %v5591
        %v5603 = vpop.xlane.xlu0 %5602
        %5604 = vadd.xlane.f32.xlu0 %v5592
        %v5605 = vpop.xlane.xlu0 %5604
        %5606 = vadd.xlane.f32.xlu0 %v5593
        %v5607 = vpop.xlane.xlu0 %5606
        %5608 = vadd.xlane.f32.xlu0 %v5594
        %v5609 = vpop.xlane.xlu0 %5608
        %5610 = vadd.xlane.f32.xlu0 %v5595
        %v5611 = vpop.xlane.xlu0 %5610
        %5612 = vadd.xlane.f32.xlu0 %v5596
        %v5613 = vpop.xlane.xlu0 %5612
        %5614 = vadd.xlane.f32.xlu0 %v5597
        %v5615 = vpop.xlane.xlu0 %5614
        %v5616 = vmul.f32 %v5601, %v3724
        %v5617 = vmul.f32 %v5603, %v3724
        %v5618 = vmul.f32 %v5605, %v3724
        %v5619 = vmul.f32 %v5607, %v3724
        %v5620 = vmul.f32 %v5609, %v3724
        %v5621 = vmul.f32 %v5611, %v3724
        %v5622 = vmul.f32 %v5613, %v3724
        %v5623 = vmul.f32 %v5615, %v3724
        %v5624 = vsub.f32 %v5590, %v5616
        %v5625 = vsub.f32 %v5591, %v5617
        %v5626 = vsub.f32 %v5592, %v5618
        %v5627 = vsub.f32 %v5593, %v5619
        %v5628 = vsub.f32 %v5594, %v5620
        %v5629 = vsub.f32 %v5595, %v5621
        %v5630 = vsub.f32 %v5596, %v5622
        %v5631 = vsub.f32 %v5597, %v5623
        %v5632 = vmul.f32 %v5624, %v5624
        %v5633 = vmul.f32 %v5625, %v5625
        %v5634 = vmul.f32 %v5626, %v5626
        %v5635 = vmul.f32 %v5627, %v5627
        %v5636 = vmul.f32 %v5628, %v5628
        %v5637 = vmul.f32 %v5629, %v5629
        %v5638 = vmul.f32 %v5630, %v5630
        %v5639 = vmul.f32 %v5631, %v5631
        %5640 = vadd.xlane.f32.xlu0 %v5632
        %v5641 = vpop.xlane.xlu0 %5640
        %5642 = vadd.xlane.f32.xlu0 %v5633
        %v5643 = vpop.xlane.xlu0 %5642
        %5644 = vadd.xlane.f32.xlu0 %v5634
        %v5645 = vpop.xlane.xlu0 %5644
        %5646 = vadd.xlane.f32.xlu0 %v5635
        %v5647 = vpop.xlane.xlu0 %5646
        %5648 = vadd.xlane.f32.xlu0 %v5636
        %v5649 = vpop.xlane.xlu0 %5648
        %5650 = vadd.xlane.f32.xlu0 %v5637
        %v5651 = vpop.xlane.xlu0 %5650
        %5652 = vadd.xlane.f32.xlu0 %v5638
        %v5653 = vpop.xlane.xlu0 %5652
        %5654 = vadd.xlane.f32.xlu0 %v5639
        %v5655 = vpop.xlane.xlu0 %5654
        %v5656 = vmul.f32 %v5641, %v3724
        %v5657 = vmul.f32 %v5643, %v3724
        %v5658 = vmul.f32 %v5645, %v3724
        %v5659 = vmul.f32 %v5647, %v3724
        %v5660 = vmul.f32 %v5649, %v3724
        %v5661 = vmul.f32 %v5651, %v3724
        %v5662 = vmul.f32 %v5653, %v3724
        %v5663 = vmul.f32 %v5655, %v3724
        %v5664 = vadd.f32 %v5656, 1e-05
        %v5665 = vadd.f32 %v5657, 1e-05
        %v5666 = vadd.f32 %v5658, 1e-05
        %v5667 = vadd.f32 %v5659, 1e-05
        %v5668 = vadd.f32 %v5660, 1e-05
        %v5669 = vadd.f32 %v5661, 1e-05
        %v5670 = vadd.f32 %v5662, 1e-05
        %v5671 = vadd.f32 %v5663, 1e-05
        %v5672 = vrsqrt.pop %v5664
        %v5673 = vrsqrt.pop %v5665
        %v5674 = vrsqrt.pop %v5666
        %v5675 = vrsqrt.pop %v5667
        %v5676 = vrsqrt.pop %v5668
        %v5677 = vrsqrt.pop %v5669
        %v5678 = vrsqrt.pop %v5670
        %v5679 = vrsqrt.pop %v5671
        %v5680 = vmul.f32 %v5624, %v5672
        %v5681 = vmul.f32 %v5625, %v5673
        %v5682 = vmul.f32 %v5626, %v5674
        %v5683 = vmul.f32 %v5627, %v5675
        %v5684 = vmul.f32 %v5628, %v5676
        %v5685 = vmul.f32 %v5629, %v5677
        %v5686 = vmul.f32 %v5630, %v5678
        %v5687 = vmul.f32 %v5631, %v5679
        %v5689 = vlaneseq
        %v5690 = vshrl.u32 %v5689, 7
        %v5691 = vsub.s32 0, %v5690
        %v5692 = vrot.slane %v5598, %v5691
        %v5694 = vmul.f32 %v5680, %v5692
        %v5695 = vmul.f32 %v5681, %v5692
        %v5696 = vmul.f32 %v5682, %v5692
        %v5697 = vmul.f32 %v5683, %v5692
        %v5698 = vmul.f32 %v5684, %v5692
        %v5699 = vmul.f32 %v5685, %v5692
        %v5700 = vmul.f32 %v5686, %v5692
        %v5701 = vmul.f32 %v5687, %v5692
        %v5703 = vlaneseq
        %v5704 = vshrl.u32 %v5703, 7
        %v5705 = vsub.s32 0, %v5704
        %v5706 = vrot.slane %v5599, %v5705
        %v5708 = vadd.f32 %v5694, %v5706
        %v5709 = vadd.f32 %v5695, %v5706
        %v5710 = vadd.f32 %v5696, %v5706
        %v5711 = vadd.f32 %v5697, %v5706
        %v5712 = vadd.f32 %v5698, %v5706
        %v5713 = vadd.f32 %v5699, %v5706
        %v5714 = vadd.f32 %v5700, %v5706
        %v5715 = vadd.f32 %v5701, %v5706
        %v5716 = vpack.c.bf16 %v5709, %v5708
        %v5717 = vpack.c.bf16 %v5711, %v5710
        %v5718 = vpack.c.bf16 %v5713, %v5712
        %v5719 = vpack.c.bf16 %v5715, %v5714
        %v5720 = vld [vmem:[%s878] sm:$0xff]
        %v5721 = vld [vmem:[%s878 + $0x8] sm:$0xff]
        %v5722 = vld [vmem:[%s878 + $0x10] sm:$0xff]
        %v5723 = vld [vmem:[%s878 + $0x18] sm:$0xff]
        %v5724 = vld [vmem:[%s878 + $0x20] sm:$0xff]
        %v5725 = vld [vmem:[%s878 + $0x28] sm:$0xff]
        %v5726 = vld [vmem:[%s878 + $0x30] sm:$0xff]
        %v5727 = vld [vmem:[%s878 + $0x38] sm:$0xff]
        %v5728 = vld [vmem:[%s878 + $0x40] sm:$0xff]
        %v5729 = vld [vmem:[%s878 + $0x48] sm:$0xff]
        %v5730 = vld [vmem:[%s878 + $0x50] sm:$0xff]
        %v5731 = vld [vmem:[%s878 + $0x58] sm:$0xff]
        %v5732 = vld [vmem:[%s878 + $0x60] sm:$0xff]
        %v5733 = vld [vmem:[%s878 + $0x68] sm:$0xff]
        %v5734 = vld [vmem:[%s878 + $0x70] sm:$0xff]
        %v5735 = vld [vmem:[%s878 + $0x78] sm:$0xff]
        %v5736 = vld [vmem:[%s878 + $0x80] sm:$0xff]
        %v5737 = vld [vmem:[%s878 + $0x88] sm:$0xff]
        %v5738 = vld [vmem:[%s878 + $0x90] sm:$0xff]
        %v5739 = vld [vmem:[%s878 + $0x98] sm:$0xff]
        %v5740 = vld [vmem:[%s878 + $0xa0] sm:$0xff]
        %v5741 = vld [vmem:[%s878 + $0xa8] sm:$0xff]
        %v5742 = vld [vmem:[%s878 + $0xb0] sm:$0xff]
        %v5743 = vld [vmem:[%s878 + $0xb8] sm:$0xff]
        %v5744 = vld [vmem:[%s878 + $0xc0] sm:$0xff]
        %v5745 = vld [vmem:[%s878 + $0xc8] sm:$0xff]
        %v5746 = vld [vmem:[%s878 + $0xd0] sm:$0xff]
        %v5747 = vld [vmem:[%s878 + $0xd8] sm:$0xff]
        %v5748 = vld [vmem:[%s878 + $0xe0] sm:$0xff]
        %v5749 = vld [vmem:[%s878 + $0xe8] sm:$0xff]
        %v5750 = vld [vmem:[%s878 + $0xf0] sm:$0xff]
        %v5751 = vld [vmem:[%s878 + $0xf8] sm:$0xff]
        %v5752 = vld [vmem:[%s882] sm:$0xf]
        %v5754 = vlaneseq
        %v5755 = vshrl.u32 %v5754, 7
        %v5756 = vsub.s32 0, %v5755
        %v5757 = vrot.slane %v5752, %v5756
        %v5758 = vlaneseq
        %v5759 = vshrl.u32 %v5758, 7
        %v5760 = vsub.s32 1, %v5759
        %v5761 = vrot.slane %v5752, %v5760
        %v5762 = vlaneseq
        %v5763 = vshrl.u32 %v5762, 7
        %v5764 = vsub.s32 2, %v5763
        %v5765 = vrot.slane %v5752, %v5764
        %v5766 = vlaneseq
        %v5767 = vshrl.u32 %v5766, 7
        %v5768 = vsub.s32 3, %v5767
        %v5769 = vrot.slane %v5752, %v5768
        %v5806 = vunpack.c.l.b16 %v5720
        %v5807 = vunpack.c.h.b16 %v5720
        %v5808 = vunpack.c.l.b16 %v5721
        %v5809 = vunpack.c.h.b16 %v5721
        %v5810 = vunpack.c.l.b16 %v5722
        %v5811 = vunpack.c.h.b16 %v5722
        %v5812 = vunpack.c.l.b16 %v5723
        %v5813 = vunpack.c.h.b16 %v5723
        %v5814 = vunpack.c.l.b16 %v5724
        %v5815 = vunpack.c.h.b16 %v5724
        %v5816 = vunpack.c.l.b16 %v5725
        %v5817 = vunpack.c.h.b16 %v5725
        %v5818 = vunpack.c.l.b16 %v5726
        %v5819 = vunpack.c.h.b16 %v5726
        %v5820 = vunpack.c.l.b16 %v5727
        %v5821 = vunpack.c.h.b16 %v5727
        %v5822 = vunpack.c.l.b16 %v5728
        %v5823 = vunpack.c.h.b16 %v5728
        %v5824 = vunpack.c.l.b16 %v5729
        %v5825 = vunpack.c.h.b16 %v5729
        %v5826 = vunpack.c.l.b16 %v5730
        %v5827 = vunpack.c.h.b16 %v5730
        %v5828 = vunpack.c.l.b16 %v5731
        %v5829 = vunpack.c.h.b16 %v5731
        %v5830 = vunpack.c.l.b16 %v5732
        %v5831 = vunpack.c.h.b16 %v5732
        %v5832 = vunpack.c.l.b16 %v5733
        %v5833 = vunpack.c.h.b16 %v5733
        %v5834 = vunpack.c.l.b16 %v5734
        %v5835 = vunpack.c.h.b16 %v5734
        %v5836 = vunpack.c.l.b16 %v5735
        %v5837 = vunpack.c.h.b16 %v5735
        %v5838 = vunpack.c.l.b16 %v5736
        %v5839 = vunpack.c.h.b16 %v5736
        %v5840 = vunpack.c.l.b16 %v5737
        %v5841 = vunpack.c.h.b16 %v5737
        %v5842 = vunpack.c.l.b16 %v5738
        %v5843 = vunpack.c.h.b16 %v5738
        %v5844 = vunpack.c.l.b16 %v5739
        %v5845 = vunpack.c.h.b16 %v5739
        %v5846 = vunpack.c.l.b16 %v5740
        %v5847 = vunpack.c.h.b16 %v5740
        %v5848 = vunpack.c.l.b16 %v5741
        %v5849 = vunpack.c.h.b16 %v5741
        %v5850 = vunpack.c.l.b16 %v5742
        %v5851 = vunpack.c.h.b16 %v5742
        %v5852 = vunpack.c.l.b16 %v5743
        %v5853 = vunpack.c.h.b16 %v5743
        %v5854 = vunpack.c.l.b16 %v5744
        %v5855 = vunpack.c.h.b16 %v5744
        %v5856 = vunpack.c.l.b16 %v5745
        %v5857 = vunpack.c.h.b16 %v5745
        %v5858 = vunpack.c.l.b16 %v5746
        %v5859 = vunpack.c.h.b16 %v5746
        %v5860 = vunpack.c.l.b16 %v5747
        %v5861 = vunpack.c.h.b16 %v5747
        %v5862 = vunpack.c.l.b16 %v5748
        %v5863 = vunpack.c.h.b16 %v5748
        %v5864 = vunpack.c.l.b16 %v5749
        %v5865 = vunpack.c.h.b16 %v5749
        %v5866 = vunpack.c.l.b16 %v5750
        %v5867 = vunpack.c.h.b16 %v5750
        %v5868 = vunpack.c.l.b16 %v5751
        %v5869 = vunpack.c.h.b16 %v5751
        %v5870 = vpack.c.b16 %v5810, %v5806
        %v5871 = vpack.c.b16 %v5811, %v5807
        %v5872 = vpack.c.b16 %v5812, %v5808
        %v5873 = vpack.c.b16 %v5813, %v5809
        %v5874 = vpack.c.b16 %v5818, %v5814
        %v5875 = vpack.c.b16 %v5819, %v5815
        %v5876 = vpack.c.b16 %v5820, %v5816
        %v5877 = vpack.c.b16 %v5821, %v5817
        %v5878 = vpack.c.b16 %v5826, %v5822
        %v5879 = vpack.c.b16 %v5827, %v5823
        %v5880 = vpack.c.b16 %v5828, %v5824
        %v5881 = vpack.c.b16 %v5829, %v5825
        %v5882 = vpack.c.b16 %v5834, %v5830
        %v5883 = vpack.c.b16 %v5835, %v5831
        %v5884 = vpack.c.b16 %v5836, %v5832
        %v5885 = vpack.c.b16 %v5837, %v5833
        %v5886 = vpack.c.b16 %v5842, %v5838
        %v5887 = vpack.c.b16 %v5843, %v5839
        %v5888 = vpack.c.b16 %v5844, %v5840
        %v5889 = vpack.c.b16 %v5845, %v5841
        %v5890 = vpack.c.b16 %v5850, %v5846
        %v5891 = vpack.c.b16 %v5851, %v5847
        %v5892 = vpack.c.b16 %v5852, %v5848
        %v5893 = vpack.c.b16 %v5853, %v5849
        %v5894 = vpack.c.b16 %v5858, %v5854
        %v5895 = vpack.c.b16 %v5859, %v5855
        %v5896 = vpack.c.b16 %v5860, %v5856
        %v5897 = vpack.c.b16 %v5861, %v5857
        %v5898 = vpack.c.b16 %v5866, %v5862
        %v5899 = vpack.c.b16 %v5867, %v5863
        %v5900 = vpack.c.b16 %v5868, %v5864
        %v5901 = vpack.c.b16 %v5869, %v5865
        %5934 = vmatprep.subr.bf16.mxu0 %v5899
        %5935 = vmatpush1.bf16.msra.mxu0 %v5898
        %5936 = vmatprep.subr.bf16.mxu0 %v5895
        %5937 = vmatpush1.bf16.msra.mxu0 %v5894
        %5938 = vmatprep.subr.bf16.mxu0 %v5891
        %5939 = vmatpush1.bf16.msra.mxu0 %v5890
        %5940 = vmatprep.subr.bf16.mxu0 %v5887
        %5941 = vmatpush1.bf16.msra.mxu0 %v5886
        %5942 = vmatprep.subr.bf16.mxu0 %v5883
        %5943 = vmatpush1.bf16.msra.mxu0 %v5882
        %5944 = vmatprep.subr.bf16.mxu0 %v5879
        %5945 = vmatpush1.bf16.msra.mxu0 %v5878
        %5946 = vmatprep.subr.bf16.mxu0 %v5875
        %5947 = vmatpush1.bf16.msra.mxu0 %v5874
        %5948 = vmatprep.subr.bf16.mxu0 %v5871
        %5949 = vmatpush1.bf16.msra.mxu0 %v5870
        %5950 = vmatprep.subr.bf16.mxu0 0
        %5951 = vmatpush2.bf16.msra.mxu0 0
        %5952 = vmatprep.subr.bf16.mxu0 0
        %5953 = vmatpush2.bf16.msra.mxu0 0
        %5954 = vmatprep.subr.bf16.mxu0 0
        %5955 = vmatpush2.bf16.msra.mxu0 0
        %5956 = vmatprep.subr.bf16.mxu0 0
        %5957 = vmatpush2.bf16.msra.mxu0 0
        %5958 = vmatprep.subr.bf16.mxu0 0
        %5959 = vmatpush2.bf16.msra.mxu0 0
        %5960 = vmatprep.subr.bf16.mxu0 0
        %5961 = vmatpush2.bf16.msra.mxu0 0
        %5962 = vmatprep.subr.bf16.mxu0 0
        %5963 = vmatpush2.bf16.msra.mxu0 0
        %5964 = vmatprep.subr.bf16.mxu0 0
        %5965 = vmatpush2.bf16.msra.mxu0 0
        %5966 = vmatprep.mubr.bf16.mxu0 0
        %5967 = vmatmul.mubr.bf16.gmra.mxu0 %v5716
        %v5968 = vpop.f32.mrf.mxu0
        %v5969 = vadd.f32 %v5757, %v5968
        %v5970 = vpop.f32.mrf.mxu0
        %v5971 = vadd.f32 %v5761, %v5970
        %v5972 = vpop.f32.mrf.mxu0
        %v5973 = vadd.f32 %v5757, %v5972
        %v5974 = vpop.f32.mrf.mxu0
        %v5975 = vadd.f32 %v5761, %v5974
        %5976 = vmatprep.mubr.bf16.mxu0 0
        %5977 = vmatmul.mubr.bf16.gmra.mxu0 %v5717
        %v5978 = vpop.f32.mrf.mxu0
        %v5979 = vadd.f32 %v5757, %v5978
        %v5980 = vpop.f32.mrf.mxu0
        %v5981 = vadd.f32 %v5761, %v5980
        %v5982 = vpop.f32.mrf.mxu0
        %v5983 = vadd.f32 %v5757, %v5982
        %v5984 = vpop.f32.mrf.mxu0
        %v5985 = vadd.f32 %v5761, %v5984
        %5986 = vmatprep.mubr.bf16.mxu0 0
        %5987 = vmatmul.mubr.bf16.gmra.mxu0 %v5718
        %v5988 = vpop.f32.mrf.mxu0
        %v5989 = vadd.f32 %v5757, %v5988
        %v5990 = vpop.f32.mrf.mxu0
        %v5991 = vadd.f32 %v5761, %v5990
        %v5992 = vpop.f32.mrf.mxu0
        %v5993 = vadd.f32 %v5757, %v5992
        %v5994 = vpop.f32.mrf.mxu0
        %v5995 = vadd.f32 %v5761, %v5994
        %5996 = vmatprep.mubr.bf16.mxu0 0
        %5997 = vmatmul.mubr.bf16.gmra.mxu0 %v5719
        %v5998 = vpop.f32.mrf.mxu0
        %v5999 = vadd.f32 %v5757, %v5998
        %v6000 = vpop.f32.mrf.mxu0
        %v6001 = vadd.f32 %v5761, %v6000
        %v6002 = vpop.f32.mrf.mxu0
        %v6003 = vadd.f32 %v5757, %v6002
        %v6004 = vpop.f32.mrf.mxu0
        %v6005 = vadd.f32 %v5761, %v6004
        %6006 = vdwg.mxu0
        %6007 = vmatprep.subr.bf16.mxu0 %v5901
        %6008 = vmatpush1.bf16.msra.mxu0 %v5900
        %6009 = vmatprep.subr.bf16.mxu0 %v5897
        %6010 = vmatpush1.bf16.msra.mxu0 %v5896
        %6011 = vmatprep.subr.bf16.mxu0 %v5893
        %6012 = vmatpush1.bf16.msra.mxu0 %v5892
        %6013 = vmatprep.subr.bf16.mxu0 %v5889
        %6014 = vmatpush1.bf16.msra.mxu0 %v5888
        %6015 = vmatprep.subr.bf16.mxu0 %v5885
        %6016 = vmatpush1.bf16.msra.mxu0 %v5884
        %6017 = vmatprep.subr.bf16.mxu0 %v5881
        %6018 = vmatpush1.bf16.msra.mxu0 %v5880
        %6019 = vmatprep.subr.bf16.mxu0 %v5877
        %6020 = vmatpush1.bf16.msra.mxu0 %v5876
        %6021 = vmatprep.subr.bf16.mxu0 %v5873
        %6022 = vmatpush1.bf16.msra.mxu0 %v5872
        %6023 = vmatprep.subr.bf16.mxu0 0
        %6024 = vmatpush2.bf16.msra.mxu0 0
        %6025 = vmatprep.subr.bf16.mxu0 0
        %6026 = vmatpush2.bf16.msra.mxu0 0
        %6027 = vmatprep.subr.bf16.mxu0 0
        %6028 = vmatpush2.bf16.msra.mxu0 0
        %6029 = vmatprep.subr.bf16.mxu0 0
        %6030 = vmatpush2.bf16.msra.mxu0 0
        %6031 = vmatprep.subr.bf16.mxu0 0
        %6032 = vmatpush2.bf16.msra.mxu0 0
        %6033 = vmatprep.subr.bf16.mxu0 0
        %6034 = vmatpush2.bf16.msra.mxu0 0
        %6035 = vmatprep.subr.bf16.mxu0 0
        %6036 = vmatpush2.bf16.msra.mxu0 0
        %6037 = vmatprep.subr.bf16.mxu0 0
        %6038 = vmatpush2.bf16.msra.mxu0 0
        %6039 = vmatprep.mubr.bf16.mxu0 0
        %6040 = vmatmul.mubr.bf16.gmra.mxu0 %v5716
        %v6041 = vpop.f32.mrf.mxu0
        %v6042 = vadd.f32 %v5765, %v6041
        %v6043 = vpop.f32.mrf.mxu0
        %v6044 = vadd.f32 %v5769, %v6043
        %v6045 = vpop.f32.mrf.mxu0
        %v6046 = vadd.f32 %v5765, %v6045
        %v6047 = vpop.f32.mrf.mxu0
        %v6048 = vadd.f32 %v5769, %v6047
        %6049 = vmatprep.mubr.bf16.mxu0 0
        %6050 = vmatmul.mubr.bf16.gmra.mxu0 %v5717
        %v6051 = vpop.f32.mrf.mxu0
        %v6052 = vadd.f32 %v5765, %v6051
        %v6053 = vpop.f32.mrf.mxu0
        %v6054 = vadd.f32 %v5769, %v6053
        %v6055 = vpop.f32.mrf.mxu0
        %v6056 = vadd.f32 %v5765, %v6055
        %v6057 = vpop.f32.mrf.mxu0
        %v6058 = vadd.f32 %v5769, %v6057
        %6059 = vmatprep.mubr.bf16.mxu0 0
        %6060 = vmatmul.mubr.bf16.gmra.mxu0 %v5718
        %v6061 = vpop.f32.mrf.mxu0
        %v6062 = vadd.f32 %v5765, %v6061
        %v6063 = vpop.f32.mrf.mxu0
        %v6064 = vadd.f32 %v5769, %v6063
        %v6065 = vpop.f32.mrf.mxu0
        %v6066 = vadd.f32 %v5765, %v6065
        %v6067 = vpop.f32.mrf.mxu0
        %v6068 = vadd.f32 %v5769, %v6067
        %6069 = vmatprep.mubr.bf16.mxu0 0
        %6070 = vmatmul.mubr.bf16.gmra.mxu0 %v5719
        %v6071 = vpop.f32.mrf.mxu0
        %v6072 = vadd.f32 %v5765, %v6071
        %v6073 = vpop.f32.mrf.mxu0
        %v6074 = vadd.f32 %v5769, %v6073
        %v6075 = vpop.f32.mrf.mxu0
        %v6076 = vadd.f32 %v5765, %v6075
        %v6077 = vpop.f32.mrf.mxu0
        %v6078 = vadd.f32 %v5769, %v6077
        %6079 = vdwg.mxu0
        %v6080 = vmul.f32 %v5969, -1.702
        %v6081 = vmul.f32 %v5971, -1.702
        %v6082 = vmul.f32 %v6042, -1.702
        %v6083 = vmul.f32 %v6044, -1.702
        %v6084 = vmul.f32 %v5973, -1.702
        %v6085 = vmul.f32 %v5975, -1.702
        %v6086 = vmul.f32 %v6046, -1.702
        %v6087 = vmul.f32 %v6048, -1.702
        %v6088 = vmul.f32 %v5979, -1.702
        %v6089 = vmul.f32 %v5981, -1.702
        %v6090 = vmul.f32 %v6052, -1.702
        %v6091 = vmul.f32 %v6054, -1.702
        %v6092 = vmul.f32 %v5983, -1.702
        %v6093 = vmul.f32 %v5985, -1.702
        %v6094 = vmul.f32 %v6056, -1.702
        %v6095 = vmul.f32 %v6058, -1.702
        %v6096 = vmul.f32 %v5989, -1.702
        %v6097 = vmul.f32 %v5991, -1.702
        %v6098 = vmul.f32 %v6062, -1.702
        %v6099 = vmul.f32 %v6064, -1.702
        %v6100 = vmul.f32 %v5993, -1.702
        %v6101 = vmul.f32 %v5995, -1.702
        %v6102 = vmul.f32 %v6066, -1.702
        %v6103 = vmul.f32 %v6068, -1.702
        %v6104 = vmul.f32 %v5999, -1.702
        %v6105 = vmul.f32 %v6001, -1.702
        %v6106 = vmul.f32 %v6072, -1.702
        %v6107 = vmul.f32 %v6074, -1.702
        %v6108 = vmul.f32 %v6003, -1.702
        %v6109 = vmul.f32 %v6005, -1.702
        %v6110 = vmul.f32 %v6076, -1.702
        %v6111 = vmul.f32 %v6078, -1.702
        %v6112 = vmul.f32 %v6080, 1.442695
        %v6113 = vpow.pop %v6112
        %v6114 = vmul.f32 %v6081, 1.442695
        %v6115 = vpow.pop %v6114
        %v6116 = vmul.f32 %v6082, 1.442695
        %v6117 = vpow.pop %v6116
        %v6118 = vmul.f32 %v6083, 1.442695
        %v6119 = vpow.pop %v6118
        %v6120 = vmul.f32 %v6084, 1.442695
        %v6121 = vpow.pop %v6120
        %v6122 = vmul.f32 %v6085, 1.442695
        %v6123 = vpow.pop %v6122
        %v6124 = vmul.f32 %v6086, 1.442695
        %v6125 = vpow.pop %v6124
        %v6126 = vmul.f32 %v6087, 1.442695
        %v6127 = vpow.pop %v6126
        %v6128 = vmul.f32 %v6088, 1.442695
        %v6129 = vpow.pop %v6128
        %v6130 = vmul.f32 %v6089, 1.442695
        %v6131 = vpow.pop %v6130
        %v6132 = vmul.f32 %v6090, 1.442695
        %v6133 = vpow.pop %v6132
        %v6134 = vmul.f32 %v6091, 1.442695
        %v6135 = vpow.pop %v6134
        %v6136 = vmul.f32 %v6092, 1.442695
        %v6137 = vpow.pop %v6136
        %v6138 = vmul.f32 %v6093, 1.442695
        %v6139 = vpow.pop %v6138
        %v6140 = vmul.f32 %v6094, 1.442695
        %v6141 = vpow.pop %v6140
        %v6142 = vmul.f32 %v6095, 1.442695
        %v6143 = vpow.pop %v6142
        %v6144 = vmul.f32 %v6096, 1.442695
        %v6145 = vpow.pop %v6144
        %v6146 = vmul.f32 %v6097, 1.442695
        %v6147 = vpow.pop %v6146
        %v6148 = vmul.f32 %v6098, 1.442695
        %v6149 = vpow.pop %v6148
        %v6150 = vmul.f32 %v6099, 1.442695
        %v6151 = vpow.pop %v6150
        %v6152 = vmul.f32 %v6100, 1.442695
        %v6153 = vpow.pop %v6152
        %v6154 = vmul.f32 %v6101, 1.442695
        %v6155 = vpow.pop %v6154
        %v6156 = vmul.f32 %v6102, 1.442695
        %v6157 = vpow.pop %v6156
        %v6158 = vmul.f32 %v6103, 1.442695
        %v6159 = vpow.pop %v6158
        %v6160 = vmul.f32 %v6104, 1.442695
        %v6161 = vpow.pop %v6160
        %v6162 = vmul.f32 %v6105, 1.442695
        %v6163 = vpow.pop %v6162
        %v6164 = vmul.f32 %v6106, 1.442695
        %v6165 = vpow.pop %v6164
        %v6166 = vmul.f32 %v6107, 1.442695
        %v6167 = vpow.pop %v6166
        %v6168 = vmul.f32 %v6108, 1.442695
        %v6169 = vpow.pop %v6168
        %v6170 = vmul.f32 %v6109, 1.442695
        %v6171 = vpow.pop %v6170
        %v6172 = vmul.f32 %v6110, 1.442695
        %v6173 = vpow.pop %v6172
        %v6174 = vmul.f32 %v6111, 1.442695
        %v6175 = vpow.pop %v6174
        %v6176 = vadd.f32 %v6113, 1.0
        %v6177 = vadd.f32 %v6115, 1.0
        %v6178 = vadd.f32 %v6117, 1.0
        %v6179 = vadd.f32 %v6119, 1.0
        %v6180 = vadd.f32 %v6121, 1.0
        %v6181 = vadd.f32 %v6123, 1.0
        %v6182 = vadd.f32 %v6125, 1.0
        %v6183 = vadd.f32 %v6127, 1.0
        %v6184 = vadd.f32 %v6129, 1.0
        %v6185 = vadd.f32 %v6131, 1.0
        %v6186 = vadd.f32 %v6133, 1.0
        %v6187 = vadd.f32 %v6135, 1.0
        %v6188 = vadd.f32 %v6137, 1.0
        %v6189 = vadd.f32 %v6139, 1.0
        %v6190 = vadd.f32 %v6141, 1.0
        %v6191 = vadd.f32 %v6143, 1.0
        %v6192 = vadd.f32 %v6145, 1.0
        %v6193 = vadd.f32 %v6147, 1.0
        %v6194 = vadd.f32 %v6149, 1.0
        %v6195 = vadd.f32 %v6151, 1.0
        %v6196 = vadd.f32 %v6153, 1.0
        %v6197 = vadd.f32 %v6155, 1.0
        %v6198 = vadd.f32 %v6157, 1.0
        %v6199 = vadd.f32 %v6159, 1.0
        %v6200 = vadd.f32 %v6161, 1.0
        %v6201 = vadd.f32 %v6163, 1.0
        %v6202 = vadd.f32 %v6165, 1.0
        %v6203 = vadd.f32 %v6167, 1.0
        %v6204 = vadd.f32 %v6169, 1.0
        %v6205 = vadd.f32 %v6171, 1.0
        %v6206 = vadd.f32 %v6173, 1.0
        %v6207 = vadd.f32 %v6175, 1.0
        %v6208 = vrcp.pop %v6176
        %v6209 = vmul.f32 1.0, %v6208
        %v6210 = vrcp.pop %v6177
        %v6211 = vmul.f32 1.0, %v6210
        %v6212 = vrcp.pop %v6178
        %v6213 = vmul.f32 1.0, %v6212
        %v6214 = vrcp.pop %v6179
        %v6215 = vmul.f32 1.0, %v6214
        %v6216 = vrcp.pop %v6180
        %v6217 = vmul.f32 1.0, %v6216
        %v6218 = vrcp.pop %v6181
        %v6219 = vmul.f32 1.0, %v6218
        %v6220 = vrcp.pop %v6182
        %v6221 = vmul.f32 1.0, %v6220
        %v6222 = vrcp.pop %v6183
        %v6223 = vmul.f32 1.0, %v6222
        %v6224 = vrcp.pop %v6184
        %v6225 = vmul.f32 1.0, %v6224
        %v6226 = vrcp.pop %v6185
        %v6227 = vmul.f32 1.0, %v6226
        %v6228 = vrcp.pop %v6186
        %v6229 = vmul.f32 1.0, %v6228
        %v6230 = vrcp.pop %v6187
        %v6231 = vmul.f32 1.0, %v6230
        %v6232 = vrcp.pop %v6188
        %v6233 = vmul.f32 1.0, %v6232
        %v6234 = vrcp.pop %v6189
        %v6235 = vmul.f32 1.0, %v6234
        %v6236 = vrcp.pop %v6190
        %v6237 = vmul.f32 1.0, %v6236
        %v6238 = vrcp.pop %v6191
        %v6239 = vmul.f32 1.0, %v6238
        %v6240 = vrcp.pop %v6192
        %v6241 = vmul.f32 1.0, %v6240
        %v6242 = vrcp.pop %v6193
        %v6243 = vmul.f32 1.0, %v6242
        %v6244 = vrcp.pop %v6194
        %v6245 = vmul.f32 1.0, %v6244
        %v6246 = vrcp.pop %v6195
        %v6247 = vmul.f32 1.0, %v6246
        %v6248 = vrcp.pop %v6196
        %v6249 = vmul.f32 1.0, %v6248
        %v6250 = vrcp.pop %v6197
        %v6251 = vmul.f32 1.0, %v6250
        %v6252 = vrcp.pop %v6198
        %v6253 = vmul.f32 1.0, %v6252
        %v6254 = vrcp.pop %v6199
        %v6255 = vmul.f32 1.0, %v6254
        %v6256 = vrcp.pop %v6200
        %v6257 = vmul.f32 1.0, %v6256
        %v6258 = vrcp.pop %v6201
        %v6259 = vmul.f32 1.0, %v6258
        %v6260 = vrcp.pop %v6202
        %v6261 = vmul.f32 1.0, %v6260
        %v6262 = vrcp.pop %v6203
        %v6263 = vmul.f32 1.0, %v6262
        %v6264 = vrcp.pop %v6204
        %v6265 = vmul.f32 1.0, %v6264
        %v6266 = vrcp.pop %v6205
        %v6267 = vmul.f32 1.0, %v6266
        %v6268 = vrcp.pop %v6206
        %v6269 = vmul.f32 1.0, %v6268
        %v6270 = vrcp.pop %v6207
        %v6271 = vmul.f32 1.0, %v6270
        %v6272 = vmul.f32 %v5969, %v6209
        %v6273 = vmul.f32 %v5971, %v6211
        %v6274 = vmul.f32 %v6042, %v6213
        %v6275 = vmul.f32 %v6044, %v6215
        %v6276 = vmul.f32 %v5973, %v6217
        %v6277 = vmul.f32 %v5975, %v6219
        %v6278 = vmul.f32 %v6046, %v6221
        %v6279 = vmul.f32 %v6048, %v6223
        %v6280 = vmul.f32 %v5979, %v6225
        %v6281 = vmul.f32 %v5981, %v6227
        %v6282 = vmul.f32 %v6052, %v6229
        %v6283 = vmul.f32 %v6054, %v6231
        %v6284 = vmul.f32 %v5983, %v6233
        %v6285 = vmul.f32 %v5985, %v6235
        %v6286 = vmul.f32 %v6056, %v6237
        %v6287 = vmul.f32 %v6058, %v6239
        %v6288 = vmul.f32 %v5989, %v6241
        %v6289 = vmul.f32 %v5991, %v6243
        %v6290 = vmul.f32 %v6062, %v6245
        %v6291 = vmul.f32 %v6064, %v6247
        %v6292 = vmul.f32 %v5993, %v6249
        %v6293 = vmul.f32 %v5995, %v6251
        %v6294 = vmul.f32 %v6066, %v6253
        %v6295 = vmul.f32 %v6068, %v6255
        %v6296 = vmul.f32 %v5999, %v6257
        %v6297 = vmul.f32 %v6001, %v6259
        %v6298 = vmul.f32 %v6072, %v6261
        %v6299 = vmul.f32 %v6074, %v6263
        %v6300 = vmul.f32 %v6003, %v6265
        %v6301 = vmul.f32 %v6005, %v6267
        %v6302 = vmul.f32 %v6076, %v6269
        %v6303 = vmul.f32 %v6078, %v6271
        %v6304 = vpack.c.bf16 %v6276, %v6272
        %v6305 = vpack.c.bf16 %v6277, %v6273
        %v6306 = vpack.c.bf16 %v6278, %v6274
        %v6307 = vpack.c.bf16 %v6279, %v6275
        %v6308 = vpack.c.bf16 %v6284, %v6280
        %v6309 = vpack.c.bf16 %v6285, %v6281
        %v6310 = vpack.c.bf16 %v6286, %v6282
        %v6311 = vpack.c.bf16 %v6287, %v6283
        %v6312 = vpack.c.bf16 %v6292, %v6288
        %v6313 = vpack.c.bf16 %v6293, %v6289
        %v6314 = vpack.c.bf16 %v6294, %v6290
        %v6315 = vpack.c.bf16 %v6295, %v6291
        %v6316 = vpack.c.bf16 %v6300, %v6296
        %v6317 = vpack.c.bf16 %v6301, %v6297
        %v6318 = vpack.c.bf16 %v6302, %v6298
        %v6319 = vpack.c.bf16 %v6303, %v6299
        %v6320 = vld [vmem:[%s887] sm:$0xf]
        %v6321 = vld [vmem:[%s887 + $0x4] sm:$0xf]
        %v6322 = vld [vmem:[%s887 + $0x8] sm:$0xf]
        %v6323 = vld [vmem:[%s887 + $0xc] sm:$0xf]
        %v6324 = vld [vmem:[%s887 + $0x10] sm:$0xf]
        %v6325 = vld [vmem:[%s887 + $0x14] sm:$0xf]
        %v6326 = vld [vmem:[%s887 + $0x18] sm:$0xf]
        %v6327 = vld [vmem:[%s887 + $0x1c] sm:$0xf]
        %v6328 = vld [vmem:[%s887 + $0x20] sm:$0xf]
        %v6329 = vld [vmem:[%s887 + $0x24] sm:$0xf]
        %v6330 = vld [vmem:[%s887 + $0x28] sm:$0xf]
        %v6331 = vld [vmem:[%s887 + $0x2c] sm:$0xf]
        %v6332 = vld [vmem:[%s887 + $0x30] sm:$0xf]
        %v6333 = vld [vmem:[%s887 + $0x34] sm:$0xf]
        %v6334 = vld [vmem:[%s887 + $0x38] sm:$0xf]
        %v6335 = vld [vmem:[%s887 + $0x3c] sm:$0xf]
        %v6336 = vld [vmem:[%s887 + $0x40] sm:$0xf]
        %v6337 = vld [vmem:[%s887 + $0x44] sm:$0xf]
        %v6338 = vld [vmem:[%s887 + $0x48] sm:$0xf]
        %v6339 = vld [vmem:[%s887 + $0x4c] sm:$0xf]
        %v6340 = vld [vmem:[%s887 + $0x50] sm:$0xf]
        %v6341 = vld [vmem:[%s887 + $0x54] sm:$0xf]
        %v6342 = vld [vmem:[%s887 + $0x58] sm:$0xf]
        %v6343 = vld [vmem:[%s887 + $0x5c] sm:$0xf]
        %v6344 = vld [vmem:[%s887 + $0x60] sm:$0xf]
        %v6345 = vld [vmem:[%s887 + $0x64] sm:$0xf]
        %v6346 = vld [vmem:[%s887 + $0x68] sm:$0xf]
        %v6347 = vld [vmem:[%s887 + $0x6c] sm:$0xf]
        %v6348 = vld [vmem:[%s887 + $0x70] sm:$0xf]
        %v6349 = vld [vmem:[%s887 + $0x74] sm:$0xf]
        %v6350 = vld [vmem:[%s887 + $0x78] sm:$0xf]
        %v6351 = vld [vmem:[%s887 + $0x7c] sm:$0xf]
        %v6352 = vld [vmem:[%s887 + $0x80] sm:$0xf]
        %v6353 = vld [vmem:[%s887 + $0x84] sm:$0xf]
        %v6354 = vld [vmem:[%s887 + $0x88] sm:$0xf]
        %v6355 = vld [vmem:[%s887 + $0x8c] sm:$0xf]
        %v6356 = vld [vmem:[%s887 + $0x90] sm:$0xf]
        %v6357 = vld [vmem:[%s887 + $0x94] sm:$0xf]
        %v6358 = vld [vmem:[%s887 + $0x98] sm:$0xf]
        %v6359 = vld [vmem:[%s887 + $0x9c] sm:$0xf]
        %v6360 = vld [vmem:[%s887 + $0xa0] sm:$0xf]
        %v6361 = vld [vmem:[%s887 + $0xa4] sm:$0xf]
        %v6362 = vld [vmem:[%s887 + $0xa8] sm:$0xf]
        %v6363 = vld [vmem:[%s887 + $0xac] sm:$0xf]
        %v6364 = vld [vmem:[%s887 + $0xb0] sm:$0xf]
        %v6365 = vld [vmem:[%s887 + $0xb4] sm:$0xf]
        %v6366 = vld [vmem:[%s887 + $0xb8] sm:$0xf]
        %v6367 = vld [vmem:[%s887 + $0xbc] sm:$0xf]
        %v6368 = vld [vmem:[%s887 + $0xc0] sm:$0xf]
        %v6369 = vld [vmem:[%s887 + $0xc4] sm:$0xf]
        %v6370 = vld [vmem:[%s887 + $0xc8] sm:$0xf]
        %v6371 = vld [vmem:[%s887 + $0xcc] sm:$0xf]
        %v6372 = vld [vmem:[%s887 + $0xd0] sm:$0xf]
        %v6373 = vld [vmem:[%s887 + $0xd4] sm:$0xf]
        %v6374 = vld [vmem:[%s887 + $0xd8] sm:$0xf]
        %v6375 = vld [vmem:[%s887 + $0xdc] sm:$0xf]
        %v6376 = vld [vmem:[%s887 + $0xe0] sm:$0xf]
        %v6377 = vld [vmem:[%s887 + $0xe4] sm:$0xf]
        %v6378 = vld [vmem:[%s887 + $0xe8] sm:$0xf]
        %v6379 = vld [vmem:[%s887 + $0xec] sm:$0xf]
        %v6380 = vld [vmem:[%s887 + $0xf0] sm:$0xf]
        %v6381 = vld [vmem:[%s887 + $0xf4] sm:$0xf]
        %v6382 = vld [vmem:[%s887 + $0xf8] sm:$0xf]
        %v6383 = vld [vmem:[%s887 + $0xfc] sm:$0xf]
        %v6384 = vld [vmem:[%s890] sm:$0x1]
        %v6386 = vlaneseq
        %v6387 = vshrl.u32 %v6386, 7
        %v6388 = vsub.s32 0, %v6387
        %v6389 = vrot.slane %v6384, %v6388
        %v6455 = vunpack.c.l.b16 %v6320
        %v6456 = vunpack.c.l.b16 %v6321
        %v6457 = vunpack.c.l.b16 %v6322
        %v6458 = vunpack.c.l.b16 %v6323
        %v6459 = vunpack.c.l.b16 %v6324
        %v6460 = vunpack.c.l.b16 %v6325
        %v6461 = vunpack.c.l.b16 %v6326
        %v6462 = vunpack.c.l.b16 %v6327
        %v6463 = vunpack.c.l.b16 %v6328
        %v6464 = vunpack.c.l.b16 %v6329
        %v6465 = vunpack.c.l.b16 %v6330
        %v6466 = vunpack.c.l.b16 %v6331
        %v6467 = vunpack.c.l.b16 %v6332
        %v6468 = vunpack.c.l.b16 %v6333
        %v6469 = vunpack.c.l.b16 %v6334
        %v6470 = vunpack.c.l.b16 %v6335
        %v6471 = vunpack.c.l.b16 %v6336
        %v6472 = vunpack.c.l.b16 %v6337
        %v6473 = vunpack.c.l.b16 %v6338
        %v6474 = vunpack.c.l.b16 %v6339
        %v6475 = vunpack.c.l.b16 %v6340
        %v6476 = vunpack.c.l.b16 %v6341
        %v6477 = vunpack.c.l.b16 %v6342
        %v6478 = vunpack.c.l.b16 %v6343
        %v6479 = vunpack.c.l.b16 %v6344
        %v6480 = vunpack.c.l.b16 %v6345
        %v6481 = vunpack.c.l.b16 %v6346
        %v6482 = vunpack.c.l.b16 %v6347
        %v6483 = vunpack.c.l.b16 %v6348
        %v6484 = vunpack.c.l.b16 %v6349
        %v6485 = vunpack.c.l.b16 %v6350
        %v6486 = vunpack.c.l.b16 %v6351
        %v6487 = vunpack.c.l.b16 %v6352
        %v6488 = vunpack.c.l.b16 %v6353
        %v6489 = vunpack.c.l.b16 %v6354
        %v6490 = vunpack.c.l.b16 %v6355
        %v6491 = vunpack.c.l.b16 %v6356
        %v6492 = vunpack.c.l.b16 %v6357
        %v6493 = vunpack.c.l.b16 %v6358
        %v6494 = vunpack.c.l.b16 %v6359
        %v6495 = vunpack.c.l.b16 %v6360
        %v6496 = vunpack.c.l.b16 %v6361
        %v6497 = vunpack.c.l.b16 %v6362
        %v6498 = vunpack.c.l.b16 %v6363
        %v6499 = vunpack.c.l.b16 %v6364
        %v6500 = vunpack.c.l.b16 %v6365
        %v6501 = vunpack.c.l.b16 %v6366
        %v6502 = vunpack.c.l.b16 %v6367
        %v6503 = vunpack.c.l.b16 %v6368
        %v6504 = vunpack.c.l.b16 %v6369
        %v6505 = vunpack.c.l.b16 %v6370
        %v6506 = vunpack.c.l.b16 %v6371
        %v6507 = vunpack.c.l.b16 %v6372
        %v6508 = vunpack.c.l.b16 %v6373
        %v6509 = vunpack.c.l.b16 %v6374
        %v6510 = vunpack.c.l.b16 %v6375
        %v6511 = vunpack.c.l.b16 %v6376
        %v6512 = vunpack.c.l.b16 %v6377
        %v6513 = vunpack.c.l.b16 %v6378
        %v6514 = vunpack.c.l.b16 %v6379
        %v6515 = vunpack.c.l.b16 %v6380
        %v6516 = vunpack.c.l.b16 %v6381
        %v6517 = vunpack.c.l.b16 %v6382
        %v6518 = vunpack.c.l.b16 %v6383
        %v6519 = vpack.c.b16 %v6456, %v6455
        %v6520 = vpack.c.b16 %v6458, %v6457
        %v6521 = vpack.c.b16 %v6460, %v6459
        %v6522 = vpack.c.b16 %v6462, %v6461
        %v6523 = vpack.c.b16 %v6464, %v6463
        %v6524 = vpack.c.b16 %v6466, %v6465
        %v6525 = vpack.c.b16 %v6468, %v6467
        %v6526 = vpack.c.b16 %v6470, %v6469
        %v6527 = vpack.c.b16 %v6472, %v6471
        %v6528 = vpack.c.b16 %v6474, %v6473
        %v6529 = vpack.c.b16 %v6476, %v6475
        %v6530 = vpack.c.b16 %v6478, %v6477
        %v6531 = vpack.c.b16 %v6480, %v6479
        %v6532 = vpack.c.b16 %v6482, %v6481
        %v6533 = vpack.c.b16 %v6484, %v6483
        %v6534 = vpack.c.b16 %v6486, %v6485
        %v6535 = vpack.c.b16 %v6488, %v6487
        %v6536 = vpack.c.b16 %v6490, %v6489
        %v6537 = vpack.c.b16 %v6492, %v6491
        %v6538 = vpack.c.b16 %v6494, %v6493
        %v6539 = vpack.c.b16 %v6496, %v6495
        %v6540 = vpack.c.b16 %v6498, %v6497
        %v6541 = vpack.c.b16 %v6500, %v6499
        %v6542 = vpack.c.b16 %v6502, %v6501
        %v6543 = vpack.c.b16 %v6504, %v6503
        %v6544 = vpack.c.b16 %v6506, %v6505
        %v6545 = vpack.c.b16 %v6508, %v6507
        %v6546 = vpack.c.b16 %v6510, %v6509
        %v6547 = vpack.c.b16 %v6512, %v6511
        %v6548 = vpack.c.b16 %v6514, %v6513
        %v6549 = vpack.c.b16 %v6516, %v6515
        %v6550 = vpack.c.b16 %v6518, %v6517
        %6583 = vmatprep.subr.bf16.mxu0 0
        %6584 = vmatpush1.bf16.msra.mxu0 %v6526
        %6585 = vmatprep.subr.bf16.mxu0 0
        %6586 = vmatpush1.bf16.msra.mxu0 %v6525
        %6587 = vmatprep.subr.bf16.mxu0 0
        %6588 = vmatpush1.bf16.msra.mxu0 %v6524
        %6589 = vmatprep.subr.bf16.mxu0 0
        %6590 = vmatpush1.bf16.msra.mxu0 %v6523
        %6591 = vmatprep.subr.bf16.mxu0 0
        %6592 = vmatpush1.bf16.msra.mxu0 %v6522
        %6593 = vmatprep.subr.bf16.mxu0 0
        %6594 = vmatpush1.bf16.msra.mxu0 %v6521
        %6595 = vmatprep.subr.bf16.mxu0 0
        %6596 = vmatpush1.bf16.msra.mxu0 %v6520
        %6597 = vmatprep.subr.bf16.mxu0 0
        %6598 = vmatpush1.bf16.msra.mxu0 %v6519
        %6599 = vmatprep.subr.bf16.mxu0 0
        %6600 = vmatpush2.bf16.msra.mxu0 %v6534
        %6601 = vmatprep.subr.bf16.mxu0 0
        %6602 = vmatpush2.bf16.msra.mxu0 %v6533
        %6603 = vmatprep.subr.bf16.mxu0 0
        %6604 = vmatpush2.bf16.msra.mxu0 %v6532
        %6605 = vmatprep.subr.bf16.mxu0 0
        %6606 = vmatpush2.bf16.msra.mxu0 %v6531
        %6607 = vmatprep.subr.bf16.mxu0 0
        %6608 = vmatpush2.bf16.msra.mxu0 %v6530
        %6609 = vmatprep.subr.bf16.mxu0 0
        %6610 = vmatpush2.bf16.msra.mxu0 %v6529
        %6611 = vmatprep.subr.bf16.mxu0 0
        %6612 = vmatpush2.bf16.msra.mxu0 %v6528
        %6613 = vmatprep.subr.bf16.mxu0 0
        %6614 = vmatpush2.bf16.msra.mxu0 %v6527
        %6615 = vmatprep.mubr.bf16.mxu0 %v6305
        %6616 = vmatmul.mubr.bf16.gmra.mxu0 %v6304
        %v6617 = vpop.f32.mrf.mxu0
        %v6618 = vadd.f32 %v6389, %v6617
        %v6619 = vpop.f32.mrf.mxu0
        %v6620 = vpop.f32.mrf.mxu0
        %v6621 = vadd.f32 %v6389, %v6620
        %v6622 = vpop.f32.mrf.mxu0
        %6623 = vmatprep.mubr.bf16.mxu0 %v6309
        %6624 = vmatmul.mubr.bf16.gmra.mxu0 %v6308
        %v6625 = vpop.f32.mrf.mxu0
        %v6626 = vadd.f32 %v6389, %v6625
        %v6627 = vpop.f32.mrf.mxu0
        %v6628 = vpop.f32.mrf.mxu0
        %v6629 = vadd.f32 %v6389, %v6628
        %v6630 = vpop.f32.mrf.mxu0
        %6631 = vmatprep.mubr.bf16.mxu0 %v6313
        %6632 = vmatmul.mubr.bf16.gmra.mxu0 %v6312
        %v6633 = vpop.f32.mrf.mxu0
        %v6634 = vadd.f32 %v6389, %v6633
        %v6635 = vpop.f32.mrf.mxu0
        %v6636 = vpop.f32.mrf.mxu0
        %v6637 = vadd.f32 %v6389, %v6636
        %v6638 = vpop.f32.mrf.mxu0
        %6639 = vmatprep.mubr.bf16.mxu0 %v6317
        %6640 = vmatmul.mubr.bf16.gmra.mxu0 %v6316
        %v6641 = vpop.f32.mrf.mxu0
        %v6642 = vadd.f32 %v6389, %v6641
        %v6643 = vpop.f32.mrf.mxu0
        %v6644 = vpop.f32.mrf.mxu0
        %v6645 = vadd.f32 %v6389, %v6644
        %v6646 = vpop.f32.mrf.mxu0
        %6647 = vdwg.mxu0
        %6648 = vmatprep.subr.bf16.mxu0 0
        %6649 = vmatpush1.bf16.msra.mxu0 %v6542
        %6650 = vmatprep.subr.bf16.mxu0 0
        %6651 = vmatpush1.bf16.msra.mxu0 %v6541
        %6652 = vmatprep.subr.bf16.mxu0 0
        %6653 = vmatpush1.bf16.msra.mxu0 %v6540
        %6654 = vmatprep.subr.bf16.mxu0 0
        %6655 = vmatpush1.bf16.msra.mxu0 %v6539
        %6656 = vmatprep.subr.bf16.mxu0 0
        %6657 = vmatpush1.bf16.msra.mxu0 %v6538
        %6658 = vmatprep.subr.bf16.mxu0 0
        %6659 = vmatpush1.bf16.msra.mxu0 %v6537
        %6660 = vmatprep.subr.bf16.mxu0 0
        %6661 = vmatpush1.bf16.msra.mxu0 %v6536
        %6662 = vmatprep.subr.bf16.mxu0 0
        %6663 = vmatpush1.bf16.msra.mxu0 %v6535
        %6664 = vmatprep.subr.bf16.mxu0 0
        %6665 = vmatpush2.bf16.msra.mxu0 %v6550
        %6666 = vmatprep.subr.bf16.mxu0 0
        %6667 = vmatpush2.bf16.msra.mxu0 %v6549
        %6668 = vmatprep.subr.bf16.mxu0 0
        %6669 = vmatpush2.bf16.msra.mxu0 %v6548
        %6670 = vmatprep.subr.bf16.mxu0 0
        %6671 = vmatpush2.bf16.msra.mxu0 %v6547
        %6672 = vmatprep.subr.bf16.mxu0 0
        %6673 = vmatpush2.bf16.msra.mxu0 %v6546
        %6674 = vmatprep.subr.bf16.mxu0 0
        %6675 = vmatpush2.bf16.msra.mxu0 %v6545
        %6676 = vmatprep.subr.bf16.mxu0 0
        %6677 = vmatpush2.bf16.msra.mxu0 %v6544
        %6678 = vmatprep.subr.bf16.mxu0 0
        %6679 = vmatpush2.bf16.msra.mxu0 %v6543
        %6680 = vmatprep.mubr.bf16.mxu0 %v6307
        %6681 = vmatmul.mubr.bf16.gmra.mxu0 %v6306
        %v6682 = vpop.f32.mrf.mxu0
        %v6683 = vadd.f32 %v6618, %v6682
        %v6684 = vpop.f32.mrf.mxu0
        %v6685 = vpop.f32.mrf.mxu0
        %v6686 = vadd.f32 %v6621, %v6685
        %v6687 = vpop.f32.mrf.mxu0
        %6688 = vmatprep.mubr.bf16.mxu0 %v6311
        %6689 = vmatmul.mubr.bf16.gmra.mxu0 %v6310
        %v6690 = vpop.f32.mrf.mxu0
        %v6691 = vadd.f32 %v6626, %v6690
        %v6692 = vpop.f32.mrf.mxu0
        %v6693 = vpop.f32.mrf.mxu0
        %v6694 = vadd.f32 %v6629, %v6693
        %v6695 = vpop.f32.mrf.mxu0
        %6696 = vmatprep.mubr.bf16.mxu0 %v6315
        %6697 = vmatmul.mubr.bf16.gmra.mxu0 %v6314
        %v6698 = vpop.f32.mrf.mxu0
        %v6699 = vadd.f32 %v6634, %v6698
        %v6700 = vpop.f32.mrf.mxu0
        %v6701 = vpop.f32.mrf.mxu0
        %v6702 = vadd.f32 %v6637, %v6701
        %v6703 = vpop.f32.mrf.mxu0
        %6704 = vmatprep.mubr.bf16.mxu0 %v6319
        %6705 = vmatmul.mubr.bf16.gmra.mxu0 %v6318
        %v6706 = vpop.f32.mrf.mxu0
        %v6707 = vadd.f32 %v6642, %v6706
        %v6708 = vpop.f32.mrf.mxu0
        %v6709 = vpop.f32.mrf.mxu0
        %v6710 = vadd.f32 %v6645, %v6709
        %v6711 = vpop.f32.mrf.mxu0
        %6712 = vdwg.mxu0
        %v6713 = vadd.f32 %v5590, %v6683
        %v6714 = vadd.f32 %v5591, %v6686
        %v6715 = vadd.f32 %v5592, %v6691
        %v6716 = vadd.f32 %v5593, %v6694
        %v6717 = vadd.f32 %v5594, %v6699
        %v6718 = vadd.f32 %v5595, %v6702
        %v6719 = vadd.f32 %v5596, %v6707
        %v6720 = vadd.f32 %v5597, %v6710
        %6721 = vst [vmem:[#allocation2] sm:$0xff] %v6713
        %6722 = vst [vmem:[#allocation2 + $0x8] sm:$0xff] %v6714
        %6723 = vst [vmem:[#allocation2 + $0x10] sm:$0xff] %v6715
        %6724 = vst [vmem:[#allocation2 + $0x18] sm:$0xff] %v6716
        %6725 = vst [vmem:[#allocation2 + $0x20] sm:$0xff] %v6717
        %6726 = vst [vmem:[#allocation2 + $0x28] sm:$0xff] %v6718
        %6727 = vst [vmem:[#allocation2 + $0x30] sm:$0xff] %v6719
        %6728 = vst [vmem:[#allocation2 + $0x38] sm:$0xff] %v6720
        %p6729 = scmp.eq.s32.totalorder %s41, 1
        // Predicated region
        $region113: #{clip_image_features.1} parent=107 // pred_check
          %p6730 = pneg %p6729
        $region114: #{clip_image_features.1} parent=107 // pred_check_branch
          %6732 = sbr.rel (%p6730) target = $region116
        $region115: #{clip_image_features.1} parent=107 // pred_region
          %v6733 = vld [vmem:[%s19] sm:$0x1]
          %v6734 = vld [vmem:[%s20] sm:$0x1]
          %vm6735 = vcmask 1040384
          %v6736 = vsel %vm6735, %v6713, 0.0
          %6737 = vadd.xlane.f32.xlu0 %v6736
          %v6738 = vpop.xlane.xlu0 %6737
          %v6739 = vmul.f32 %v6738, %v3724
          %v6740 = vsub.f32 %v6713, %v6739
          %v6741 = vmul.f32 %v6740, %v6740
          %v6742 = vsel %vm6735, %v6741, 0.0
          %6743 = vadd.xlane.f32.xlu0 %v6742
          %v6744 = vpop.xlane.xlu0 %6743
          %v6745 = vmul.f32 %v6744, %v3724
          %v6746 = vadd.f32 %v6745, 1e-05
          %v6747 = vrsqrt.pop %v6746
          %v6748 = vmul.f32 %v6740, %v6747
          %v6749 = vmul.f32 %v6748, %v6733
          %v6750 = vadd.f32 %v6749, %v6734
          %v6751 = vpack.c.bf16 %v6750, %v6750
          %v6752 = vld [vmem:[%s21] sm:$0xf]
          %v6753 = vld [vmem:[%s21 + $0x4] sm:$0xf]
          %v6754 = vld [vmem:[%s21 + $0x8] sm:$0xf]
          %v6755 = vld [vmem:[%s21 + $0xc] sm:$0xf]
          %v6756 = vld [vmem:[%s21 + $0x10] sm:$0xf]
          %v6757 = vld [vmem:[%s21 + $0x14] sm:$0xf]
          %v6758 = vld [vmem:[%s21 + $0x18] sm:$0xf]
          %v6759 = vld [vmem:[%s21 + $0x1c] sm:$0xf]
          %v6760 = vld [vmem:[%s21 + $0x20] sm:$0xf]
          %v6761 = vld [vmem:[%s21 + $0x24] sm:$0xf]
          %v6762 = vld [vmem:[%s21 + $0x28] sm:$0xf]
          %v6763 = vld [vmem:[%s21 + $0x2c] sm:$0xf]
          %v6764 = vld [vmem:[%s21 + $0x30] sm:$0xf]
          %v6765 = vld [vmem:[%s21 + $0x34] sm:$0xf]
          %v6766 = vld [vmem:[%s21 + $0x38] sm:$0xf]
          %v6767 = vld [vmem:[%s21 + $0x3c] sm:$0xf]
          %v6784 = vunpack.c.l.b16 %v6752
          %v6785 = vunpack.c.l.b16 %v6753
          %v6786 = vunpack.c.l.b16 %v6754
          %v6787 = vunpack.c.l.b16 %v6755
          %v6788 = vunpack.c.l.b16 %v6756
          %v6789 = vunpack.c.l.b16 %v6757
          %v6790 = vunpack.c.l.b16 %v6758
          %v6791 = vunpack.c.l.b16 %v6759
          %v6792 = vunpack.c.l.b16 %v6760
          %v6793 = vunpack.c.l.b16 %v6761
          %v6794 = vunpack.c.l.b16 %v6762
          %v6795 = vunpack.c.l.b16 %v6763
          %v6796 = vunpack.c.l.b16 %v6764
          %v6797 = vunpack.c.l.b16 %v6765
          %v6798 = vunpack.c.l.b16 %v6766
          %v6799 = vunpack.c.l.b16 %v6767
          %v6800 = vpack.c.b16 %v6785, %v6784
          %v6801 = vpack.c.b16 %v6787, %v6786
          %v6802 = vpack.c.b16 %v6789, %v6788
          %v6803 = vpack.c.b16 %v6791, %v6790
          %v6804 = vpack.c.b16 %v6793, %v6792
          %v6805 = vpack.c.b16 %v6795, %v6794
          %v6806 = vpack.c.b16 %v6797, %v6796
          %v6807 = vpack.c.b16 %v6799, %v6798
          %6816 = vmatprep.subr.bf16.mxu0 0
          %6817 = vmatpush1.bf16.msra.mxu0 %v6807
          %6818 = vmatprep.subr.bf16.mxu0 0
          %6819 = vmatpush1.bf16.msra.mxu0 %v6806
          %6820 = vmatprep.subr.bf16.mxu0 0
          %6821 = vmatpush1.bf16.msra.mxu0 %v6805
          %6822 = vmatprep.subr.bf16.mxu0 0
          %6823 = vmatpush1.bf16.msra.mxu0 %v6804
          %6824 = vmatprep.subr.bf16.mxu0 0
          %6825 = vmatpush1.bf16.msra.mxu0 %v6803
          %6826 = vmatprep.subr.bf16.mxu0 0
          %6827 = vmatpush1.bf16.msra.mxu0 %v6802
          %6828 = vmatprep.subr.bf16.mxu0 0
          %6829 = vmatpush1.bf16.msra.mxu0 %v6801
          %6830 = vmatprep.subr.bf16.mxu0 0
          %6831 = vmatpush1.bf16.msra.mxu0 %v6800
          %6832 = vmatprep.subr.bf16.mxu0 0
          %6833 = vmatpush2.bf16.msra.mxu0 0
          %6834 = vmatprep.subr.bf16.mxu0 0
          %6835 = vmatpush2.bf16.msra.mxu0 0
          %6836 = vmatprep.subr.bf16.mxu0 0
          %6837 = vmatpush2.bf16.msra.mxu0 0
          %6838 = vmatprep.subr.bf16.mxu0 0
          %6839 = vmatpush2.bf16.msra.mxu0 0
          %6840 = vmatprep.subr.bf16.mxu0 0
          %6841 = vmatpush2.bf16.msra.mxu0 0
          %6842 = vmatprep.subr.bf16.mxu0 0
          %6843 = vmatpush2.bf16.msra.mxu0 0
          %6844 = vmatprep.subr.bf16.mxu0 0
          %6845 = vmatpush2.bf16.msra.mxu0 0
          %6846 = vmatprep.subr.bf16.mxu0 0
          %6847 = vmatpush2.bf16.msra.mxu0 0
          %6848 = vmatprep.mubr.bf16.mxu0 0
          %6849 = vmatmul.mubr.bf16.gmra.mxu0 %v6751
          %v6850 = vpop.f32.mrf.mxu0
          %v6851 = vadd.f32 0.0, %v6850
          %v6852 = vpop.f32.mrf.mxu0
          %v6853 = vpop.f32.mrf.mxu0
          %v6854 = vpop.f32.mrf.mxu0
          %6855 = vdwg.mxu0
          %vm6856 = vcmask 516096
          %6857 = vst.msk [vmem:[%s839] sm:$0x1] %vm6856, %v6851
        $region116: #{clip_image_features.1} parent=107 // pred_fallthru
          _
        %s6858 = sand.u32 %s583, 1
        %s6859 = scalar_lea.sflag [#allocation4], %s6858
        %s6860 = sand.u32 %s583, 1
        %s6861 = scalar_lea.vmem [#allocation3], %s6860
        // Predicated region
        $region117: #{clip_image_features.1} parent=107 // pred_check
          %p6862 = pneg %p593
        $region118: #{clip_image_features.1} parent=107 // pred_check_branch
          %6864 = sbr.rel (%p6862) target = $region120
        $region119: #{clip_image_features.1} parent=107 // pred_region
          %s6866 = ssub.s32 16, 16
          %6867 = vsyncadd %s6859, %s6866
          %s6868 = smul.addr %s40, 16
          %s6869 = scalar_lea.hbm %s22, %s6868
          %s6871 = sshll.u32 %s6861, 4
          %s6872 = int_to_ptr.vmem [resolvable:$true] %s6871
          %6874 = dma.vmem_to_hbm [thread:$0]  %s6872, 16, %s6869, %s6859
        $region120: #{clip_image_features.1} parent=107 // pred_fallthru
          _
      $region108: #{clip_image_features.1} parent=5 // pred_fallthru
        _
      %p6875 = scmp.le.s32.totalorder 2, %s31
      // Predicated region
      $region121: #{clip_image_features.1} parent=5 // pred_check
        %p6876 = pneg %p6875
      $region122: #{clip_image_features.1} parent=5 // pred_check_branch
        %6878 = sbr.rel (%p6876) target = $region124
      $region123: #{clip_image_features.1} parent=5 // pred_region
        %s6879 = ssub.s32 %s31, 2
        // Predicated region
        $region125: #{clip_image_features.1} parent=123 // pred_check
          %p6880 = pneg %p599
        $region126: #{clip_image_features.1} parent=123 // pred_check_branch
          %6882 = sbr.rel (%p6880) target = $region128
        $region127: #{clip_image_features.1} parent=123 // pred_region
          %s6883 = sand.u32 %s584, 1
          %s6884 = scalar_lea.sflag [#allocation4], %s6883
          %s6885 = sand.u32 %s584, 1
          %s6886 = scalar_lea.vmem [#allocation3], %s6885
          %6887 = dma.done %s6884, 16
        $region128: #{clip_image_features.1} parent=123 // pred_fallthru
          _
      $region124: #{clip_image_features.1} parent=5 // pred_fallthru
        _
    $region6: #{clip_image_features.1} parent=1 // loop_footer
      %s35 = sadd.s32 1, %s31
    $region7: #{clip_image_features.1} parent=1 // loop_footer_branch
      %30 = sbr.rel target = $region3
    $region8: #{clip_image_features.1} parent=1 // loop_exit
      _
    %6888 = vsyncpa [#allocation4], 1
    %s6889 = scalar_lea.sflag [#allocation4], 1
    %6890 = vsyncpa %s6889, 1

</llo_original>
